<compile_context>
chip_gen: v6e
topology: v6e:2x2x1
jax: 0.10.0
libtpu: 0.0.40
codegen_flags: <defaults>
</compile_context>

<pallas_src>
import functools

import jax
import jax.numpy as jnp
from jax.experimental import pallas as pl
from jax.experimental.pallas import tpu as pltpu

_LANE = 128  # TPU lane width


def _res2d_kernel(x_ref, hpos_ref, wpos_ref, gamma_ref, beta_ref, w_ref, b_ref,
                  o_ref, *, H, W, K, pad_lo, eps):
    """Fused BN->ReLU->conv (x2, shared weights) + residual, lane-dense layout.

    x_ref:     (M, Cp)        f32  input, M = N*H*W rows, Cp = padded channels
    hpos_ref:  (M, 1)         i32  h coordinate of each flat row
    wpos_ref:  (M, 1)         i32  w coordinate of each flat row
    gamma_ref: (1, Cp)        f32  BN scale   (zero in padded lanes)
    beta_ref:  (1, Cp)        f32  BN shift   (zero in padded lanes)
    w_ref:     (K*K*Cp, Cp)   f32  im2col-flattened conv weight (zero-padded)
    b_ref:     (1, Cp)        f32  conv bias  (zero in padded lanes)
    o_ref:     (M, Cp)        f32  output
    """
    M, Cp = x_ref.shape
    inv_m = 1.0 / float(M)

    hp = hpos_ref[...]
    wp = wpos_ref[...]
    gamma = gamma_ref[...]
    beta = beta_ref[...]
    bias = b_ref[...]
    wmat = w_ref[...]

    def bn_relu(v):
        # One-pass batch statistics: sum and sum-of-squares from one read of v.
        mean = jnp.sum(v, axis=0, keepdims=True) * inv_m
        ex2 = jnp.sum(v * v, axis=0, keepdims=True) * inv_m
        var = jnp.maximum(ex2 - mean * mean, 0.0)      # biased (train-mode) var
        scale = gamma * jax.lax.rsqrt(var + eps)
        shift = beta - mean * scale
        return jnp.maximum(v * scale + shift, 0.0)     # folded BN + ReLU

    def conv(v):
        # Column (kw) shifts: the only non-8-aligned row shifts; do them once.
        shifted_w = []
        for kw in range(K):
            dw = kw - pad_lo
            if dw == 0:
                shifted_w.append(v)
            else:
                t = jnp.roll(v, -dw, axis=0)           # out[m] = v[m + dw]
                ok = (wp + dw >= 0) & (wp + dw < W)
                shifted_w.append(jnp.where(ok, t, 0.0))
        # Row (kh) shifts are whole rows (dh*W) -> sublane aligned for W%8==0.
        cols = []
        for kh in range(K):
            dh = kh - pad_lo
            for kw in range(K):
                t = shifted_w[kw]
                if dh != 0:
                    t = jnp.roll(t, -dh * W, axis=0)   # out[m] = t[m + dh*W]
                    ok = (hp + dh >= 0) & (hp + dh < H)
                    t = jnp.where(ok, t, 0.0)
                cols.append(t)
        # im2col patch: lane-axis concat at 128-aligned offsets, then a single
        # (M, K*K*Cp) x (K*K*Cp, Cp) MXU contraction.  Bias added once.
        patch = jnp.concatenate(cols, axis=1)
        return jnp.dot(patch, wmat, preferred_element_type=jnp.float32) + bias

    x1 = conv(bn_relu(x_ref[...]))
    x2 = conv(bn_relu(x1))
    o_ref[...] = (x2 + x_ref[...]).astype(o_ref.dtype)  # residual, lane-dense store


def res2d_pallas(x_nchw, gamma, beta, w_torch, bias, kernel_size, eps=1e-5):
    """x_nchw: (N, C, H, W); w_torch: (Cout, Cin, K, K) — PyTorch conventions."""
    N, C, H, W = x_nchw.shape
    K = kernel_size
    k = (K - 1) // 2                       # pad_lo; ZeroPad2d((k, k_, k, k_)) is
    M = N * H * W                          # handled implicitly by the tap masks.
    Cp = ((C + _LANE - 1) // _LANE) * _LANE

    # Lane-dense activations: NCHW -> NHWC -> (M, Cp) with zero-padded channels.
    x_nhwc = jnp.transpose(x_nchw, (0, 2, 3, 1)).astype(jnp.float32)
    x2d = jnp.pad(x_nhwc, ((0, 0), (0, 0), (0, 0), (0, Cp - C))).reshape(M, Cp)

    # im2col-flattened weight: (Cout, Cin, K, K) -> (K, K, Cin, Cout) -> pad
    # channels -> (K*K*Cp, Cp).  Row order (kh, kw, ci) matches the patch concat.
    w_kkcc = jnp.transpose(w_torch, (2, 3, 1, 0)).astype(jnp.float32)
    w_kkcc = jnp.pad(w_kkcc, ((0, 0), (0, 0), (0, Cp - C), (0, Cp - C)))
    w2d = w_kkcc.reshape(K * K * Cp, Cp)

    def pad_vec(v):
        return jnp.pad(v.astype(jnp.float32), (0, Cp - C)).reshape(1, Cp)

    gamma2, beta2, bias2 = pad_vec(gamma), pad_vec(beta), pad_vec(bias)

    # Spatial coordinates of each flat row (computed host/XLA-side; avoids
    # vector integer div/mod inside the kernel).
    rows = jnp.arange(M, dtype=jnp.int32)
    w_pos = (rows % W).reshape(M, 1)
    h_pos = ((rows // W) % H).reshape(M, 1)

    kernel = functools.partial(_res2d_kernel, H=H, W=W, K=K, pad_lo=k, eps=eps)
    out2d = pl.pallas_call(
        kernel,
        out_shape=jax.ShapeDtypeStruct((M, Cp), jnp.float32),
        in_specs=[pl.BlockSpec(memory_space=pltpu.MemorySpace.VMEM)] * 7,
        out_specs=pl.BlockSpec(memory_space=pltpu.MemorySpace.VMEM),
        compiler_params=pltpu.CompilerParams(vmem_limit_bytes=32 * 1024 * 1024),
    )(x2d, h_pos, w_pos, gamma2, beta2, w2d, bias2)

    out = out2d.reshape(N, H, W, Cp)[..., :C]
    return jnp.transpose(out, (0, 3, 1, 2))


def res2d_reference(x_nchw, gamma, beta, w_torch, bias, kernel_size, eps=1e-5):
    """Pure-JAX reference mirroring the PyTorch forward (for validation)."""
    K = kernel_size
    k = (K - 1) // 2
    k_hi = k + (1 if K % 2 == 0 else 0)

    def bn_relu(v):
        mean = jnp.mean(v, axis=(0, 2, 3), keepdims=True)
        var = jnp.mean((v - mean) ** 2, axis=(0, 2, 3), keepdims=True)
        y = (v - mean) * jax.lax.rsqrt(var + eps)
        y = y * gamma[None, :, None, None] + beta[None, :, None, None]
        return jnp.maximum(y, 0.0)

    def conv(v):
        vp = jnp.pad(v, ((0, 0), (0, 0), (k, k_hi), (k, k_hi)))
        out = jax.lax.conv_general_dilated(
            vp, w_torch, window_strides=(1, 1), padding="VALID",
            dimension_numbers=("NCHW", "OIHW", "NCHW"))
        return out + bias[None, :, None, None]

    x1 = conv(bn_relu(x_nchw))
    x2 = conv(bn_relu(x1))
    return x2 + x_nchw


if __name__ == "__main__":
    # Small shapes consistent with the module: NCHW input, square conv.
    N, C, H, W = 2, 4, 16, 16
    K = 3

    key = jax.random.PRNGKey(0)
    kx, kg, kb, kw, kbias = jax.random.split(key, 5)
    x = jax.random.normal(kx, (N, C, H, W), dtype=jnp.float32)
    gamma = jax.random.uniform(kg, (C,), dtype=jnp.float32, minval=0.5, maxval=1.5)
    beta = 0.1 * jax.random.normal(kb, (C,), dtype=jnp.float32)
    w1 = 0.1 * jax.random.normal(kw, (C, C, K, K), dtype=jnp.float32)   # conv1 weight
    b1 = 0.1 * jax.random.normal(kbias, (C,), dtype=jnp.float32)        # conv1 bias
    # NOTE: conv2 exists in __init__ but is never used in forward() -> not needed.

    out = jax.block_until_ready(res2d_pallas(x, gamma, beta, w1, b1, K))
    ref = jax.block_until_ready(res2d_reference(x, gamma, beta, w1, b1, K))

    assert out.shape == (N, C, H, W)
    assert jnp.allclose(out, ref, rtol=1e-3, atol=1e-3), (
        float(jnp.max(jnp.abs(out - ref))))
    print("KERNEL_OK")
</pallas_src>

<mosaic_0001>
module attributes {stable_mosaic.version = 11 : i64} {
  func.func @_res2d_kernel(%arg0: memref<512x128xf32, #tpu.memory_space<vmem>>, %arg1: memref<512x1xi32, #tpu.memory_space<vmem>>, %arg2: memref<512x1xi32, #tpu.memory_space<vmem>>, %arg3: memref<1x128xf32, #tpu.memory_space<vmem>>, %arg4: memref<1x128xf32, #tpu.memory_space<vmem>>, %arg5: memref<1152x128xf32, #tpu.memory_space<vmem>>, %arg6: memref<1x128xf32, #tpu.memory_space<vmem>>, %arg7: memref<512x128xf32, #tpu.memory_space<vmem>>) attributes {dimension_semantics = [], scalar_prefetch = 0 : i64, scratch_operands = 0 : i64, tpu.core_type = #tpu.core_type<tc>} {
    %c0 = arith.constant 0 : index
    %c0_0 = arith.constant 0 : index
    %0 = vector.load %arg1[%c0, %c0_0] : memref<512x1xi32, #tpu.memory_space<vmem>>, vector<512x1xi32>
    %c0_1 = arith.constant 0 : index
    %c0_2 = arith.constant 0 : index
    %1 = vector.load %arg2[%c0_1, %c0_2] : memref<512x1xi32, #tpu.memory_space<vmem>>, vector<512x1xi32>
    %c0_3 = arith.constant 0 : index
    %c0_4 = arith.constant 0 : index
    %2 = vector.load %arg3[%c0_3, %c0_4] : memref<1x128xf32, #tpu.memory_space<vmem>>, vector<1x128xf32>
    %c0_5 = arith.constant 0 : index
    %c0_6 = arith.constant 0 : index
    %3 = vector.load %arg4[%c0_5, %c0_6] : memref<1x128xf32, #tpu.memory_space<vmem>>, vector<1x128xf32>
    %c0_7 = arith.constant 0 : index
    %c0_8 = arith.constant 0 : index
    %4 = vector.load %arg6[%c0_7, %c0_8] : memref<1x128xf32, #tpu.memory_space<vmem>>, vector<1x128xf32>
    %c0_9 = arith.constant 0 : index
    %c0_10 = arith.constant 0 : index
    %5 = vector.load %arg5[%c0_9, %c0_10] : memref<1152x128xf32, #tpu.memory_space<vmem>>, vector<1152x128xf32>
    %c0_11 = arith.constant 0 : index
    %c0_12 = arith.constant 0 : index
    %6 = vector.load %arg0[%c0_11, %c0_12] : memref<512x128xf32, #tpu.memory_space<vmem>>, vector<512x128xf32>
    %cst = arith.constant dense<0.000000e+00> : vector<128xf32>
    %7 = vector.multi_reduction <add>, %6, %cst [0] : vector<512x128xf32> to vector<128xf32>
    %8 = vector.shape_cast %7 : vector<128xf32> to vector<1x128xf32>
    %cst_13 = arith.constant 0.001953125 : f32
    %9 = vector.broadcast %cst_13 : f32 to vector<1x128xf32>
    %10 = arith.mulf %8, %9 : vector<1x128xf32>
    %11 = arith.mulf %6, %6 : vector<512x128xf32>
    %cst_14 = arith.constant dense<0.000000e+00> : vector<128xf32>
    %12 = vector.multi_reduction <add>, %11, %cst_14 [0] : vector<512x128xf32> to vector<128xf32>
    %13 = vector.shape_cast %12 : vector<128xf32> to vector<1x128xf32>
    %cst_15 = arith.constant 0.001953125 : f32
    %14 = vector.broadcast %cst_15 : f32 to vector<1x128xf32>
    %15 = arith.mulf %13, %14 : vector<1x128xf32>
    %16 = arith.mulf %10, %10 : vector<1x128xf32>
    %17 = arith.subf %15, %16 : vector<1x128xf32>
    %cst_16 = arith.constant 0.000000e+00 : f32
    %18 = vector.broadcast %cst_16 : f32 to vector<1x128xf32>
    %19 = arith.maximumf %17, %18 : vector<1x128xf32>
    %cst_17 = arith.constant 9.99999974E-6 : f32
    %20 = vector.broadcast %cst_17 : f32 to vector<1x128xf32>
    %21 = arith.addf %19, %20 : vector<1x128xf32>
    %22 = math.rsqrt %21 : vector<1x128xf32>
    %23 = arith.mulf %2, %22 : vector<1x128xf32>
    %24 = arith.mulf %10, %23 : vector<1x128xf32>
    %25 = arith.subf %3, %24 : vector<1x128xf32>
    %26 = vector.broadcast %23 : vector<1x128xf32> to vector<512x128xf32>
    %27 = arith.mulf %6, %26 : vector<512x128xf32>
    %28 = vector.broadcast %25 : vector<1x128xf32> to vector<512x128xf32>
    %29 = arith.addf %27, %28 : vector<512x128xf32>
    %cst_18 = arith.constant 0.000000e+00 : f32
    %30 = vector.broadcast %cst_18 : f32 to vector<512x128xf32>
    %31 = arith.maximumf %29, %30 : vector<512x128xf32>
    %32 = vector.extract_strided_slice %31 {offsets = [511, 0], sizes = [1, 128], strides = [1, 1]} : vector<512x128xf32> to vector<1x128xf32>
    %33 = vector.extract_strided_slice %31 {offsets = [0, 0], sizes = [511, 128], strides = [1, 1]} : vector<512x128xf32> to vector<511x128xf32>
    %34 = tpu.concatenate %32, %33 in 0 : vector<1x128xf32>, vector<511x128xf32> -> vector<512x128xf32>
    %c-1_i32 = arith.constant -1 : i32
    %35 = vector.broadcast %c-1_i32 : i32 to vector<512x1xi32>
    %36 = arith.addi %1, %35 : vector<512x1xi32>
    %c0_i32 = arith.constant 0 : i32
    %37 = vector.broadcast %c0_i32 : i32 to vector<512x1xi32>
    %38 = arith.cmpi sge, %36, %37 : vector<512x1xi32>
    %c-1_i32_19 = arith.constant -1 : i32
    %39 = vector.broadcast %c-1_i32_19 : i32 to vector<512x1xi32>
    %40 = arith.addi %1, %39 : vector<512x1xi32>
    %c16_i32 = arith.constant 16 : i32
    %41 = vector.broadcast %c16_i32 : i32 to vector<512x1xi32>
    %42 = arith.cmpi slt, %40, %41 : vector<512x1xi32>
    %43 = arith.andi %38, %42 : vector<512x1xi1>
    %cst_20 = arith.constant 0.000000e+00 : f32
    %44 = vector.shape_cast %43 : vector<512x1xi1> to vector<512x1xi1>
    %45 = vector.broadcast %44 : vector<512x1xi1> to vector<512x128xi1>
    %46 = vector.broadcast %cst_20 : f32 to vector<512x128xf32>
    %47 = arith.select %45, %34, %46 : vector<512x128xi1>, vector<512x128xf32>
    %48 = vector.extract_strided_slice %31 {offsets = [1, 0], sizes = [511, 128], strides = [1, 1]} : vector<512x128xf32> to vector<511x128xf32>
    %49 = vector.extract_strided_slice %31 {offsets = [0, 0], sizes = [1, 128], strides = [1, 1]} : vector<512x128xf32> to vector<1x128xf32>
    %50 = tpu.concatenate %48, %49 in 0 : vector<511x128xf32>, vector<1x128xf32> -> vector<512x128xf32>
    %c1_i32 = arith.constant 1 : i32
    %51 = vector.broadcast %c1_i32 : i32 to vector<512x1xi32>
    %52 = arith.addi %1, %51 : vector<512x1xi32>
    %c0_i32_21 = arith.constant 0 : i32
    %53 = vector.broadcast %c0_i32_21 : i32 to vector<512x1xi32>
    %54 = arith.cmpi sge, %52, %53 : vector<512x1xi32>
    %c1_i32_22 = arith.constant 1 : i32
    %55 = vector.broadcast %c1_i32_22 : i32 to vector<512x1xi32>
    %56 = arith.addi %1, %55 : vector<512x1xi32>
    %c16_i32_23 = arith.constant 16 : i32
    %57 = vector.broadcast %c16_i32_23 : i32 to vector<512x1xi32>
    %58 = arith.cmpi slt, %56, %57 : vector<512x1xi32>
    %59 = arith.andi %54, %58 : vector<512x1xi1>
    %cst_24 = arith.constant 0.000000e+00 : f32
    %60 = vector.shape_cast %59 : vector<512x1xi1> to vector<512x1xi1>
    %61 = vector.broadcast %60 : vector<512x1xi1> to vector<512x128xi1>
    %62 = vector.broadcast %cst_24 : f32 to vector<512x128xf32>
    %63 = arith.select %61, %50, %62 : vector<512x128xi1>, vector<512x128xf32>
    %64 = vector.extract_strided_slice %47 {offsets = [496, 0], sizes = [16, 128], strides = [1, 1]} : vector<512x128xf32> to vector<16x128xf32>
    %65 = vector.extract_strided_slice %47 {offsets = [0, 0], sizes = [496, 128], strides = [1, 1]} : vector<512x128xf32> to vector<496x128xf32>
    %66 = tpu.concatenate %64, %65 in 0 : vector<16x128xf32>, vector<496x128xf32> -> vector<512x128xf32>
    %c-1_i32_25 = arith.constant -1 : i32
    %67 = vector.broadcast %c-1_i32_25 : i32 to vector<512x1xi32>
    %68 = arith.addi %0, %67 : vector<512x1xi32>
    %c0_i32_26 = arith.constant 0 : i32
    %69 = vector.broadcast %c0_i32_26 : i32 to vector<512x1xi32>
    %70 = arith.cmpi sge, %68, %69 : vector<512x1xi32>
    %c-1_i32_27 = arith.constant -1 : i32
    %71 = vector.broadcast %c-1_i32_27 : i32 to vector<512x1xi32>
    %72 = arith.addi %0, %71 : vector<512x1xi32>
    %c16_i32_28 = arith.constant 16 : i32
    %73 = vector.broadcast %c16_i32_28 : i32 to vector<512x1xi32>
    %74 = arith.cmpi slt, %72, %73 : vector<512x1xi32>
    %75 = arith.andi %70, %74 : vector<512x1xi1>
    %cst_29 = arith.constant 0.000000e+00 : f32
    %76 = vector.shape_cast %75 : vector<512x1xi1> to vector<512x1xi1>
    %77 = vector.broadcast %76 : vector<512x1xi1> to vector<512x128xi1>
    %78 = vector.broadcast %cst_29 : f32 to vector<512x128xf32>
    %79 = arith.select %77, %66, %78 : vector<512x128xi1>, vector<512x128xf32>
    %80 = vector.extract_strided_slice %31 {offsets = [496, 0], sizes = [16, 128], strides = [1, 1]} : vector<512x128xf32> to vector<16x128xf32>
    %81 = vector.extract_strided_slice %31 {offsets = [0, 0], sizes = [496, 128], strides = [1, 1]} : vector<512x128xf32> to vector<496x128xf32>
    %82 = tpu.concatenate %80, %81 in 0 : vector<16x128xf32>, vector<496x128xf32> -> vector<512x128xf32>
    %c-1_i32_30 = arith.constant -1 : i32
    %83 = vector.broadcast %c-1_i32_30 : i32 to vector<512x1xi32>
    %84 = arith.addi %0, %83 : vector<512x1xi32>
    %c0_i32_31 = arith.constant 0 : i32
    %85 = vector.broadcast %c0_i32_31 : i32 to vector<512x1xi32>
    %86 = arith.cmpi sge, %84, %85 : vector<512x1xi32>
    %c-1_i32_32 = arith.constant -1 : i32
    %87 = vector.broadcast %c-1_i32_32 : i32 to vector<512x1xi32>
    %88 = arith.addi %0, %87 : vector<512x1xi32>
    %c16_i32_33 = arith.constant 16 : i32
    %89 = vector.broadcast %c16_i32_33 : i32 to vector<512x1xi32>
    %90 = arith.cmpi slt, %88, %89 : vector<512x1xi32>
    %91 = arith.andi %86, %90 : vector<512x1xi1>
    %cst_34 = arith.constant 0.000000e+00 : f32
    %92 = vector.shape_cast %91 : vector<512x1xi1> to vector<512x1xi1>
    %93 = vector.broadcast %92 : vector<512x1xi1> to vector<512x128xi1>
    %94 = vector.broadcast %cst_34 : f32 to vector<512x128xf32>
    %95 = arith.select %93, %82, %94 : vector<512x128xi1>, vector<512x128xf32>
    %96 = vector.extract_strided_slice %63 {offsets = [496, 0], sizes = [16, 128], strides = [1, 1]} : vector<512x128xf32> to vector<16x128xf32>
    %97 = vector.extract_strided_slice %63 {offsets = [0, 0], sizes = [496, 128], strides = [1, 1]} : vector<512x128xf32> to vector<496x128xf32>
    %98 = tpu.concatenate %96, %97 in 0 : vector<16x128xf32>, vector<496x128xf32> -> vector<512x128xf32>
    %c-1_i32_35 = arith.constant -1 : i32
    %99 = vector.broadcast %c-1_i32_35 : i32 to vector<512x1xi32>
    %100 = arith.addi %0, %99 : vector<512x1xi32>
    %c0_i32_36 = arith.constant 0 : i32
    %101 = vector.broadcast %c0_i32_36 : i32 to vector<512x1xi32>
    %102 = arith.cmpi sge, %100, %101 : vector<512x1xi32>
    %c-1_i32_37 = arith.constant -1 : i32
    %103 = vector.broadcast %c-1_i32_37 : i32 to vector<512x1xi32>
    %104 = arith.addi %0, %103 : vector<512x1xi32>
    %c16_i32_38 = arith.constant 16 : i32
    %105 = vector.broadcast %c16_i32_38 : i32 to vector<512x1xi32>
    %106 = arith.cmpi slt, %104, %105 : vector<512x1xi32>
    %107 = arith.andi %102, %106 : vector<512x1xi1>
    %cst_39 = arith.constant 0.000000e+00 : f32
    %108 = vector.shape_cast %107 : vector<512x1xi1> to vector<512x1xi1>
    %109 = vector.broadcast %108 : vector<512x1xi1> to vector<512x128xi1>
    %110 = vector.broadcast %cst_39 : f32 to vector<512x128xf32>
    %111 = arith.select %109, %98, %110 : vector<512x128xi1>, vector<512x128xf32>
    %112 = vector.extract_strided_slice %47 {offsets = [16, 0], sizes = [496, 128], strides = [1, 1]} : vector<512x128xf32> to vector<496x128xf32>
    %113 = vector.extract_strided_slice %47 {offsets = [0, 0], sizes = [16, 128], strides = [1, 1]} : vector<512x128xf32> to vector<16x128xf32>
    %114 = tpu.concatenate %112, %113 in 0 : vector<496x128xf32>, vector<16x128xf32> -> vector<512x128xf32>
    %c1_i32_40 = arith.constant 1 : i32
    %115 = vector.broadcast %c1_i32_40 : i32 to vector<512x1xi32>
    %116 = arith.addi %0, %115 : vector<512x1xi32>
    %c0_i32_41 = arith.constant 0 : i32
    %117 = vector.broadcast %c0_i32_41 : i32 to vector<512x1xi32>
    %118 = arith.cmpi sge, %116, %117 : vector<512x1xi32>
    %c1_i32_42 = arith.constant 1 : i32
    %119 = vector.broadcast %c1_i32_42 : i32 to vector<512x1xi32>
    %120 = arith.addi %0, %119 : vector<512x1xi32>
    %c16_i32_43 = arith.constant 16 : i32
    %121 = vector.broadcast %c16_i32_43 : i32 to vector<512x1xi32>
    %122 = arith.cmpi slt, %120, %121 : vector<512x1xi32>
    %123 = arith.andi %118, %122 : vector<512x1xi1>
    %cst_44 = arith.constant 0.000000e+00 : f32
    %124 = vector.shape_cast %123 : vector<512x1xi1> to vector<512x1xi1>
    %125 = vector.broadcast %124 : vector<512x1xi1> to vector<512x128xi1>
    %126 = vector.broadcast %cst_44 : f32 to vector<512x128xf32>
    %127 = arith.select %125, %114, %126 : vector<512x128xi1>, vector<512x128xf32>
    %128 = vector.extract_strided_slice %31 {offsets = [16, 0], sizes = [496, 128], strides = [1, 1]} : vector<512x128xf32> to vector<496x128xf32>
    %129 = vector.extract_strided_slice %31 {offsets = [0, 0], sizes = [16, 128], strides = [1, 1]} : vector<512x128xf32> to vector<16x128xf32>
    %130 = tpu.concatenate %128, %129 in 0 : vector<496x128xf32>, vector<16x128xf32> -> vector<512x128xf32>
    %c1_i32_45 = arith.constant 1 : i32
    %131 = vector.broadcast %c1_i32_45 : i32 to vector<512x1xi32>
    %132 = arith.addi %0, %131 : vector<512x1xi32>
    %c0_i32_46 = arith.constant 0 : i32
    %133 = vector.broadcast %c0_i32_46 : i32 to vector<512x1xi32>
    %134 = arith.cmpi sge, %132, %133 : vector<512x1xi32>
    %c1_i32_47 = arith.constant 1 : i32
    %135 = vector.broadcast %c1_i32_47 : i32 to vector<512x1xi32>
    %136 = arith.addi %0, %135 : vector<512x1xi32>
    %c16_i32_48 = arith.constant 16 : i32
    %137 = vector.broadcast %c16_i32_48 : i32 to vector<512x1xi32>
    %138 = arith.cmpi slt, %136, %137 : vector<512x1xi32>
    %139 = arith.andi %134, %138 : vector<512x1xi1>
    %cst_49 = arith.constant 0.000000e+00 : f32
    %140 = vector.shape_cast %139 : vector<512x1xi1> to vector<512x1xi1>
    %141 = vector.broadcast %140 : vector<512x1xi1> to vector<512x128xi1>
    %142 = vector.broadcast %cst_49 : f32 to vector<512x128xf32>
    %143 = arith.select %141, %130, %142 : vector<512x128xi1>, vector<512x128xf32>
    %144 = vector.extract_strided_slice %63 {offsets = [16, 0], sizes = [496, 128], strides = [1, 1]} : vector<512x128xf32> to vector<496x128xf32>
    %145 = vector.extract_strided_slice %63 {offsets = [0, 0], sizes = [16, 128], strides = [1, 1]} : vector<512x128xf32> to vector<16x128xf32>
    %146 = tpu.concatenate %144, %145 in 0 : vector<496x128xf32>, vector<16x128xf32> -> vector<512x128xf32>
    %c1_i32_50 = arith.constant 1 : i32
    %147 = vector.broadcast %c1_i32_50 : i32 to vector<512x1xi32>
    %148 = arith.addi %0, %147 : vector<512x1xi32>
    %c0_i32_51 = arith.constant 0 : i32
    %149 = vector.broadcast %c0_i32_51 : i32 to vector<512x1xi32>
    %150 = arith.cmpi sge, %148, %149 : vector<512x1xi32>
    %c1_i32_52 = arith.constant 1 : i32
    %151 = vector.broadcast %c1_i32_52 : i32 to vector<512x1xi32>
    %152 = arith.addi %0, %151 : vector<512x1xi32>
    %c16_i32_53 = arith.constant 16 : i32
    %153 = vector.broadcast %c16_i32_53 : i32 to vector<512x1xi32>
    %154 = arith.cmpi slt, %152, %153 : vector<512x1xi32>
    %155 = arith.andi %150, %154 : vector<512x1xi1>
    %cst_54 = arith.constant 0.000000e+00 : f32
    %156 = vector.shape_cast %155 : vector<512x1xi1> to vector<512x1xi1>
    %157 = vector.broadcast %156 : vector<512x1xi1> to vector<512x128xi1>
    %158 = vector.broadcast %cst_54 : f32 to vector<512x128xf32>
    %159 = arith.select %157, %146, %158 : vector<512x128xi1>, vector<512x128xf32>
    %160 = tpu.concatenate %79, %95, %111, %47, %31, %63, %127, %143, %159 in 1 : vector<512x128xf32>, vector<512x128xf32>, vector<512x128xf32>, vector<512x128xf32>, vector<512x128xf32>, vector<512x128xf32>, vector<512x128xf32>, vector<512x128xf32>, vector<512x128xf32> -> vector<512x1152xf32>
    %cst_55 = arith.constant dense<0.000000e+00> : vector<512x128xf32>
    %161 = tpu.matmul %160, %5, %cst_55 {dimension_numbers = #tpu.dot_dimension_numbers<[1], [0], [0], [1], [0, 0, 1, 1], [], []>} : vector<512x1152xf32>, vector<1152x128xf32>, vector<512x128xf32> -> vector<512x128xf32>
    %162 = vector.broadcast %4 : vector<1x128xf32> to vector<512x128xf32>
    %163 = arith.addf %161, %162 : vector<512x128xf32>
    %cst_56 = arith.constant dense<0.000000e+00> : vector<128xf32>
    %164 = vector.multi_reduction <add>, %163, %cst_56 [0] : vector<512x128xf32> to vector<128xf32>
    %165 = vector.shape_cast %164 : vector<128xf32> to vector<1x128xf32>
    %cst_57 = arith.constant 0.001953125 : f32
    %166 = vector.broadcast %cst_57 : f32 to vector<1x128xf32>
    %167 = arith.mulf %165, %166 : vector<1x128xf32>
    %168 = arith.mulf %163, %163 : vector<512x128xf32>
    %cst_58 = arith.constant dense<0.000000e+00> : vector<128xf32>
    %169 = vector.multi_reduction <add>, %168, %cst_58 [0] : vector<512x128xf32> to vector<128xf32>
    %170 = vector.shape_cast %169 : vector<128xf32> to vector<1x128xf32>
    %cst_59 = arith.constant 0.001953125 : f32
    %171 = vector.broadcast %cst_59 : f32 to vector<1x128xf32>
    %172 = arith.mulf %170, %171 : vector<1x128xf32>
    %173 = arith.mulf %167, %167 : vector<1x128xf32>
    %174 = arith.subf %172, %173 : vector<1x128xf32>
    %cst_60 = arith.constant 0.000000e+00 : f32
    %175 = vector.broadcast %cst_60 : f32 to vector<1x128xf32>
    %176 = arith.maximumf %174, %175 : vector<1x128xf32>
    %cst_61 = arith.constant 9.99999974E-6 : f32
    %177 = vector.broadcast %cst_61 : f32 to vector<1x128xf32>
    %178 = arith.addf %176, %177 : vector<1x128xf32>
    %179 = math.rsqrt %178 : vector<1x128xf32>
    %180 = arith.mulf %2, %179 : vector<1x128xf32>
    %181 = arith.mulf %167, %180 : vector<1x128xf32>
    %182 = arith.subf %3, %181 : vector<1x128xf32>
    %183 = vector.broadcast %180 : vector<1x128xf32> to vector<512x128xf32>
    %184 = arith.mulf %163, %183 : vector<512x128xf32>
    %185 = vector.broadcast %182 : vector<1x128xf32> to vector<512x128xf32>
    %186 = arith.addf %184, %185 : vector<512x128xf32>
    %cst_62 = arith.constant 0.000000e+00 : f32
    %187 = vector.broadcast %cst_62 : f32 to vector<512x128xf32>
    %188 = arith.maximumf %186, %187 : vector<512x128xf32>
    %189 = vector.extract_strided_slice %188 {offsets = [511, 0], sizes = [1, 128], strides = [1, 1]} : vector<512x128xf32> to vector<1x128xf32>
    %190 = vector.extract_strided_slice %188 {offsets = [0, 0], sizes = [511, 128], strides = [1, 1]} : vector<512x128xf32> to vector<511x128xf32>
    %191 = tpu.concatenate %189, %190 in 0 : vector<1x128xf32>, vector<511x128xf32> -> vector<512x128xf32>
    %c-1_i32_63 = arith.constant -1 : i32
    %192 = vector.broadcast %c-1_i32_63 : i32 to vector<512x1xi32>
    %193 = arith.addi %1, %192 : vector<512x1xi32>
    %c0_i32_64 = arith.constant 0 : i32
    %194 = vector.broadcast %c0_i32_64 : i32 to vector<512x1xi32>
    %195 = arith.cmpi sge, %193, %194 : vector<512x1xi32>
    %c-1_i32_65 = arith.constant -1 : i32
    %196 = vector.broadcast %c-1_i32_65 : i32 to vector<512x1xi32>
    %197 = arith.addi %1, %196 : vector<512x1xi32>
    %c16_i32_66 = arith.constant 16 : i32
    %198 = vector.broadcast %c16_i32_66 : i32 to vector<512x1xi32>
    %199 = arith.cmpi slt, %197, %198 : vector<512x1xi32>
    %200 = arith.andi %195, %199 : vector<512x1xi1>
    %cst_67 = arith.constant 0.000000e+00 : f32
    %201 = vector.shape_cast %200 : vector<512x1xi1> to vector<512x1xi1>
    %202 = vector.broadcast %201 : vector<512x1xi1> to vector<512x128xi1>
    %203 = vector.broadcast %cst_67 : f32 to vector<512x128xf32>
    %204 = arith.select %202, %191, %203 : vector<512x128xi1>, vector<512x128xf32>
    %205 = vector.extract_strided_slice %188 {offsets = [1, 0], sizes = [511, 128], strides = [1, 1]} : vector<512x128xf32> to vector<511x128xf32>
    %206 = vector.extract_strided_slice %188 {offsets = [0, 0], sizes = [1, 128], strides = [1, 1]} : vector<512x128xf32> to vector<1x128xf32>
    %207 = tpu.concatenate %205, %206 in 0 : vector<511x128xf32>, vector<1x128xf32> -> vector<512x128xf32>
    %c1_i32_68 = arith.constant 1 : i32
    %208 = vector.broadcast %c1_i32_68 : i32 to vector<512x1xi32>
    %209 = arith.addi %1, %208 : vector<512x1xi32>
    %c0_i32_69 = arith.constant 0 : i32
    %210 = vector.broadcast %c0_i32_69 : i32 to vector<512x1xi32>
    %211 = arith.cmpi sge, %209, %210 : vector<512x1xi32>
    %c1_i32_70 = arith.constant 1 : i32
    %212 = vector.broadcast %c1_i32_70 : i32 to vector<512x1xi32>
    %213 = arith.addi %1, %212 : vector<512x1xi32>
    %c16_i32_71 = arith.constant 16 : i32
    %214 = vector.broadcast %c16_i32_71 : i32 to vector<512x1xi32>
    %215 = arith.cmpi slt, %213, %214 : vector<512x1xi32>
    %216 = arith.andi %211, %215 : vector<512x1xi1>
    %cst_72 = arith.constant 0.000000e+00 : f32
    %217 = vector.shape_cast %216 : vector<512x1xi1> to vector<512x1xi1>
    %218 = vector.broadcast %217 : vector<512x1xi1> to vector<512x128xi1>
    %219 = vector.broadcast %cst_72 : f32 to vector<512x128xf32>
    %220 = arith.select %218, %207, %219 : vector<512x128xi1>, vector<512x128xf32>
    %221 = vector.extract_strided_slice %204 {offsets = [496, 0], sizes = [16, 128], strides = [1, 1]} : vector<512x128xf32> to vector<16x128xf32>
    %222 = vector.extract_strided_slice %204 {offsets = [0, 0], sizes = [496, 128], strides = [1, 1]} : vector<512x128xf32> to vector<496x128xf32>
    %223 = tpu.concatenate %221, %222 in 0 : vector<16x128xf32>, vector<496x128xf32> -> vector<512x128xf32>
    %c-1_i32_73 = arith.constant -1 : i32
    %224 = vector.broadcast %c-1_i32_73 : i32 to vector<512x1xi32>
    %225 = arith.addi %0, %224 : vector<512x1xi32>
    %c0_i32_74 = arith.constant 0 : i32
    %226 = vector.broadcast %c0_i32_74 : i32 to vector<512x1xi32>
    %227 = arith.cmpi sge, %225, %226 : vector<512x1xi32>
    %c-1_i32_75 = arith.constant -1 : i32
    %228 = vector.broadcast %c-1_i32_75 : i32 to vector<512x1xi32>
    %229 = arith.addi %0, %228 : vector<512x1xi32>
    %c16_i32_76 = arith.constant 16 : i32
    %230 = vector.broadcast %c16_i32_76 : i32 to vector<512x1xi32>
    %231 = arith.cmpi slt, %229, %230 : vector<512x1xi32>
    %232 = arith.andi %227, %231 : vector<512x1xi1>
    %cst_77 = arith.constant 0.000000e+00 : f32
    %233 = vector.shape_cast %232 : vector<512x1xi1> to vector<512x1xi1>
    %234 = vector.broadcast %233 : vector<512x1xi1> to vector<512x128xi1>
    %235 = vector.broadcast %cst_77 : f32 to vector<512x128xf32>
    %236 = arith.select %234, %223, %235 : vector<512x128xi1>, vector<512x128xf32>
    %237 = vector.extract_strided_slice %188 {offsets = [496, 0], sizes = [16, 128], strides = [1, 1]} : vector<512x128xf32> to vector<16x128xf32>
    %238 = vector.extract_strided_slice %188 {offsets = [0, 0], sizes = [496, 128], strides = [1, 1]} : vector<512x128xf32> to vector<496x128xf32>
    %239 = tpu.concatenate %237, %238 in 0 : vector<16x128xf32>, vector<496x128xf32> -> vector<512x128xf32>
    %c-1_i32_78 = arith.constant -1 : i32
    %240 = vector.broadcast %c-1_i32_78 : i32 to vector<512x1xi32>
    %241 = arith.addi %0, %240 : vector<512x1xi32>
    %c0_i32_79 = arith.constant 0 : i32
    %242 = vector.broadcast %c0_i32_79 : i32 to vector<512x1xi32>
    %243 = arith.cmpi sge, %241, %242 : vector<512x1xi32>
    %c-1_i32_80 = arith.constant -1 : i32
    %244 = vector.broadcast %c-1_i32_80 : i32 to vector<512x1xi32>
    %245 = arith.addi %0, %244 : vector<512x1xi32>
    %c16_i32_81 = arith.constant 16 : i32
    %246 = vector.broadcast %c16_i32_81 : i32 to vector<512x1xi32>
    %247 = arith.cmpi slt, %245, %246 : vector<512x1xi32>
    %248 = arith.andi %243, %247 : vector<512x1xi1>
    %cst_82 = arith.constant 0.000000e+00 : f32
    %249 = vector.shape_cast %248 : vector<512x1xi1> to vector<512x1xi1>
    %250 = vector.broadcast %249 : vector<512x1xi1> to vector<512x128xi1>
    %251 = vector.broadcast %cst_82 : f32 to vector<512x128xf32>
    %252 = arith.select %250, %239, %251 : vector<512x128xi1>, vector<512x128xf32>
    %253 = vector.extract_strided_slice %220 {offsets = [496, 0], sizes = [16, 128], strides = [1, 1]} : vector<512x128xf32> to vector<16x128xf32>
    %254 = vector.extract_strided_slice %220 {offsets = [0, 0], sizes = [496, 128], strides = [1, 1]} : vector<512x128xf32> to vector<496x128xf32>
    %255 = tpu.concatenate %253, %254 in 0 : vector<16x128xf32>, vector<496x128xf32> -> vector<512x128xf32>
    %c-1_i32_83 = arith.constant -1 : i32
    %256 = vector.broadcast %c-1_i32_83 : i32 to vector<512x1xi32>
    %257 = arith.addi %0, %256 : vector<512x1xi32>
    %c0_i32_84 = arith.constant 0 : i32
    %258 = vector.broadcast %c0_i32_84 : i32 to vector<512x1xi32>
    %259 = arith.cmpi sge, %257, %258 : vector<512x1xi32>
    %c-1_i32_85 = arith.constant -1 : i32
    %260 = vector.broadcast %c-1_i32_85 : i32 to vector<512x1xi32>
    %261 = arith.addi %0, %260 : vector<512x1xi32>
    %c16_i32_86 = arith.constant 16 : i32
    %262 = vector.broadcast %c16_i32_86 : i32 to vector<512x1xi32>
    %263 = arith.cmpi slt, %261, %262 : vector<512x1xi32>
    %264 = arith.andi %259, %263 : vector<512x1xi1>
    %cst_87 = arith.constant 0.000000e+00 : f32
    %265 = vector.shape_cast %264 : vector<512x1xi1> to vector<512x1xi1>
    %266 = vector.broadcast %265 : vector<512x1xi1> to vector<512x128xi1>
    %267 = vector.broadcast %cst_87 : f32 to vector<512x128xf32>
    %268 = arith.select %266, %255, %267 : vector<512x128xi1>, vector<512x128xf32>
    %269 = vector.extract_strided_slice %204 {offsets = [16, 0], sizes = [496, 128], strides = [1, 1]} : vector<512x128xf32> to vector<496x128xf32>
    %270 = vector.extract_strided_slice %204 {offsets = [0, 0], sizes = [16, 128], strides = [1, 1]} : vector<512x128xf32> to vector<16x128xf32>
    %271 = tpu.concatenate %269, %270 in 0 : vector<496x128xf32>, vector<16x128xf32> -> vector<512x128xf32>
    %c1_i32_88 = arith.constant 1 : i32
    %272 = vector.broadcast %c1_i32_88 : i32 to vector<512x1xi32>
    %273 = arith.addi %0, %272 : vector<512x1xi32>
    %c0_i32_89 = arith.constant 0 : i32
    %274 = vector.broadcast %c0_i32_89 : i32 to vector<512x1xi32>
    %275 = arith.cmpi sge, %273, %274 : vector<512x1xi32>
    %c1_i32_90 = arith.constant 1 : i32
    %276 = vector.broadcast %c1_i32_90 : i32 to vector<512x1xi32>
    %277 = arith.addi %0, %276 : vector<512x1xi32>
    %c16_i32_91 = arith.constant 16 : i32
    %278 = vector.broadcast %c16_i32_91 : i32 to vector<512x1xi32>
    %279 = arith.cmpi slt, %277, %278 : vector<512x1xi32>
    %280 = arith.andi %275, %279 : vector<512x1xi1>
    %cst_92 = arith.constant 0.000000e+00 : f32
    %281 = vector.shape_cast %280 : vector<512x1xi1> to vector<512x1xi1>
    %282 = vector.broadcast %281 : vector<512x1xi1> to vector<512x128xi1>
    %283 = vector.broadcast %cst_92 : f32 to vector<512x128xf32>
    %284 = arith.select %282, %271, %283 : vector<512x128xi1>, vector<512x128xf32>
    %285 = vector.extract_strided_slice %188 {offsets = [16, 0], sizes = [496, 128], strides = [1, 1]} : vector<512x128xf32> to vector<496x128xf32>
    %286 = vector.extract_strided_slice %188 {offsets = [0, 0], sizes = [16, 128], strides = [1, 1]} : vector<512x128xf32> to vector<16x128xf32>
    %287 = tpu.concatenate %285, %286 in 0 : vector<496x128xf32>, vector<16x128xf32> -> vector<512x128xf32>
    %c1_i32_93 = arith.constant 1 : i32
    %288 = vector.broadcast %c1_i32_93 : i32 to vector<512x1xi32>
    %289 = arith.addi %0, %288 : vector<512x1xi32>
    %c0_i32_94 = arith.constant 0 : i32
    %290 = vector.broadcast %c0_i32_94 : i32 to vector<512x1xi32>
    %291 = arith.cmpi sge, %289, %290 : vector<512x1xi32>
    %c1_i32_95 = arith.constant 1 : i32
    %292 = vector.broadcast %c1_i32_95 : i32 to vector<512x1xi32>
    %293 = arith.addi %0, %292 : vector<512x1xi32>
    %c16_i32_96 = arith.constant 16 : i32
    %294 = vector.broadcast %c16_i32_96 : i32 to vector<512x1xi32>
    %295 = arith.cmpi slt, %293, %294 : vector<512x1xi32>
    %296 = arith.andi %291, %295 : vector<512x1xi1>
    %cst_97 = arith.constant 0.000000e+00 : f32
    %297 = vector.shape_cast %296 : vector<512x1xi1> to vector<512x1xi1>
    %298 = vector.broadcast %297 : vector<512x1xi1> to vector<512x128xi1>
    %299 = vector.broadcast %cst_97 : f32 to vector<512x128xf32>
    %300 = arith.select %298, %287, %299 : vector<512x128xi1>, vector<512x128xf32>
    %301 = vector.extract_strided_slice %220 {offsets = [16, 0], sizes = [496, 128], strides = [1, 1]} : vector<512x128xf32> to vector<496x128xf32>
    %302 = vector.extract_strided_slice %220 {offsets = [0, 0], sizes = [16, 128], strides = [1, 1]} : vector<512x128xf32> to vector<16x128xf32>
    %303 = tpu.concatenate %301, %302 in 0 : vector<496x128xf32>, vector<16x128xf32> -> vector<512x128xf32>
    %c1_i32_98 = arith.constant 1 : i32
    %304 = vector.broadcast %c1_i32_98 : i32 to vector<512x1xi32>
    %305 = arith.addi %0, %304 : vector<512x1xi32>
    %c0_i32_99 = arith.constant 0 : i32
    %306 = vector.broadcast %c0_i32_99 : i32 to vector<512x1xi32>
    %307 = arith.cmpi sge, %305, %306 : vector<512x1xi32>
    %c1_i32_100 = arith.constant 1 : i32
    %308 = vector.broadcast %c1_i32_100 : i32 to vector<512x1xi32>
    %309 = arith.addi %0, %308 : vector<512x1xi32>
    %c16_i32_101 = arith.constant 16 : i32
    %310 = vector.broadcast %c16_i32_101 : i32 to vector<512x1xi32>
    %311 = arith.cmpi slt, %309, %310 : vector<512x1xi32>
    %312 = arith.andi %307, %311 : vector<512x1xi1>
    %cst_102 = arith.constant 0.000000e+00 : f32
    %313 = vector.shape_cast %312 : vector<512x1xi1> to vector<512x1xi1>
    %314 = vector.broadcast %313 : vector<512x1xi1> to vector<512x128xi1>
    %315 = vector.broadcast %cst_102 : f32 to vector<512x128xf32>
    %316 = arith.select %314, %303, %315 : vector<512x128xi1>, vector<512x128xf32>
    %317 = tpu.concatenate %236, %252, %268, %204, %188, %220, %284, %300, %316 in 1 : vector<512x128xf32>, vector<512x128xf32>, vector<512x128xf32>, vector<512x128xf32>, vector<512x128xf32>, vector<512x128xf32>, vector<512x128xf32>, vector<512x128xf32>, vector<512x128xf32> -> vector<512x1152xf32>
    %cst_103 = arith.constant dense<0.000000e+00> : vector<512x128xf32>
    %318 = tpu.matmul %317, %5, %cst_103 {dimension_numbers = #tpu.dot_dimension_numbers<[1], [0], [0], [1], [0, 0, 1, 1], [], []>} : vector<512x1152xf32>, vector<1152x128xf32>, vector<512x128xf32> -> vector<512x128xf32>
    %319 = vector.broadcast %4 : vector<1x128xf32> to vector<512x128xf32>
    %320 = arith.addf %318, %319 : vector<512x128xf32>
    %c0_104 = arith.constant 0 : index
    %c0_105 = arith.constant 0 : index
    %321 = vector.load %arg0[%c0_104, %c0_105] : memref<512x128xf32, #tpu.memory_space<vmem>>, vector<512x128xf32>
    %322 = arith.addf %320, %321 : vector<512x128xf32>
    %c0_106 = arith.constant 0 : index
    %c0_107 = arith.constant 0 : index
    %323 = vector.load %arg7[%c0_106, %c0_107] : memref<512x128xf32, #tpu.memory_space<vmem>>, vector<512x128xf32>
    tpu.vector_store %arg7[%c0_106, %c0_107], %322 {strides = array<i32>} : memref<512x128xf32, #tpu.memory_space<vmem>>, vector<512x128xf32>,
    return
  }
}

</mosaic_0001>

<llo_original>
// kernel: tpu_custom_call.1
$region0: #{tpu_custom_call.1}
  #allocation0 [shape = 'u32[]', space=smem, size = 0x4, offset = 0x4, fixed_abs, tag = 'smem constant byte address 0x4 - core index']
  #allocation1 [shape = 'u32[144,128]{1,0:T(1,128)}', space=vmem, size = 0x12000, scoped, tag = 'internal scratch']
  %s0 = inlined_call_operand.vmem [shape: f32[512,128], index: 0, kind: input, shape index: {}]
  %s1 = inlined_call_operand.vmem [shape: s32[512,1], index: 1, kind: input, shape index: {}]
  %s2 = inlined_call_operand.vmem [shape: s32[512,1], index: 2, kind: input, shape index: {}]
  %s3 = inlined_call_operand.vmem [shape: f32[1,128], index: 3, kind: input, shape index: {}]
  %s4 = inlined_call_operand.vmem [shape: f32[1,128], index: 4, kind: input, shape index: {}]
  %s5 = inlined_call_operand.hbm [shape: f32[1152,128], index: 5, kind: input, shape index: {}]
  %s6 = inlined_call_operand.vmem [shape: f32[1,128], index: 6, kind: input, shape index: {}]
  %s7 = inlined_call_operand.hbm [shape: f32[512,128], index: 7, kind: output, shape index: {}]
  %s8 = sld [smem:[#allocation0]]
  $region42: #{tpu_custom_call.1} parent=0
    _
  %s10 = ssub.s32 1, %s8
  %s11 = scalar_select 0, %s10, %s8
  $region1: #{tpu_custom_call.1} parent=0
    #allocation2 [shape = 'u8[589824]{0}', space=vmem, size = 0x90000, scoped, tag = 'input window, operand 5, single buffered']
    #allocation3 [shape = 's32[1]{0}', space=sflag, size = 0x4, scoped, tag = 'scoped memory for tpu_custom_call.1']
    #allocation4 [shape = 's32[1]{0}', space=sflag, size = 0x4, scoped, tag = 'scoped memory for tpu_custom_call.1']
    #allocation5 [shape = 'u8[262144]{0}', space=vmem, size = 0x40000, scoped, tag = 'output window, operand 0, single buffered']
    %12 = vsyncpa [#allocation3], 0
    %13 = vsyncpa [#allocation4], 0
    // Predicated region
    $region2: #{tpu_custom_call.1} parent=1 // pred_check
      _
    $region3: #{tpu_custom_call.1} parent=1 // pred_check_branch
      %15 = sbr.rel (0) target = $region5
    $region4: #{tpu_custom_call.1} parent=1 // pred_region
      _
    $region5: #{tpu_custom_call.1} parent=1 // pred_fallthru
      _
    // Predicated region
    $region6: #{tpu_custom_call.1} parent=1 // pred_check
      _
    $region7: #{tpu_custom_call.1} parent=1 // pred_check_branch
      %17 = sbr.rel (0) target = $region9
    $region8: #{tpu_custom_call.1} parent=1 // pred_region
      _
    $region9: #{tpu_custom_call.1} parent=1 // pred_fallthru
      _
    // Predicated region
    $region10: #{tpu_custom_call.1} parent=1 // pred_check
      _
    $region11: #{tpu_custom_call.1} parent=1 // pred_check_branch
      %19 = sbr.rel (0) target = $region13
    $region12: #{tpu_custom_call.1} parent=1 // pred_region
      _
    $region13: #{tpu_custom_call.1} parent=1 // pred_fallthru
      _
    // Predicated region
    $region14: #{tpu_custom_call.1} parent=1 // pred_check
      _
    $region15: #{tpu_custom_call.1} parent=1 // pred_check_branch
      %21 = sbr.rel (0) target = $region17
    $region16: #{tpu_custom_call.1} parent=1 // pred_region
      _
    $region17: #{tpu_custom_call.1} parent=1 // pred_fallthru
      _
    // Predicated region
    $region18: #{tpu_custom_call.1} parent=1 // pred_check
      _
    $region19: #{tpu_custom_call.1} parent=1 // pred_check_branch
      %23 = sbr.rel (0) target = $region21
    $region20: #{tpu_custom_call.1} parent=1 // pred_region
      _
    $region21: #{tpu_custom_call.1} parent=1 // pred_fallthru
      _
    // Predicated region
    $region22: #{tpu_custom_call.1} parent=1 // pred_check
      _
    $region23: #{tpu_custom_call.1} parent=1 // pred_check_branch
      %25 = sbr.rel (0) target = $region25
    $region24: #{tpu_custom_call.1} parent=1 // pred_region
      %s27 = ssub.s32 18432, 18432
      %28 = vsyncadd [#allocation3], %s27
      %s29 = sshll.u32 [#allocation2], 4
      %s30 = int_to_ptr.vmem [resolvable:$true] %s29
      %35 = dma.hbm_to_vmem [thread:$0]  %s5, 18432, %s30, [#allocation3], 128, 128, 8
    $region25: #{tpu_custom_call.1} parent=1 // pred_fallthru
      _
    // Predicated region
    $region26: #{tpu_custom_call.1} parent=1 // pred_check
      _
    $region27: #{tpu_custom_call.1} parent=1 // pred_check_branch
      %37 = sbr.rel (0) target = $region29
    $region28: #{tpu_custom_call.1} parent=1 // pred_region
      _
    $region29: #{tpu_custom_call.1} parent=1 // pred_fallthru
      _
    // Predicated region
    $region30: #{tpu_custom_call.1} parent=1 // pred_check
      _
    $region31: #{tpu_custom_call.1} parent=1 // pred_check_branch
      %39 = sbr.rel (0) target = $region33
    $region32: #{tpu_custom_call.1} parent=1 // pred_region
      %40 = dma.done [#allocation3], 18432
    $region33: #{tpu_custom_call.1} parent=1 // pred_fallthru
      _
    %v41 = vld [vmem:[%s1] sm:$0xff]
    %v42 = vld [vmem:[%s1 + $0x8] sm:$0xff]
    %v43 = vld [vmem:[%s1 + $0x10] sm:$0xff]
    %v44 = vld [vmem:[%s1 + $0x18] sm:$0xff]
    %v45 = vld [vmem:[%s1 + $0x20] sm:$0xff]
    %v46 = vld [vmem:[%s1 + $0x28] sm:$0xff]
    %v47 = vld [vmem:[%s1 + $0x30] sm:$0xff]
    %v48 = vld [vmem:[%s1 + $0x38] sm:$0xff]
    %v49 = vld [vmem:[%s1 + $0x40] sm:$0xff]
    %v50 = vld [vmem:[%s1 + $0x48] sm:$0xff]
    %v51 = vld [vmem:[%s1 + $0x50] sm:$0xff]
    %v52 = vld [vmem:[%s1 + $0x58] sm:$0xff]
    %v53 = vld [vmem:[%s1 + $0x60] sm:$0xff]
    %v54 = vld [vmem:[%s1 + $0x68] sm:$0xff]
    %v55 = vld [vmem:[%s1 + $0x70] sm:$0xff]
    %v56 = vld [vmem:[%s1 + $0x78] sm:$0xff]
    %v57 = vld [vmem:[%s1 + $0x80] sm:$0xff]
    %v58 = vld [vmem:[%s1 + $0x88] sm:$0xff]
    %v59 = vld [vmem:[%s1 + $0x90] sm:$0xff]
    %v60 = vld [vmem:[%s1 + $0x98] sm:$0xff]
    %v61 = vld [vmem:[%s1 + $0xa0] sm:$0xff]
    %v62 = vld [vmem:[%s1 + $0xa8] sm:$0xff]
    %v63 = vld [vmem:[%s1 + $0xb0] sm:$0xff]
    %v64 = vld [vmem:[%s1 + $0xb8] sm:$0xff]
    %v65 = vld [vmem:[%s1 + $0xc0] sm:$0xff]
    %v66 = vld [vmem:[%s1 + $0xc8] sm:$0xff]
    %v67 = vld [vmem:[%s1 + $0xd0] sm:$0xff]
    %v68 = vld [vmem:[%s1 + $0xd8] sm:$0xff]
    %v69 = vld [vmem:[%s1 + $0xe0] sm:$0xff]
    %v70 = vld [vmem:[%s1 + $0xe8] sm:$0xff]
    %v71 = vld [vmem:[%s1 + $0xf0] sm:$0xff]
    %v72 = vld [vmem:[%s1 + $0xf8] sm:$0xff]
    %v73 = vld [vmem:[%s1 + $0x100] sm:$0xff]
    %v74 = vld [vmem:[%s1 + $0x108] sm:$0xff]
    %v75 = vld [vmem:[%s1 + $0x110] sm:$0xff]
    %v76 = vld [vmem:[%s1 + $0x118] sm:$0xff]
    %v77 = vld [vmem:[%s1 + $0x120] sm:$0xff]
    %v78 = vld [vmem:[%s1 + $0x128] sm:$0xff]
    %v79 = vld [vmem:[%s1 + $0x130] sm:$0xff]
    %v80 = vld [vmem:[%s1 + $0x138] sm:$0xff]
    %v81 = vld [vmem:[%s1 + $0x140] sm:$0xff]
    %v82 = vld [vmem:[%s1 + $0x148] sm:$0xff]
    %v83 = vld [vmem:[%s1 + $0x150] sm:$0xff]
    %v84 = vld [vmem:[%s1 + $0x158] sm:$0xff]
    %v85 = vld [vmem:[%s1 + $0x160] sm:$0xff]
    %v86 = vld [vmem:[%s1 + $0x168] sm:$0xff]
    %v87 = vld [vmem:[%s1 + $0x170] sm:$0xff]
    %v88 = vld [vmem:[%s1 + $0x178] sm:$0xff]
    %v89 = vld [vmem:[%s1 + $0x180] sm:$0xff]
    %v90 = vld [vmem:[%s1 + $0x188] sm:$0xff]
    %v91 = vld [vmem:[%s1 + $0x190] sm:$0xff]
    %v92 = vld [vmem:[%s1 + $0x198] sm:$0xff]
    %v93 = vld [vmem:[%s1 + $0x1a0] sm:$0xff]
    %v94 = vld [vmem:[%s1 + $0x1a8] sm:$0xff]
    %v95 = vld [vmem:[%s1 + $0x1b0] sm:$0xff]
    %v96 = vld [vmem:[%s1 + $0x1b8] sm:$0xff]
    %v97 = vld [vmem:[%s1 + $0x1c0] sm:$0xff]
    %v98 = vld [vmem:[%s1 + $0x1c8] sm:$0xff]
    %v99 = vld [vmem:[%s1 + $0x1d0] sm:$0xff]
    %v100 = vld [vmem:[%s1 + $0x1d8] sm:$0xff]
    %v101 = vld [vmem:[%s1 + $0x1e0] sm:$0xff]
    %v102 = vld [vmem:[%s1 + $0x1e8] sm:$0xff]
    %v103 = vld [vmem:[%s1 + $0x1f0] sm:$0xff]
    %v104 = vld [vmem:[%s1 + $0x1f8] sm:$0xff]
    %v105 = vld [vmem:[%s2] sm:$0xff]
    %v106 = vld [vmem:[%s2 + $0x8] sm:$0xff]
    %v107 = vld [vmem:[%s2 + $0x10] sm:$0xff]
    %v108 = vld [vmem:[%s2 + $0x18] sm:$0xff]
    %v109 = vld [vmem:[%s2 + $0x20] sm:$0xff]
    %v110 = vld [vmem:[%s2 + $0x28] sm:$0xff]
    %v111 = vld [vmem:[%s2 + $0x30] sm:$0xff]
    %v112 = vld [vmem:[%s2 + $0x38] sm:$0xff]
    %v113 = vld [vmem:[%s2 + $0x40] sm:$0xff]
    %v114 = vld [vmem:[%s2 + $0x48] sm:$0xff]
    %v115 = vld [vmem:[%s2 + $0x50] sm:$0xff]
    %v116 = vld [vmem:[%s2 + $0x58] sm:$0xff]
    %v117 = vld [vmem:[%s2 + $0x60] sm:$0xff]
    %v118 = vld [vmem:[%s2 + $0x68] sm:$0xff]
    %v119 = vld [vmem:[%s2 + $0x70] sm:$0xff]
    %v120 = vld [vmem:[%s2 + $0x78] sm:$0xff]
    %v121 = vld [vmem:[%s2 + $0x80] sm:$0xff]
    %v122 = vld [vmem:[%s2 + $0x88] sm:$0xff]
    %v123 = vld [vmem:[%s2 + $0x90] sm:$0xff]
    %v124 = vld [vmem:[%s2 + $0x98] sm:$0xff]
    %v125 = vld [vmem:[%s2 + $0xa0] sm:$0xff]
    %v126 = vld [vmem:[%s2 + $0xa8] sm:$0xff]
    %v127 = vld [vmem:[%s2 + $0xb0] sm:$0xff]
    %v128 = vld [vmem:[%s2 + $0xb8] sm:$0xff]
    %v129 = vld [vmem:[%s2 + $0xc0] sm:$0xff]
    %v130 = vld [vmem:[%s2 + $0xc8] sm:$0xff]
    %v131 = vld [vmem:[%s2 + $0xd0] sm:$0xff]
    %v132 = vld [vmem:[%s2 + $0xd8] sm:$0xff]
    %v133 = vld [vmem:[%s2 + $0xe0] sm:$0xff]
    %v134 = vld [vmem:[%s2 + $0xe8] sm:$0xff]
    %v135 = vld [vmem:[%s2 + $0xf0] sm:$0xff]
    %v136 = vld [vmem:[%s2 + $0xf8] sm:$0xff]
    %v137 = vld [vmem:[%s2 + $0x100] sm:$0xff]
    %v138 = vld [vmem:[%s2 + $0x108] sm:$0xff]
    %v139 = vld [vmem:[%s2 + $0x110] sm:$0xff]
    %v140 = vld [vmem:[%s2 + $0x118] sm:$0xff]
    %v141 = vld [vmem:[%s2 + $0x120] sm:$0xff]
    %v142 = vld [vmem:[%s2 + $0x128] sm:$0xff]
    %v143 = vld [vmem:[%s2 + $0x130] sm:$0xff]
    %v144 = vld [vmem:[%s2 + $0x138] sm:$0xff]
    %v145 = vld [vmem:[%s2 + $0x140] sm:$0xff]
    %v146 = vld [vmem:[%s2 + $0x148] sm:$0xff]
    %v147 = vld [vmem:[%s2 + $0x150] sm:$0xff]
    %v148 = vld [vmem:[%s2 + $0x158] sm:$0xff]
    %v149 = vld [vmem:[%s2 + $0x160] sm:$0xff]
    %v150 = vld [vmem:[%s2 + $0x168] sm:$0xff]
    %v151 = vld [vmem:[%s2 + $0x170] sm:$0xff]
    %v152 = vld [vmem:[%s2 + $0x178] sm:$0xff]
    %v153 = vld [vmem:[%s2 + $0x180] sm:$0xff]
    %v154 = vld [vmem:[%s2 + $0x188] sm:$0xff]
    %v155 = vld [vmem:[%s2 + $0x190] sm:$0xff]
    %v156 = vld [vmem:[%s2 + $0x198] sm:$0xff]
    %v157 = vld [vmem:[%s2 + $0x1a0] sm:$0xff]
    %v158 = vld [vmem:[%s2 + $0x1a8] sm:$0xff]
    %v159 = vld [vmem:[%s2 + $0x1b0] sm:$0xff]
    %v160 = vld [vmem:[%s2 + $0x1b8] sm:$0xff]
    %v161 = vld [vmem:[%s2 + $0x1c0] sm:$0xff]
    %v162 = vld [vmem:[%s2 + $0x1c8] sm:$0xff]
    %v163 = vld [vmem:[%s2 + $0x1d0] sm:$0xff]
    %v164 = vld [vmem:[%s2 + $0x1d8] sm:$0xff]
    %v165 = vld [vmem:[%s2 + $0x1e0] sm:$0xff]
    %v166 = vld [vmem:[%s2 + $0x1e8] sm:$0xff]
    %v167 = vld [vmem:[%s2 + $0x1f0] sm:$0xff]
    %v168 = vld [vmem:[%s2 + $0x1f8] sm:$0xff]
    %v169 = vld [vmem:[%s3] sm:$0x1]
    %v170 = vld [vmem:[%s4] sm:$0x1]
    %v171 = vld [vmem:[%s6] sm:$0x1]
    %v172 = vld [vmem:[#allocation2] sm:$0xff]
    %v173 = vld [vmem:[#allocation2 + $0x8] sm:$0xff]
    %v174 = vld [vmem:[#allocation2 + $0x10] sm:$0xff]
    %v175 = vld [vmem:[#allocation2 + $0x18] sm:$0xff]
    %v176 = vld [vmem:[#allocation2 + $0x20] sm:$0xff]
    %v177 = vld [vmem:[#allocation2 + $0x28] sm:$0xff]
    %v178 = vld [vmem:[#allocation2 + $0x30] sm:$0xff]
    %v179 = vld [vmem:[#allocation2 + $0x38] sm:$0xff]
    %v180 = vld [vmem:[#allocation2 + $0x40] sm:$0xff]
    %v181 = vld [vmem:[#allocation2 + $0x48] sm:$0xff]
    %v182 = vld [vmem:[#allocation2 + $0x50] sm:$0xff]
    %v183 = vld [vmem:[#allocation2 + $0x58] sm:$0xff]
    %v184 = vld [vmem:[#allocation2 + $0x60] sm:$0xff]
    %v185 = vld [vmem:[#allocation2 + $0x68] sm:$0xff]
    %v186 = vld [vmem:[#allocation2 + $0x70] sm:$0xff]
    %v187 = vld [vmem:[#allocation2 + $0x78] sm:$0xff]
    %v188 = vld [vmem:[#allocation2 + $0x80] sm:$0xff]
    %v189 = vld [vmem:[#allocation2 + $0x88] sm:$0xff]
    %v190 = vld [vmem:[#allocation2 + $0x90] sm:$0xff]
    %v191 = vld [vmem:[#allocation2 + $0x98] sm:$0xff]
    %v192 = vld [vmem:[#allocation2 + $0xa0] sm:$0xff]
    %v193 = vld [vmem:[#allocation2 + $0xa8] sm:$0xff]
    %v194 = vld [vmem:[#allocation2 + $0xb0] sm:$0xff]
    %v195 = vld [vmem:[#allocation2 + $0xb8] sm:$0xff]
    %v196 = vld [vmem:[#allocation2 + $0xc0] sm:$0xff]
    %v197 = vld [vmem:[#allocation2 + $0xc8] sm:$0xff]
    %v198 = vld [vmem:[#allocation2 + $0xd0] sm:$0xff]
    %v199 = vld [vmem:[#allocation2 + $0xd8] sm:$0xff]
    %v200 = vld [vmem:[#allocation2 + $0xe0] sm:$0xff]
    %v201 = vld [vmem:[#allocation2 + $0xe8] sm:$0xff]
    %v202 = vld [vmem:[#allocation2 + $0xf0] sm:$0xff]
    %v203 = vld [vmem:[#allocation2 + $0xf8] sm:$0xff]
    %v204 = vld [vmem:[#allocation2 + $0x100] sm:$0xff]
    %v205 = vld [vmem:[#allocation2 + $0x108] sm:$0xff]
    %v206 = vld [vmem:[#allocation2 + $0x110] sm:$0xff]
    %v207 = vld [vmem:[#allocation2 + $0x118] sm:$0xff]
    %v208 = vld [vmem:[#allocation2 + $0x120] sm:$0xff]
    %v209 = vld [vmem:[#allocation2 + $0x128] sm:$0xff]
    %v210 = vld [vmem:[#allocation2 + $0x130] sm:$0xff]
    %v211 = vld [vmem:[#allocation2 + $0x138] sm:$0xff]
    %v212 = vld [vmem:[#allocation2 + $0x140] sm:$0xff]
    %v213 = vld [vmem:[#allocation2 + $0x148] sm:$0xff]
    %v214 = vld [vmem:[#allocation2 + $0x150] sm:$0xff]
    %v215 = vld [vmem:[#allocation2 + $0x158] sm:$0xff]
    %v216 = vld [vmem:[#allocation2 + $0x160] sm:$0xff]
    %v217 = vld [vmem:[#allocation2 + $0x168] sm:$0xff]
    %v218 = vld [vmem:[#allocation2 + $0x170] sm:$0xff]
    %v219 = vld [vmem:[#allocation2 + $0x178] sm:$0xff]
    %v220 = vld [vmem:[#allocation2 + $0x180] sm:$0xff]
    %v221 = vld [vmem:[#allocation2 + $0x188] sm:$0xff]
    %v222 = vld [vmem:[#allocation2 + $0x190] sm:$0xff]
    %v223 = vld [vmem:[#allocation2 + $0x198] sm:$0xff]
    %v224 = vld [vmem:[#allocation2 + $0x1a0] sm:$0xff]
    %v225 = vld [vmem:[#allocation2 + $0x1a8] sm:$0xff]
    %v226 = vld [vmem:[#allocation2 + $0x1b0] sm:$0xff]
    %v227 = vld [vmem:[#allocation2 + $0x1b8] sm:$0xff]
    %v228 = vld [vmem:[#allocation2 + $0x1c0] sm:$0xff]
    %v229 = vld [vmem:[#allocation2 + $0x1c8] sm:$0xff]
    %v230 = vld [vmem:[#allocation2 + $0x1d0] sm:$0xff]
    %v231 = vld [vmem:[#allocation2 + $0x1d8] sm:$0xff]
    %v232 = vld [vmem:[#allocation2 + $0x1e0] sm:$0xff]
    %v233 = vld [vmem:[#allocation2 + $0x1e8] sm:$0xff]
    %v234 = vld [vmem:[#allocation2 + $0x1f0] sm:$0xff]
    %v235 = vld [vmem:[#allocation2 + $0x1f8] sm:$0xff]
    %v236 = vld [vmem:[#allocation2 + $0x200] sm:$0xff]
    %v237 = vld [vmem:[#allocation2 + $0x208] sm:$0xff]
    %v238 = vld [vmem:[#allocation2 + $0x210] sm:$0xff]
    %v239 = vld [vmem:[#allocation2 + $0x218] sm:$0xff]
    %v240 = vld [vmem:[#allocation2 + $0x220] sm:$0xff]
    %v241 = vld [vmem:[#allocation2 + $0x228] sm:$0xff]
    %v242 = vld [vmem:[#allocation2 + $0x230] sm:$0xff]
    %v243 = vld [vmem:[#allocation2 + $0x238] sm:$0xff]
    %v244 = vld [vmem:[#allocation2 + $0x240] sm:$0xff]
    %v245 = vld [vmem:[#allocation2 + $0x248] sm:$0xff]
    %v246 = vld [vmem:[#allocation2 + $0x250] sm:$0xff]
    %v247 = vld [vmem:[#allocation2 + $0x258] sm:$0xff]
    %v248 = vld [vmem:[#allocation2 + $0x260] sm:$0xff]
    %v249 = vld [vmem:[#allocation2 + $0x268] sm:$0xff]
    %v250 = vld [vmem:[#allocation2 + $0x270] sm:$0xff]
    %v251 = vld [vmem:[#allocation2 + $0x278] sm:$0xff]
    %v252 = vld [vmem:[#allocation2 + $0x280] sm:$0xff]
    %v253 = vld [vmem:[#allocation2 + $0x288] sm:$0xff]
    %v254 = vld [vmem:[#allocation2 + $0x290] sm:$0xff]
    %v255 = vld [vmem:[#allocation2 + $0x298] sm:$0xff]
    %v256 = vld [vmem:[#allocation2 + $0x2a0] sm:$0xff]
    %v257 = vld [vmem:[#allocation2 + $0x2a8] sm:$0xff]
    %v258 = vld [vmem:[#allocation2 + $0x2b0] sm:$0xff]
    %v259 = vld [vmem:[#allocation2 + $0x2b8] sm:$0xff]
    %v260 = vld [vmem:[#allocation2 + $0x2c0] sm:$0xff]
    %v261 = vld [vmem:[#allocation2 + $0x2c8] sm:$0xff]
    %v262 = vld [vmem:[#allocation2 + $0x2d0] sm:$0xff]
    %v263 = vld [vmem:[#allocation2 + $0x2d8] sm:$0xff]
    %v264 = vld [vmem:[#allocation2 + $0x2e0] sm:$0xff]
    %v265 = vld [vmem:[#allocation2 + $0x2e8] sm:$0xff]
    %v266 = vld [vmem:[#allocation2 + $0x2f0] sm:$0xff]
    %v267 = vld [vmem:[#allocation2 + $0x2f8] sm:$0xff]
    %v268 = vld [vmem:[#allocation2 + $0x300] sm:$0xff]
    %v269 = vld [vmem:[#allocation2 + $0x308] sm:$0xff]
    %v270 = vld [vmem:[#allocation2 + $0x310] sm:$0xff]
    %v271 = vld [vmem:[#allocation2 + $0x318] sm:$0xff]
    %v272 = vld [vmem:[#allocation2 + $0x320] sm:$0xff]
    %v273 = vld [vmem:[#allocation2 + $0x328] sm:$0xff]
    %v274 = vld [vmem:[#allocation2 + $0x330] sm:$0xff]
    %v275 = vld [vmem:[#allocation2 + $0x338] sm:$0xff]
    %v276 = vld [vmem:[#allocation2 + $0x340] sm:$0xff]
    %v277 = vld [vmem:[#allocation2 + $0x348] sm:$0xff]
    %v278 = vld [vmem:[#allocation2 + $0x350] sm:$0xff]
    %v279 = vld [vmem:[#allocation2 + $0x358] sm:$0xff]
    %v280 = vld [vmem:[#allocation2 + $0x360] sm:$0xff]
    %v281 = vld [vmem:[#allocation2 + $0x368] sm:$0xff]
    %v282 = vld [vmem:[#allocation2 + $0x370] sm:$0xff]
    %v283 = vld [vmem:[#allocation2 + $0x378] sm:$0xff]
    %v284 = vld [vmem:[#allocation2 + $0x380] sm:$0xff]
    %v285 = vld [vmem:[#allocation2 + $0x388] sm:$0xff]
    %v286 = vld [vmem:[#allocation2 + $0x390] sm:$0xff]
    %v287 = vld [vmem:[#allocation2 + $0x398] sm:$0xff]
    %v288 = vld [vmem:[#allocation2 + $0x3a0] sm:$0xff]
    %v289 = vld [vmem:[#allocation2 + $0x3a8] sm:$0xff]
    %v290 = vld [vmem:[#allocation2 + $0x3b0] sm:$0xff]
    %v291 = vld [vmem:[#allocation2 + $0x3b8] sm:$0xff]
    %v292 = vld [vmem:[#allocation2 + $0x3c0] sm:$0xff]
    %v293 = vld [vmem:[#allocation2 + $0x3c8] sm:$0xff]
    %v294 = vld [vmem:[#allocation2 + $0x3d0] sm:$0xff]
    %v295 = vld [vmem:[#allocation2 + $0x3d8] sm:$0xff]
    %v296 = vld [vmem:[#allocation2 + $0x3e0] sm:$0xff]
    %v297 = vld [vmem:[#allocation2 + $0x3e8] sm:$0xff]
    %v298 = vld [vmem:[#allocation2 + $0x3f0] sm:$0xff]
    %v299 = vld [vmem:[#allocation2 + $0x3f8] sm:$0xff]
    %v300 = vld [vmem:[#allocation2 + $0x400] sm:$0xff]
    %v301 = vld [vmem:[#allocation2 + $0x408] sm:$0xff]
    %v302 = vld [vmem:[#allocation2 + $0x410] sm:$0xff]
    %v303 = vld [vmem:[#allocation2 + $0x418] sm:$0xff]
    %v304 = vld [vmem:[#allocation2 + $0x420] sm:$0xff]
    %v305 = vld [vmem:[#allocation2 + $0x428] sm:$0xff]
    %v306 = vld [vmem:[#allocation2 + $0x430] sm:$0xff]
    %v307 = vld [vmem:[#allocation2 + $0x438] sm:$0xff]
    %v308 = vld [vmem:[#allocation2 + $0x440] sm:$0xff]
    %v309 = vld [vmem:[#allocation2 + $0x448] sm:$0xff]
    %v310 = vld [vmem:[#allocation2 + $0x450] sm:$0xff]
    %v311 = vld [vmem:[#allocation2 + $0x458] sm:$0xff]
    %v312 = vld [vmem:[#allocation2 + $0x460] sm:$0xff]
    %v313 = vld [vmem:[#allocation2 + $0x468] sm:$0xff]
    %v314 = vld [vmem:[#allocation2 + $0x470] sm:$0xff]
    %v315 = vld [vmem:[#allocation2 + $0x478] sm:$0xff]
    %v316 = vld [vmem:[%s0] sm:$0xff]
    %v317 = vld [vmem:[%s0 + $0x8] sm:$0xff]
    %v318 = vld [vmem:[%s0 + $0x10] sm:$0xff]
    %v319 = vld [vmem:[%s0 + $0x18] sm:$0xff]
    %v320 = vld [vmem:[%s0 + $0x20] sm:$0xff]
    %v321 = vld [vmem:[%s0 + $0x28] sm:$0xff]
    %v322 = vld [vmem:[%s0 + $0x30] sm:$0xff]
    %v323 = vld [vmem:[%s0 + $0x38] sm:$0xff]
    %v324 = vld [vmem:[%s0 + $0x40] sm:$0xff]
    %v325 = vld [vmem:[%s0 + $0x48] sm:$0xff]
    %v326 = vld [vmem:[%s0 + $0x50] sm:$0xff]
    %v327 = vld [vmem:[%s0 + $0x58] sm:$0xff]
    %v328 = vld [vmem:[%s0 + $0x60] sm:$0xff]
    %v329 = vld [vmem:[%s0 + $0x68] sm:$0xff]
    %v330 = vld [vmem:[%s0 + $0x70] sm:$0xff]
    %v331 = vld [vmem:[%s0 + $0x78] sm:$0xff]
    %v332 = vld [vmem:[%s0 + $0x80] sm:$0xff]
    %v333 = vld [vmem:[%s0 + $0x88] sm:$0xff]
    %v334 = vld [vmem:[%s0 + $0x90] sm:$0xff]
    %v335 = vld [vmem:[%s0 + $0x98] sm:$0xff]
    %v336 = vld [vmem:[%s0 + $0xa0] sm:$0xff]
    %v337 = vld [vmem:[%s0 + $0xa8] sm:$0xff]
    %v338 = vld [vmem:[%s0 + $0xb0] sm:$0xff]
    %v339 = vld [vmem:[%s0 + $0xb8] sm:$0xff]
    %v340 = vld [vmem:[%s0 + $0xc0] sm:$0xff]
    %v341 = vld [vmem:[%s0 + $0xc8] sm:$0xff]
    %v342 = vld [vmem:[%s0 + $0xd0] sm:$0xff]
    %v343 = vld [vmem:[%s0 + $0xd8] sm:$0xff]
    %v344 = vld [vmem:[%s0 + $0xe0] sm:$0xff]
    %v345 = vld [vmem:[%s0 + $0xe8] sm:$0xff]
    %v346 = vld [vmem:[%s0 + $0xf0] sm:$0xff]
    %v347 = vld [vmem:[%s0 + $0xf8] sm:$0xff]
    %v348 = vld [vmem:[%s0 + $0x100] sm:$0xff]
    %v349 = vld [vmem:[%s0 + $0x108] sm:$0xff]
    %v350 = vld [vmem:[%s0 + $0x110] sm:$0xff]
    %v351 = vld [vmem:[%s0 + $0x118] sm:$0xff]
    %v352 = vld [vmem:[%s0 + $0x120] sm:$0xff]
    %v353 = vld [vmem:[%s0 + $0x128] sm:$0xff]
    %v354 = vld [vmem:[%s0 + $0x130] sm:$0xff]
    %v355 = vld [vmem:[%s0 + $0x138] sm:$0xff]
    %v356 = vld [vmem:[%s0 + $0x140] sm:$0xff]
    %v357 = vld [vmem:[%s0 + $0x148] sm:$0xff]
    %v358 = vld [vmem:[%s0 + $0x150] sm:$0xff]
    %v359 = vld [vmem:[%s0 + $0x158] sm:$0xff]
    %v360 = vld [vmem:[%s0 + $0x160] sm:$0xff]
    %v361 = vld [vmem:[%s0 + $0x168] sm:$0xff]
    %v362 = vld [vmem:[%s0 + $0x170] sm:$0xff]
    %v363 = vld [vmem:[%s0 + $0x178] sm:$0xff]
    %v364 = vld [vmem:[%s0 + $0x180] sm:$0xff]
    %v365 = vld [vmem:[%s0 + $0x188] sm:$0xff]
    %v366 = vld [vmem:[%s0 + $0x190] sm:$0xff]
    %v367 = vld [vmem:[%s0 + $0x198] sm:$0xff]
    %v368 = vld [vmem:[%s0 + $0x1a0] sm:$0xff]
    %v369 = vld [vmem:[%s0 + $0x1a8] sm:$0xff]
    %v370 = vld [vmem:[%s0 + $0x1b0] sm:$0xff]
    %v371 = vld [vmem:[%s0 + $0x1b8] sm:$0xff]
    %v372 = vld [vmem:[%s0 + $0x1c0] sm:$0xff]
    %v373 = vld [vmem:[%s0 + $0x1c8] sm:$0xff]
    %v374 = vld [vmem:[%s0 + $0x1d0] sm:$0xff]
    %v375 = vld [vmem:[%s0 + $0x1d8] sm:$0xff]
    %v376 = vld [vmem:[%s0 + $0x1e0] sm:$0xff]
    %v377 = vld [vmem:[%s0 + $0x1e8] sm:$0xff]
    %v378 = vld [vmem:[%s0 + $0x1f0] sm:$0xff]
    %v379 = vld [vmem:[%s0 + $0x1f8] sm:$0xff]
    %v380 = vadd.f32 %v316, %v317
    %v381 = vadd.f32 %v380, %v318
    %v382 = vadd.f32 %v381, %v319
    %v383 = vadd.f32 %v382, %v320
    %v384 = vadd.f32 %v383, %v321
    %v385 = vadd.f32 %v384, %v322
    %v386 = vadd.f32 %v385, %v323
    %v387 = vadd.f32 %v386, %v324
    %v388 = vadd.f32 %v387, %v325
    %v389 = vadd.f32 %v388, %v326
    %v390 = vadd.f32 %v389, %v327
    %v391 = vadd.f32 %v390, %v328
    %v392 = vadd.f32 %v391, %v329
    %v393 = vadd.f32 %v392, %v330
    %v394 = vadd.f32 %v393, %v331
    %v395 = vadd.f32 %v394, %v332
    %v396 = vadd.f32 %v395, %v333
    %v397 = vadd.f32 %v396, %v334
    %v398 = vadd.f32 %v397, %v335
    %v399 = vadd.f32 %v398, %v336
    %v400 = vadd.f32 %v399, %v337
    %v401 = vadd.f32 %v400, %v338
    %v402 = vadd.f32 %v401, %v339
    %v403 = vadd.f32 %v402, %v340
    %v404 = vadd.f32 %v403, %v341
    %v405 = vadd.f32 %v404, %v342
    %v406 = vadd.f32 %v405, %v343
    %v407 = vadd.f32 %v406, %v344
    %v408 = vadd.f32 %v407, %v345
    %v409 = vadd.f32 %v408, %v346
    %v410 = vadd.f32 %v409, %v347
    %v411 = vadd.f32 %v410, %v348
    %v412 = vadd.f32 %v411, %v349
    %v413 = vadd.f32 %v412, %v350
    %v414 = vadd.f32 %v413, %v351
    %v415 = vadd.f32 %v414, %v352
    %v416 = vadd.f32 %v415, %v353
    %v417 = vadd.f32 %v416, %v354
    %v418 = vadd.f32 %v417, %v355
    %v419 = vadd.f32 %v418, %v356
    %v420 = vadd.f32 %v419, %v357
    %v421 = vadd.f32 %v420, %v358
    %v422 = vadd.f32 %v421, %v359
    %v423 = vadd.f32 %v422, %v360
    %v424 = vadd.f32 %v423, %v361
    %v425 = vadd.f32 %v424, %v362
    %v426 = vadd.f32 %v425, %v363
    %v427 = vadd.f32 %v426, %v364
    %v428 = vadd.f32 %v427, %v365
    %v429 = vadd.f32 %v428, %v366
    %v430 = vadd.f32 %v429, %v367
    %v431 = vadd.f32 %v430, %v368
    %v432 = vadd.f32 %v431, %v369
    %v433 = vadd.f32 %v432, %v370
    %v434 = vadd.f32 %v433, %v371
    %v435 = vadd.f32 %v434, %v372
    %v436 = vadd.f32 %v435, %v373
    %v437 = vadd.f32 %v436, %v374
    %v438 = vadd.f32 %v437, %v375
    %v439 = vadd.f32 %v438, %v376
    %v440 = vadd.f32 %v439, %v377
    %v441 = vadd.f32 %v440, %v378
    %v442 = vadd.f32 %v441, %v379
    %v443 = vrot.slane %v442, 4
    %v444 = vadd.f32 %v442, %v443
    %v445 = vrot.slane %v444, 2
    %v446 = vadd.f32 %v444, %v445
    %v447 = vrot.slane %v446, 1
    %v448 = vadd.f32 %v446, %v447
    %v449 = vmul.f32 %v448, 0.001953125
    %v450 = vmul.f32 %v316, %v316
    %v451 = vmul.f32 %v317, %v317
    %v452 = vmul.f32 %v318, %v318
    %v453 = vmul.f32 %v319, %v319
    %v454 = vmul.f32 %v320, %v320
    %v455 = vmul.f32 %v321, %v321
    %v456 = vmul.f32 %v322, %v322
    %v457 = vmul.f32 %v323, %v323
    %v458 = vmul.f32 %v324, %v324
    %v459 = vmul.f32 %v325, %v325
    %v460 = vmul.f32 %v326, %v326
    %v461 = vmul.f32 %v327, %v327
    %v462 = vmul.f32 %v328, %v328
    %v463 = vmul.f32 %v329, %v329
    %v464 = vmul.f32 %v330, %v330
    %v465 = vmul.f32 %v331, %v331
    %v466 = vmul.f32 %v332, %v332
    %v467 = vmul.f32 %v333, %v333
    %v468 = vmul.f32 %v334, %v334
    %v469 = vmul.f32 %v335, %v335
    %v470 = vmul.f32 %v336, %v336
    %v471 = vmul.f32 %v337, %v337
    %v472 = vmul.f32 %v338, %v338
    %v473 = vmul.f32 %v339, %v339
    %v474 = vmul.f32 %v340, %v340
    %v475 = vmul.f32 %v341, %v341
    %v476 = vmul.f32 %v342, %v342
    %v477 = vmul.f32 %v343, %v343
    %v478 = vmul.f32 %v344, %v344
    %v479 = vmul.f32 %v345, %v345
    %v480 = vmul.f32 %v346, %v346
    %v481 = vmul.f32 %v347, %v347
    %v482 = vmul.f32 %v348, %v348
    %v483 = vmul.f32 %v349, %v349
    %v484 = vmul.f32 %v350, %v350
    %v485 = vmul.f32 %v351, %v351
    %v486 = vmul.f32 %v352, %v352
    %v487 = vmul.f32 %v353, %v353
    %v488 = vmul.f32 %v354, %v354
    %v489 = vmul.f32 %v355, %v355
    %v490 = vmul.f32 %v356, %v356
    %v491 = vmul.f32 %v357, %v357
    %v492 = vmul.f32 %v358, %v358
    %v493 = vmul.f32 %v359, %v359
    %v494 = vmul.f32 %v360, %v360
    %v495 = vmul.f32 %v361, %v361
    %v496 = vmul.f32 %v362, %v362
    %v497 = vmul.f32 %v363, %v363
    %v498 = vmul.f32 %v364, %v364
    %v499 = vmul.f32 %v365, %v365
    %v500 = vmul.f32 %v366, %v366
    %v501 = vmul.f32 %v367, %v367
    %v502 = vmul.f32 %v368, %v368
    %v503 = vmul.f32 %v369, %v369
    %v504 = vmul.f32 %v370, %v370
    %v505 = vmul.f32 %v371, %v371
    %v506 = vmul.f32 %v372, %v372
    %v507 = vmul.f32 %v373, %v373
    %v508 = vmul.f32 %v374, %v374
    %v509 = vmul.f32 %v375, %v375
    %v510 = vmul.f32 %v376, %v376
    %v511 = vmul.f32 %v377, %v377
    %v512 = vmul.f32 %v378, %v378
    %v513 = vmul.f32 %v379, %v379
    %v514 = vadd.f32 %v450, %v451
    %v515 = vadd.f32 %v514, %v452
    %v516 = vadd.f32 %v515, %v453
    %v517 = vadd.f32 %v516, %v454
    %v518 = vadd.f32 %v517, %v455
    %v519 = vadd.f32 %v518, %v456
    %v520 = vadd.f32 %v519, %v457
    %v521 = vadd.f32 %v520, %v458
    %v522 = vadd.f32 %v521, %v459
    %v523 = vadd.f32 %v522, %v460
    %v524 = vadd.f32 %v523, %v461
    %v525 = vadd.f32 %v524, %v462
    %v526 = vadd.f32 %v525, %v463
    %v527 = vadd.f32 %v526, %v464
    %v528 = vadd.f32 %v527, %v465
    %v529 = vadd.f32 %v528, %v466
    %v530 = vadd.f32 %v529, %v467
    %v531 = vadd.f32 %v530, %v468
    %v532 = vadd.f32 %v531, %v469
    %v533 = vadd.f32 %v532, %v470
    %v534 = vadd.f32 %v533, %v471
    %v535 = vadd.f32 %v534, %v472
    %v536 = vadd.f32 %v535, %v473
    %v537 = vadd.f32 %v536, %v474
    %v538 = vadd.f32 %v537, %v475
    %v539 = vadd.f32 %v538, %v476
    %v540 = vadd.f32 %v539, %v477
    %v541 = vadd.f32 %v540, %v478
    %v542 = vadd.f32 %v541, %v479
    %v543 = vadd.f32 %v542, %v480
    %v544 = vadd.f32 %v543, %v481
    %v545 = vadd.f32 %v544, %v482
    %v546 = vadd.f32 %v545, %v483
    %v547 = vadd.f32 %v546, %v484
    %v548 = vadd.f32 %v547, %v485
    %v549 = vadd.f32 %v548, %v486
    %v550 = vadd.f32 %v549, %v487
    %v551 = vadd.f32 %v550, %v488
    %v552 = vadd.f32 %v551, %v489
    %v553 = vadd.f32 %v552, %v490
    %v554 = vadd.f32 %v553, %v491
    %v555 = vadd.f32 %v554, %v492
    %v556 = vadd.f32 %v555, %v493
    %v557 = vadd.f32 %v556, %v494
    %v558 = vadd.f32 %v557, %v495
    %v559 = vadd.f32 %v558, %v496
    %v560 = vadd.f32 %v559, %v497
    %v561 = vadd.f32 %v560, %v498
    %v562 = vadd.f32 %v561, %v499
    %v563 = vadd.f32 %v562, %v500
    %v564 = vadd.f32 %v563, %v501
    %v565 = vadd.f32 %v564, %v502
    %v566 = vadd.f32 %v565, %v503
    %v567 = vadd.f32 %v566, %v504
    %v568 = vadd.f32 %v567, %v505
    %v569 = vadd.f32 %v568, %v506
    %v570 = vadd.f32 %v569, %v507
    %v571 = vadd.f32 %v570, %v508
    %v572 = vadd.f32 %v571, %v509
    %v573 = vadd.f32 %v572, %v510
    %v574 = vadd.f32 %v573, %v511
    %v575 = vadd.f32 %v574, %v512
    %v576 = vadd.f32 %v575, %v513
    %v577 = vrot.slane %v576, 4
    %v578 = vadd.f32 %v576, %v577
    %v579 = vrot.slane %v578, 2
    %v580 = vadd.f32 %v578, %v579
    %v581 = vrot.slane %v580, 1
    %v582 = vadd.f32 %v580, %v581
    %v583 = vmul.f32 %v582, 0.001953125
    %v584 = vmul.f32 %v449, %v449
    %v585 = vsub.f32 %v583, %v584
    %v586 = vmax.f32 %v585, 0.0
    %v587 = vadd.f32 %v586, 1e-05
    %v588 = vrsqrt.pop %v587
    %v589 = vmul.f32 %v169, %v588
    %v590 = vmul.f32 %v449, %v589
    %v591 = vsub.f32 %v170, %v590
    %v593 = vlaneseq
    %v594 = vshrl.u32 %v593, 7
    %v595 = vsub.s32 0, %v594
    %v596 = vrot.slane %v589, %v595
    %v598 = vmul.f32 %v316, %v596
    %v599 = vmul.f32 %v317, %v596
    %v600 = vmul.f32 %v318, %v596
    %v601 = vmul.f32 %v319, %v596
    %v602 = vmul.f32 %v320, %v596
    %v603 = vmul.f32 %v321, %v596
    %v604 = vmul.f32 %v322, %v596
    %v605 = vmul.f32 %v323, %v596
    %v606 = vmul.f32 %v324, %v596
    %v607 = vmul.f32 %v325, %v596
    %v608 = vmul.f32 %v326, %v596
    %v609 = vmul.f32 %v327, %v596
    %v610 = vmul.f32 %v328, %v596
    %v611 = vmul.f32 %v329, %v596
    %v612 = vmul.f32 %v330, %v596
    %v613 = vmul.f32 %v331, %v596
    %v614 = vmul.f32 %v332, %v596
    %v615 = vmul.f32 %v333, %v596
    %v616 = vmul.f32 %v334, %v596
    %v617 = vmul.f32 %v335, %v596
    %v618 = vmul.f32 %v336, %v596
    %v619 = vmul.f32 %v337, %v596
    %v620 = vmul.f32 %v338, %v596
    %v621 = vmul.f32 %v339, %v596
    %v622 = vmul.f32 %v340, %v596
    %v623 = vmul.f32 %v341, %v596
    %v624 = vmul.f32 %v342, %v596
    %v625 = vmul.f32 %v343, %v596
    %v626 = vmul.f32 %v344, %v596
    %v627 = vmul.f32 %v345, %v596
    %v628 = vmul.f32 %v346, %v596
    %v629 = vmul.f32 %v347, %v596
    %v630 = vmul.f32 %v348, %v596
    %v631 = vmul.f32 %v349, %v596
    %v632 = vmul.f32 %v350, %v596
    %v633 = vmul.f32 %v351, %v596
    %v634 = vmul.f32 %v352, %v596
    %v635 = vmul.f32 %v353, %v596
    %v636 = vmul.f32 %v354, %v596
    %v637 = vmul.f32 %v355, %v596
    %v638 = vmul.f32 %v356, %v596
    %v639 = vmul.f32 %v357, %v596
    %v640 = vmul.f32 %v358, %v596
    %v641 = vmul.f32 %v359, %v596
    %v642 = vmul.f32 %v360, %v596
    %v643 = vmul.f32 %v361, %v596
    %v644 = vmul.f32 %v362, %v596
    %v645 = vmul.f32 %v363, %v596
    %v646 = vmul.f32 %v364, %v596
    %v647 = vmul.f32 %v365, %v596
    %v648 = vmul.f32 %v366, %v596
    %v649 = vmul.f32 %v367, %v596
    %v650 = vmul.f32 %v368, %v596
    %v651 = vmul.f32 %v369, %v596
    %v652 = vmul.f32 %v370, %v596
    %v653 = vmul.f32 %v371, %v596
    %v654 = vmul.f32 %v372, %v596
    %v655 = vmul.f32 %v373, %v596
    %v656 = vmul.f32 %v374, %v596
    %v657 = vmul.f32 %v375, %v596
    %v658 = vmul.f32 %v376, %v596
    %v659 = vmul.f32 %v377, %v596
    %v660 = vmul.f32 %v378, %v596
    %v661 = vmul.f32 %v379, %v596
    %v663 = vlaneseq
    %v664 = vshrl.u32 %v663, 7
    %v665 = vsub.s32 0, %v664
    %v666 = vrot.slane %v591, %v665
    %v668 = vadd.f32 %v598, %v666
    %v669 = vadd.f32 %v599, %v666
    %v670 = vadd.f32 %v600, %v666
    %v671 = vadd.f32 %v601, %v666
    %v672 = vadd.f32 %v602, %v666
    %v673 = vadd.f32 %v603, %v666
    %v674 = vadd.f32 %v604, %v666
    %v675 = vadd.f32 %v605, %v666
    %v676 = vadd.f32 %v606, %v666
    %v677 = vadd.f32 %v607, %v666
    %v678 = vadd.f32 %v608, %v666
    %v679 = vadd.f32 %v609, %v666
    %v680 = vadd.f32 %v610, %v666
    %v681 = vadd.f32 %v611, %v666
    %v682 = vadd.f32 %v612, %v666
    %v683 = vadd.f32 %v613, %v666
    %v684 = vadd.f32 %v614, %v666
    %v685 = vadd.f32 %v615, %v666
    %v686 = vadd.f32 %v616, %v666
    %v687 = vadd.f32 %v617, %v666
    %v688 = vadd.f32 %v618, %v666
    %v689 = vadd.f32 %v619, %v666
    %v690 = vadd.f32 %v620, %v666
    %v691 = vadd.f32 %v621, %v666
    %v692 = vadd.f32 %v622, %v666
    %v693 = vadd.f32 %v623, %v666
    %v694 = vadd.f32 %v624, %v666
    %v695 = vadd.f32 %v625, %v666
    %v696 = vadd.f32 %v626, %v666
    %v697 = vadd.f32 %v627, %v666
    %v698 = vadd.f32 %v628, %v666
    %v699 = vadd.f32 %v629, %v666
    %v700 = vadd.f32 %v630, %v666
    %v701 = vadd.f32 %v631, %v666
    %v702 = vadd.f32 %v632, %v666
    %v703 = vadd.f32 %v633, %v666
    %v704 = vadd.f32 %v634, %v666
    %v705 = vadd.f32 %v635, %v666
    %v706 = vadd.f32 %v636, %v666
    %v707 = vadd.f32 %v637, %v666
    %v708 = vadd.f32 %v638, %v666
    %v709 = vadd.f32 %v639, %v666
    %v710 = vadd.f32 %v640, %v666
    %v711 = vadd.f32 %v641, %v666
    %v712 = vadd.f32 %v642, %v666
    %v713 = vadd.f32 %v643, %v666
    %v714 = vadd.f32 %v644, %v666
    %v715 = vadd.f32 %v645, %v666
    %v716 = vadd.f32 %v646, %v666
    %v717 = vadd.f32 %v647, %v666
    %v718 = vadd.f32 %v648, %v666
    %v719 = vadd.f32 %v649, %v666
    %v720 = vadd.f32 %v650, %v666
    %v721 = vadd.f32 %v651, %v666
    %v722 = vadd.f32 %v652, %v666
    %v723 = vadd.f32 %v653, %v666
    %v724 = vadd.f32 %v654, %v666
    %v725 = vadd.f32 %v655, %v666
    %v726 = vadd.f32 %v656, %v666
    %v727 = vadd.f32 %v657, %v666
    %v728 = vadd.f32 %v658, %v666
    %v729 = vadd.f32 %v659, %v666
    %v730 = vadd.f32 %v660, %v666
    %v731 = vadd.f32 %v661, %v666
    %v732 = vmax.f32 %v668, 0.0
    %v733 = vmax.f32 %v669, 0.0
    %v734 = vmax.f32 %v670, 0.0
    %v735 = vmax.f32 %v671, 0.0
    %v736 = vmax.f32 %v672, 0.0
    %v737 = vmax.f32 %v673, 0.0
    %v738 = vmax.f32 %v674, 0.0
    %v739 = vmax.f32 %v675, 0.0
    %v740 = vmax.f32 %v676, 0.0
    %v741 = vmax.f32 %v677, 0.0
    %v742 = vmax.f32 %v678, 0.0
    %v743 = vmax.f32 %v679, 0.0
    %v744 = vmax.f32 %v680, 0.0
    %v745 = vmax.f32 %v681, 0.0
    %v746 = vmax.f32 %v682, 0.0
    %v747 = vmax.f32 %v683, 0.0
    %v748 = vmax.f32 %v684, 0.0
    %v749 = vmax.f32 %v685, 0.0
    %v750 = vmax.f32 %v686, 0.0
    %v751 = vmax.f32 %v687, 0.0
    %v752 = vmax.f32 %v688, 0.0
    %v753 = vmax.f32 %v689, 0.0
    %v754 = vmax.f32 %v690, 0.0
    %v755 = vmax.f32 %v691, 0.0
    %v756 = vmax.f32 %v692, 0.0
    %v757 = vmax.f32 %v693, 0.0
    %v758 = vmax.f32 %v694, 0.0
    %v759 = vmax.f32 %v695, 0.0
    %v760 = vmax.f32 %v696, 0.0
    %v761 = vmax.f32 %v697, 0.0
    %v762 = vmax.f32 %v698, 0.0
    %v763 = vmax.f32 %v699, 0.0
    %v764 = vmax.f32 %v700, 0.0
    %v765 = vmax.f32 %v701, 0.0
    %v766 = vmax.f32 %v702, 0.0
    %v767 = vmax.f32 %v703, 0.0
    %v768 = vmax.f32 %v704, 0.0
    %v769 = vmax.f32 %v705, 0.0
    %v770 = vmax.f32 %v706, 0.0
    %v771 = vmax.f32 %v707, 0.0
    %v772 = vmax.f32 %v708, 0.0
    %v773 = vmax.f32 %v709, 0.0
    %v774 = vmax.f32 %v710, 0.0
    %v775 = vmax.f32 %v711, 0.0
    %v776 = vmax.f32 %v712, 0.0
    %v777 = vmax.f32 %v713, 0.0
    %v778 = vmax.f32 %v714, 0.0
    %v779 = vmax.f32 %v715, 0.0
    %v780 = vmax.f32 %v716, 0.0
    %v781 = vmax.f32 %v717, 0.0
    %v782 = vmax.f32 %v718, 0.0
    %v783 = vmax.f32 %v719, 0.0
    %v784 = vmax.f32 %v720, 0.0
    %v785 = vmax.f32 %v721, 0.0
    %v786 = vmax.f32 %v722, 0.0
    %v787 = vmax.f32 %v723, 0.0
    %v788 = vmax.f32 %v724, 0.0
    %v789 = vmax.f32 %v725, 0.0
    %v790 = vmax.f32 %v726, 0.0
    %v791 = vmax.f32 %v727, 0.0
    %v792 = vmax.f32 %v728, 0.0
    %v793 = vmax.f32 %v729, 0.0
    %v794 = vmax.f32 %v730, 0.0
    %v795 = vmax.f32 %v731, 0.0
    %v797 = vrot.slane %v795, 7
    %vm862 = vcmask 1040384
    %v863 = vrot.slane %v732, 7
    %v864 = vrot.slane %v733, 7
    %v865 = vsel %vm862, %v863, %v864
    %v866 = vrot.slane %v734, 7
    %v867 = vsel %vm862, %v864, %v866
    %v868 = vrot.slane %v735, 7
    %v869 = vsel %vm862, %v866, %v868
    %v870 = vrot.slane %v736, 7
    %v871 = vsel %vm862, %v868, %v870
    %v872 = vrot.slane %v737, 7
    %v873 = vsel %vm862, %v870, %v872
    %v874 = vrot.slane %v738, 7
    %v875 = vsel %vm862, %v872, %v874
    %v876 = vrot.slane %v739, 7
    %v877 = vsel %vm862, %v874, %v876
    %v878 = vrot.slane %v740, 7
    %v879 = vsel %vm862, %v876, %v878
    %v880 = vrot.slane %v741, 7
    %v881 = vsel %vm862, %v878, %v880
    %v882 = vrot.slane %v742, 7
    %v883 = vsel %vm862, %v880, %v882
    %v884 = vrot.slane %v743, 7
    %v885 = vsel %vm862, %v882, %v884
    %v886 = vrot.slane %v744, 7
    %v887 = vsel %vm862, %v884, %v886
    %v888 = vrot.slane %v745, 7
    %v889 = vsel %vm862, %v886, %v888
    %v890 = vrot.slane %v746, 7
    %v891 = vsel %vm862, %v888, %v890
    %v892 = vrot.slane %v747, 7
    %v893 = vsel %vm862, %v890, %v892
    %v894 = vrot.slane %v748, 7
    %v895 = vsel %vm862, %v892, %v894
    %v896 = vrot.slane %v749, 7
    %v897 = vsel %vm862, %v894, %v896
    %v898 = vrot.slane %v750, 7
    %v899 = vsel %vm862, %v896, %v898
    %v900 = vrot.slane %v751, 7
    %v901 = vsel %vm862, %v898, %v900
    %v902 = vrot.slane %v752, 7
    %v903 = vsel %vm862, %v900, %v902
    %v904 = vrot.slane %v753, 7
    %v905 = vsel %vm862, %v902, %v904
    %v906 = vrot.slane %v754, 7
    %v907 = vsel %vm862, %v904, %v906
    %v908 = vrot.slane %v755, 7
    %v909 = vsel %vm862, %v906, %v908
    %v910 = vrot.slane %v756, 7
    %v911 = vsel %vm862, %v908, %v910
    %v912 = vrot.slane %v757, 7
    %v913 = vsel %vm862, %v910, %v912
    %v914 = vrot.slane %v758, 7
    %v915 = vsel %vm862, %v912, %v914
    %v916 = vrot.slane %v759, 7
    %v917 = vsel %vm862, %v914, %v916
    %v918 = vrot.slane %v760, 7
    %v919 = vsel %vm862, %v916, %v918
    %v920 = vrot.slane %v761, 7
    %v921 = vsel %vm862, %v918, %v920
    %v922 = vrot.slane %v762, 7
    %v923 = vsel %vm862, %v920, %v922
    %v924 = vrot.slane %v763, 7
    %v925 = vsel %vm862, %v922, %v924
    %v926 = vrot.slane %v764, 7
    %v927 = vsel %vm862, %v924, %v926
    %v928 = vrot.slane %v765, 7
    %v929 = vsel %vm862, %v926, %v928
    %v930 = vrot.slane %v766, 7
    %v931 = vsel %vm862, %v928, %v930
    %v932 = vrot.slane %v767, 7
    %v933 = vsel %vm862, %v930, %v932
    %v934 = vrot.slane %v768, 7
    %v935 = vsel %vm862, %v932, %v934
    %v936 = vrot.slane %v769, 7
    %v937 = vsel %vm862, %v934, %v936
    %v938 = vrot.slane %v770, 7
    %v939 = vsel %vm862, %v936, %v938
    %v940 = vrot.slane %v771, 7
    %v941 = vsel %vm862, %v938, %v940
    %v942 = vrot.slane %v772, 7
    %v943 = vsel %vm862, %v940, %v942
    %v944 = vrot.slane %v773, 7
    %v945 = vsel %vm862, %v942, %v944
    %v946 = vrot.slane %v774, 7
    %v947 = vsel %vm862, %v944, %v946
    %v948 = vrot.slane %v775, 7
    %v949 = vsel %vm862, %v946, %v948
    %v950 = vrot.slane %v776, 7
    %v951 = vsel %vm862, %v948, %v950
    %v952 = vrot.slane %v777, 7
    %v953 = vsel %vm862, %v950, %v952
    %v954 = vrot.slane %v778, 7
    %v955 = vsel %vm862, %v952, %v954
    %v956 = vrot.slane %v779, 7
    %v957 = vsel %vm862, %v954, %v956
    %v958 = vrot.slane %v780, 7
    %v959 = vsel %vm862, %v956, %v958
    %v960 = vrot.slane %v781, 7
    %v961 = vsel %vm862, %v958, %v960
    %v962 = vrot.slane %v782, 7
    %v963 = vsel %vm862, %v960, %v962
    %v964 = vrot.slane %v783, 7
    %v965 = vsel %vm862, %v962, %v964
    %v966 = vrot.slane %v784, 7
    %v967 = vsel %vm862, %v964, %v966
    %v968 = vrot.slane %v785, 7
    %v969 = vsel %vm862, %v966, %v968
    %v970 = vrot.slane %v786, 7
    %v971 = vsel %vm862, %v968, %v970
    %v972 = vrot.slane %v787, 7
    %v973 = vsel %vm862, %v970, %v972
    %v974 = vrot.slane %v788, 7
    %v975 = vsel %vm862, %v972, %v974
    %v976 = vrot.slane %v789, 7
    %v977 = vsel %vm862, %v974, %v976
    %v978 = vrot.slane %v790, 7
    %v979 = vsel %vm862, %v976, %v978
    %v980 = vrot.slane %v791, 7
    %v981 = vsel %vm862, %v978, %v980
    %v982 = vrot.slane %v792, 7
    %v983 = vsel %vm862, %v980, %v982
    %v984 = vrot.slane %v793, 7
    %v985 = vsel %vm862, %v982, %v984
    %v986 = vrot.slane %v794, 7
    %v987 = vsel %vm862, %v984, %v986
    %v988 = vsel %vm862, %v986, %v797
    %v1053 = vsel %vm862, %v797, %v863
    %v1054 = vadd.s32 %v105, 4294967295
    %v1055 = vadd.s32 %v106, 4294967295
    %v1056 = vadd.s32 %v107, 4294967295
    %v1057 = vadd.s32 %v108, 4294967295
    %v1058 = vadd.s32 %v109, 4294967295
    %v1059 = vadd.s32 %v110, 4294967295
    %v1060 = vadd.s32 %v111, 4294967295
    %v1061 = vadd.s32 %v112, 4294967295
    %v1062 = vadd.s32 %v113, 4294967295
    %v1063 = vadd.s32 %v114, 4294967295
    %v1064 = vadd.s32 %v115, 4294967295
    %v1065 = vadd.s32 %v116, 4294967295
    %v1066 = vadd.s32 %v117, 4294967295
    %v1067 = vadd.s32 %v118, 4294967295
    %v1068 = vadd.s32 %v119, 4294967295
    %v1069 = vadd.s32 %v120, 4294967295
    %v1070 = vadd.s32 %v121, 4294967295
    %v1071 = vadd.s32 %v122, 4294967295
    %v1072 = vadd.s32 %v123, 4294967295
    %v1073 = vadd.s32 %v124, 4294967295
    %v1074 = vadd.s32 %v125, 4294967295
    %v1075 = vadd.s32 %v126, 4294967295
    %v1076 = vadd.s32 %v127, 4294967295
    %v1077 = vadd.s32 %v128, 4294967295
    %v1078 = vadd.s32 %v129, 4294967295
    %v1079 = vadd.s32 %v130, 4294967295
    %v1080 = vadd.s32 %v131, 4294967295
    %v1081 = vadd.s32 %v132, 4294967295
    %v1082 = vadd.s32 %v133, 4294967295
    %v1083 = vadd.s32 %v134, 4294967295
    %v1084 = vadd.s32 %v135, 4294967295
    %v1085 = vadd.s32 %v136, 4294967295
    %v1086 = vadd.s32 %v137, 4294967295
    %v1087 = vadd.s32 %v138, 4294967295
    %v1088 = vadd.s32 %v139, 4294967295
    %v1089 = vadd.s32 %v140, 4294967295
    %v1090 = vadd.s32 %v141, 4294967295
    %v1091 = vadd.s32 %v142, 4294967295
    %v1092 = vadd.s32 %v143, 4294967295
    %v1093 = vadd.s32 %v144, 4294967295
    %v1094 = vadd.s32 %v145, 4294967295
    %v1095 = vadd.s32 %v146, 4294967295
    %v1096 = vadd.s32 %v147, 4294967295
    %v1097 = vadd.s32 %v148, 4294967295
    %v1098 = vadd.s32 %v149, 4294967295
    %v1099 = vadd.s32 %v150, 4294967295
    %v1100 = vadd.s32 %v151, 4294967295
    %v1101 = vadd.s32 %v152, 4294967295
    %v1102 = vadd.s32 %v153, 4294967295
    %v1103 = vadd.s32 %v154, 4294967295
    %v1104 = vadd.s32 %v155, 4294967295
    %v1105 = vadd.s32 %v156, 4294967295
    %v1106 = vadd.s32 %v157, 4294967295
    %v1107 = vadd.s32 %v158, 4294967295
    %v1108 = vadd.s32 %v159, 4294967295
    %v1109 = vadd.s32 %v160, 4294967295
    %v1110 = vadd.s32 %v161, 4294967295
    %v1111 = vadd.s32 %v162, 4294967295
    %v1112 = vadd.s32 %v163, 4294967295
    %v1113 = vadd.s32 %v164, 4294967295
    %v1114 = vadd.s32 %v165, 4294967295
    %v1115 = vadd.s32 %v166, 4294967295
    %v1116 = vadd.s32 %v167, 4294967295
    %v1117 = vadd.s32 %v168, 4294967295
    %vm1118 = vcmp.ge.s32.totalorder %v1054, 0
    %vm1119 = vcmp.ge.s32.totalorder %v1055, 0
    %vm1120 = vcmp.ge.s32.totalorder %v1056, 0
    %vm1121 = vcmp.ge.s32.totalorder %v1057, 0
    %vm1122 = vcmp.ge.s32.totalorder %v1058, 0
    %vm1123 = vcmp.ge.s32.totalorder %v1059, 0
    %vm1124 = vcmp.ge.s32.totalorder %v1060, 0
    %vm1125 = vcmp.ge.s32.totalorder %v1061, 0
    %vm1126 = vcmp.ge.s32.totalorder %v1062, 0
    %vm1127 = vcmp.ge.s32.totalorder %v1063, 0
    %vm1128 = vcmp.ge.s32.totalorder %v1064, 0
    %vm1129 = vcmp.ge.s32.totalorder %v1065, 0
    %vm1130 = vcmp.ge.s32.totalorder %v1066, 0
    %vm1131 = vcmp.ge.s32.totalorder %v1067, 0
    %vm1132 = vcmp.ge.s32.totalorder %v1068, 0
    %vm1133 = vcmp.ge.s32.totalorder %v1069, 0
    %vm1134 = vcmp.ge.s32.totalorder %v1070, 0
    %vm1135 = vcmp.ge.s32.totalorder %v1071, 0
    %vm1136 = vcmp.ge.s32.totalorder %v1072, 0
    %vm1137 = vcmp.ge.s32.totalorder %v1073, 0
    %vm1138 = vcmp.ge.s32.totalorder %v1074, 0
    %vm1139 = vcmp.ge.s32.totalorder %v1075, 0
    %vm1140 = vcmp.ge.s32.totalorder %v1076, 0
    %vm1141 = vcmp.ge.s32.totalorder %v1077, 0
    %vm1142 = vcmp.ge.s32.totalorder %v1078, 0
    %vm1143 = vcmp.ge.s32.totalorder %v1079, 0
    %vm1144 = vcmp.ge.s32.totalorder %v1080, 0
    %vm1145 = vcmp.ge.s32.totalorder %v1081, 0
    %vm1146 = vcmp.ge.s32.totalorder %v1082, 0
    %vm1147 = vcmp.ge.s32.totalorder %v1083, 0
    %vm1148 = vcmp.ge.s32.totalorder %v1084, 0
    %vm1149 = vcmp.ge.s32.totalorder %v1085, 0
    %vm1150 = vcmp.ge.s32.totalorder %v1086, 0
    %vm1151 = vcmp.ge.s32.totalorder %v1087, 0
    %vm1152 = vcmp.ge.s32.totalorder %v1088, 0
    %vm1153 = vcmp.ge.s32.totalorder %v1089, 0
    %vm1154 = vcmp.ge.s32.totalorder %v1090, 0
    %vm1155 = vcmp.ge.s32.totalorder %v1091, 0
    %vm1156 = vcmp.ge.s32.totalorder %v1092, 0
    %vm1157 = vcmp.ge.s32.totalorder %v1093, 0
    %vm1158 = vcmp.ge.s32.totalorder %v1094, 0
    %vm1159 = vcmp.ge.s32.totalorder %v1095, 0
    %vm1160 = vcmp.ge.s32.totalorder %v1096, 0
    %vm1161 = vcmp.ge.s32.totalorder %v1097, 0
    %vm1162 = vcmp.ge.s32.totalorder %v1098, 0
    %vm1163 = vcmp.ge.s32.totalorder %v1099, 0
    %vm1164 = vcmp.ge.s32.totalorder %v1100, 0
    %vm1165 = vcmp.ge.s32.totalorder %v1101, 0
    %vm1166 = vcmp.ge.s32.totalorder %v1102, 0
    %vm1167 = vcmp.ge.s32.totalorder %v1103, 0
    %vm1168 = vcmp.ge.s32.totalorder %v1104, 0
    %vm1169 = vcmp.ge.s32.totalorder %v1105, 0
    %vm1170 = vcmp.ge.s32.totalorder %v1106, 0
    %vm1171 = vcmp.ge.s32.totalorder %v1107, 0
    %vm1172 = vcmp.ge.s32.totalorder %v1108, 0
    %vm1173 = vcmp.ge.s32.totalorder %v1109, 0
    %vm1174 = vcmp.ge.s32.totalorder %v1110, 0
    %vm1175 = vcmp.ge.s32.totalorder %v1111, 0
    %vm1176 = vcmp.ge.s32.totalorder %v1112, 0
    %vm1177 = vcmp.ge.s32.totalorder %v1113, 0
    %vm1178 = vcmp.ge.s32.totalorder %v1114, 0
    %vm1179 = vcmp.ge.s32.totalorder %v1115, 0
    %vm1180 = vcmp.ge.s32.totalorder %v1116, 0
    %vm1181 = vcmp.ge.s32.totalorder %v1117, 0
    %vm1182 = vcmp.lt.s32.totalorder %v1054, 16
    %vm1183 = vcmp.lt.s32.totalorder %v1055, 16
    %vm1184 = vcmp.lt.s32.totalorder %v1056, 16
    %vm1185 = vcmp.lt.s32.totalorder %v1057, 16
    %vm1186 = vcmp.lt.s32.totalorder %v1058, 16
    %vm1187 = vcmp.lt.s32.totalorder %v1059, 16
    %vm1188 = vcmp.lt.s32.totalorder %v1060, 16
    %vm1189 = vcmp.lt.s32.totalorder %v1061, 16
    %vm1190 = vcmp.lt.s32.totalorder %v1062, 16
    %vm1191 = vcmp.lt.s32.totalorder %v1063, 16
    %vm1192 = vcmp.lt.s32.totalorder %v1064, 16
    %vm1193 = vcmp.lt.s32.totalorder %v1065, 16
    %vm1194 = vcmp.lt.s32.totalorder %v1066, 16
    %vm1195 = vcmp.lt.s32.totalorder %v1067, 16
    %vm1196 = vcmp.lt.s32.totalorder %v1068, 16
    %vm1197 = vcmp.lt.s32.totalorder %v1069, 16
    %vm1198 = vcmp.lt.s32.totalorder %v1070, 16
    %vm1199 = vcmp.lt.s32.totalorder %v1071, 16
    %vm1200 = vcmp.lt.s32.totalorder %v1072, 16
    %vm1201 = vcmp.lt.s32.totalorder %v1073, 16
    %vm1202 = vcmp.lt.s32.totalorder %v1074, 16
    %vm1203 = vcmp.lt.s32.totalorder %v1075, 16
    %vm1204 = vcmp.lt.s32.totalorder %v1076, 16
    %vm1205 = vcmp.lt.s32.totalorder %v1077, 16
    %vm1206 = vcmp.lt.s32.totalorder %v1078, 16
    %vm1207 = vcmp.lt.s32.totalorder %v1079, 16
    %vm1208 = vcmp.lt.s32.totalorder %v1080, 16
    %vm1209 = vcmp.lt.s32.totalorder %v1081, 16
    %vm1210 = vcmp.lt.s32.totalorder %v1082, 16
    %vm1211 = vcmp.lt.s32.totalorder %v1083, 16
    %vm1212 = vcmp.lt.s32.totalorder %v1084, 16
    %vm1213 = vcmp.lt.s32.totalorder %v1085, 16
    %vm1214 = vcmp.lt.s32.totalorder %v1086, 16
    %vm1215 = vcmp.lt.s32.totalorder %v1087, 16
    %vm1216 = vcmp.lt.s32.totalorder %v1088, 16
    %vm1217 = vcmp.lt.s32.totalorder %v1089, 16
    %vm1218 = vcmp.lt.s32.totalorder %v1090, 16
    %vm1219 = vcmp.lt.s32.totalorder %v1091, 16
    %vm1220 = vcmp.lt.s32.totalorder %v1092, 16
    %vm1221 = vcmp.lt.s32.totalorder %v1093, 16
    %vm1222 = vcmp.lt.s32.totalorder %v1094, 16
    %vm1223 = vcmp.lt.s32.totalorder %v1095, 16
    %vm1224 = vcmp.lt.s32.totalorder %v1096, 16
    %vm1225 = vcmp.lt.s32.totalorder %v1097, 16
    %vm1226 = vcmp.lt.s32.totalorder %v1098, 16
    %vm1227 = vcmp.lt.s32.totalorder %v1099, 16
    %vm1228 = vcmp.lt.s32.totalorder %v1100, 16
    %vm1229 = vcmp.lt.s32.totalorder %v1101, 16
    %vm1230 = vcmp.lt.s32.totalorder %v1102, 16
    %vm1231 = vcmp.lt.s32.totalorder %v1103, 16
    %vm1232 = vcmp.lt.s32.totalorder %v1104, 16
    %vm1233 = vcmp.lt.s32.totalorder %v1105, 16
    %vm1234 = vcmp.lt.s32.totalorder %v1106, 16
    %vm1235 = vcmp.lt.s32.totalorder %v1107, 16
    %vm1236 = vcmp.lt.s32.totalorder %v1108, 16
    %vm1237 = vcmp.lt.s32.totalorder %v1109, 16
    %vm1238 = vcmp.lt.s32.totalorder %v1110, 16
    %vm1239 = vcmp.lt.s32.totalorder %v1111, 16
    %vm1240 = vcmp.lt.s32.totalorder %v1112, 16
    %vm1241 = vcmp.lt.s32.totalorder %v1113, 16
    %vm1242 = vcmp.lt.s32.totalorder %v1114, 16
    %vm1243 = vcmp.lt.s32.totalorder %v1115, 16
    %vm1244 = vcmp.lt.s32.totalorder %v1116, 16
    %vm1245 = vcmp.lt.s32.totalorder %v1117, 16
    %vm1246 = vmand %vm1118, %vm1182
    %vm1247 = vmand %vm1119, %vm1183
    %vm1248 = vmand %vm1120, %vm1184
    %vm1249 = vmand %vm1121, %vm1185
    %vm1250 = vmand %vm1122, %vm1186
    %vm1251 = vmand %vm1123, %vm1187
    %vm1252 = vmand %vm1124, %vm1188
    %vm1253 = vmand %vm1125, %vm1189
    %vm1254 = vmand %vm1126, %vm1190
    %vm1255 = vmand %vm1127, %vm1191
    %vm1256 = vmand %vm1128, %vm1192
    %vm1257 = vmand %vm1129, %vm1193
    %vm1258 = vmand %vm1130, %vm1194
    %vm1259 = vmand %vm1131, %vm1195
    %vm1260 = vmand %vm1132, %vm1196
    %vm1261 = vmand %vm1133, %vm1197
    %vm1262 = vmand %vm1134, %vm1198
    %vm1263 = vmand %vm1135, %vm1199
    %vm1264 = vmand %vm1136, %vm1200
    %vm1265 = vmand %vm1137, %vm1201
    %vm1266 = vmand %vm1138, %vm1202
    %vm1267 = vmand %vm1139, %vm1203
    %vm1268 = vmand %vm1140, %vm1204
    %vm1269 = vmand %vm1141, %vm1205
    %vm1270 = vmand %vm1142, %vm1206
    %vm1271 = vmand %vm1143, %vm1207
    %vm1272 = vmand %vm1144, %vm1208
    %vm1273 = vmand %vm1145, %vm1209
    %vm1274 = vmand %vm1146, %vm1210
    %vm1275 = vmand %vm1147, %vm1211
    %vm1276 = vmand %vm1148, %vm1212
    %vm1277 = vmand %vm1149, %vm1213
    %vm1278 = vmand %vm1150, %vm1214
    %vm1279 = vmand %vm1151, %vm1215
    %vm1280 = vmand %vm1152, %vm1216
    %vm1281 = vmand %vm1153, %vm1217
    %vm1282 = vmand %vm1154, %vm1218
    %vm1283 = vmand %vm1155, %vm1219
    %vm1284 = vmand %vm1156, %vm1220
    %vm1285 = vmand %vm1157, %vm1221
    %vm1286 = vmand %vm1158, %vm1222
    %vm1287 = vmand %vm1159, %vm1223
    %vm1288 = vmand %vm1160, %vm1224
    %vm1289 = vmand %vm1161, %vm1225
    %vm1290 = vmand %vm1162, %vm1226
    %vm1291 = vmand %vm1163, %vm1227
    %vm1292 = vmand %vm1164, %vm1228
    %vm1293 = vmand %vm1165, %vm1229
    %vm1294 = vmand %vm1166, %vm1230
    %vm1295 = vmand %vm1167, %vm1231
    %vm1296 = vmand %vm1168, %vm1232
    %vm1297 = vmand %vm1169, %vm1233
    %vm1298 = vmand %vm1170, %vm1234
    %vm1299 = vmand %vm1171, %vm1235
    %vm1300 = vmand %vm1172, %vm1236
    %vm1301 = vmand %vm1173, %vm1237
    %vm1302 = vmand %vm1174, %vm1238
    %vm1303 = vmand %vm1175, %vm1239
    %vm1304 = vmand %vm1176, %vm1240
    %vm1305 = vmand %vm1177, %vm1241
    %vm1306 = vmand %vm1178, %vm1242
    %vm1307 = vmand %vm1179, %vm1243
    %vm1308 = vmand %vm1180, %vm1244
    %vm1309 = vmand %vm1181, %vm1245
    %v1310 = vsel %vm1246, 1, 0
    %v1311 = vsel %vm1247, 1, 0
    %v1312 = vsel %vm1248, 1, 0
    %v1313 = vsel %vm1249, 1, 0
    %v1314 = vsel %vm1250, 1, 0
    %v1315 = vsel %vm1251, 1, 0
    %v1316 = vsel %vm1252, 1, 0
    %v1317 = vsel %vm1253, 1, 0
    %v1318 = vsel %vm1254, 1, 0
    %v1319 = vsel %vm1255, 1, 0
    %v1320 = vsel %vm1256, 1, 0
    %v1321 = vsel %vm1257, 1, 0
    %v1322 = vsel %vm1258, 1, 0
    %v1323 = vsel %vm1259, 1, 0
    %v1324 = vsel %vm1260, 1, 0
    %v1325 = vsel %vm1261, 1, 0
    %v1326 = vsel %vm1262, 1, 0
    %v1327 = vsel %vm1263, 1, 0
    %v1328 = vsel %vm1264, 1, 0
    %v1329 = vsel %vm1265, 1, 0
    %v1330 = vsel %vm1266, 1, 0
    %v1331 = vsel %vm1267, 1, 0
    %v1332 = vsel %vm1268, 1, 0
    %v1333 = vsel %vm1269, 1, 0
    %v1334 = vsel %vm1270, 1, 0
    %v1335 = vsel %vm1271, 1, 0
    %v1336 = vsel %vm1272, 1, 0
    %v1337 = vsel %vm1273, 1, 0
    %v1338 = vsel %vm1274, 1, 0
    %v1339 = vsel %vm1275, 1, 0
    %v1340 = vsel %vm1276, 1, 0
    %v1341 = vsel %vm1277, 1, 0
    %v1342 = vsel %vm1278, 1, 0
    %v1343 = vsel %vm1279, 1, 0
    %v1344 = vsel %vm1280, 1, 0
    %v1345 = vsel %vm1281, 1, 0
    %v1346 = vsel %vm1282, 1, 0
    %v1347 = vsel %vm1283, 1, 0
    %v1348 = vsel %vm1284, 1, 0
    %v1349 = vsel %vm1285, 1, 0
    %v1350 = vsel %vm1286, 1, 0
    %v1351 = vsel %vm1287, 1, 0
    %v1352 = vsel %vm1288, 1, 0
    %v1353 = vsel %vm1289, 1, 0
    %v1354 = vsel %vm1290, 1, 0
    %v1355 = vsel %vm1291, 1, 0
    %v1356 = vsel %vm1292, 1, 0
    %v1357 = vsel %vm1293, 1, 0
    %v1358 = vsel %vm1294, 1, 0
    %v1359 = vsel %vm1295, 1, 0
    %v1360 = vsel %vm1296, 1, 0
    %v1361 = vsel %vm1297, 1, 0
    %v1362 = vsel %vm1298, 1, 0
    %v1363 = vsel %vm1299, 1, 0
    %v1364 = vsel %vm1300, 1, 0
    %v1365 = vsel %vm1301, 1, 0
    %v1366 = vsel %vm1302, 1, 0
    %v1367 = vsel %vm1303, 1, 0
    %v1368 = vsel %vm1304, 1, 0
    %v1369 = vsel %vm1305, 1, 0
    %v1370 = vsel %vm1306, 1, 0
    %v1371 = vsel %vm1307, 1, 0
    %v1372 = vsel %vm1308, 1, 0
    %v1373 = vsel %vm1309, 1, 0
    %1374 = vset.pattern.permute.xlu0 0
    %1375 = vperm.xlu0 %1374, %v1310
    %v1376 = vpop.permute.xlu0 %1375
    %1377 = vset.pattern.permute.xlu0 0
    %1378 = vperm.xlu0 %1377, %v1311
    %v1379 = vpop.permute.xlu0 %1378
    %1380 = vset.pattern.permute.xlu0 0
    %1381 = vperm.xlu0 %1380, %v1312
    %v1382 = vpop.permute.xlu0 %1381
    %1383 = vset.pattern.permute.xlu0 0
    %1384 = vperm.xlu0 %1383, %v1313
    %v1385 = vpop.permute.xlu0 %1384
    %1386 = vset.pattern.permute.xlu0 0
    %1387 = vperm.xlu0 %1386, %v1314
    %v1388 = vpop.permute.xlu0 %1387
    %1389 = vset.pattern.permute.xlu0 0
    %1390 = vperm.xlu0 %1389, %v1315
    %v1391 = vpop.permute.xlu0 %1390
    %1392 = vset.pattern.permute.xlu0 0
    %1393 = vperm.xlu0 %1392, %v1316
    %v1394 = vpop.permute.xlu0 %1393
    %1395 = vset.pattern.permute.xlu0 0
    %1396 = vperm.xlu0 %1395, %v1317
    %v1397 = vpop.permute.xlu0 %1396
    %1398 = vset.pattern.permute.xlu0 0
    %1399 = vperm.xlu0 %1398, %v1318
    %v1400 = vpop.permute.xlu0 %1399
    %1401 = vset.pattern.permute.xlu0 0
    %1402 = vperm.xlu0 %1401, %v1319
    %v1403 = vpop.permute.xlu0 %1402
    %1404 = vset.pattern.permute.xlu0 0
    %1405 = vperm.xlu0 %1404, %v1320
    %v1406 = vpop.permute.xlu0 %1405
    %1407 = vset.pattern.permute.xlu0 0
    %1408 = vperm.xlu0 %1407, %v1321
    %v1409 = vpop.permute.xlu0 %1408
    %1410 = vset.pattern.permute.xlu0 0
    %1411 = vperm.xlu0 %1410, %v1322
    %v1412 = vpop.permute.xlu0 %1411
    %1413 = vset.pattern.permute.xlu0 0
    %1414 = vperm.xlu0 %1413, %v1323
    %v1415 = vpop.permute.xlu0 %1414
    %1416 = vset.pattern.permute.xlu0 0
    %1417 = vperm.xlu0 %1416, %v1324
    %v1418 = vpop.permute.xlu0 %1417
    %1419 = vset.pattern.permute.xlu0 0
    %1420 = vperm.xlu0 %1419, %v1325
    %v1421 = vpop.permute.xlu0 %1420
    %1422 = vset.pattern.permute.xlu0 0
    %1423 = vperm.xlu0 %1422, %v1326
    %v1424 = vpop.permute.xlu0 %1423
    %1425 = vset.pattern.permute.xlu0 0
    %1426 = vperm.xlu0 %1425, %v1327
    %v1427 = vpop.permute.xlu0 %1426
    %1428 = vset.pattern.permute.xlu0 0
    %1429 = vperm.xlu0 %1428, %v1328
    %v1430 = vpop.permute.xlu0 %1429
    %1431 = vset.pattern.permute.xlu0 0
    %1432 = vperm.xlu0 %1431, %v1329
    %v1433 = vpop.permute.xlu0 %1432
    %1434 = vset.pattern.permute.xlu0 0
    %1435 = vperm.xlu0 %1434, %v1330
    %v1436 = vpop.permute.xlu0 %1435
    %1437 = vset.pattern.permute.xlu0 0
    %1438 = vperm.xlu0 %1437, %v1331
    %v1439 = vpop.permute.xlu0 %1438
    %1440 = vset.pattern.permute.xlu0 0
    %1441 = vperm.xlu0 %1440, %v1332
    %v1442 = vpop.permute.xlu0 %1441
    %1443 = vset.pattern.permute.xlu0 0
    %1444 = vperm.xlu0 %1443, %v1333
    %v1445 = vpop.permute.xlu0 %1444
    %1446 = vset.pattern.permute.xlu0 0
    %1447 = vperm.xlu0 %1446, %v1334
    %v1448 = vpop.permute.xlu0 %1447
    %1449 = vset.pattern.permute.xlu0 0
    %1450 = vperm.xlu0 %1449, %v1335
    %v1451 = vpop.permute.xlu0 %1450
    %1452 = vset.pattern.permute.xlu0 0
    %1453 = vperm.xlu0 %1452, %v1336
    %v1454 = vpop.permute.xlu0 %1453
    %1455 = vset.pattern.permute.xlu0 0
    %1456 = vperm.xlu0 %1455, %v1337
    %v1457 = vpop.permute.xlu0 %1456
    %1458 = vset.pattern.permute.xlu0 0
    %1459 = vperm.xlu0 %1458, %v1338
    %v1460 = vpop.permute.xlu0 %1459
    %1461 = vset.pattern.permute.xlu0 0
    %1462 = vperm.xlu0 %1461, %v1339
    %v1463 = vpop.permute.xlu0 %1462
    %1464 = vset.pattern.permute.xlu0 0
    %1465 = vperm.xlu0 %1464, %v1340
    %v1466 = vpop.permute.xlu0 %1465
    %1467 = vset.pattern.permute.xlu0 0
    %1468 = vperm.xlu0 %1467, %v1341
    %v1469 = vpop.permute.xlu0 %1468
    %1470 = vset.pattern.permute.xlu0 0
    %1471 = vperm.xlu0 %1470, %v1342
    %v1472 = vpop.permute.xlu0 %1471
    %1473 = vset.pattern.permute.xlu0 0
    %1474 = vperm.xlu0 %1473, %v1343
    %v1475 = vpop.permute.xlu0 %1474
    %1476 = vset.pattern.permute.xlu0 0
    %1477 = vperm.xlu0 %1476, %v1344
    %v1478 = vpop.permute.xlu0 %1477
    %1479 = vset.pattern.permute.xlu0 0
    %1480 = vperm.xlu0 %1479, %v1345
    %v1481 = vpop.permute.xlu0 %1480
    %1482 = vset.pattern.permute.xlu0 0
    %1483 = vperm.xlu0 %1482, %v1346
    %v1484 = vpop.permute.xlu0 %1483
    %1485 = vset.pattern.permute.xlu0 0
    %1486 = vperm.xlu0 %1485, %v1347
    %v1487 = vpop.permute.xlu0 %1486
    %1488 = vset.pattern.permute.xlu0 0
    %1489 = vperm.xlu0 %1488, %v1348
    %v1490 = vpop.permute.xlu0 %1489
    %1491 = vset.pattern.permute.xlu0 0
    %1492 = vperm.xlu0 %1491, %v1349
    %v1493 = vpop.permute.xlu0 %1492
    %1494 = vset.pattern.permute.xlu0 0
    %1495 = vperm.xlu0 %1494, %v1350
    %v1496 = vpop.permute.xlu0 %1495
    %1497 = vset.pattern.permute.xlu0 0
    %1498 = vperm.xlu0 %1497, %v1351
    %v1499 = vpop.permute.xlu0 %1498
    %1500 = vset.pattern.permute.xlu0 0
    %1501 = vperm.xlu0 %1500, %v1352
    %v1502 = vpop.permute.xlu0 %1501
    %1503 = vset.pattern.permute.xlu0 0
    %1504 = vperm.xlu0 %1503, %v1353
    %v1505 = vpop.permute.xlu0 %1504
    %1506 = vset.pattern.permute.xlu0 0
    %1507 = vperm.xlu0 %1506, %v1354
    %v1508 = vpop.permute.xlu0 %1507
    %1509 = vset.pattern.permute.xlu0 0
    %1510 = vperm.xlu0 %1509, %v1355
    %v1511 = vpop.permute.xlu0 %1510
    %1512 = vset.pattern.permute.xlu0 0
    %1513 = vperm.xlu0 %1512, %v1356
    %v1514 = vpop.permute.xlu0 %1513
    %1515 = vset.pattern.permute.xlu0 0
    %1516 = vperm.xlu0 %1515, %v1357
    %v1517 = vpop.permute.xlu0 %1516
    %1518 = vset.pattern.permute.xlu0 0
    %1519 = vperm.xlu0 %1518, %v1358
    %v1520 = vpop.permute.xlu0 %1519
    %1521 = vset.pattern.permute.xlu0 0
    %1522 = vperm.xlu0 %1521, %v1359
    %v1523 = vpop.permute.xlu0 %1522
    %1524 = vset.pattern.permute.xlu0 0
    %1525 = vperm.xlu0 %1524, %v1360
    %v1526 = vpop.permute.xlu0 %1525
    %1527 = vset.pattern.permute.xlu0 0
    %1528 = vperm.xlu0 %1527, %v1361
    %v1529 = vpop.permute.xlu0 %1528
    %1530 = vset.pattern.permute.xlu0 0
    %1531 = vperm.xlu0 %1530, %v1362
    %v1532 = vpop.permute.xlu0 %1531
    %1533 = vset.pattern.permute.xlu0 0
    %1534 = vperm.xlu0 %1533, %v1363
    %v1535 = vpop.permute.xlu0 %1534
    %1536 = vset.pattern.permute.xlu0 0
    %1537 = vperm.xlu0 %1536, %v1364
    %v1538 = vpop.permute.xlu0 %1537
    %1539 = vset.pattern.permute.xlu0 0
    %1540 = vperm.xlu0 %1539, %v1365
    %v1541 = vpop.permute.xlu0 %1540
    %1542 = vset.pattern.permute.xlu0 0
    %1543 = vperm.xlu0 %1542, %v1366
    %v1544 = vpop.permute.xlu0 %1543
    %1545 = vset.pattern.permute.xlu0 0
    %1546 = vperm.xlu0 %1545, %v1367
    %v1547 = vpop.permute.xlu0 %1546
    %1548 = vset.pattern.permute.xlu0 0
    %1549 = vperm.xlu0 %1548, %v1368
    %v1550 = vpop.permute.xlu0 %1549
    %1551 = vset.pattern.permute.xlu0 0
    %1552 = vperm.xlu0 %1551, %v1369
    %v1553 = vpop.permute.xlu0 %1552
    %1554 = vset.pattern.permute.xlu0 0
    %1555 = vperm.xlu0 %1554, %v1370
    %v1556 = vpop.permute.xlu0 %1555
    %1557 = vset.pattern.permute.xlu0 0
    %1558 = vperm.xlu0 %1557, %v1371
    %v1559 = vpop.permute.xlu0 %1558
    %1560 = vset.pattern.permute.xlu0 0
    %1561 = vperm.xlu0 %1560, %v1372
    %v1562 = vpop.permute.xlu0 %1561
    %1563 = vset.pattern.permute.xlu0 0
    %1564 = vperm.xlu0 %1563, %v1373
    %v1565 = vpop.permute.xlu0 %1564
    %vm1566 = vcmp.eq.s32.totalorder %v1376, 1
    %vm1567 = vcmp.eq.s32.totalorder %v1379, 1
    %vm1568 = vcmp.eq.s32.totalorder %v1382, 1
    %vm1569 = vcmp.eq.s32.totalorder %v1385, 1
    %vm1570 = vcmp.eq.s32.totalorder %v1388, 1
    %vm1571 = vcmp.eq.s32.totalorder %v1391, 1
    %vm1572 = vcmp.eq.s32.totalorder %v1394, 1
    %vm1573 = vcmp.eq.s32.totalorder %v1397, 1
    %vm1574 = vcmp.eq.s32.totalorder %v1400, 1
    %vm1575 = vcmp.eq.s32.totalorder %v1403, 1
    %vm1576 = vcmp.eq.s32.totalorder %v1406, 1
    %vm1577 = vcmp.eq.s32.totalorder %v1409, 1
    %vm1578 = vcmp.eq.s32.totalorder %v1412, 1
    %vm1579 = vcmp.eq.s32.totalorder %v1415, 1
    %vm1580 = vcmp.eq.s32.totalorder %v1418, 1
    %vm1581 = vcmp.eq.s32.totalorder %v1421, 1
    %vm1582 = vcmp.eq.s32.totalorder %v1424, 1
    %vm1583 = vcmp.eq.s32.totalorder %v1427, 1
    %vm1584 = vcmp.eq.s32.totalorder %v1430, 1
    %vm1585 = vcmp.eq.s32.totalorder %v1433, 1
    %vm1586 = vcmp.eq.s32.totalorder %v1436, 1
    %vm1587 = vcmp.eq.s32.totalorder %v1439, 1
    %vm1588 = vcmp.eq.s32.totalorder %v1442, 1
    %vm1589 = vcmp.eq.s32.totalorder %v1445, 1
    %vm1590 = vcmp.eq.s32.totalorder %v1448, 1
    %vm1591 = vcmp.eq.s32.totalorder %v1451, 1
    %vm1592 = vcmp.eq.s32.totalorder %v1454, 1
    %vm1593 = vcmp.eq.s32.totalorder %v1457, 1
    %vm1594 = vcmp.eq.s32.totalorder %v1460, 1
    %vm1595 = vcmp.eq.s32.totalorder %v1463, 1
    %vm1596 = vcmp.eq.s32.totalorder %v1466, 1
    %vm1597 = vcmp.eq.s32.totalorder %v1469, 1
    %vm1598 = vcmp.eq.s32.totalorder %v1472, 1
    %vm1599 = vcmp.eq.s32.totalorder %v1475, 1
    %vm1600 = vcmp.eq.s32.totalorder %v1478, 1
    %vm1601 = vcmp.eq.s32.totalorder %v1481, 1
    %vm1602 = vcmp.eq.s32.totalorder %v1484, 1
    %vm1603 = vcmp.eq.s32.totalorder %v1487, 1
    %vm1604 = vcmp.eq.s32.totalorder %v1490, 1
    %vm1605 = vcmp.eq.s32.totalorder %v1493, 1
    %vm1606 = vcmp.eq.s32.totalorder %v1496, 1
    %vm1607 = vcmp.eq.s32.totalorder %v1499, 1
    %vm1608 = vcmp.eq.s32.totalorder %v1502, 1
    %vm1609 = vcmp.eq.s32.totalorder %v1505, 1
    %vm1610 = vcmp.eq.s32.totalorder %v1508, 1
    %vm1611 = vcmp.eq.s32.totalorder %v1511, 1
    %vm1612 = vcmp.eq.s32.totalorder %v1514, 1
    %vm1613 = vcmp.eq.s32.totalorder %v1517, 1
    %vm1614 = vcmp.eq.s32.totalorder %v1520, 1
    %vm1615 = vcmp.eq.s32.totalorder %v1523, 1
    %vm1616 = vcmp.eq.s32.totalorder %v1526, 1
    %vm1617 = vcmp.eq.s32.totalorder %v1529, 1
    %vm1618 = vcmp.eq.s32.totalorder %v1532, 1
    %vm1619 = vcmp.eq.s32.totalorder %v1535, 1
    %vm1620 = vcmp.eq.s32.totalorder %v1538, 1
    %vm1621 = vcmp.eq.s32.totalorder %v1541, 1
    %vm1622 = vcmp.eq.s32.totalorder %v1544, 1
    %vm1623 = vcmp.eq.s32.totalorder %v1547, 1
    %vm1624 = vcmp.eq.s32.totalorder %v1550, 1
    %vm1625 = vcmp.eq.s32.totalorder %v1553, 1
    %vm1626 = vcmp.eq.s32.totalorder %v1556, 1
    %vm1627 = vcmp.eq.s32.totalorder %v1559, 1
    %vm1628 = vcmp.eq.s32.totalorder %v1562, 1
    %vm1629 = vcmp.eq.s32.totalorder %v1565, 1
    %v1630 = vsel %vm1566, %v1053, 0.0
    %v1631 = vsel %vm1567, %v865, 0.0
    %v1632 = vsel %vm1568, %v867, 0.0
    %v1633 = vsel %vm1569, %v869, 0.0
    %v1634 = vsel %vm1570, %v871, 0.0
    %v1635 = vsel %vm1571, %v873, 0.0
    %v1636 = vsel %vm1572, %v875, 0.0
    %v1637 = vsel %vm1573, %v877, 0.0
    %v1638 = vsel %vm1574, %v879, 0.0
    %v1639 = vsel %vm1575, %v881, 0.0
    %v1640 = vsel %vm1576, %v883, 0.0
    %v1641 = vsel %vm1577, %v885, 0.0
    %v1642 = vsel %vm1578, %v887, 0.0
    %v1643 = vsel %vm1579, %v889, 0.0
    %v1644 = vsel %vm1580, %v891, 0.0
    %v1645 = vsel %vm1581, %v893, 0.0
    %v1646 = vsel %vm1582, %v895, 0.0
    %v1647 = vsel %vm1583, %v897, 0.0
    %v1648 = vsel %vm1584, %v899, 0.0
    %v1649 = vsel %vm1585, %v901, 0.0
    %v1650 = vsel %vm1586, %v903, 0.0
    %v1651 = vsel %vm1587, %v905, 0.0
    %v1652 = vsel %vm1588, %v907, 0.0
    %v1653 = vsel %vm1589, %v909, 0.0
    %v1654 = vsel %vm1590, %v911, 0.0
    %v1655 = vsel %vm1591, %v913, 0.0
    %v1656 = vsel %vm1592, %v915, 0.0
    %v1657 = vsel %vm1593, %v917, 0.0
    %v1658 = vsel %vm1594, %v919, 0.0
    %v1659 = vsel %vm1595, %v921, 0.0
    %v1660 = vsel %vm1596, %v923, 0.0
    %v1661 = vsel %vm1597, %v925, 0.0
    %v1662 = vsel %vm1598, %v927, 0.0
    %v1663 = vsel %vm1599, %v929, 0.0
    %v1664 = vsel %vm1600, %v931, 0.0
    %v1665 = vsel %vm1601, %v933, 0.0
    %v1666 = vsel %vm1602, %v935, 0.0
    %v1667 = vsel %vm1603, %v937, 0.0
    %v1668 = vsel %vm1604, %v939, 0.0
    %v1669 = vsel %vm1605, %v941, 0.0
    %v1670 = vsel %vm1606, %v943, 0.0
    %v1671 = vsel %vm1607, %v945, 0.0
    %v1672 = vsel %vm1608, %v947, 0.0
    %v1673 = vsel %vm1609, %v949, 0.0
    %v1674 = vsel %vm1610, %v951, 0.0
    %v1675 = vsel %vm1611, %v953, 0.0
    %v1676 = vsel %vm1612, %v955, 0.0
    %v1677 = vsel %vm1613, %v957, 0.0
    %v1678 = vsel %vm1614, %v959, 0.0
    %v1679 = vsel %vm1615, %v961, 0.0
    %v1680 = vsel %vm1616, %v963, 0.0
    %v1681 = vsel %vm1617, %v965, 0.0
    %v1682 = vsel %vm1618, %v967, 0.0
    %v1683 = vsel %vm1619, %v969, 0.0
    %v1684 = vsel %vm1620, %v971, 0.0
    %v1685 = vsel %vm1621, %v973, 0.0
    %v1686 = vsel %vm1622, %v975, 0.0
    %v1687 = vsel %vm1623, %v977, 0.0
    %v1688 = vsel %vm1624, %v979, 0.0
    %v1689 = vsel %vm1625, %v981, 0.0
    %v1690 = vsel %vm1626, %v983, 0.0
    %v1691 = vsel %vm1627, %v985, 0.0
    %v1692 = vsel %vm1628, %v987, 0.0
    %v1693 = vsel %vm1629, %v988, 0.0
    %vm1694 = vcmask 1046528
    %v1695 = vrot.slane %v732, 1
    %v1696 = vrot.slane %v733, 1
    %v1697 = vsel %vm1694, %v1695, %v1696
    %v1698 = vrot.slane %v734, 1
    %v1699 = vsel %vm1694, %v1696, %v1698
    %v1700 = vrot.slane %v735, 1
    %v1701 = vsel %vm1694, %v1698, %v1700
    %v1702 = vrot.slane %v736, 1
    %v1703 = vsel %vm1694, %v1700, %v1702
    %v1704 = vrot.slane %v737, 1
    %v1705 = vsel %vm1694, %v1702, %v1704
    %v1706 = vrot.slane %v738, 1
    %v1707 = vsel %vm1694, %v1704, %v1706
    %v1708 = vrot.slane %v739, 1
    %v1709 = vsel %vm1694, %v1706, %v1708
    %v1710 = vrot.slane %v740, 1
    %v1711 = vsel %vm1694, %v1708, %v1710
    %v1712 = vrot.slane %v741, 1
    %v1713 = vsel %vm1694, %v1710, %v1712
    %v1714 = vrot.slane %v742, 1
    %v1715 = vsel %vm1694, %v1712, %v1714
    %v1716 = vrot.slane %v743, 1
    %v1717 = vsel %vm1694, %v1714, %v1716
    %v1718 = vrot.slane %v744, 1
    %v1719 = vsel %vm1694, %v1716, %v1718
    %v1720 = vrot.slane %v745, 1
    %v1721 = vsel %vm1694, %v1718, %v1720
    %v1722 = vrot.slane %v746, 1
    %v1723 = vsel %vm1694, %v1720, %v1722
    %v1724 = vrot.slane %v747, 1
    %v1725 = vsel %vm1694, %v1722, %v1724
    %v1726 = vrot.slane %v748, 1
    %v1727 = vsel %vm1694, %v1724, %v1726
    %v1728 = vrot.slane %v749, 1
    %v1729 = vsel %vm1694, %v1726, %v1728
    %v1730 = vrot.slane %v750, 1
    %v1731 = vsel %vm1694, %v1728, %v1730
    %v1732 = vrot.slane %v751, 1
    %v1733 = vsel %vm1694, %v1730, %v1732
    %v1734 = vrot.slane %v752, 1
    %v1735 = vsel %vm1694, %v1732, %v1734
    %v1736 = vrot.slane %v753, 1
    %v1737 = vsel %vm1694, %v1734, %v1736
    %v1738 = vrot.slane %v754, 1
    %v1739 = vsel %vm1694, %v1736, %v1738
    %v1740 = vrot.slane %v755, 1
    %v1741 = vsel %vm1694, %v1738, %v1740
    %v1742 = vrot.slane %v756, 1
    %v1743 = vsel %vm1694, %v1740, %v1742
    %v1744 = vrot.slane %v757, 1
    %v1745 = vsel %vm1694, %v1742, %v1744
    %v1746 = vrot.slane %v758, 1
    %v1747 = vsel %vm1694, %v1744, %v1746
    %v1748 = vrot.slane %v759, 1
    %v1749 = vsel %vm1694, %v1746, %v1748
    %v1750 = vrot.slane %v760, 1
    %v1751 = vsel %vm1694, %v1748, %v1750
    %v1752 = vrot.slane %v761, 1
    %v1753 = vsel %vm1694, %v1750, %v1752
    %v1754 = vrot.slane %v762, 1
    %v1755 = vsel %vm1694, %v1752, %v1754
    %v1756 = vrot.slane %v763, 1
    %v1757 = vsel %vm1694, %v1754, %v1756
    %v1758 = vrot.slane %v764, 1
    %v1759 = vsel %vm1694, %v1756, %v1758
    %v1760 = vrot.slane %v765, 1
    %v1761 = vsel %vm1694, %v1758, %v1760
    %v1762 = vrot.slane %v766, 1
    %v1763 = vsel %vm1694, %v1760, %v1762
    %v1764 = vrot.slane %v767, 1
    %v1765 = vsel %vm1694, %v1762, %v1764
    %v1766 = vrot.slane %v768, 1
    %v1767 = vsel %vm1694, %v1764, %v1766
    %v1768 = vrot.slane %v769, 1
    %v1769 = vsel %vm1694, %v1766, %v1768
    %v1770 = vrot.slane %v770, 1
    %v1771 = vsel %vm1694, %v1768, %v1770
    %v1772 = vrot.slane %v771, 1
    %v1773 = vsel %vm1694, %v1770, %v1772
    %v1774 = vrot.slane %v772, 1
    %v1775 = vsel %vm1694, %v1772, %v1774
    %v1776 = vrot.slane %v773, 1
    %v1777 = vsel %vm1694, %v1774, %v1776
    %v1778 = vrot.slane %v774, 1
    %v1779 = vsel %vm1694, %v1776, %v1778
    %v1780 = vrot.slane %v775, 1
    %v1781 = vsel %vm1694, %v1778, %v1780
    %v1782 = vrot.slane %v776, 1
    %v1783 = vsel %vm1694, %v1780, %v1782
    %v1784 = vrot.slane %v777, 1
    %v1785 = vsel %vm1694, %v1782, %v1784
    %v1786 = vrot.slane %v778, 1
    %v1787 = vsel %vm1694, %v1784, %v1786
    %v1788 = vrot.slane %v779, 1
    %v1789 = vsel %vm1694, %v1786, %v1788
    %v1790 = vrot.slane %v780, 1
    %v1791 = vsel %vm1694, %v1788, %v1790
    %v1792 = vrot.slane %v781, 1
    %v1793 = vsel %vm1694, %v1790, %v1792
    %v1794 = vrot.slane %v782, 1
    %v1795 = vsel %vm1694, %v1792, %v1794
    %v1796 = vrot.slane %v783, 1
    %v1797 = vsel %vm1694, %v1794, %v1796
    %v1798 = vrot.slane %v784, 1
    %v1799 = vsel %vm1694, %v1796, %v1798
    %v1800 = vrot.slane %v785, 1
    %v1801 = vsel %vm1694, %v1798, %v1800
    %v1802 = vrot.slane %v786, 1
    %v1803 = vsel %vm1694, %v1800, %v1802
    %v1804 = vrot.slane %v787, 1
    %v1805 = vsel %vm1694, %v1802, %v1804
    %v1806 = vrot.slane %v788, 1
    %v1807 = vsel %vm1694, %v1804, %v1806
    %v1808 = vrot.slane %v789, 1
    %v1809 = vsel %vm1694, %v1806, %v1808
    %v1810 = vrot.slane %v790, 1
    %v1811 = vsel %vm1694, %v1808, %v1810
    %v1812 = vrot.slane %v791, 1
    %v1813 = vsel %vm1694, %v1810, %v1812
    %v1814 = vrot.slane %v792, 1
    %v1815 = vsel %vm1694, %v1812, %v1814
    %v1816 = vrot.slane %v793, 1
    %v1817 = vsel %vm1694, %v1814, %v1816
    %v1818 = vrot.slane %v794, 1
    %v1819 = vsel %vm1694, %v1816, %v1818
    %v1820 = vrot.slane %v795, 1
    %v1821 = vsel %vm1694, %v1818, %v1820
    %v1887 = vsel %vm1694, %v1820, %v1695
    %v1888 = vadd.s32 %v105, 1
    %v1889 = vadd.s32 %v106, 1
    %v1890 = vadd.s32 %v107, 1
    %v1891 = vadd.s32 %v108, 1
    %v1892 = vadd.s32 %v109, 1
    %v1893 = vadd.s32 %v110, 1
    %v1894 = vadd.s32 %v111, 1
    %v1895 = vadd.s32 %v112, 1
    %v1896 = vadd.s32 %v113, 1
    %v1897 = vadd.s32 %v114, 1
    %v1898 = vadd.s32 %v115, 1
    %v1899 = vadd.s32 %v116, 1
    %v1900 = vadd.s32 %v117, 1
    %v1901 = vadd.s32 %v118, 1
    %v1902 = vadd.s32 %v119, 1
    %v1903 = vadd.s32 %v120, 1
    %v1904 = vadd.s32 %v121, 1
    %v1905 = vadd.s32 %v122, 1
    %v1906 = vadd.s32 %v123, 1
    %v1907 = vadd.s32 %v124, 1
    %v1908 = vadd.s32 %v125, 1
    %v1909 = vadd.s32 %v126, 1
    %v1910 = vadd.s32 %v127, 1
    %v1911 = vadd.s32 %v128, 1
    %v1912 = vadd.s32 %v129, 1
    %v1913 = vadd.s32 %v130, 1
    %v1914 = vadd.s32 %v131, 1
    %v1915 = vadd.s32 %v132, 1
    %v1916 = vadd.s32 %v133, 1
    %v1917 = vadd.s32 %v134, 1
    %v1918 = vadd.s32 %v135, 1
    %v1919 = vadd.s32 %v136, 1
    %v1920 = vadd.s32 %v137, 1
    %v1921 = vadd.s32 %v138, 1
    %v1922 = vadd.s32 %v139, 1
    %v1923 = vadd.s32 %v140, 1
    %v1924 = vadd.s32 %v141, 1
    %v1925 = vadd.s32 %v142, 1
    %v1926 = vadd.s32 %v143, 1
    %v1927 = vadd.s32 %v144, 1
    %v1928 = vadd.s32 %v145, 1
    %v1929 = vadd.s32 %v146, 1
    %v1930 = vadd.s32 %v147, 1
    %v1931 = vadd.s32 %v148, 1
    %v1932 = vadd.s32 %v149, 1
    %v1933 = vadd.s32 %v150, 1
    %v1934 = vadd.s32 %v151, 1
    %v1935 = vadd.s32 %v152, 1
    %v1936 = vadd.s32 %v153, 1
    %v1937 = vadd.s32 %v154, 1
    %v1938 = vadd.s32 %v155, 1
    %v1939 = vadd.s32 %v156, 1
    %v1940 = vadd.s32 %v157, 1
    %v1941 = vadd.s32 %v158, 1
    %v1942 = vadd.s32 %v159, 1
    %v1943 = vadd.s32 %v160, 1
    %v1944 = vadd.s32 %v161, 1
    %v1945 = vadd.s32 %v162, 1
    %v1946 = vadd.s32 %v163, 1
    %v1947 = vadd.s32 %v164, 1
    %v1948 = vadd.s32 %v165, 1
    %v1949 = vadd.s32 %v166, 1
    %v1950 = vadd.s32 %v167, 1
    %v1951 = vadd.s32 %v168, 1
    %vm1952 = vcmp.ge.s32.totalorder %v1888, 0
    %vm1953 = vcmp.ge.s32.totalorder %v1889, 0
    %vm1954 = vcmp.ge.s32.totalorder %v1890, 0
    %vm1955 = vcmp.ge.s32.totalorder %v1891, 0
    %vm1956 = vcmp.ge.s32.totalorder %v1892, 0
    %vm1957 = vcmp.ge.s32.totalorder %v1893, 0
    %vm1958 = vcmp.ge.s32.totalorder %v1894, 0
    %vm1959 = vcmp.ge.s32.totalorder %v1895, 0
    %vm1960 = vcmp.ge.s32.totalorder %v1896, 0
    %vm1961 = vcmp.ge.s32.totalorder %v1897, 0
    %vm1962 = vcmp.ge.s32.totalorder %v1898, 0
    %vm1963 = vcmp.ge.s32.totalorder %v1899, 0
    %vm1964 = vcmp.ge.s32.totalorder %v1900, 0
    %vm1965 = vcmp.ge.s32.totalorder %v1901, 0
    %vm1966 = vcmp.ge.s32.totalorder %v1902, 0
    %vm1967 = vcmp.ge.s32.totalorder %v1903, 0
    %vm1968 = vcmp.ge.s32.totalorder %v1904, 0
    %vm1969 = vcmp.ge.s32.totalorder %v1905, 0
    %vm1970 = vcmp.ge.s32.totalorder %v1906, 0
    %vm1971 = vcmp.ge.s32.totalorder %v1907, 0
    %vm1972 = vcmp.ge.s32.totalorder %v1908, 0
    %vm1973 = vcmp.ge.s32.totalorder %v1909, 0
    %vm1974 = vcmp.ge.s32.totalorder %v1910, 0
    %vm1975 = vcmp.ge.s32.totalorder %v1911, 0
    %vm1976 = vcmp.ge.s32.totalorder %v1912, 0
    %vm1977 = vcmp.ge.s32.totalorder %v1913, 0
    %vm1978 = vcmp.ge.s32.totalorder %v1914, 0
    %vm1979 = vcmp.ge.s32.totalorder %v1915, 0
    %vm1980 = vcmp.ge.s32.totalorder %v1916, 0
    %vm1981 = vcmp.ge.s32.totalorder %v1917, 0
    %vm1982 = vcmp.ge.s32.totalorder %v1918, 0
    %vm1983 = vcmp.ge.s32.totalorder %v1919, 0
    %vm1984 = vcmp.ge.s32.totalorder %v1920, 0
    %vm1985 = vcmp.ge.s32.totalorder %v1921, 0
    %vm1986 = vcmp.ge.s32.totalorder %v1922, 0
    %vm1987 = vcmp.ge.s32.totalorder %v1923, 0
    %vm1988 = vcmp.ge.s32.totalorder %v1924, 0
    %vm1989 = vcmp.ge.s32.totalorder %v1925, 0
    %vm1990 = vcmp.ge.s32.totalorder %v1926, 0
    %vm1991 = vcmp.ge.s32.totalorder %v1927, 0
    %vm1992 = vcmp.ge.s32.totalorder %v1928, 0
    %vm1993 = vcmp.ge.s32.totalorder %v1929, 0
    %vm1994 = vcmp.ge.s32.totalorder %v1930, 0
    %vm1995 = vcmp.ge.s32.totalorder %v1931, 0
    %vm1996 = vcmp.ge.s32.totalorder %v1932, 0
    %vm1997 = vcmp.ge.s32.totalorder %v1933, 0
    %vm1998 = vcmp.ge.s32.totalorder %v1934, 0
    %vm1999 = vcmp.ge.s32.totalorder %v1935, 0
    %vm2000 = vcmp.ge.s32.totalorder %v1936, 0
    %vm2001 = vcmp.ge.s32.totalorder %v1937, 0
    %vm2002 = vcmp.ge.s32.totalorder %v1938, 0
    %vm2003 = vcmp.ge.s32.totalorder %v1939, 0
    %vm2004 = vcmp.ge.s32.totalorder %v1940, 0
    %vm2005 = vcmp.ge.s32.totalorder %v1941, 0
    %vm2006 = vcmp.ge.s32.totalorder %v1942, 0
    %vm2007 = vcmp.ge.s32.totalorder %v1943, 0
    %vm2008 = vcmp.ge.s32.totalorder %v1944, 0
    %vm2009 = vcmp.ge.s32.totalorder %v1945, 0
    %vm2010 = vcmp.ge.s32.totalorder %v1946, 0
    %vm2011 = vcmp.ge.s32.totalorder %v1947, 0
    %vm2012 = vcmp.ge.s32.totalorder %v1948, 0
    %vm2013 = vcmp.ge.s32.totalorder %v1949, 0
    %vm2014 = vcmp.ge.s32.totalorder %v1950, 0
    %vm2015 = vcmp.ge.s32.totalorder %v1951, 0
    %vm2016 = vcmp.lt.s32.totalorder %v1888, 16
    %vm2017 = vcmp.lt.s32.totalorder %v1889, 16
    %vm2018 = vcmp.lt.s32.totalorder %v1890, 16
    %vm2019 = vcmp.lt.s32.totalorder %v1891, 16
    %vm2020 = vcmp.lt.s32.totalorder %v1892, 16
    %vm2021 = vcmp.lt.s32.totalorder %v1893, 16
    %vm2022 = vcmp.lt.s32.totalorder %v1894, 16
    %vm2023 = vcmp.lt.s32.totalorder %v1895, 16
    %vm2024 = vcmp.lt.s32.totalorder %v1896, 16
    %vm2025 = vcmp.lt.s32.totalorder %v1897, 16
    %vm2026 = vcmp.lt.s32.totalorder %v1898, 16
    %vm2027 = vcmp.lt.s32.totalorder %v1899, 16
    %vm2028 = vcmp.lt.s32.totalorder %v1900, 16
    %vm2029 = vcmp.lt.s32.totalorder %v1901, 16
    %vm2030 = vcmp.lt.s32.totalorder %v1902, 16
    %vm2031 = vcmp.lt.s32.totalorder %v1903, 16
    %vm2032 = vcmp.lt.s32.totalorder %v1904, 16
    %vm2033 = vcmp.lt.s32.totalorder %v1905, 16
    %vm2034 = vcmp.lt.s32.totalorder %v1906, 16
    %vm2035 = vcmp.lt.s32.totalorder %v1907, 16
    %vm2036 = vcmp.lt.s32.totalorder %v1908, 16
    %vm2037 = vcmp.lt.s32.totalorder %v1909, 16
    %vm2038 = vcmp.lt.s32.totalorder %v1910, 16
    %vm2039 = vcmp.lt.s32.totalorder %v1911, 16
    %vm2040 = vcmp.lt.s32.totalorder %v1912, 16
    %vm2041 = vcmp.lt.s32.totalorder %v1913, 16
    %vm2042 = vcmp.lt.s32.totalorder %v1914, 16
    %vm2043 = vcmp.lt.s32.totalorder %v1915, 16
    %vm2044 = vcmp.lt.s32.totalorder %v1916, 16
    %vm2045 = vcmp.lt.s32.totalorder %v1917, 16
    %vm2046 = vcmp.lt.s32.totalorder %v1918, 16
    %vm2047 = vcmp.lt.s32.totalorder %v1919, 16
    %vm2048 = vcmp.lt.s32.totalorder %v1920, 16
    %vm2049 = vcmp.lt.s32.totalorder %v1921, 16
    %vm2050 = vcmp.lt.s32.totalorder %v1922, 16
    %vm2051 = vcmp.lt.s32.totalorder %v1923, 16
    %vm2052 = vcmp.lt.s32.totalorder %v1924, 16
    %vm2053 = vcmp.lt.s32.totalorder %v1925, 16
    %vm2054 = vcmp.lt.s32.totalorder %v1926, 16
    %vm2055 = vcmp.lt.s32.totalorder %v1927, 16
    %vm2056 = vcmp.lt.s32.totalorder %v1928, 16
    %vm2057 = vcmp.lt.s32.totalorder %v1929, 16
    %vm2058 = vcmp.lt.s32.totalorder %v1930, 16
    %vm2059 = vcmp.lt.s32.totalorder %v1931, 16
    %vm2060 = vcmp.lt.s32.totalorder %v1932, 16
    %vm2061 = vcmp.lt.s32.totalorder %v1933, 16
    %vm2062 = vcmp.lt.s32.totalorder %v1934, 16
    %vm2063 = vcmp.lt.s32.totalorder %v1935, 16
    %vm2064 = vcmp.lt.s32.totalorder %v1936, 16
    %vm2065 = vcmp.lt.s32.totalorder %v1937, 16
    %vm2066 = vcmp.lt.s32.totalorder %v1938, 16
    %vm2067 = vcmp.lt.s32.totalorder %v1939, 16
    %vm2068 = vcmp.lt.s32.totalorder %v1940, 16
    %vm2069 = vcmp.lt.s32.totalorder %v1941, 16
    %vm2070 = vcmp.lt.s32.totalorder %v1942, 16
    %vm2071 = vcmp.lt.s32.totalorder %v1943, 16
    %vm2072 = vcmp.lt.s32.totalorder %v1944, 16
    %vm2073 = vcmp.lt.s32.totalorder %v1945, 16
    %vm2074 = vcmp.lt.s32.totalorder %v1946, 16
    %vm2075 = vcmp.lt.s32.totalorder %v1947, 16
    %vm2076 = vcmp.lt.s32.totalorder %v1948, 16
    %vm2077 = vcmp.lt.s32.totalorder %v1949, 16
    %vm2078 = vcmp.lt.s32.totalorder %v1950, 16
    %vm2079 = vcmp.lt.s32.totalorder %v1951, 16
    %vm2080 = vmand %vm1952, %vm2016
    %vm2081 = vmand %vm1953, %vm2017
    %vm2082 = vmand %vm1954, %vm2018
    %vm2083 = vmand %vm1955, %vm2019
    %vm2084 = vmand %vm1956, %vm2020
    %vm2085 = vmand %vm1957, %vm2021
    %vm2086 = vmand %vm1958, %vm2022
    %vm2087 = vmand %vm1959, %vm2023
    %vm2088 = vmand %vm1960, %vm2024
    %vm2089 = vmand %vm1961, %vm2025
    %vm2090 = vmand %vm1962, %vm2026
    %vm2091 = vmand %vm1963, %vm2027
    %vm2092 = vmand %vm1964, %vm2028
    %vm2093 = vmand %vm1965, %vm2029
    %vm2094 = vmand %vm1966, %vm2030
    %vm2095 = vmand %vm1967, %vm2031
    %vm2096 = vmand %vm1968, %vm2032
    %vm2097 = vmand %vm1969, %vm2033
    %vm2098 = vmand %vm1970, %vm2034
    %vm2099 = vmand %vm1971, %vm2035
    %vm2100 = vmand %vm1972, %vm2036
    %vm2101 = vmand %vm1973, %vm2037
    %vm2102 = vmand %vm1974, %vm2038
    %vm2103 = vmand %vm1975, %vm2039
    %vm2104 = vmand %vm1976, %vm2040
    %vm2105 = vmand %vm1977, %vm2041
    %vm2106 = vmand %vm1978, %vm2042
    %vm2107 = vmand %vm1979, %vm2043
    %vm2108 = vmand %vm1980, %vm2044
    %vm2109 = vmand %vm1981, %vm2045
    %vm2110 = vmand %vm1982, %vm2046
    %vm2111 = vmand %vm1983, %vm2047
    %vm2112 = vmand %vm1984, %vm2048
    %vm2113 = vmand %vm1985, %vm2049
    %vm2114 = vmand %vm1986, %vm2050
    %vm2115 = vmand %vm1987, %vm2051
    %vm2116 = vmand %vm1988, %vm2052
    %vm2117 = vmand %vm1989, %vm2053
    %vm2118 = vmand %vm1990, %vm2054
    %vm2119 = vmand %vm1991, %vm2055
    %vm2120 = vmand %vm1992, %vm2056
    %vm2121 = vmand %vm1993, %vm2057
    %vm2122 = vmand %vm1994, %vm2058
    %vm2123 = vmand %vm1995, %vm2059
    %vm2124 = vmand %vm1996, %vm2060
    %vm2125 = vmand %vm1997, %vm2061
    %vm2126 = vmand %vm1998, %vm2062
    %vm2127 = vmand %vm1999, %vm2063
    %vm2128 = vmand %vm2000, %vm2064
    %vm2129 = vmand %vm2001, %vm2065
    %vm2130 = vmand %vm2002, %vm2066
    %vm2131 = vmand %vm2003, %vm2067
    %vm2132 = vmand %vm2004, %vm2068
    %vm2133 = vmand %vm2005, %vm2069
    %vm2134 = vmand %vm2006, %vm2070
    %vm2135 = vmand %vm2007, %vm2071
    %vm2136 = vmand %vm2008, %vm2072
    %vm2137 = vmand %vm2009, %vm2073
    %vm2138 = vmand %vm2010, %vm2074
    %vm2139 = vmand %vm2011, %vm2075
    %vm2140 = vmand %vm2012, %vm2076
    %vm2141 = vmand %vm2013, %vm2077
    %vm2142 = vmand %vm2014, %vm2078
    %vm2143 = vmand %vm2015, %vm2079
    %v2144 = vsel %vm2080, 1, 0
    %v2145 = vsel %vm2081, 1, 0
    %v2146 = vsel %vm2082, 1, 0
    %v2147 = vsel %vm2083, 1, 0
    %v2148 = vsel %vm2084, 1, 0
    %v2149 = vsel %vm2085, 1, 0
    %v2150 = vsel %vm2086, 1, 0
    %v2151 = vsel %vm2087, 1, 0
    %v2152 = vsel %vm2088, 1, 0
    %v2153 = vsel %vm2089, 1, 0
    %v2154 = vsel %vm2090, 1, 0
    %v2155 = vsel %vm2091, 1, 0
    %v2156 = vsel %vm2092, 1, 0
    %v2157 = vsel %vm2093, 1, 0
    %v2158 = vsel %vm2094, 1, 0
    %v2159 = vsel %vm2095, 1, 0
    %v2160 = vsel %vm2096, 1, 0
    %v2161 = vsel %vm2097, 1, 0
    %v2162 = vsel %vm2098, 1, 0
    %v2163 = vsel %vm2099, 1, 0
    %v2164 = vsel %vm2100, 1, 0
    %v2165 = vsel %vm2101, 1, 0
    %v2166 = vsel %vm2102, 1, 0
    %v2167 = vsel %vm2103, 1, 0
    %v2168 = vsel %vm2104, 1, 0
    %v2169 = vsel %vm2105, 1, 0
    %v2170 = vsel %vm2106, 1, 0
    %v2171 = vsel %vm2107, 1, 0
    %v2172 = vsel %vm2108, 1, 0
    %v2173 = vsel %vm2109, 1, 0
    %v2174 = vsel %vm2110, 1, 0
    %v2175 = vsel %vm2111, 1, 0
    %v2176 = vsel %vm2112, 1, 0
    %v2177 = vsel %vm2113, 1, 0
    %v2178 = vsel %vm2114, 1, 0
    %v2179 = vsel %vm2115, 1, 0
    %v2180 = vsel %vm2116, 1, 0
    %v2181 = vsel %vm2117, 1, 0
    %v2182 = vsel %vm2118, 1, 0
    %v2183 = vsel %vm2119, 1, 0
    %v2184 = vsel %vm2120, 1, 0
    %v2185 = vsel %vm2121, 1, 0
    %v2186 = vsel %vm2122, 1, 0
    %v2187 = vsel %vm2123, 1, 0
    %v2188 = vsel %vm2124, 1, 0
    %v2189 = vsel %vm2125, 1, 0
    %v2190 = vsel %vm2126, 1, 0
    %v2191 = vsel %vm2127, 1, 0
    %v2192 = vsel %vm2128, 1, 0
    %v2193 = vsel %vm2129, 1, 0
    %v2194 = vsel %vm2130, 1, 0
    %v2195 = vsel %vm2131, 1, 0
    %v2196 = vsel %vm2132, 1, 0
    %v2197 = vsel %vm2133, 1, 0
    %v2198 = vsel %vm2134, 1, 0
    %v2199 = vsel %vm2135, 1, 0
    %v2200 = vsel %vm2136, 1, 0
    %v2201 = vsel %vm2137, 1, 0
    %v2202 = vsel %vm2138, 1, 0
    %v2203 = vsel %vm2139, 1, 0
    %v2204 = vsel %vm2140, 1, 0
    %v2205 = vsel %vm2141, 1, 0
    %v2206 = vsel %vm2142, 1, 0
    %v2207 = vsel %vm2143, 1, 0
    %2208 = vset.pattern.permute.xlu0 0
    %2209 = vperm.xlu0 %2208, %v2144
    %v2210 = vpop.permute.xlu0 %2209
    %2211 = vset.pattern.permute.xlu0 0
    %2212 = vperm.xlu0 %2211, %v2145
    %v2213 = vpop.permute.xlu0 %2212
    %2214 = vset.pattern.permute.xlu0 0
    %2215 = vperm.xlu0 %2214, %v2146
    %v2216 = vpop.permute.xlu0 %2215
    %2217 = vset.pattern.permute.xlu0 0
    %2218 = vperm.xlu0 %2217, %v2147
    %v2219 = vpop.permute.xlu0 %2218
    %2220 = vset.pattern.permute.xlu0 0
    %2221 = vperm.xlu0 %2220, %v2148
    %v2222 = vpop.permute.xlu0 %2221
    %2223 = vset.pattern.permute.xlu0 0
    %2224 = vperm.xlu0 %2223, %v2149
    %v2225 = vpop.permute.xlu0 %2224
    %2226 = vset.pattern.permute.xlu0 0
    %2227 = vperm.xlu0 %2226, %v2150
    %v2228 = vpop.permute.xlu0 %2227
    %2229 = vset.pattern.permute.xlu0 0
    %2230 = vperm.xlu0 %2229, %v2151
    %v2231 = vpop.permute.xlu0 %2230
    %2232 = vset.pattern.permute.xlu0 0
    %2233 = vperm.xlu0 %2232, %v2152
    %v2234 = vpop.permute.xlu0 %2233
    %2235 = vset.pattern.permute.xlu0 0
    %2236 = vperm.xlu0 %2235, %v2153
    %v2237 = vpop.permute.xlu0 %2236
    %2238 = vset.pattern.permute.xlu0 0
    %2239 = vperm.xlu0 %2238, %v2154
    %v2240 = vpop.permute.xlu0 %2239
    %2241 = vset.pattern.permute.xlu0 0
    %2242 = vperm.xlu0 %2241, %v2155
    %v2243 = vpop.permute.xlu0 %2242
    %2244 = vset.pattern.permute.xlu0 0
    %2245 = vperm.xlu0 %2244, %v2156
    %v2246 = vpop.permute.xlu0 %2245
    %2247 = vset.pattern.permute.xlu0 0
    %2248 = vperm.xlu0 %2247, %v2157
    %v2249 = vpop.permute.xlu0 %2248
    %2250 = vset.pattern.permute.xlu0 0
    %2251 = vperm.xlu0 %2250, %v2158
    %v2252 = vpop.permute.xlu0 %2251
    %2253 = vset.pattern.permute.xlu0 0
    %2254 = vperm.xlu0 %2253, %v2159
    %v2255 = vpop.permute.xlu0 %2254
    %2256 = vset.pattern.permute.xlu0 0
    %2257 = vperm.xlu0 %2256, %v2160
    %v2258 = vpop.permute.xlu0 %2257
    %2259 = vset.pattern.permute.xlu0 0
    %2260 = vperm.xlu0 %2259, %v2161
    %v2261 = vpop.permute.xlu0 %2260
    %2262 = vset.pattern.permute.xlu0 0
    %2263 = vperm.xlu0 %2262, %v2162
    %v2264 = vpop.permute.xlu0 %2263
    %2265 = vset.pattern.permute.xlu0 0
    %2266 = vperm.xlu0 %2265, %v2163
    %v2267 = vpop.permute.xlu0 %2266
    %2268 = vset.pattern.permute.xlu0 0
    %2269 = vperm.xlu0 %2268, %v2164
    %v2270 = vpop.permute.xlu0 %2269
    %2271 = vset.pattern.permute.xlu0 0
    %2272 = vperm.xlu0 %2271, %v2165
    %v2273 = vpop.permute.xlu0 %2272
    %2274 = vset.pattern.permute.xlu0 0
    %2275 = vperm.xlu0 %2274, %v2166
    %v2276 = vpop.permute.xlu0 %2275
    %2277 = vset.pattern.permute.xlu0 0
    %2278 = vperm.xlu0 %2277, %v2167
    %v2279 = vpop.permute.xlu0 %2278
    %2280 = vset.pattern.permute.xlu0 0
    %2281 = vperm.xlu0 %2280, %v2168
    %v2282 = vpop.permute.xlu0 %2281
    %2283 = vset.pattern.permute.xlu0 0
    %2284 = vperm.xlu0 %2283, %v2169
    %v2285 = vpop.permute.xlu0 %2284
    %2286 = vset.pattern.permute.xlu0 0
    %2287 = vperm.xlu0 %2286, %v2170
    %v2288 = vpop.permute.xlu0 %2287
    %2289 = vset.pattern.permute.xlu0 0
    %2290 = vperm.xlu0 %2289, %v2171
    %v2291 = vpop.permute.xlu0 %2290
    %2292 = vset.pattern.permute.xlu0 0
    %2293 = vperm.xlu0 %2292, %v2172
    %v2294 = vpop.permute.xlu0 %2293
    %2295 = vset.pattern.permute.xlu0 0
    %2296 = vperm.xlu0 %2295, %v2173
    %v2297 = vpop.permute.xlu0 %2296
    %2298 = vset.pattern.permute.xlu0 0
    %2299 = vperm.xlu0 %2298, %v2174
    %v2300 = vpop.permute.xlu0 %2299
    %2301 = vset.pattern.permute.xlu0 0
    %2302 = vperm.xlu0 %2301, %v2175
    %v2303 = vpop.permute.xlu0 %2302
    %2304 = vset.pattern.permute.xlu0 0
    %2305 = vperm.xlu0 %2304, %v2176
    %v2306 = vpop.permute.xlu0 %2305
    %2307 = vset.pattern.permute.xlu0 0
    %2308 = vperm.xlu0 %2307, %v2177
    %v2309 = vpop.permute.xlu0 %2308
    %2310 = vset.pattern.permute.xlu0 0
    %2311 = vperm.xlu0 %2310, %v2178
    %v2312 = vpop.permute.xlu0 %2311
    %2313 = vset.pattern.permute.xlu0 0
    %2314 = vperm.xlu0 %2313, %v2179
    %v2315 = vpop.permute.xlu0 %2314
    %2316 = vset.pattern.permute.xlu0 0
    %2317 = vperm.xlu0 %2316, %v2180
    %v2318 = vpop.permute.xlu0 %2317
    %2319 = vset.pattern.permute.xlu0 0
    %2320 = vperm.xlu0 %2319, %v2181
    %v2321 = vpop.permute.xlu0 %2320
    %2322 = vset.pattern.permute.xlu0 0
    %2323 = vperm.xlu0 %2322, %v2182
    %v2324 = vpop.permute.xlu0 %2323
    %2325 = vset.pattern.permute.xlu0 0
    %2326 = vperm.xlu0 %2325, %v2183
    %v2327 = vpop.permute.xlu0 %2326
    %2328 = vset.pattern.permute.xlu0 0
    %2329 = vperm.xlu0 %2328, %v2184
    %v2330 = vpop.permute.xlu0 %2329
    %2331 = vset.pattern.permute.xlu0 0
    %2332 = vperm.xlu0 %2331, %v2185
    %v2333 = vpop.permute.xlu0 %2332
    %2334 = vset.pattern.permute.xlu0 0
    %2335 = vperm.xlu0 %2334, %v2186
    %v2336 = vpop.permute.xlu0 %2335
    %2337 = vset.pattern.permute.xlu0 0
    %2338 = vperm.xlu0 %2337, %v2187
    %v2339 = vpop.permute.xlu0 %2338
    %2340 = vset.pattern.permute.xlu0 0
    %2341 = vperm.xlu0 %2340, %v2188
    %v2342 = vpop.permute.xlu0 %2341
    %2343 = vset.pattern.permute.xlu0 0
    %2344 = vperm.xlu0 %2343, %v2189
    %v2345 = vpop.permute.xlu0 %2344
    %2346 = vset.pattern.permute.xlu0 0
    %2347 = vperm.xlu0 %2346, %v2190
    %v2348 = vpop.permute.xlu0 %2347
    %2349 = vset.pattern.permute.xlu0 0
    %2350 = vperm.xlu0 %2349, %v2191
    %v2351 = vpop.permute.xlu0 %2350
    %2352 = vset.pattern.permute.xlu0 0
    %2353 = vperm.xlu0 %2352, %v2192
    %v2354 = vpop.permute.xlu0 %2353
    %2355 = vset.pattern.permute.xlu0 0
    %2356 = vperm.xlu0 %2355, %v2193
    %v2357 = vpop.permute.xlu0 %2356
    %2358 = vset.pattern.permute.xlu0 0
    %2359 = vperm.xlu0 %2358, %v2194
    %v2360 = vpop.permute.xlu0 %2359
    %2361 = vset.pattern.permute.xlu0 0
    %2362 = vperm.xlu0 %2361, %v2195
    %v2363 = vpop.permute.xlu0 %2362
    %2364 = vset.pattern.permute.xlu0 0
    %2365 = vperm.xlu0 %2364, %v2196
    %v2366 = vpop.permute.xlu0 %2365
    %2367 = vset.pattern.permute.xlu0 0
    %2368 = vperm.xlu0 %2367, %v2197
    %v2369 = vpop.permute.xlu0 %2368
    %2370 = vset.pattern.permute.xlu0 0
    %2371 = vperm.xlu0 %2370, %v2198
    %v2372 = vpop.permute.xlu0 %2371
    %2373 = vset.pattern.permute.xlu0 0
    %2374 = vperm.xlu0 %2373, %v2199
    %v2375 = vpop.permute.xlu0 %2374
    %2376 = vset.pattern.permute.xlu0 0
    %2377 = vperm.xlu0 %2376, %v2200
    %v2378 = vpop.permute.xlu0 %2377
    %2379 = vset.pattern.permute.xlu0 0
    %2380 = vperm.xlu0 %2379, %v2201
    %v2381 = vpop.permute.xlu0 %2380
    %2382 = vset.pattern.permute.xlu0 0
    %2383 = vperm.xlu0 %2382, %v2202
    %v2384 = vpop.permute.xlu0 %2383
    %2385 = vset.pattern.permute.xlu0 0
    %2386 = vperm.xlu0 %2385, %v2203
    %v2387 = vpop.permute.xlu0 %2386
    %2388 = vset.pattern.permute.xlu0 0
    %2389 = vperm.xlu0 %2388, %v2204
    %v2390 = vpop.permute.xlu0 %2389
    %2391 = vset.pattern.permute.xlu0 0
    %2392 = vperm.xlu0 %2391, %v2205
    %v2393 = vpop.permute.xlu0 %2392
    %2394 = vset.pattern.permute.xlu0 0
    %2395 = vperm.xlu0 %2394, %v2206
    %v2396 = vpop.permute.xlu0 %2395
    %2397 = vset.pattern.permute.xlu0 0
    %2398 = vperm.xlu0 %2397, %v2207
    %v2399 = vpop.permute.xlu0 %2398
    %vm2400 = vcmp.eq.s32.totalorder %v2210, 1
    %vm2401 = vcmp.eq.s32.totalorder %v2213, 1
    %vm2402 = vcmp.eq.s32.totalorder %v2216, 1
    %vm2403 = vcmp.eq.s32.totalorder %v2219, 1
    %vm2404 = vcmp.eq.s32.totalorder %v2222, 1
    %vm2405 = vcmp.eq.s32.totalorder %v2225, 1
    %vm2406 = vcmp.eq.s32.totalorder %v2228, 1
    %vm2407 = vcmp.eq.s32.totalorder %v2231, 1
    %vm2408 = vcmp.eq.s32.totalorder %v2234, 1
    %vm2409 = vcmp.eq.s32.totalorder %v2237, 1
    %vm2410 = vcmp.eq.s32.totalorder %v2240, 1
    %vm2411 = vcmp.eq.s32.totalorder %v2243, 1
    %vm2412 = vcmp.eq.s32.totalorder %v2246, 1
    %vm2413 = vcmp.eq.s32.totalorder %v2249, 1
    %vm2414 = vcmp.eq.s32.totalorder %v2252, 1
    %vm2415 = vcmp.eq.s32.totalorder %v2255, 1
    %vm2416 = vcmp.eq.s32.totalorder %v2258, 1
    %vm2417 = vcmp.eq.s32.totalorder %v2261, 1
    %vm2418 = vcmp.eq.s32.totalorder %v2264, 1
    %vm2419 = vcmp.eq.s32.totalorder %v2267, 1
    %vm2420 = vcmp.eq.s32.totalorder %v2270, 1
    %vm2421 = vcmp.eq.s32.totalorder %v2273, 1
    %vm2422 = vcmp.eq.s32.totalorder %v2276, 1
    %vm2423 = vcmp.eq.s32.totalorder %v2279, 1
    %vm2424 = vcmp.eq.s32.totalorder %v2282, 1
    %vm2425 = vcmp.eq.s32.totalorder %v2285, 1
    %vm2426 = vcmp.eq.s32.totalorder %v2288, 1
    %vm2427 = vcmp.eq.s32.totalorder %v2291, 1
    %vm2428 = vcmp.eq.s32.totalorder %v2294, 1
    %vm2429 = vcmp.eq.s32.totalorder %v2297, 1
    %vm2430 = vcmp.eq.s32.totalorder %v2300, 1
    %vm2431 = vcmp.eq.s32.totalorder %v2303, 1
    %vm2432 = vcmp.eq.s32.totalorder %v2306, 1
    %vm2433 = vcmp.eq.s32.totalorder %v2309, 1
    %vm2434 = vcmp.eq.s32.totalorder %v2312, 1
    %vm2435 = vcmp.eq.s32.totalorder %v2315, 1
    %vm2436 = vcmp.eq.s32.totalorder %v2318, 1
    %vm2437 = vcmp.eq.s32.totalorder %v2321, 1
    %vm2438 = vcmp.eq.s32.totalorder %v2324, 1
    %vm2439 = vcmp.eq.s32.totalorder %v2327, 1
    %vm2440 = vcmp.eq.s32.totalorder %v2330, 1
    %vm2441 = vcmp.eq.s32.totalorder %v2333, 1
    %vm2442 = vcmp.eq.s32.totalorder %v2336, 1
    %vm2443 = vcmp.eq.s32.totalorder %v2339, 1
    %vm2444 = vcmp.eq.s32.totalorder %v2342, 1
    %vm2445 = vcmp.eq.s32.totalorder %v2345, 1
    %vm2446 = vcmp.eq.s32.totalorder %v2348, 1
    %vm2447 = vcmp.eq.s32.totalorder %v2351, 1
    %vm2448 = vcmp.eq.s32.totalorder %v2354, 1
    %vm2449 = vcmp.eq.s32.totalorder %v2357, 1
    %vm2450 = vcmp.eq.s32.totalorder %v2360, 1
    %vm2451 = vcmp.eq.s32.totalorder %v2363, 1
    %vm2452 = vcmp.eq.s32.totalorder %v2366, 1
    %vm2453 = vcmp.eq.s32.totalorder %v2369, 1
    %vm2454 = vcmp.eq.s32.totalorder %v2372, 1
    %vm2455 = vcmp.eq.s32.totalorder %v2375, 1
    %vm2456 = vcmp.eq.s32.totalorder %v2378, 1
    %vm2457 = vcmp.eq.s32.totalorder %v2381, 1
    %vm2458 = vcmp.eq.s32.totalorder %v2384, 1
    %vm2459 = vcmp.eq.s32.totalorder %v2387, 1
    %vm2460 = vcmp.eq.s32.totalorder %v2390, 1
    %vm2461 = vcmp.eq.s32.totalorder %v2393, 1
    %vm2462 = vcmp.eq.s32.totalorder %v2396, 1
    %vm2463 = vcmp.eq.s32.totalorder %v2399, 1
    %v2464 = vsel %vm2400, %v1697, 0.0
    %v2465 = vsel %vm2401, %v1699, 0.0
    %v2466 = vsel %vm2402, %v1701, 0.0
    %v2467 = vsel %vm2403, %v1703, 0.0
    %v2468 = vsel %vm2404, %v1705, 0.0
    %v2469 = vsel %vm2405, %v1707, 0.0
    %v2470 = vsel %vm2406, %v1709, 0.0
    %v2471 = vsel %vm2407, %v1711, 0.0
    %v2472 = vsel %vm2408, %v1713, 0.0
    %v2473 = vsel %vm2409, %v1715, 0.0
    %v2474 = vsel %vm2410, %v1717, 0.0
    %v2475 = vsel %vm2411, %v1719, 0.0
    %v2476 = vsel %vm2412, %v1721, 0.0
    %v2477 = vsel %vm2413, %v1723, 0.0
    %v2478 = vsel %vm2414, %v1725, 0.0
    %v2479 = vsel %vm2415, %v1727, 0.0
    %v2480 = vsel %vm2416, %v1729, 0.0
    %v2481 = vsel %vm2417, %v1731, 0.0
    %v2482 = vsel %vm2418, %v1733, 0.0
    %v2483 = vsel %vm2419, %v1735, 0.0
    %v2484 = vsel %vm2420, %v1737, 0.0
    %v2485 = vsel %vm2421, %v1739, 0.0
    %v2486 = vsel %vm2422, %v1741, 0.0
    %v2487 = vsel %vm2423, %v1743, 0.0
    %v2488 = vsel %vm2424, %v1745, 0.0
    %v2489 = vsel %vm2425, %v1747, 0.0
    %v2490 = vsel %vm2426, %v1749, 0.0
    %v2491 = vsel %vm2427, %v1751, 0.0
    %v2492 = vsel %vm2428, %v1753, 0.0
    %v2493 = vsel %vm2429, %v1755, 0.0
    %v2494 = vsel %vm2430, %v1757, 0.0
    %v2495 = vsel %vm2431, %v1759, 0.0
    %v2496 = vsel %vm2432, %v1761, 0.0
    %v2497 = vsel %vm2433, %v1763, 0.0
    %v2498 = vsel %vm2434, %v1765, 0.0
    %v2499 = vsel %vm2435, %v1767, 0.0
    %v2500 = vsel %vm2436, %v1769, 0.0
    %v2501 = vsel %vm2437, %v1771, 0.0
    %v2502 = vsel %vm2438, %v1773, 0.0
    %v2503 = vsel %vm2439, %v1775, 0.0
    %v2504 = vsel %vm2440, %v1777, 0.0
    %v2505 = vsel %vm2441, %v1779, 0.0
    %v2506 = vsel %vm2442, %v1781, 0.0
    %v2507 = vsel %vm2443, %v1783, 0.0
    %v2508 = vsel %vm2444, %v1785, 0.0
    %v2509 = vsel %vm2445, %v1787, 0.0
    %v2510 = vsel %vm2446, %v1789, 0.0
    %v2511 = vsel %vm2447, %v1791, 0.0
    %v2512 = vsel %vm2448, %v1793, 0.0
    %v2513 = vsel %vm2449, %v1795, 0.0
    %v2514 = vsel %vm2450, %v1797, 0.0
    %v2515 = vsel %vm2451, %v1799, 0.0
    %v2516 = vsel %vm2452, %v1801, 0.0
    %v2517 = vsel %vm2453, %v1803, 0.0
    %v2518 = vsel %vm2454, %v1805, 0.0
    %v2519 = vsel %vm2455, %v1807, 0.0
    %v2520 = vsel %vm2456, %v1809, 0.0
    %v2521 = vsel %vm2457, %v1811, 0.0
    %v2522 = vsel %vm2458, %v1813, 0.0
    %v2523 = vsel %vm2459, %v1815, 0.0
    %v2524 = vsel %vm2460, %v1817, 0.0
    %v2525 = vsel %vm2461, %v1819, 0.0
    %v2526 = vsel %vm2462, %v1821, 0.0
    %v2527 = vsel %vm2463, %v1887, 0.0
    %v2528 = vadd.s32 %v41, 4294967295
    %v2529 = vadd.s32 %v42, 4294967295
    %v2530 = vadd.s32 %v43, 4294967295
    %v2531 = vadd.s32 %v44, 4294967295
    %v2532 = vadd.s32 %v45, 4294967295
    %v2533 = vadd.s32 %v46, 4294967295
    %v2534 = vadd.s32 %v47, 4294967295
    %v2535 = vadd.s32 %v48, 4294967295
    %v2536 = vadd.s32 %v49, 4294967295
    %v2537 = vadd.s32 %v50, 4294967295
    %v2538 = vadd.s32 %v51, 4294967295
    %v2539 = vadd.s32 %v52, 4294967295
    %v2540 = vadd.s32 %v53, 4294967295
    %v2541 = vadd.s32 %v54, 4294967295
    %v2542 = vadd.s32 %v55, 4294967295
    %v2543 = vadd.s32 %v56, 4294967295
    %v2544 = vadd.s32 %v57, 4294967295
    %v2545 = vadd.s32 %v58, 4294967295
    %v2546 = vadd.s32 %v59, 4294967295
    %v2547 = vadd.s32 %v60, 4294967295
    %v2548 = vadd.s32 %v61, 4294967295
    %v2549 = vadd.s32 %v62, 4294967295
    %v2550 = vadd.s32 %v63, 4294967295
    %v2551 = vadd.s32 %v64, 4294967295
    %v2552 = vadd.s32 %v65, 4294967295
    %v2553 = vadd.s32 %v66, 4294967295
    %v2554 = vadd.s32 %v67, 4294967295
    %v2555 = vadd.s32 %v68, 4294967295
    %v2556 = vadd.s32 %v69, 4294967295
    %v2557 = vadd.s32 %v70, 4294967295
    %v2558 = vadd.s32 %v71, 4294967295
    %v2559 = vadd.s32 %v72, 4294967295
    %v2560 = vadd.s32 %v73, 4294967295
    %v2561 = vadd.s32 %v74, 4294967295
    %v2562 = vadd.s32 %v75, 4294967295
    %v2563 = vadd.s32 %v76, 4294967295
    %v2564 = vadd.s32 %v77, 4294967295
    %v2565 = vadd.s32 %v78, 4294967295
    %v2566 = vadd.s32 %v79, 4294967295
    %v2567 = vadd.s32 %v80, 4294967295
    %v2568 = vadd.s32 %v81, 4294967295
    %v2569 = vadd.s32 %v82, 4294967295
    %v2570 = vadd.s32 %v83, 4294967295
    %v2571 = vadd.s32 %v84, 4294967295
    %v2572 = vadd.s32 %v85, 4294967295
    %v2573 = vadd.s32 %v86, 4294967295
    %v2574 = vadd.s32 %v87, 4294967295
    %v2575 = vadd.s32 %v88, 4294967295
    %v2576 = vadd.s32 %v89, 4294967295
    %v2577 = vadd.s32 %v90, 4294967295
    %v2578 = vadd.s32 %v91, 4294967295
    %v2579 = vadd.s32 %v92, 4294967295
    %v2580 = vadd.s32 %v93, 4294967295
    %v2581 = vadd.s32 %v94, 4294967295
    %v2582 = vadd.s32 %v95, 4294967295
    %v2583 = vadd.s32 %v96, 4294967295
    %v2584 = vadd.s32 %v97, 4294967295
    %v2585 = vadd.s32 %v98, 4294967295
    %v2586 = vadd.s32 %v99, 4294967295
    %v2587 = vadd.s32 %v100, 4294967295
    %v2588 = vadd.s32 %v101, 4294967295
    %v2589 = vadd.s32 %v102, 4294967295
    %v2590 = vadd.s32 %v103, 4294967295
    %v2591 = vadd.s32 %v104, 4294967295
    %vm2592 = vcmp.ge.s32.totalorder %v2528, 0
    %vm2593 = vcmp.ge.s32.totalorder %v2529, 0
    %vm2594 = vcmp.ge.s32.totalorder %v2530, 0
    %vm2595 = vcmp.ge.s32.totalorder %v2531, 0
    %vm2596 = vcmp.ge.s32.totalorder %v2532, 0
    %vm2597 = vcmp.ge.s32.totalorder %v2533, 0
    %vm2598 = vcmp.ge.s32.totalorder %v2534, 0
    %vm2599 = vcmp.ge.s32.totalorder %v2535, 0
    %vm2600 = vcmp.ge.s32.totalorder %v2536, 0
    %vm2601 = vcmp.ge.s32.totalorder %v2537, 0
    %vm2602 = vcmp.ge.s32.totalorder %v2538, 0
    %vm2603 = vcmp.ge.s32.totalorder %v2539, 0
    %vm2604 = vcmp.ge.s32.totalorder %v2540, 0
    %vm2605 = vcmp.ge.s32.totalorder %v2541, 0
    %vm2606 = vcmp.ge.s32.totalorder %v2542, 0
    %vm2607 = vcmp.ge.s32.totalorder %v2543, 0
    %vm2608 = vcmp.ge.s32.totalorder %v2544, 0
    %vm2609 = vcmp.ge.s32.totalorder %v2545, 0
    %vm2610 = vcmp.ge.s32.totalorder %v2546, 0
    %vm2611 = vcmp.ge.s32.totalorder %v2547, 0
    %vm2612 = vcmp.ge.s32.totalorder %v2548, 0
    %vm2613 = vcmp.ge.s32.totalorder %v2549, 0
    %vm2614 = vcmp.ge.s32.totalorder %v2550, 0
    %vm2615 = vcmp.ge.s32.totalorder %v2551, 0
    %vm2616 = vcmp.ge.s32.totalorder %v2552, 0
    %vm2617 = vcmp.ge.s32.totalorder %v2553, 0
    %vm2618 = vcmp.ge.s32.totalorder %v2554, 0
    %vm2619 = vcmp.ge.s32.totalorder %v2555, 0
    %vm2620 = vcmp.ge.s32.totalorder %v2556, 0
    %vm2621 = vcmp.ge.s32.totalorder %v2557, 0
    %vm2622 = vcmp.ge.s32.totalorder %v2558, 0
    %vm2623 = vcmp.ge.s32.totalorder %v2559, 0
    %vm2624 = vcmp.ge.s32.totalorder %v2560, 0
    %vm2625 = vcmp.ge.s32.totalorder %v2561, 0
    %vm2626 = vcmp.ge.s32.totalorder %v2562, 0
    %vm2627 = vcmp.ge.s32.totalorder %v2563, 0
    %vm2628 = vcmp.ge.s32.totalorder %v2564, 0
    %vm2629 = vcmp.ge.s32.totalorder %v2565, 0
    %vm2630 = vcmp.ge.s32.totalorder %v2566, 0
    %vm2631 = vcmp.ge.s32.totalorder %v2567, 0
    %vm2632 = vcmp.ge.s32.totalorder %v2568, 0
    %vm2633 = vcmp.ge.s32.totalorder %v2569, 0
    %vm2634 = vcmp.ge.s32.totalorder %v2570, 0
    %vm2635 = vcmp.ge.s32.totalorder %v2571, 0
    %vm2636 = vcmp.ge.s32.totalorder %v2572, 0
    %vm2637 = vcmp.ge.s32.totalorder %v2573, 0
    %vm2638 = vcmp.ge.s32.totalorder %v2574, 0
    %vm2639 = vcmp.ge.s32.totalorder %v2575, 0
    %vm2640 = vcmp.ge.s32.totalorder %v2576, 0
    %vm2641 = vcmp.ge.s32.totalorder %v2577, 0
    %vm2642 = vcmp.ge.s32.totalorder %v2578, 0
    %vm2643 = vcmp.ge.s32.totalorder %v2579, 0
    %vm2644 = vcmp.ge.s32.totalorder %v2580, 0
    %vm2645 = vcmp.ge.s32.totalorder %v2581, 0
    %vm2646 = vcmp.ge.s32.totalorder %v2582, 0
    %vm2647 = vcmp.ge.s32.totalorder %v2583, 0
    %vm2648 = vcmp.ge.s32.totalorder %v2584, 0
    %vm2649 = vcmp.ge.s32.totalorder %v2585, 0
    %vm2650 = vcmp.ge.s32.totalorder %v2586, 0
    %vm2651 = vcmp.ge.s32.totalorder %v2587, 0
    %vm2652 = vcmp.ge.s32.totalorder %v2588, 0
    %vm2653 = vcmp.ge.s32.totalorder %v2589, 0
    %vm2654 = vcmp.ge.s32.totalorder %v2590, 0
    %vm2655 = vcmp.ge.s32.totalorder %v2591, 0
    %vm2656 = vcmp.lt.s32.totalorder %v2528, 16
    %vm2657 = vcmp.lt.s32.totalorder %v2529, 16
    %vm2658 = vcmp.lt.s32.totalorder %v2530, 16
    %vm2659 = vcmp.lt.s32.totalorder %v2531, 16
    %vm2660 = vcmp.lt.s32.totalorder %v2532, 16
    %vm2661 = vcmp.lt.s32.totalorder %v2533, 16
    %vm2662 = vcmp.lt.s32.totalorder %v2534, 16
    %vm2663 = vcmp.lt.s32.totalorder %v2535, 16
    %vm2664 = vcmp.lt.s32.totalorder %v2536, 16
    %vm2665 = vcmp.lt.s32.totalorder %v2537, 16
    %vm2666 = vcmp.lt.s32.totalorder %v2538, 16
    %vm2667 = vcmp.lt.s32.totalorder %v2539, 16
    %vm2668 = vcmp.lt.s32.totalorder %v2540, 16
    %vm2669 = vcmp.lt.s32.totalorder %v2541, 16
    %vm2670 = vcmp.lt.s32.totalorder %v2542, 16
    %vm2671 = vcmp.lt.s32.totalorder %v2543, 16
    %vm2672 = vcmp.lt.s32.totalorder %v2544, 16
    %vm2673 = vcmp.lt.s32.totalorder %v2545, 16
    %vm2674 = vcmp.lt.s32.totalorder %v2546, 16
    %vm2675 = vcmp.lt.s32.totalorder %v2547, 16
    %vm2676 = vcmp.lt.s32.totalorder %v2548, 16
    %vm2677 = vcmp.lt.s32.totalorder %v2549, 16
    %vm2678 = vcmp.lt.s32.totalorder %v2550, 16
    %vm2679 = vcmp.lt.s32.totalorder %v2551, 16
    %vm2680 = vcmp.lt.s32.totalorder %v2552, 16
    %vm2681 = vcmp.lt.s32.totalorder %v2553, 16
    %vm2682 = vcmp.lt.s32.totalorder %v2554, 16
    %vm2683 = vcmp.lt.s32.totalorder %v2555, 16
    %vm2684 = vcmp.lt.s32.totalorder %v2556, 16
    %vm2685 = vcmp.lt.s32.totalorder %v2557, 16
    %vm2686 = vcmp.lt.s32.totalorder %v2558, 16
    %vm2687 = vcmp.lt.s32.totalorder %v2559, 16
    %vm2688 = vcmp.lt.s32.totalorder %v2560, 16
    %vm2689 = vcmp.lt.s32.totalorder %v2561, 16
    %vm2690 = vcmp.lt.s32.totalorder %v2562, 16
    %vm2691 = vcmp.lt.s32.totalorder %v2563, 16
    %vm2692 = vcmp.lt.s32.totalorder %v2564, 16
    %vm2693 = vcmp.lt.s32.totalorder %v2565, 16
    %vm2694 = vcmp.lt.s32.totalorder %v2566, 16
    %vm2695 = vcmp.lt.s32.totalorder %v2567, 16
    %vm2696 = vcmp.lt.s32.totalorder %v2568, 16
    %vm2697 = vcmp.lt.s32.totalorder %v2569, 16
    %vm2698 = vcmp.lt.s32.totalorder %v2570, 16
    %vm2699 = vcmp.lt.s32.totalorder %v2571, 16
    %vm2700 = vcmp.lt.s32.totalorder %v2572, 16
    %vm2701 = vcmp.lt.s32.totalorder %v2573, 16
    %vm2702 = vcmp.lt.s32.totalorder %v2574, 16
    %vm2703 = vcmp.lt.s32.totalorder %v2575, 16
    %vm2704 = vcmp.lt.s32.totalorder %v2576, 16
    %vm2705 = vcmp.lt.s32.totalorder %v2577, 16
    %vm2706 = vcmp.lt.s32.totalorder %v2578, 16
    %vm2707 = vcmp.lt.s32.totalorder %v2579, 16
    %vm2708 = vcmp.lt.s32.totalorder %v2580, 16
    %vm2709 = vcmp.lt.s32.totalorder %v2581, 16
    %vm2710 = vcmp.lt.s32.totalorder %v2582, 16
    %vm2711 = vcmp.lt.s32.totalorder %v2583, 16
    %vm2712 = vcmp.lt.s32.totalorder %v2584, 16
    %vm2713 = vcmp.lt.s32.totalorder %v2585, 16
    %vm2714 = vcmp.lt.s32.totalorder %v2586, 16
    %vm2715 = vcmp.lt.s32.totalorder %v2587, 16
    %vm2716 = vcmp.lt.s32.totalorder %v2588, 16
    %vm2717 = vcmp.lt.s32.totalorder %v2589, 16
    %vm2718 = vcmp.lt.s32.totalorder %v2590, 16
    %vm2719 = vcmp.lt.s32.totalorder %v2591, 16
    %vm2720 = vmand %vm2592, %vm2656
    %vm2721 = vmand %vm2593, %vm2657
    %vm2722 = vmand %vm2594, %vm2658
    %vm2723 = vmand %vm2595, %vm2659
    %vm2724 = vmand %vm2596, %vm2660
    %vm2725 = vmand %vm2597, %vm2661
    %vm2726 = vmand %vm2598, %vm2662
    %vm2727 = vmand %vm2599, %vm2663
    %vm2728 = vmand %vm2600, %vm2664
    %vm2729 = vmand %vm2601, %vm2665
    %vm2730 = vmand %vm2602, %vm2666
    %vm2731 = vmand %vm2603, %vm2667
    %vm2732 = vmand %vm2604, %vm2668
    %vm2733 = vmand %vm2605, %vm2669
    %vm2734 = vmand %vm2606, %vm2670
    %vm2735 = vmand %vm2607, %vm2671
    %vm2736 = vmand %vm2608, %vm2672
    %vm2737 = vmand %vm2609, %vm2673
    %vm2738 = vmand %vm2610, %vm2674
    %vm2739 = vmand %vm2611, %vm2675
    %vm2740 = vmand %vm2612, %vm2676
    %vm2741 = vmand %vm2613, %vm2677
    %vm2742 = vmand %vm2614, %vm2678
    %vm2743 = vmand %vm2615, %vm2679
    %vm2744 = vmand %vm2616, %vm2680
    %vm2745 = vmand %vm2617, %vm2681
    %vm2746 = vmand %vm2618, %vm2682
    %vm2747 = vmand %vm2619, %vm2683
    %vm2748 = vmand %vm2620, %vm2684
    %vm2749 = vmand %vm2621, %vm2685
    %vm2750 = vmand %vm2622, %vm2686
    %vm2751 = vmand %vm2623, %vm2687
    %vm2752 = vmand %vm2624, %vm2688
    %vm2753 = vmand %vm2625, %vm2689
    %vm2754 = vmand %vm2626, %vm2690
    %vm2755 = vmand %vm2627, %vm2691
    %vm2756 = vmand %vm2628, %vm2692
    %vm2757 = vmand %vm2629, %vm2693
    %vm2758 = vmand %vm2630, %vm2694
    %vm2759 = vmand %vm2631, %vm2695
    %vm2760 = vmand %vm2632, %vm2696
    %vm2761 = vmand %vm2633, %vm2697
    %vm2762 = vmand %vm2634, %vm2698
    %vm2763 = vmand %vm2635, %vm2699
    %vm2764 = vmand %vm2636, %vm2700
    %vm2765 = vmand %vm2637, %vm2701
    %vm2766 = vmand %vm2638, %vm2702
    %vm2767 = vmand %vm2639, %vm2703
    %vm2768 = vmand %vm2640, %vm2704
    %vm2769 = vmand %vm2641, %vm2705
    %vm2770 = vmand %vm2642, %vm2706
    %vm2771 = vmand %vm2643, %vm2707
    %vm2772 = vmand %vm2644, %vm2708
    %vm2773 = vmand %vm2645, %vm2709
    %vm2774 = vmand %vm2646, %vm2710
    %vm2775 = vmand %vm2647, %vm2711
    %vm2776 = vmand %vm2648, %vm2712
    %vm2777 = vmand %vm2649, %vm2713
    %vm2778 = vmand %vm2650, %vm2714
    %vm2779 = vmand %vm2651, %vm2715
    %vm2780 = vmand %vm2652, %vm2716
    %vm2781 = vmand %vm2653, %vm2717
    %vm2782 = vmand %vm2654, %vm2718
    %vm2783 = vmand %vm2655, %vm2719
    %v2784 = vsel %vm2720, 1, 0
    %v2785 = vsel %vm2721, 1, 0
    %v2786 = vsel %vm2722, 1, 0
    %v2787 = vsel %vm2723, 1, 0
    %v2788 = vsel %vm2724, 1, 0
    %v2789 = vsel %vm2725, 1, 0
    %v2790 = vsel %vm2726, 1, 0
    %v2791 = vsel %vm2727, 1, 0
    %v2792 = vsel %vm2728, 1, 0
    %v2793 = vsel %vm2729, 1, 0
    %v2794 = vsel %vm2730, 1, 0
    %v2795 = vsel %vm2731, 1, 0
    %v2796 = vsel %vm2732, 1, 0
    %v2797 = vsel %vm2733, 1, 0
    %v2798 = vsel %vm2734, 1, 0
    %v2799 = vsel %vm2735, 1, 0
    %v2800 = vsel %vm2736, 1, 0
    %v2801 = vsel %vm2737, 1, 0
    %v2802 = vsel %vm2738, 1, 0
    %v2803 = vsel %vm2739, 1, 0
    %v2804 = vsel %vm2740, 1, 0
    %v2805 = vsel %vm2741, 1, 0
    %v2806 = vsel %vm2742, 1, 0
    %v2807 = vsel %vm2743, 1, 0
    %v2808 = vsel %vm2744, 1, 0
    %v2809 = vsel %vm2745, 1, 0
    %v2810 = vsel %vm2746, 1, 0
    %v2811 = vsel %vm2747, 1, 0
    %v2812 = vsel %vm2748, 1, 0
    %v2813 = vsel %vm2749, 1, 0
    %v2814 = vsel %vm2750, 1, 0
    %v2815 = vsel %vm2751, 1, 0
    %v2816 = vsel %vm2752, 1, 0
    %v2817 = vsel %vm2753, 1, 0
    %v2818 = vsel %vm2754, 1, 0
    %v2819 = vsel %vm2755, 1, 0
    %v2820 = vsel %vm2756, 1, 0
    %v2821 = vsel %vm2757, 1, 0
    %v2822 = vsel %vm2758, 1, 0
    %v2823 = vsel %vm2759, 1, 0
    %v2824 = vsel %vm2760, 1, 0
    %v2825 = vsel %vm2761, 1, 0
    %v2826 = vsel %vm2762, 1, 0
    %v2827 = vsel %vm2763, 1, 0
    %v2828 = vsel %vm2764, 1, 0
    %v2829 = vsel %vm2765, 1, 0
    %v2830 = vsel %vm2766, 1, 0
    %v2831 = vsel %vm2767, 1, 0
    %v2832 = vsel %vm2768, 1, 0
    %v2833 = vsel %vm2769, 1, 0
    %v2834 = vsel %vm2770, 1, 0
    %v2835 = vsel %vm2771, 1, 0
    %v2836 = vsel %vm2772, 1, 0
    %v2837 = vsel %vm2773, 1, 0
    %v2838 = vsel %vm2774, 1, 0
    %v2839 = vsel %vm2775, 1, 0
    %v2840 = vsel %vm2776, 1, 0
    %v2841 = vsel %vm2777, 1, 0
    %v2842 = vsel %vm2778, 1, 0
    %v2843 = vsel %vm2779, 1, 0
    %v2844 = vsel %vm2780, 1, 0
    %v2845 = vsel %vm2781, 1, 0
    %v2846 = vsel %vm2782, 1, 0
    %v2847 = vsel %vm2783, 1, 0
    %2848 = vset.pattern.permute.xlu0 0
    %2849 = vperm.xlu0 %2848, %v2784
    %v2850 = vpop.permute.xlu0 %2849
    %2851 = vset.pattern.permute.xlu0 0
    %2852 = vperm.xlu0 %2851, %v2785
    %v2853 = vpop.permute.xlu0 %2852
    %2854 = vset.pattern.permute.xlu0 0
    %2855 = vperm.xlu0 %2854, %v2786
    %v2856 = vpop.permute.xlu0 %2855
    %2857 = vset.pattern.permute.xlu0 0
    %2858 = vperm.xlu0 %2857, %v2787
    %v2859 = vpop.permute.xlu0 %2858
    %2860 = vset.pattern.permute.xlu0 0
    %2861 = vperm.xlu0 %2860, %v2788
    %v2862 = vpop.permute.xlu0 %2861
    %2863 = vset.pattern.permute.xlu0 0
    %2864 = vperm.xlu0 %2863, %v2789
    %v2865 = vpop.permute.xlu0 %2864
    %2866 = vset.pattern.permute.xlu0 0
    %2867 = vperm.xlu0 %2866, %v2790
    %v2868 = vpop.permute.xlu0 %2867
    %2869 = vset.pattern.permute.xlu0 0
    %2870 = vperm.xlu0 %2869, %v2791
    %v2871 = vpop.permute.xlu0 %2870
    %2872 = vset.pattern.permute.xlu0 0
    %2873 = vperm.xlu0 %2872, %v2792
    %v2874 = vpop.permute.xlu0 %2873
    %2875 = vset.pattern.permute.xlu0 0
    %2876 = vperm.xlu0 %2875, %v2793
    %v2877 = vpop.permute.xlu0 %2876
    %2878 = vset.pattern.permute.xlu0 0
    %2879 = vperm.xlu0 %2878, %v2794
    %v2880 = vpop.permute.xlu0 %2879
    %2881 = vset.pattern.permute.xlu0 0
    %2882 = vperm.xlu0 %2881, %v2795
    %v2883 = vpop.permute.xlu0 %2882
    %2884 = vset.pattern.permute.xlu0 0
    %2885 = vperm.xlu0 %2884, %v2796
    %v2886 = vpop.permute.xlu0 %2885
    %2887 = vset.pattern.permute.xlu0 0
    %2888 = vperm.xlu0 %2887, %v2797
    %v2889 = vpop.permute.xlu0 %2888
    %2890 = vset.pattern.permute.xlu0 0
    %2891 = vperm.xlu0 %2890, %v2798
    %v2892 = vpop.permute.xlu0 %2891
    %2893 = vset.pattern.permute.xlu0 0
    %2894 = vperm.xlu0 %2893, %v2799
    %v2895 = vpop.permute.xlu0 %2894
    %2896 = vset.pattern.permute.xlu0 0
    %2897 = vperm.xlu0 %2896, %v2800
    %v2898 = vpop.permute.xlu0 %2897
    %2899 = vset.pattern.permute.xlu0 0
    %2900 = vperm.xlu0 %2899, %v2801
    %v2901 = vpop.permute.xlu0 %2900
    %2902 = vset.pattern.permute.xlu0 0
    %2903 = vperm.xlu0 %2902, %v2802
    %v2904 = vpop.permute.xlu0 %2903
    %2905 = vset.pattern.permute.xlu0 0
    %2906 = vperm.xlu0 %2905, %v2803
    %v2907 = vpop.permute.xlu0 %2906
    %2908 = vset.pattern.permute.xlu0 0
    %2909 = vperm.xlu0 %2908, %v2804
    %v2910 = vpop.permute.xlu0 %2909
    %2911 = vset.pattern.permute.xlu0 0
    %2912 = vperm.xlu0 %2911, %v2805
    %v2913 = vpop.permute.xlu0 %2912
    %2914 = vset.pattern.permute.xlu0 0
    %2915 = vperm.xlu0 %2914, %v2806
    %v2916 = vpop.permute.xlu0 %2915
    %2917 = vset.pattern.permute.xlu0 0
    %2918 = vperm.xlu0 %2917, %v2807
    %v2919 = vpop.permute.xlu0 %2918
    %2920 = vset.pattern.permute.xlu0 0
    %2921 = vperm.xlu0 %2920, %v2808
    %v2922 = vpop.permute.xlu0 %2921
    %2923 = vset.pattern.permute.xlu0 0
    %2924 = vperm.xlu0 %2923, %v2809
    %v2925 = vpop.permute.xlu0 %2924
    %2926 = vset.pattern.permute.xlu0 0
    %2927 = vperm.xlu0 %2926, %v2810
    %v2928 = vpop.permute.xlu0 %2927
    %2929 = vset.pattern.permute.xlu0 0
    %2930 = vperm.xlu0 %2929, %v2811
    %v2931 = vpop.permute.xlu0 %2930
    %2932 = vset.pattern.permute.xlu0 0
    %2933 = vperm.xlu0 %2932, %v2812
    %v2934 = vpop.permute.xlu0 %2933
    %2935 = vset.pattern.permute.xlu0 0
    %2936 = vperm.xlu0 %2935, %v2813
    %v2937 = vpop.permute.xlu0 %2936
    %2938 = vset.pattern.permute.xlu0 0
    %2939 = vperm.xlu0 %2938, %v2814
    %v2940 = vpop.permute.xlu0 %2939
    %2941 = vset.pattern.permute.xlu0 0
    %2942 = vperm.xlu0 %2941, %v2815
    %v2943 = vpop.permute.xlu0 %2942
    %2944 = vset.pattern.permute.xlu0 0
    %2945 = vperm.xlu0 %2944, %v2816
    %v2946 = vpop.permute.xlu0 %2945
    %2947 = vset.pattern.permute.xlu0 0
    %2948 = vperm.xlu0 %2947, %v2817
    %v2949 = vpop.permute.xlu0 %2948
    %2950 = vset.pattern.permute.xlu0 0
    %2951 = vperm.xlu0 %2950, %v2818
    %v2952 = vpop.permute.xlu0 %2951
    %2953 = vset.pattern.permute.xlu0 0
    %2954 = vperm.xlu0 %2953, %v2819
    %v2955 = vpop.permute.xlu0 %2954
    %2956 = vset.pattern.permute.xlu0 0
    %2957 = vperm.xlu0 %2956, %v2820
    %v2958 = vpop.permute.xlu0 %2957
    %2959 = vset.pattern.permute.xlu0 0
    %2960 = vperm.xlu0 %2959, %v2821
    %v2961 = vpop.permute.xlu0 %2960
    %2962 = vset.pattern.permute.xlu0 0
    %2963 = vperm.xlu0 %2962, %v2822
    %v2964 = vpop.permute.xlu0 %2963
    %2965 = vset.pattern.permute.xlu0 0
    %2966 = vperm.xlu0 %2965, %v2823
    %v2967 = vpop.permute.xlu0 %2966
    %2968 = vset.pattern.permute.xlu0 0
    %2969 = vperm.xlu0 %2968, %v2824
    %v2970 = vpop.permute.xlu0 %2969
    %2971 = vset.pattern.permute.xlu0 0
    %2972 = vperm.xlu0 %2971, %v2825
    %v2973 = vpop.permute.xlu0 %2972
    %2974 = vset.pattern.permute.xlu0 0
    %2975 = vperm.xlu0 %2974, %v2826
    %v2976 = vpop.permute.xlu0 %2975
    %2977 = vset.pattern.permute.xlu0 0
    %2978 = vperm.xlu0 %2977, %v2827
    %v2979 = vpop.permute.xlu0 %2978
    %2980 = vset.pattern.permute.xlu0 0
    %2981 = vperm.xlu0 %2980, %v2828
    %v2982 = vpop.permute.xlu0 %2981
    %2983 = vset.pattern.permute.xlu0 0
    %2984 = vperm.xlu0 %2983, %v2829
    %v2985 = vpop.permute.xlu0 %2984
    %2986 = vset.pattern.permute.xlu0 0
    %2987 = vperm.xlu0 %2986, %v2830
    %v2988 = vpop.permute.xlu0 %2987
    %2989 = vset.pattern.permute.xlu0 0
    %2990 = vperm.xlu0 %2989, %v2831
    %v2991 = vpop.permute.xlu0 %2990
    %2992 = vset.pattern.permute.xlu0 0
    %2993 = vperm.xlu0 %2992, %v2832
    %v2994 = vpop.permute.xlu0 %2993
    %2995 = vset.pattern.permute.xlu0 0
    %2996 = vperm.xlu0 %2995, %v2833
    %v2997 = vpop.permute.xlu0 %2996
    %2998 = vset.pattern.permute.xlu0 0
    %2999 = vperm.xlu0 %2998, %v2834
    %v3000 = vpop.permute.xlu0 %2999
    %3001 = vset.pattern.permute.xlu0 0
    %3002 = vperm.xlu0 %3001, %v2835
    %v3003 = vpop.permute.xlu0 %3002
    %3004 = vset.pattern.permute.xlu0 0
    %3005 = vperm.xlu0 %3004, %v2836
    %v3006 = vpop.permute.xlu0 %3005
    %3007 = vset.pattern.permute.xlu0 0
    %3008 = vperm.xlu0 %3007, %v2837
    %v3009 = vpop.permute.xlu0 %3008
    %3010 = vset.pattern.permute.xlu0 0
    %3011 = vperm.xlu0 %3010, %v2838
    %v3012 = vpop.permute.xlu0 %3011
    %3013 = vset.pattern.permute.xlu0 0
    %3014 = vperm.xlu0 %3013, %v2839
    %v3015 = vpop.permute.xlu0 %3014
    %3016 = vset.pattern.permute.xlu0 0
    %3017 = vperm.xlu0 %3016, %v2840
    %v3018 = vpop.permute.xlu0 %3017
    %3019 = vset.pattern.permute.xlu0 0
    %3020 = vperm.xlu0 %3019, %v2841
    %v3021 = vpop.permute.xlu0 %3020
    %3022 = vset.pattern.permute.xlu0 0
    %3023 = vperm.xlu0 %3022, %v2842
    %v3024 = vpop.permute.xlu0 %3023
    %3025 = vset.pattern.permute.xlu0 0
    %3026 = vperm.xlu0 %3025, %v2843
    %v3027 = vpop.permute.xlu0 %3026
    %3028 = vset.pattern.permute.xlu0 0
    %3029 = vperm.xlu0 %3028, %v2844
    %v3030 = vpop.permute.xlu0 %3029
    %3031 = vset.pattern.permute.xlu0 0
    %3032 = vperm.xlu0 %3031, %v2845
    %v3033 = vpop.permute.xlu0 %3032
    %3034 = vset.pattern.permute.xlu0 0
    %3035 = vperm.xlu0 %3034, %v2846
    %v3036 = vpop.permute.xlu0 %3035
    %3037 = vset.pattern.permute.xlu0 0
    %3038 = vperm.xlu0 %3037, %v2847
    %v3039 = vpop.permute.xlu0 %3038
    %vm3040 = vcmp.eq.s32.totalorder %v2850, 1
    %vm3041 = vcmp.eq.s32.totalorder %v2853, 1
    %vm3042 = vcmp.eq.s32.totalorder %v2856, 1
    %vm3043 = vcmp.eq.s32.totalorder %v2859, 1
    %vm3044 = vcmp.eq.s32.totalorder %v2862, 1
    %vm3045 = vcmp.eq.s32.totalorder %v2865, 1
    %vm3046 = vcmp.eq.s32.totalorder %v2868, 1
    %vm3047 = vcmp.eq.s32.totalorder %v2871, 1
    %vm3048 = vcmp.eq.s32.totalorder %v2874, 1
    %vm3049 = vcmp.eq.s32.totalorder %v2877, 1
    %vm3050 = vcmp.eq.s32.totalorder %v2880, 1
    %vm3051 = vcmp.eq.s32.totalorder %v2883, 1
    %vm3052 = vcmp.eq.s32.totalorder %v2886, 1
    %vm3053 = vcmp.eq.s32.totalorder %v2889, 1
    %vm3054 = vcmp.eq.s32.totalorder %v2892, 1
    %vm3055 = vcmp.eq.s32.totalorder %v2895, 1
    %vm3056 = vcmp.eq.s32.totalorder %v2898, 1
    %vm3057 = vcmp.eq.s32.totalorder %v2901, 1
    %vm3058 = vcmp.eq.s32.totalorder %v2904, 1
    %vm3059 = vcmp.eq.s32.totalorder %v2907, 1
    %vm3060 = vcmp.eq.s32.totalorder %v2910, 1
    %vm3061 = vcmp.eq.s32.totalorder %v2913, 1
    %vm3062 = vcmp.eq.s32.totalorder %v2916, 1
    %vm3063 = vcmp.eq.s32.totalorder %v2919, 1
    %vm3064 = vcmp.eq.s32.totalorder %v2922, 1
    %vm3065 = vcmp.eq.s32.totalorder %v2925, 1
    %vm3066 = vcmp.eq.s32.totalorder %v2928, 1
    %vm3067 = vcmp.eq.s32.totalorder %v2931, 1
    %vm3068 = vcmp.eq.s32.totalorder %v2934, 1
    %vm3069 = vcmp.eq.s32.totalorder %v2937, 1
    %vm3070 = vcmp.eq.s32.totalorder %v2940, 1
    %vm3071 = vcmp.eq.s32.totalorder %v2943, 1
    %vm3072 = vcmp.eq.s32.totalorder %v2946, 1
    %vm3073 = vcmp.eq.s32.totalorder %v2949, 1
    %vm3074 = vcmp.eq.s32.totalorder %v2952, 1
    %vm3075 = vcmp.eq.s32.totalorder %v2955, 1
    %vm3076 = vcmp.eq.s32.totalorder %v2958, 1
    %vm3077 = vcmp.eq.s32.totalorder %v2961, 1
    %vm3078 = vcmp.eq.s32.totalorder %v2964, 1
    %vm3079 = vcmp.eq.s32.totalorder %v2967, 1
    %vm3080 = vcmp.eq.s32.totalorder %v2970, 1
    %vm3081 = vcmp.eq.s32.totalorder %v2973, 1
    %vm3082 = vcmp.eq.s32.totalorder %v2976, 1
    %vm3083 = vcmp.eq.s32.totalorder %v2979, 1
    %vm3084 = vcmp.eq.s32.totalorder %v2982, 1
    %vm3085 = vcmp.eq.s32.totalorder %v2985, 1
    %vm3086 = vcmp.eq.s32.totalorder %v2988, 1
    %vm3087 = vcmp.eq.s32.totalorder %v2991, 1
    %vm3088 = vcmp.eq.s32.totalorder %v2994, 1
    %vm3089 = vcmp.eq.s32.totalorder %v2997, 1
    %vm3090 = vcmp.eq.s32.totalorder %v3000, 1
    %vm3091 = vcmp.eq.s32.totalorder %v3003, 1
    %vm3092 = vcmp.eq.s32.totalorder %v3006, 1
    %vm3093 = vcmp.eq.s32.totalorder %v3009, 1
    %vm3094 = vcmp.eq.s32.totalorder %v3012, 1
    %vm3095 = vcmp.eq.s32.totalorder %v3015, 1
    %vm3096 = vcmp.eq.s32.totalorder %v3018, 1
    %vm3097 = vcmp.eq.s32.totalorder %v3021, 1
    %vm3098 = vcmp.eq.s32.totalorder %v3024, 1
    %vm3099 = vcmp.eq.s32.totalorder %v3027, 1
    %vm3100 = vcmp.eq.s32.totalorder %v3030, 1
    %vm3101 = vcmp.eq.s32.totalorder %v3033, 1
    %vm3102 = vcmp.eq.s32.totalorder %v3036, 1
    %vm3103 = vcmp.eq.s32.totalorder %v3039, 1
    %v3104 = vsel %vm3040, %v1692, 0.0
    %v3105 = vsel %vm3041, %v1693, 0.0
    %v3106 = vsel %vm3042, %v1630, 0.0
    %v3107 = vsel %vm3043, %v1631, 0.0
    %v3108 = vsel %vm3044, %v1632, 0.0
    %v3109 = vsel %vm3045, %v1633, 0.0
    %v3110 = vsel %vm3046, %v1634, 0.0
    %v3111 = vsel %vm3047, %v1635, 0.0
    %v3112 = vsel %vm3048, %v1636, 0.0
    %v3113 = vsel %vm3049, %v1637, 0.0
    %v3114 = vsel %vm3050, %v1638, 0.0
    %v3115 = vsel %vm3051, %v1639, 0.0
    %v3116 = vsel %vm3052, %v1640, 0.0
    %v3117 = vsel %vm3053, %v1641, 0.0
    %v3118 = vsel %vm3054, %v1642, 0.0
    %v3119 = vsel %vm3055, %v1643, 0.0
    %v3120 = vsel %vm3056, %v1644, 0.0
    %v3121 = vsel %vm3057, %v1645, 0.0
    %v3122 = vsel %vm3058, %v1646, 0.0
    %v3123 = vsel %vm3059, %v1647, 0.0
    %v3124 = vsel %vm3060, %v1648, 0.0
    %v3125 = vsel %vm3061, %v1649, 0.0
    %v3126 = vsel %vm3062, %v1650, 0.0
    %v3127 = vsel %vm3063, %v1651, 0.0
    %v3128 = vsel %vm3064, %v1652, 0.0
    %v3129 = vsel %vm3065, %v1653, 0.0
    %v3130 = vsel %vm3066, %v1654, 0.0
    %v3131 = vsel %vm3067, %v1655, 0.0
    %v3132 = vsel %vm3068, %v1656, 0.0
    %v3133 = vsel %vm3069, %v1657, 0.0
    %v3134 = vsel %vm3070, %v1658, 0.0
    %v3135 = vsel %vm3071, %v1659, 0.0
    %v3136 = vsel %vm3072, %v1660, 0.0
    %v3137 = vsel %vm3073, %v1661, 0.0
    %v3138 = vsel %vm3074, %v1662, 0.0
    %v3139 = vsel %vm3075, %v1663, 0.0
    %v3140 = vsel %vm3076, %v1664, 0.0
    %v3141 = vsel %vm3077, %v1665, 0.0
    %v3142 = vsel %vm3078, %v1666, 0.0
    %v3143 = vsel %vm3079, %v1667, 0.0
    %v3144 = vsel %vm3080, %v1668, 0.0
    %v3145 = vsel %vm3081, %v1669, 0.0
    %v3146 = vsel %vm3082, %v1670, 0.0
    %v3147 = vsel %vm3083, %v1671, 0.0
    %v3148 = vsel %vm3084, %v1672, 0.0
    %v3149 = vsel %vm3085, %v1673, 0.0
    %v3150 = vsel %vm3086, %v1674, 0.0
    %v3151 = vsel %vm3087, %v1675, 0.0
    %v3152 = vsel %vm3088, %v1676, 0.0
    %v3153 = vsel %vm3089, %v1677, 0.0
    %v3154 = vsel %vm3090, %v1678, 0.0
    %v3155 = vsel %vm3091, %v1679, 0.0
    %v3156 = vsel %vm3092, %v1680, 0.0
    %v3157 = vsel %vm3093, %v1681, 0.0
    %v3158 = vsel %vm3094, %v1682, 0.0
    %v3159 = vsel %vm3095, %v1683, 0.0
    %v3160 = vsel %vm3096, %v1684, 0.0
    %v3161 = vsel %vm3097, %v1685, 0.0
    %v3162 = vsel %vm3098, %v1686, 0.0
    %v3163 = vsel %vm3099, %v1687, 0.0
    %v3164 = vsel %vm3100, %v1688, 0.0
    %v3165 = vsel %vm3101, %v1689, 0.0
    %v3166 = vsel %vm3102, %v1690, 0.0
    %v3167 = vsel %vm3103, %v1691, 0.0
    %v3168 = vsel %vm3040, %v794, 0.0
    %v3169 = vsel %vm3041, %v795, 0.0
    %v3170 = vsel %vm3042, %v732, 0.0
    %v3171 = vsel %vm3043, %v733, 0.0
    %v3172 = vsel %vm3044, %v734, 0.0
    %v3173 = vsel %vm3045, %v735, 0.0
    %v3174 = vsel %vm3046, %v736, 0.0
    %v3175 = vsel %vm3047, %v737, 0.0
    %v3176 = vsel %vm3048, %v738, 0.0
    %v3177 = vsel %vm3049, %v739, 0.0
    %v3178 = vsel %vm3050, %v740, 0.0
    %v3179 = vsel %vm3051, %v741, 0.0
    %v3180 = vsel %vm3052, %v742, 0.0
    %v3181 = vsel %vm3053, %v743, 0.0
    %v3182 = vsel %vm3054, %v744, 0.0
    %v3183 = vsel %vm3055, %v745, 0.0
    %v3184 = vsel %vm3056, %v746, 0.0
    %v3185 = vsel %vm3057, %v747, 0.0
    %v3186 = vsel %vm3058, %v748, 0.0
    %v3187 = vsel %vm3059, %v749, 0.0
    %v3188 = vsel %vm3060, %v750, 0.0
    %v3189 = vsel %vm3061, %v751, 0.0
    %v3190 = vsel %vm3062, %v752, 0.0
    %v3191 = vsel %vm3063, %v753, 0.0
    %v3192 = vsel %vm3064, %v754, 0.0
    %v3193 = vsel %vm3065, %v755, 0.0
    %v3194 = vsel %vm3066, %v756, 0.0
    %v3195 = vsel %vm3067, %v757, 0.0
    %v3196 = vsel %vm3068, %v758, 0.0
    %v3197 = vsel %vm3069, %v759, 0.0
    %v3198 = vsel %vm3070, %v760, 0.0
    %v3199 = vsel %vm3071, %v761, 0.0
    %v3200 = vsel %vm3072, %v762, 0.0
    %v3201 = vsel %vm3073, %v763, 0.0
    %v3202 = vsel %vm3074, %v764, 0.0
    %v3203 = vsel %vm3075, %v765, 0.0
    %v3204 = vsel %vm3076, %v766, 0.0
    %v3205 = vsel %vm3077, %v767, 0.0
    %v3206 = vsel %vm3078, %v768, 0.0
    %v3207 = vsel %vm3079, %v769, 0.0
    %v3208 = vsel %vm3080, %v770, 0.0
    %v3209 = vsel %vm3081, %v771, 0.0
    %v3210 = vsel %vm3082, %v772, 0.0
    %v3211 = vsel %vm3083, %v773, 0.0
    %v3212 = vsel %vm3084, %v774, 0.0
    %v3213 = vsel %vm3085, %v775, 0.0
    %v3214 = vsel %vm3086, %v776, 0.0
    %v3215 = vsel %vm3087, %v777, 0.0
    %v3216 = vsel %vm3088, %v778, 0.0
    %v3217 = vsel %vm3089, %v779, 0.0
    %v3218 = vsel %vm3090, %v780, 0.0
    %v3219 = vsel %vm3091, %v781, 0.0
    %v3220 = vsel %vm3092, %v782, 0.0
    %v3221 = vsel %vm3093, %v783, 0.0
    %v3222 = vsel %vm3094, %v784, 0.0
    %v3223 = vsel %vm3095, %v785, 0.0
    %v3224 = vsel %vm3096, %v786, 0.0
    %v3225 = vsel %vm3097, %v787, 0.0
    %v3226 = vsel %vm3098, %v788, 0.0
    %v3227 = vsel %vm3099, %v789, 0.0
    %v3228 = vsel %vm3100, %v790, 0.0
    %v3229 = vsel %vm3101, %v791, 0.0
    %v3230 = vsel %vm3102, %v792, 0.0
    %v3231 = vsel %vm3103, %v793, 0.0
    %v3232 = vsel %vm3040, %v2526, 0.0
    %v3233 = vsel %vm3041, %v2527, 0.0
    %v3234 = vsel %vm3042, %v2464, 0.0
    %v3235 = vsel %vm3043, %v2465, 0.0
    %v3236 = vsel %vm3044, %v2466, 0.0
    %v3237 = vsel %vm3045, %v2467, 0.0
    %v3238 = vsel %vm3046, %v2468, 0.0
    %v3239 = vsel %vm3047, %v2469, 0.0
    %v3240 = vsel %vm3048, %v2470, 0.0
    %v3241 = vsel %vm3049, %v2471, 0.0
    %v3242 = vsel %vm3050, %v2472, 0.0
    %v3243 = vsel %vm3051, %v2473, 0.0
    %v3244 = vsel %vm3052, %v2474, 0.0
    %v3245 = vsel %vm3053, %v2475, 0.0
    %v3246 = vsel %vm3054, %v2476, 0.0
    %v3247 = vsel %vm3055, %v2477, 0.0
    %v3248 = vsel %vm3056, %v2478, 0.0
    %v3249 = vsel %vm3057, %v2479, 0.0
    %v3250 = vsel %vm3058, %v2480, 0.0
    %v3251 = vsel %vm3059, %v2481, 0.0
    %v3252 = vsel %vm3060, %v2482, 0.0
    %v3253 = vsel %vm3061, %v2483, 0.0
    %v3254 = vsel %vm3062, %v2484, 0.0
    %v3255 = vsel %vm3063, %v2485, 0.0
    %v3256 = vsel %vm3064, %v2486, 0.0
    %v3257 = vsel %vm3065, %v2487, 0.0
    %v3258 = vsel %vm3066, %v2488, 0.0
    %v3259 = vsel %vm3067, %v2489, 0.0
    %v3260 = vsel %vm3068, %v2490, 0.0
    %v3261 = vsel %vm3069, %v2491, 0.0
    %v3262 = vsel %vm3070, %v2492, 0.0
    %v3263 = vsel %vm3071, %v2493, 0.0
    %v3264 = vsel %vm3072, %v2494, 0.0
    %v3265 = vsel %vm3073, %v2495, 0.0
    %v3266 = vsel %vm3074, %v2496, 0.0
    %v3267 = vsel %vm3075, %v2497, 0.0
    %v3268 = vsel %vm3076, %v2498, 0.0
    %v3269 = vsel %vm3077, %v2499, 0.0
    %v3270 = vsel %vm3078, %v2500, 0.0
    %v3271 = vsel %vm3079, %v2501, 0.0
    %v3272 = vsel %vm3080, %v2502, 0.0
    %v3273 = vsel %vm3081, %v2503, 0.0
    %v3274 = vsel %vm3082, %v2504, 0.0
    %v3275 = vsel %vm3083, %v2505, 0.0
    %v3276 = vsel %vm3084, %v2506, 0.0
    %v3277 = vsel %vm3085, %v2507, 0.0
    %v3278 = vsel %vm3086, %v2508, 0.0
    %v3279 = vsel %vm3087, %v2509, 0.0
    %v3280 = vsel %vm3088, %v2510, 0.0
    %v3281 = vsel %vm3089, %v2511, 0.0
    %v3282 = vsel %vm3090, %v2512, 0.0
    %v3283 = vsel %vm3091, %v2513, 0.0
    %v3284 = vsel %vm3092, %v2514, 0.0
    %v3285 = vsel %vm3093, %v2515, 0.0
    %v3286 = vsel %vm3094, %v2516, 0.0
    %v3287 = vsel %vm3095, %v2517, 0.0
    %v3288 = vsel %vm3096, %v2518, 0.0
    %v3289 = vsel %vm3097, %v2519, 0.0
    %v3290 = vsel %vm3098, %v2520, 0.0
    %v3291 = vsel %vm3099, %v2521, 0.0
    %v3292 = vsel %vm3100, %v2522, 0.0
    %v3293 = vsel %vm3101, %v2523, 0.0
    %v3294 = vsel %vm3102, %v2524, 0.0
    %v3295 = vsel %vm3103, %v2525, 0.0
    %v3296 = vadd.s32 %v41, 1
    %v3297 = vadd.s32 %v42, 1
    %v3298 = vadd.s32 %v43, 1
    %v3299 = vadd.s32 %v44, 1
    %v3300 = vadd.s32 %v45, 1
    %v3301 = vadd.s32 %v46, 1
    %v3302 = vadd.s32 %v47, 1
    %v3303 = vadd.s32 %v48, 1
    %v3304 = vadd.s32 %v49, 1
    %v3305 = vadd.s32 %v50, 1
    %v3306 = vadd.s32 %v51, 1
    %v3307 = vadd.s32 %v52, 1
    %v3308 = vadd.s32 %v53, 1
    %v3309 = vadd.s32 %v54, 1
    %v3310 = vadd.s32 %v55, 1
    %v3311 = vadd.s32 %v56, 1
    %v3312 = vadd.s32 %v57, 1
    %v3313 = vadd.s32 %v58, 1
    %v3314 = vadd.s32 %v59, 1
    %v3315 = vadd.s32 %v60, 1
    %v3316 = vadd.s32 %v61, 1
    %v3317 = vadd.s32 %v62, 1
    %v3318 = vadd.s32 %v63, 1
    %v3319 = vadd.s32 %v64, 1
    %v3320 = vadd.s32 %v65, 1
    %v3321 = vadd.s32 %v66, 1
    %v3322 = vadd.s32 %v67, 1
    %v3323 = vadd.s32 %v68, 1
    %v3324 = vadd.s32 %v69, 1
    %v3325 = vadd.s32 %v70, 1
    %v3326 = vadd.s32 %v71, 1
    %v3327 = vadd.s32 %v72, 1
    %v3328 = vadd.s32 %v73, 1
    %v3329 = vadd.s32 %v74, 1
    %v3330 = vadd.s32 %v75, 1
    %v3331 = vadd.s32 %v76, 1
    %v3332 = vadd.s32 %v77, 1
    %v3333 = vadd.s32 %v78, 1
    %v3334 = vadd.s32 %v79, 1
    %v3335 = vadd.s32 %v80, 1
    %v3336 = vadd.s32 %v81, 1
    %v3337 = vadd.s32 %v82, 1
    %v3338 = vadd.s32 %v83, 1
    %v3339 = vadd.s32 %v84, 1
    %v3340 = vadd.s32 %v85, 1
    %v3341 = vadd.s32 %v86, 1
    %v3342 = vadd.s32 %v87, 1
    %v3343 = vadd.s32 %v88, 1
    %v3344 = vadd.s32 %v89, 1
    %v3345 = vadd.s32 %v90, 1
    %v3346 = vadd.s32 %v91, 1
    %v3347 = vadd.s32 %v92, 1
    %v3348 = vadd.s32 %v93, 1
    %v3349 = vadd.s32 %v94, 1
    %v3350 = vadd.s32 %v95, 1
    %v3351 = vadd.s32 %v96, 1
    %v3352 = vadd.s32 %v97, 1
    %v3353 = vadd.s32 %v98, 1
    %v3354 = vadd.s32 %v99, 1
    %v3355 = vadd.s32 %v100, 1
    %v3356 = vadd.s32 %v101, 1
    %v3357 = vadd.s32 %v102, 1
    %v3358 = vadd.s32 %v103, 1
    %v3359 = vadd.s32 %v104, 1
    %vm3360 = vcmp.ge.s32.totalorder %v3296, 0
    %vm3361 = vcmp.ge.s32.totalorder %v3297, 0
    %vm3362 = vcmp.ge.s32.totalorder %v3298, 0
    %vm3363 = vcmp.ge.s32.totalorder %v3299, 0
    %vm3364 = vcmp.ge.s32.totalorder %v3300, 0
    %vm3365 = vcmp.ge.s32.totalorder %v3301, 0
    %vm3366 = vcmp.ge.s32.totalorder %v3302, 0
    %vm3367 = vcmp.ge.s32.totalorder %v3303, 0
    %vm3368 = vcmp.ge.s32.totalorder %v3304, 0
    %vm3369 = vcmp.ge.s32.totalorder %v3305, 0
    %vm3370 = vcmp.ge.s32.totalorder %v3306, 0
    %vm3371 = vcmp.ge.s32.totalorder %v3307, 0
    %vm3372 = vcmp.ge.s32.totalorder %v3308, 0
    %vm3373 = vcmp.ge.s32.totalorder %v3309, 0
    %vm3374 = vcmp.ge.s32.totalorder %v3310, 0
    %vm3375 = vcmp.ge.s32.totalorder %v3311, 0
    %vm3376 = vcmp.ge.s32.totalorder %v3312, 0
    %vm3377 = vcmp.ge.s32.totalorder %v3313, 0
    %vm3378 = vcmp.ge.s32.totalorder %v3314, 0
    %vm3379 = vcmp.ge.s32.totalorder %v3315, 0
    %vm3380 = vcmp.ge.s32.totalorder %v3316, 0
    %vm3381 = vcmp.ge.s32.totalorder %v3317, 0
    %vm3382 = vcmp.ge.s32.totalorder %v3318, 0
    %vm3383 = vcmp.ge.s32.totalorder %v3319, 0
    %vm3384 = vcmp.ge.s32.totalorder %v3320, 0
    %vm3385 = vcmp.ge.s32.totalorder %v3321, 0
    %vm3386 = vcmp.ge.s32.totalorder %v3322, 0
    %vm3387 = vcmp.ge.s32.totalorder %v3323, 0
    %vm3388 = vcmp.ge.s32.totalorder %v3324, 0
    %vm3389 = vcmp.ge.s32.totalorder %v3325, 0
    %vm3390 = vcmp.ge.s32.totalorder %v3326, 0
    %vm3391 = vcmp.ge.s32.totalorder %v3327, 0
    %vm3392 = vcmp.ge.s32.totalorder %v3328, 0
    %vm3393 = vcmp.ge.s32.totalorder %v3329, 0
    %vm3394 = vcmp.ge.s32.totalorder %v3330, 0
    %vm3395 = vcmp.ge.s32.totalorder %v3331, 0
    %vm3396 = vcmp.ge.s32.totalorder %v3332, 0
    %vm3397 = vcmp.ge.s32.totalorder %v3333, 0
    %vm3398 = vcmp.ge.s32.totalorder %v3334, 0
    %vm3399 = vcmp.ge.s32.totalorder %v3335, 0
    %vm3400 = vcmp.ge.s32.totalorder %v3336, 0
    %vm3401 = vcmp.ge.s32.totalorder %v3337, 0
    %vm3402 = vcmp.ge.s32.totalorder %v3338, 0
    %vm3403 = vcmp.ge.s32.totalorder %v3339, 0
    %vm3404 = vcmp.ge.s32.totalorder %v3340, 0
    %vm3405 = vcmp.ge.s32.totalorder %v3341, 0
    %vm3406 = vcmp.ge.s32.totalorder %v3342, 0
    %vm3407 = vcmp.ge.s32.totalorder %v3343, 0
    %vm3408 = vcmp.ge.s32.totalorder %v3344, 0
    %vm3409 = vcmp.ge.s32.totalorder %v3345, 0
    %vm3410 = vcmp.ge.s32.totalorder %v3346, 0
    %vm3411 = vcmp.ge.s32.totalorder %v3347, 0
    %vm3412 = vcmp.ge.s32.totalorder %v3348, 0
    %vm3413 = vcmp.ge.s32.totalorder %v3349, 0
    %vm3414 = vcmp.ge.s32.totalorder %v3350, 0
    %vm3415 = vcmp.ge.s32.totalorder %v3351, 0
    %vm3416 = vcmp.ge.s32.totalorder %v3352, 0
    %vm3417 = vcmp.ge.s32.totalorder %v3353, 0
    %vm3418 = vcmp.ge.s32.totalorder %v3354, 0
    %vm3419 = vcmp.ge.s32.totalorder %v3355, 0
    %vm3420 = vcmp.ge.s32.totalorder %v3356, 0
    %vm3421 = vcmp.ge.s32.totalorder %v3357, 0
    %vm3422 = vcmp.ge.s32.totalorder %v3358, 0
    %vm3423 = vcmp.ge.s32.totalorder %v3359, 0
    %vm3424 = vcmp.lt.s32.totalorder %v3296, 16
    %vm3425 = vcmp.lt.s32.totalorder %v3297, 16
    %vm3426 = vcmp.lt.s32.totalorder %v3298, 16
    %vm3427 = vcmp.lt.s32.totalorder %v3299, 16
    %vm3428 = vcmp.lt.s32.totalorder %v3300, 16
    %vm3429 = vcmp.lt.s32.totalorder %v3301, 16
    %vm3430 = vcmp.lt.s32.totalorder %v3302, 16
    %vm3431 = vcmp.lt.s32.totalorder %v3303, 16
    %vm3432 = vcmp.lt.s32.totalorder %v3304, 16
    %vm3433 = vcmp.lt.s32.totalorder %v3305, 16
    %vm3434 = vcmp.lt.s32.totalorder %v3306, 16
    %vm3435 = vcmp.lt.s32.totalorder %v3307, 16
    %vm3436 = vcmp.lt.s32.totalorder %v3308, 16
    %vm3437 = vcmp.lt.s32.totalorder %v3309, 16
    %vm3438 = vcmp.lt.s32.totalorder %v3310, 16
    %vm3439 = vcmp.lt.s32.totalorder %v3311, 16
    %vm3440 = vcmp.lt.s32.totalorder %v3312, 16
    %vm3441 = vcmp.lt.s32.totalorder %v3313, 16
    %vm3442 = vcmp.lt.s32.totalorder %v3314, 16
    %vm3443 = vcmp.lt.s32.totalorder %v3315, 16
    %vm3444 = vcmp.lt.s32.totalorder %v3316, 16
    %vm3445 = vcmp.lt.s32.totalorder %v3317, 16
    %vm3446 = vcmp.lt.s32.totalorder %v3318, 16
    %vm3447 = vcmp.lt.s32.totalorder %v3319, 16
    %vm3448 = vcmp.lt.s32.totalorder %v3320, 16
    %vm3449 = vcmp.lt.s32.totalorder %v3321, 16
    %vm3450 = vcmp.lt.s32.totalorder %v3322, 16
    %vm3451 = vcmp.lt.s32.totalorder %v3323, 16
    %vm3452 = vcmp.lt.s32.totalorder %v3324, 16
    %vm3453 = vcmp.lt.s32.totalorder %v3325, 16
    %vm3454 = vcmp.lt.s32.totalorder %v3326, 16
    %vm3455 = vcmp.lt.s32.totalorder %v3327, 16
    %vm3456 = vcmp.lt.s32.totalorder %v3328, 16
    %vm3457 = vcmp.lt.s32.totalorder %v3329, 16
    %vm3458 = vcmp.lt.s32.totalorder %v3330, 16
    %vm3459 = vcmp.lt.s32.totalorder %v3331, 16
    %vm3460 = vcmp.lt.s32.totalorder %v3332, 16
    %vm3461 = vcmp.lt.s32.totalorder %v3333, 16
    %vm3462 = vcmp.lt.s32.totalorder %v3334, 16
    %vm3463 = vcmp.lt.s32.totalorder %v3335, 16
    %vm3464 = vcmp.lt.s32.totalorder %v3336, 16
    %vm3465 = vcmp.lt.s32.totalorder %v3337, 16
    %vm3466 = vcmp.lt.s32.totalorder %v3338, 16
    %vm3467 = vcmp.lt.s32.totalorder %v3339, 16
    %vm3468 = vcmp.lt.s32.totalorder %v3340, 16
    %vm3469 = vcmp.lt.s32.totalorder %v3341, 16
    %vm3470 = vcmp.lt.s32.totalorder %v3342, 16
    %vm3471 = vcmp.lt.s32.totalorder %v3343, 16
    %vm3472 = vcmp.lt.s32.totalorder %v3344, 16
    %vm3473 = vcmp.lt.s32.totalorder %v3345, 16
    %vm3474 = vcmp.lt.s32.totalorder %v3346, 16
    %vm3475 = vcmp.lt.s32.totalorder %v3347, 16
    %vm3476 = vcmp.lt.s32.totalorder %v3348, 16
    %vm3477 = vcmp.lt.s32.totalorder %v3349, 16
    %vm3478 = vcmp.lt.s32.totalorder %v3350, 16
    %vm3479 = vcmp.lt.s32.totalorder %v3351, 16
    %vm3480 = vcmp.lt.s32.totalorder %v3352, 16
    %vm3481 = vcmp.lt.s32.totalorder %v3353, 16
    %vm3482 = vcmp.lt.s32.totalorder %v3354, 16
    %vm3483 = vcmp.lt.s32.totalorder %v3355, 16
    %vm3484 = vcmp.lt.s32.totalorder %v3356, 16
    %vm3485 = vcmp.lt.s32.totalorder %v3357, 16
    %vm3486 = vcmp.lt.s32.totalorder %v3358, 16
    %vm3487 = vcmp.lt.s32.totalorder %v3359, 16
    %vm3488 = vmand %vm3360, %vm3424
    %vm3489 = vmand %vm3361, %vm3425
    %vm3490 = vmand %vm3362, %vm3426
    %vm3491 = vmand %vm3363, %vm3427
    %vm3492 = vmand %vm3364, %vm3428
    %vm3493 = vmand %vm3365, %vm3429
    %vm3494 = vmand %vm3366, %vm3430
    %vm3495 = vmand %vm3367, %vm3431
    %vm3496 = vmand %vm3368, %vm3432
    %vm3497 = vmand %vm3369, %vm3433
    %vm3498 = vmand %vm3370, %vm3434
    %vm3499 = vmand %vm3371, %vm3435
    %vm3500 = vmand %vm3372, %vm3436
    %vm3501 = vmand %vm3373, %vm3437
    %vm3502 = vmand %vm3374, %vm3438
    %vm3503 = vmand %vm3375, %vm3439
    %vm3504 = vmand %vm3376, %vm3440
    %vm3505 = vmand %vm3377, %vm3441
    %vm3506 = vmand %vm3378, %vm3442
    %vm3507 = vmand %vm3379, %vm3443
    %vm3508 = vmand %vm3380, %vm3444
    %vm3509 = vmand %vm3381, %vm3445
    %vm3510 = vmand %vm3382, %vm3446
    %vm3511 = vmand %vm3383, %vm3447
    %vm3512 = vmand %vm3384, %vm3448
    %vm3513 = vmand %vm3385, %vm3449
    %vm3514 = vmand %vm3386, %vm3450
    %vm3515 = vmand %vm3387, %vm3451
    %vm3516 = vmand %vm3388, %vm3452
    %vm3517 = vmand %vm3389, %vm3453
    %vm3518 = vmand %vm3390, %vm3454
    %vm3519 = vmand %vm3391, %vm3455
    %vm3520 = vmand %vm3392, %vm3456
    %vm3521 = vmand %vm3393, %vm3457
    %vm3522 = vmand %vm3394, %vm3458
    %vm3523 = vmand %vm3395, %vm3459
    %vm3524 = vmand %vm3396, %vm3460
    %vm3525 = vmand %vm3397, %vm3461
    %vm3526 = vmand %vm3398, %vm3462
    %vm3527 = vmand %vm3399, %vm3463
    %vm3528 = vmand %vm3400, %vm3464
    %vm3529 = vmand %vm3401, %vm3465
    %vm3530 = vmand %vm3402, %vm3466
    %vm3531 = vmand %vm3403, %vm3467
    %vm3532 = vmand %vm3404, %vm3468
    %vm3533 = vmand %vm3405, %vm3469
    %vm3534 = vmand %vm3406, %vm3470
    %vm3535 = vmand %vm3407, %vm3471
    %vm3536 = vmand %vm3408, %vm3472
    %vm3537 = vmand %vm3409, %vm3473
    %vm3538 = vmand %vm3410, %vm3474
    %vm3539 = vmand %vm3411, %vm3475
    %vm3540 = vmand %vm3412, %vm3476
    %vm3541 = vmand %vm3413, %vm3477
    %vm3542 = vmand %vm3414, %vm3478
    %vm3543 = vmand %vm3415, %vm3479
    %vm3544 = vmand %vm3416, %vm3480
    %vm3545 = vmand %vm3417, %vm3481
    %vm3546 = vmand %vm3418, %vm3482
    %vm3547 = vmand %vm3419, %vm3483
    %vm3548 = vmand %vm3420, %vm3484
    %vm3549 = vmand %vm3421, %vm3485
    %vm3550 = vmand %vm3422, %vm3486
    %vm3551 = vmand %vm3423, %vm3487
    %v3552 = vsel %vm3488, 1, 0
    %v3553 = vsel %vm3489, 1, 0
    %v3554 = vsel %vm3490, 1, 0
    %v3555 = vsel %vm3491, 1, 0
    %v3556 = vsel %vm3492, 1, 0
    %v3557 = vsel %vm3493, 1, 0
    %v3558 = vsel %vm3494, 1, 0
    %v3559 = vsel %vm3495, 1, 0
    %v3560 = vsel %vm3496, 1, 0
    %v3561 = vsel %vm3497, 1, 0
    %v3562 = vsel %vm3498, 1, 0
    %v3563 = vsel %vm3499, 1, 0
    %v3564 = vsel %vm3500, 1, 0
    %v3565 = vsel %vm3501, 1, 0
    %v3566 = vsel %vm3502, 1, 0
    %v3567 = vsel %vm3503, 1, 0
    %v3568 = vsel %vm3504, 1, 0
    %v3569 = vsel %vm3505, 1, 0
    %v3570 = vsel %vm3506, 1, 0
    %v3571 = vsel %vm3507, 1, 0
    %v3572 = vsel %vm3508, 1, 0
    %v3573 = vsel %vm3509, 1, 0
    %v3574 = vsel %vm3510, 1, 0
    %v3575 = vsel %vm3511, 1, 0
    %v3576 = vsel %vm3512, 1, 0
    %v3577 = vsel %vm3513, 1, 0
    %v3578 = vsel %vm3514, 1, 0
    %v3579 = vsel %vm3515, 1, 0
    %v3580 = vsel %vm3516, 1, 0
    %v3581 = vsel %vm3517, 1, 0
    %v3582 = vsel %vm3518, 1, 0
    %v3583 = vsel %vm3519, 1, 0
    %v3584 = vsel %vm3520, 1, 0
    %v3585 = vsel %vm3521, 1, 0
    %v3586 = vsel %vm3522, 1, 0
    %v3587 = vsel %vm3523, 1, 0
    %v3588 = vsel %vm3524, 1, 0
    %v3589 = vsel %vm3525, 1, 0
    %v3590 = vsel %vm3526, 1, 0
    %v3591 = vsel %vm3527, 1, 0
    %v3592 = vsel %vm3528, 1, 0
    %v3593 = vsel %vm3529, 1, 0
    %v3594 = vsel %vm3530, 1, 0
    %v3595 = vsel %vm3531, 1, 0
    %v3596 = vsel %vm3532, 1, 0
    %v3597 = vsel %vm3533, 1, 0
    %v3598 = vsel %vm3534, 1, 0
    %v3599 = vsel %vm3535, 1, 0
    %v3600 = vsel %vm3536, 1, 0
    %v3601 = vsel %vm3537, 1, 0
    %v3602 = vsel %vm3538, 1, 0
    %v3603 = vsel %vm3539, 1, 0
    %v3604 = vsel %vm3540, 1, 0
    %v3605 = vsel %vm3541, 1, 0
    %v3606 = vsel %vm3542, 1, 0
    %v3607 = vsel %vm3543, 1, 0
    %v3608 = vsel %vm3544, 1, 0
    %v3609 = vsel %vm3545, 1, 0
    %v3610 = vsel %vm3546, 1, 0
    %v3611 = vsel %vm3547, 1, 0
    %v3612 = vsel %vm3548, 1, 0
    %v3613 = vsel %vm3549, 1, 0
    %v3614 = vsel %vm3550, 1, 0
    %v3615 = vsel %vm3551, 1, 0
    %3616 = vset.pattern.permute.xlu0 0
    %3617 = vperm.xlu0 %3616, %v3552
    %v3618 = vpop.permute.xlu0 %3617
    %3619 = vset.pattern.permute.xlu0 0
    %3620 = vperm.xlu0 %3619, %v3553
    %v3621 = vpop.permute.xlu0 %3620
    %3622 = vset.pattern.permute.xlu0 0
    %3623 = vperm.xlu0 %3622, %v3554
    %v3624 = vpop.permute.xlu0 %3623
    %3625 = vset.pattern.permute.xlu0 0
    %3626 = vperm.xlu0 %3625, %v3555
    %v3627 = vpop.permute.xlu0 %3626
    %3628 = vset.pattern.permute.xlu0 0
    %3629 = vperm.xlu0 %3628, %v3556
    %v3630 = vpop.permute.xlu0 %3629
    %3631 = vset.pattern.permute.xlu0 0
    %3632 = vperm.xlu0 %3631, %v3557
    %v3633 = vpop.permute.xlu0 %3632
    %3634 = vset.pattern.permute.xlu0 0
    %3635 = vperm.xlu0 %3634, %v3558
    %v3636 = vpop.permute.xlu0 %3635
    %3637 = vset.pattern.permute.xlu0 0
    %3638 = vperm.xlu0 %3637, %v3559
    %v3639 = vpop.permute.xlu0 %3638
    %3640 = vset.pattern.permute.xlu0 0
    %3641 = vperm.xlu0 %3640, %v3560
    %v3642 = vpop.permute.xlu0 %3641
    %3643 = vset.pattern.permute.xlu0 0
    %3644 = vperm.xlu0 %3643, %v3561
    %v3645 = vpop.permute.xlu0 %3644
    %3646 = vset.pattern.permute.xlu0 0
    %3647 = vperm.xlu0 %3646, %v3562
    %v3648 = vpop.permute.xlu0 %3647
    %3649 = vset.pattern.permute.xlu0 0
    %3650 = vperm.xlu0 %3649, %v3563
    %v3651 = vpop.permute.xlu0 %3650
    %3652 = vset.pattern.permute.xlu0 0
    %3653 = vperm.xlu0 %3652, %v3564
    %v3654 = vpop.permute.xlu0 %3653
    %3655 = vset.pattern.permute.xlu0 0
    %3656 = vperm.xlu0 %3655, %v3565
    %v3657 = vpop.permute.xlu0 %3656
    %3658 = vset.pattern.permute.xlu0 0
    %3659 = vperm.xlu0 %3658, %v3566
    %v3660 = vpop.permute.xlu0 %3659
    %3661 = vset.pattern.permute.xlu0 0
    %3662 = vperm.xlu0 %3661, %v3567
    %v3663 = vpop.permute.xlu0 %3662
    %3664 = vset.pattern.permute.xlu0 0
    %3665 = vperm.xlu0 %3664, %v3568
    %v3666 = vpop.permute.xlu0 %3665
    %3667 = vset.pattern.permute.xlu0 0
    %3668 = vperm.xlu0 %3667, %v3569
    %v3669 = vpop.permute.xlu0 %3668
    %3670 = vset.pattern.permute.xlu0 0
    %3671 = vperm.xlu0 %3670, %v3570
    %v3672 = vpop.permute.xlu0 %3671
    %3673 = vset.pattern.permute.xlu0 0
    %3674 = vperm.xlu0 %3673, %v3571
    %v3675 = vpop.permute.xlu0 %3674
    %3676 = vset.pattern.permute.xlu0 0
    %3677 = vperm.xlu0 %3676, %v3572
    %v3678 = vpop.permute.xlu0 %3677
    %3679 = vset.pattern.permute.xlu0 0
    %3680 = vperm.xlu0 %3679, %v3573
    %v3681 = vpop.permute.xlu0 %3680
    %3682 = vset.pattern.permute.xlu0 0
    %3683 = vperm.xlu0 %3682, %v3574
    %v3684 = vpop.permute.xlu0 %3683
    %3685 = vset.pattern.permute.xlu0 0
    %3686 = vperm.xlu0 %3685, %v3575
    %v3687 = vpop.permute.xlu0 %3686
    %3688 = vset.pattern.permute.xlu0 0
    %3689 = vperm.xlu0 %3688, %v3576
    %v3690 = vpop.permute.xlu0 %3689
    %3691 = vset.pattern.permute.xlu0 0
    %3692 = vperm.xlu0 %3691, %v3577
    %v3693 = vpop.permute.xlu0 %3692
    %3694 = vset.pattern.permute.xlu0 0
    %3695 = vperm.xlu0 %3694, %v3578
    %v3696 = vpop.permute.xlu0 %3695
    %3697 = vset.pattern.permute.xlu0 0
    %3698 = vperm.xlu0 %3697, %v3579
    %v3699 = vpop.permute.xlu0 %3698
    %3700 = vset.pattern.permute.xlu0 0
    %3701 = vperm.xlu0 %3700, %v3580
    %v3702 = vpop.permute.xlu0 %3701
    %3703 = vset.pattern.permute.xlu0 0
    %3704 = vperm.xlu0 %3703, %v3581
    %v3705 = vpop.permute.xlu0 %3704
    %3706 = vset.pattern.permute.xlu0 0
    %3707 = vperm.xlu0 %3706, %v3582
    %v3708 = vpop.permute.xlu0 %3707
    %3709 = vset.pattern.permute.xlu0 0
    %3710 = vperm.xlu0 %3709, %v3583
    %v3711 = vpop.permute.xlu0 %3710
    %3712 = vset.pattern.permute.xlu0 0
    %3713 = vperm.xlu0 %3712, %v3584
    %v3714 = vpop.permute.xlu0 %3713
    %3715 = vset.pattern.permute.xlu0 0
    %3716 = vperm.xlu0 %3715, %v3585
    %v3717 = vpop.permute.xlu0 %3716
    %3718 = vset.pattern.permute.xlu0 0
    %3719 = vperm.xlu0 %3718, %v3586
    %v3720 = vpop.permute.xlu0 %3719
    %3721 = vset.pattern.permute.xlu0 0
    %3722 = vperm.xlu0 %3721, %v3587
    %v3723 = vpop.permute.xlu0 %3722
    %3724 = vset.pattern.permute.xlu0 0
    %3725 = vperm.xlu0 %3724, %v3588
    %v3726 = vpop.permute.xlu0 %3725
    %3727 = vset.pattern.permute.xlu0 0
    %3728 = vperm.xlu0 %3727, %v3589
    %v3729 = vpop.permute.xlu0 %3728
    %3730 = vset.pattern.permute.xlu0 0
    %3731 = vperm.xlu0 %3730, %v3590
    %v3732 = vpop.permute.xlu0 %3731
    %3733 = vset.pattern.permute.xlu0 0
    %3734 = vperm.xlu0 %3733, %v3591
    %v3735 = vpop.permute.xlu0 %3734
    %3736 = vset.pattern.permute.xlu0 0
    %3737 = vperm.xlu0 %3736, %v3592
    %v3738 = vpop.permute.xlu0 %3737
    %3739 = vset.pattern.permute.xlu0 0
    %3740 = vperm.xlu0 %3739, %v3593
    %v3741 = vpop.permute.xlu0 %3740
    %3742 = vset.pattern.permute.xlu0 0
    %3743 = vperm.xlu0 %3742, %v3594
    %v3744 = vpop.permute.xlu0 %3743
    %3745 = vset.pattern.permute.xlu0 0
    %3746 = vperm.xlu0 %3745, %v3595
    %v3747 = vpop.permute.xlu0 %3746
    %3748 = vset.pattern.permute.xlu0 0
    %3749 = vperm.xlu0 %3748, %v3596
    %v3750 = vpop.permute.xlu0 %3749
    %3751 = vset.pattern.permute.xlu0 0
    %3752 = vperm.xlu0 %3751, %v3597
    %v3753 = vpop.permute.xlu0 %3752
    %3754 = vset.pattern.permute.xlu0 0
    %3755 = vperm.xlu0 %3754, %v3598
    %v3756 = vpop.permute.xlu0 %3755
    %3757 = vset.pattern.permute.xlu0 0
    %3758 = vperm.xlu0 %3757, %v3599
    %v3759 = vpop.permute.xlu0 %3758
    %3760 = vset.pattern.permute.xlu0 0
    %3761 = vperm.xlu0 %3760, %v3600
    %v3762 = vpop.permute.xlu0 %3761
    %3763 = vset.pattern.permute.xlu0 0
    %3764 = vperm.xlu0 %3763, %v3601
    %v3765 = vpop.permute.xlu0 %3764
    %3766 = vset.pattern.permute.xlu0 0
    %3767 = vperm.xlu0 %3766, %v3602
    %v3768 = vpop.permute.xlu0 %3767
    %3769 = vset.pattern.permute.xlu0 0
    %3770 = vperm.xlu0 %3769, %v3603
    %v3771 = vpop.permute.xlu0 %3770
    %3772 = vset.pattern.permute.xlu0 0
    %3773 = vperm.xlu0 %3772, %v3604
    %v3774 = vpop.permute.xlu0 %3773
    %3775 = vset.pattern.permute.xlu0 0
    %3776 = vperm.xlu0 %3775, %v3605
    %v3777 = vpop.permute.xlu0 %3776
    %3778 = vset.pattern.permute.xlu0 0
    %3779 = vperm.xlu0 %3778, %v3606
    %v3780 = vpop.permute.xlu0 %3779
    %3781 = vset.pattern.permute.xlu0 0
    %3782 = vperm.xlu0 %3781, %v3607
    %v3783 = vpop.permute.xlu0 %3782
    %3784 = vset.pattern.permute.xlu0 0
    %3785 = vperm.xlu0 %3784, %v3608
    %v3786 = vpop.permute.xlu0 %3785
    %3787 = vset.pattern.permute.xlu0 0
    %3788 = vperm.xlu0 %3787, %v3609
    %v3789 = vpop.permute.xlu0 %3788
    %3790 = vset.pattern.permute.xlu0 0
    %3791 = vperm.xlu0 %3790, %v3610
    %v3792 = vpop.permute.xlu0 %3791
    %3793 = vset.pattern.permute.xlu0 0
    %3794 = vperm.xlu0 %3793, %v3611
    %v3795 = vpop.permute.xlu0 %3794
    %3796 = vset.pattern.permute.xlu0 0
    %3797 = vperm.xlu0 %3796, %v3612
    %v3798 = vpop.permute.xlu0 %3797
    %3799 = vset.pattern.permute.xlu0 0
    %3800 = vperm.xlu0 %3799, %v3613
    %v3801 = vpop.permute.xlu0 %3800
    %3802 = vset.pattern.permute.xlu0 0
    %3803 = vperm.xlu0 %3802, %v3614
    %v3804 = vpop.permute.xlu0 %3803
    %3805 = vset.pattern.permute.xlu0 0
    %3806 = vperm.xlu0 %3805, %v3615
    %v3807 = vpop.permute.xlu0 %3806
    %vm3808 = vcmp.eq.s32.totalorder %v3618, 1
    %vm3809 = vcmp.eq.s32.totalorder %v3621, 1
    %vm3810 = vcmp.eq.s32.totalorder %v3624, 1
    %vm3811 = vcmp.eq.s32.totalorder %v3627, 1
    %vm3812 = vcmp.eq.s32.totalorder %v3630, 1
    %vm3813 = vcmp.eq.s32.totalorder %v3633, 1
    %vm3814 = vcmp.eq.s32.totalorder %v3636, 1
    %vm3815 = vcmp.eq.s32.totalorder %v3639, 1
    %vm3816 = vcmp.eq.s32.totalorder %v3642, 1
    %vm3817 = vcmp.eq.s32.totalorder %v3645, 1
    %vm3818 = vcmp.eq.s32.totalorder %v3648, 1
    %vm3819 = vcmp.eq.s32.totalorder %v3651, 1
    %vm3820 = vcmp.eq.s32.totalorder %v3654, 1
    %vm3821 = vcmp.eq.s32.totalorder %v3657, 1
    %vm3822 = vcmp.eq.s32.totalorder %v3660, 1
    %vm3823 = vcmp.eq.s32.totalorder %v3663, 1
    %vm3824 = vcmp.eq.s32.totalorder %v3666, 1
    %vm3825 = vcmp.eq.s32.totalorder %v3669, 1
    %vm3826 = vcmp.eq.s32.totalorder %v3672, 1
    %vm3827 = vcmp.eq.s32.totalorder %v3675, 1
    %vm3828 = vcmp.eq.s32.totalorder %v3678, 1
    %vm3829 = vcmp.eq.s32.totalorder %v3681, 1
    %vm3830 = vcmp.eq.s32.totalorder %v3684, 1
    %vm3831 = vcmp.eq.s32.totalorder %v3687, 1
    %vm3832 = vcmp.eq.s32.totalorder %v3690, 1
    %vm3833 = vcmp.eq.s32.totalorder %v3693, 1
    %vm3834 = vcmp.eq.s32.totalorder %v3696, 1
    %vm3835 = vcmp.eq.s32.totalorder %v3699, 1
    %vm3836 = vcmp.eq.s32.totalorder %v3702, 1
    %vm3837 = vcmp.eq.s32.totalorder %v3705, 1
    %vm3838 = vcmp.eq.s32.totalorder %v3708, 1
    %vm3839 = vcmp.eq.s32.totalorder %v3711, 1
    %vm3840 = vcmp.eq.s32.totalorder %v3714, 1
    %vm3841 = vcmp.eq.s32.totalorder %v3717, 1
    %vm3842 = vcmp.eq.s32.totalorder %v3720, 1
    %vm3843 = vcmp.eq.s32.totalorder %v3723, 1
    %vm3844 = vcmp.eq.s32.totalorder %v3726, 1
    %vm3845 = vcmp.eq.s32.totalorder %v3729, 1
    %vm3846 = vcmp.eq.s32.totalorder %v3732, 1
    %vm3847 = vcmp.eq.s32.totalorder %v3735, 1
    %vm3848 = vcmp.eq.s32.totalorder %v3738, 1
    %vm3849 = vcmp.eq.s32.totalorder %v3741, 1
    %vm3850 = vcmp.eq.s32.totalorder %v3744, 1
    %vm3851 = vcmp.eq.s32.totalorder %v3747, 1
    %vm3852 = vcmp.eq.s32.totalorder %v3750, 1
    %vm3853 = vcmp.eq.s32.totalorder %v3753, 1
    %vm3854 = vcmp.eq.s32.totalorder %v3756, 1
    %vm3855 = vcmp.eq.s32.totalorder %v3759, 1
    %vm3856 = vcmp.eq.s32.totalorder %v3762, 1
    %vm3857 = vcmp.eq.s32.totalorder %v3765, 1
    %vm3858 = vcmp.eq.s32.totalorder %v3768, 1
    %vm3859 = vcmp.eq.s32.totalorder %v3771, 1
    %vm3860 = vcmp.eq.s32.totalorder %v3774, 1
    %vm3861 = vcmp.eq.s32.totalorder %v3777, 1
    %vm3862 = vcmp.eq.s32.totalorder %v3780, 1
    %vm3863 = vcmp.eq.s32.totalorder %v3783, 1
    %vm3864 = vcmp.eq.s32.totalorder %v3786, 1
    %vm3865 = vcmp.eq.s32.totalorder %v3789, 1
    %vm3866 = vcmp.eq.s32.totalorder %v3792, 1
    %vm3867 = vcmp.eq.s32.totalorder %v3795, 1
    %vm3868 = vcmp.eq.s32.totalorder %v3798, 1
    %vm3869 = vcmp.eq.s32.totalorder %v3801, 1
    %vm3870 = vcmp.eq.s32.totalorder %v3804, 1
    %vm3871 = vcmp.eq.s32.totalorder %v3807, 1
    %v3872 = vsel %vm3808, %v1632, 0.0
    %v3873 = vsel %vm3809, %v1633, 0.0
    %v3874 = vsel %vm3810, %v1634, 0.0
    %v3875 = vsel %vm3811, %v1635, 0.0
    %v3876 = vsel %vm3812, %v1636, 0.0
    %v3877 = vsel %vm3813, %v1637, 0.0
    %v3878 = vsel %vm3814, %v1638, 0.0
    %v3879 = vsel %vm3815, %v1639, 0.0
    %v3880 = vsel %vm3816, %v1640, 0.0
    %v3881 = vsel %vm3817, %v1641, 0.0
    %v3882 = vsel %vm3818, %v1642, 0.0
    %v3883 = vsel %vm3819, %v1643, 0.0
    %v3884 = vsel %vm3820, %v1644, 0.0
    %v3885 = vsel %vm3821, %v1645, 0.0
    %v3886 = vsel %vm3822, %v1646, 0.0
    %v3887 = vsel %vm3823, %v1647, 0.0
    %v3888 = vsel %vm3824, %v1648, 0.0
    %v3889 = vsel %vm3825, %v1649, 0.0
    %v3890 = vsel %vm3826, %v1650, 0.0
    %v3891 = vsel %vm3827, %v1651, 0.0
    %v3892 = vsel %vm3828, %v1652, 0.0
    %v3893 = vsel %vm3829, %v1653, 0.0
    %v3894 = vsel %vm3830, %v1654, 0.0
    %v3895 = vsel %vm3831, %v1655, 0.0
    %v3896 = vsel %vm3832, %v1656, 0.0
    %v3897 = vsel %vm3833, %v1657, 0.0
    %v3898 = vsel %vm3834, %v1658, 0.0
    %v3899 = vsel %vm3835, %v1659, 0.0
    %v3900 = vsel %vm3836, %v1660, 0.0
    %v3901 = vsel %vm3837, %v1661, 0.0
    %v3902 = vsel %vm3838, %v1662, 0.0
    %v3903 = vsel %vm3839, %v1663, 0.0
    %v3904 = vsel %vm3840, %v1664, 0.0
    %v3905 = vsel %vm3841, %v1665, 0.0
    %v3906 = vsel %vm3842, %v1666, 0.0
    %v3907 = vsel %vm3843, %v1667, 0.0
    %v3908 = vsel %vm3844, %v1668, 0.0
    %v3909 = vsel %vm3845, %v1669, 0.0
    %v3910 = vsel %vm3846, %v1670, 0.0
    %v3911 = vsel %vm3847, %v1671, 0.0
    %v3912 = vsel %vm3848, %v1672, 0.0
    %v3913 = vsel %vm3849, %v1673, 0.0
    %v3914 = vsel %vm3850, %v1674, 0.0
    %v3915 = vsel %vm3851, %v1675, 0.0
    %v3916 = vsel %vm3852, %v1676, 0.0
    %v3917 = vsel %vm3853, %v1677, 0.0
    %v3918 = vsel %vm3854, %v1678, 0.0
    %v3919 = vsel %vm3855, %v1679, 0.0
    %v3920 = vsel %vm3856, %v1680, 0.0
    %v3921 = vsel %vm3857, %v1681, 0.0
    %v3922 = vsel %vm3858, %v1682, 0.0
    %v3923 = vsel %vm3859, %v1683, 0.0
    %v3924 = vsel %vm3860, %v1684, 0.0
    %v3925 = vsel %vm3861, %v1685, 0.0
    %v3926 = vsel %vm3862, %v1686, 0.0
    %v3927 = vsel %vm3863, %v1687, 0.0
    %v3928 = vsel %vm3864, %v1688, 0.0
    %v3929 = vsel %vm3865, %v1689, 0.0
    %v3930 = vsel %vm3866, %v1690, 0.0
    %v3931 = vsel %vm3867, %v1691, 0.0
    %v3932 = vsel %vm3868, %v1692, 0.0
    %v3933 = vsel %vm3869, %v1693, 0.0
    %v3934 = vsel %vm3870, %v1630, 0.0
    %v3935 = vsel %vm3871, %v1631, 0.0
    %v3936 = vsel %vm3808, %v734, 0.0
    %v3937 = vsel %vm3809, %v735, 0.0
    %v3938 = vsel %vm3810, %v736, 0.0
    %v3939 = vsel %vm3811, %v737, 0.0
    %v3940 = vsel %vm3812, %v738, 0.0
    %v3941 = vsel %vm3813, %v739, 0.0
    %v3942 = vsel %vm3814, %v740, 0.0
    %v3943 = vsel %vm3815, %v741, 0.0
    %v3944 = vsel %vm3816, %v742, 0.0
    %v3945 = vsel %vm3817, %v743, 0.0
    %v3946 = vsel %vm3818, %v744, 0.0
    %v3947 = vsel %vm3819, %v745, 0.0
    %v3948 = vsel %vm3820, %v746, 0.0
    %v3949 = vsel %vm3821, %v747, 0.0
    %v3950 = vsel %vm3822, %v748, 0.0
    %v3951 = vsel %vm3823, %v749, 0.0
    %v3952 = vsel %vm3824, %v750, 0.0
    %v3953 = vsel %vm3825, %v751, 0.0
    %v3954 = vsel %vm3826, %v752, 0.0
    %v3955 = vsel %vm3827, %v753, 0.0
    %v3956 = vsel %vm3828, %v754, 0.0
    %v3957 = vsel %vm3829, %v755, 0.0
    %v3958 = vsel %vm3830, %v756, 0.0
    %v3959 = vsel %vm3831, %v757, 0.0
    %v3960 = vsel %vm3832, %v758, 0.0
    %v3961 = vsel %vm3833, %v759, 0.0
    %v3962 = vsel %vm3834, %v760, 0.0
    %v3963 = vsel %vm3835, %v761, 0.0
    %v3964 = vsel %vm3836, %v762, 0.0
    %v3965 = vsel %vm3837, %v763, 0.0
    %v3966 = vsel %vm3838, %v764, 0.0
    %v3967 = vsel %vm3839, %v765, 0.0
    %v3968 = vsel %vm3840, %v766, 0.0
    %v3969 = vsel %vm3841, %v767, 0.0
    %v3970 = vsel %vm3842, %v768, 0.0
    %v3971 = vsel %vm3843, %v769, 0.0
    %v3972 = vsel %vm3844, %v770, 0.0
    %v3973 = vsel %vm3845, %v771, 0.0
    %v3974 = vsel %vm3846, %v772, 0.0
    %v3975 = vsel %vm3847, %v773, 0.0
    %v3976 = vsel %vm3848, %v774, 0.0
    %v3977 = vsel %vm3849, %v775, 0.0
    %v3978 = vsel %vm3850, %v776, 0.0
    %v3979 = vsel %vm3851, %v777, 0.0
    %v3980 = vsel %vm3852, %v778, 0.0
    %v3981 = vsel %vm3853, %v779, 0.0
    %v3982 = vsel %vm3854, %v780, 0.0
    %v3983 = vsel %vm3855, %v781, 0.0
    %v3984 = vsel %vm3856, %v782, 0.0
    %v3985 = vsel %vm3857, %v783, 0.0
    %v3986 = vsel %vm3858, %v784, 0.0
    %v3987 = vsel %vm3859, %v785, 0.0
    %v3988 = vsel %vm3860, %v786, 0.0
    %v3989 = vsel %vm3861, %v787, 0.0
    %v3990 = vsel %vm3862, %v788, 0.0
    %v3991 = vsel %vm3863, %v789, 0.0
    %v3992 = vsel %vm3864, %v790, 0.0
    %v3993 = vsel %vm3865, %v791, 0.0
    %v3994 = vsel %vm3866, %v792, 0.0
    %v3995 = vsel %vm3867, %v793, 0.0
    %v3996 = vsel %vm3868, %v794, 0.0
    %v3997 = vsel %vm3869, %v795, 0.0
    %v3998 = vsel %vm3870, %v732, 0.0
    %v3999 = vsel %vm3871, %v733, 0.0
    %v4000 = vsel %vm3808, %v2466, 0.0
    %v4001 = vsel %vm3809, %v2467, 0.0
    %v4002 = vsel %vm3810, %v2468, 0.0
    %v4003 = vsel %vm3811, %v2469, 0.0
    %v4004 = vsel %vm3812, %v2470, 0.0
    %v4005 = vsel %vm3813, %v2471, 0.0
    %v4006 = vsel %vm3814, %v2472, 0.0
    %v4007 = vsel %vm3815, %v2473, 0.0
    %v4008 = vsel %vm3816, %v2474, 0.0
    %v4009 = vsel %vm3817, %v2475, 0.0
    %v4010 = vsel %vm3818, %v2476, 0.0
    %v4011 = vsel %vm3819, %v2477, 0.0
    %v4012 = vsel %vm3820, %v2478, 0.0
    %v4013 = vsel %vm3821, %v2479, 0.0
    %v4014 = vsel %vm3822, %v2480, 0.0
    %v4015 = vsel %vm3823, %v2481, 0.0
    %v4016 = vsel %vm3824, %v2482, 0.0
    %v4017 = vsel %vm3825, %v2483, 0.0
    %v4018 = vsel %vm3826, %v2484, 0.0
    %v4019 = vsel %vm3827, %v2485, 0.0
    %v4020 = vsel %vm3828, %v2486, 0.0
    %v4021 = vsel %vm3829, %v2487, 0.0
    %v4022 = vsel %vm3830, %v2488, 0.0
    %v4023 = vsel %vm3831, %v2489, 0.0
    %v4024 = vsel %vm3832, %v2490, 0.0
    %v4025 = vsel %vm3833, %v2491, 0.0
    %v4026 = vsel %vm3834, %v2492, 0.0
    %v4027 = vsel %vm3835, %v2493, 0.0
    %v4028 = vsel %vm3836, %v2494, 0.0
    %v4029 = vsel %vm3837, %v2495, 0.0
    %v4030 = vsel %vm3838, %v2496, 0.0
    %v4031 = vsel %vm3839, %v2497, 0.0
    %v4032 = vsel %vm3840, %v2498, 0.0
    %v4033 = vsel %vm3841, %v2499, 0.0
    %v4034 = vsel %vm3842, %v2500, 0.0
    %v4035 = vsel %vm3843, %v2501, 0.0
    %v4036 = vsel %vm3844, %v2502, 0.0
    %v4037 = vsel %vm3845, %v2503, 0.0
    %v4038 = vsel %vm3846, %v2504, 0.0
    %v4039 = vsel %vm3847, %v2505, 0.0
    %v4040 = vsel %vm3848, %v2506, 0.0
    %v4041 = vsel %vm3849, %v2507, 0.0
    %v4042 = vsel %vm3850, %v2508, 0.0
    %v4043 = vsel %vm3851, %v2509, 0.0
    %v4044 = vsel %vm3852, %v2510, 0.0
    %v4045 = vsel %vm3853, %v2511, 0.0
    %v4046 = vsel %vm3854, %v2512, 0.0
    %v4047 = vsel %vm3855, %v2513, 0.0
    %v4048 = vsel %vm3856, %v2514, 0.0
    %v4049 = vsel %vm3857, %v2515, 0.0
    %v4050 = vsel %vm3858, %v2516, 0.0
    %v4051 = vsel %vm3859, %v2517, 0.0
    %v4052 = vsel %vm3860, %v2518, 0.0
    %v4053 = vsel %vm3861, %v2519, 0.0
    %v4054 = vsel %vm3862, %v2520, 0.0
    %v4055 = vsel %vm3863, %v2521, 0.0
    %v4056 = vsel %vm3864, %v2522, 0.0
    %v4057 = vsel %vm3865, %v2523, 0.0
    %v4058 = vsel %vm3866, %v2524, 0.0
    %v4059 = vsel %vm3867, %v2525, 0.0
    %v4060 = vsel %vm3868, %v2526, 0.0
    %v4061 = vsel %vm3869, %v2527, 0.0
    %v4062 = vsel %vm3870, %v2464, 0.0
    %v4063 = vsel %vm3871, %v2465, 0.0
    %v4065 = vlaneseq
    %v4066 = vshrl.u32 %v4065, 7
    %v4067 = vsub.s32 0, %v4066
    %v4068 = vrot.slane %v171, %v4067
    %4070 = vmatprep.subr.mxu0 0.0
    %4071 = vmatpush1.msra.mxu0 %v187
    %4072 = vmatprep.subr.mxu0 0.0
    %4073 = vmatpush1.msra.mxu0 %v186
    %4074 = vmatprep.subr.mxu0 0.0
    %4075 = vmatpush1.msra.mxu0 %v185
    %4076 = vmatprep.subr.mxu0 0.0
    %4077 = vmatpush1.msra.mxu0 %v184
    %4078 = vmatprep.subr.mxu0 0.0
    %4079 = vmatpush1.msra.mxu0 %v183
    %4080 = vmatprep.subr.mxu0 0.0
    %4081 = vmatpush1.msra.mxu0 %v182
    %4082 = vmatprep.subr.mxu0 0.0
    %4083 = vmatpush1.msra.mxu0 %v181
    %4084 = vmatprep.subr.mxu0 0.0
    %4085 = vmatpush1.msra.mxu0 %v180
    %4086 = vmatprep.subr.mxu0 0.0
    %4087 = vmatpush1.msra.mxu0 %v179
    %4088 = vmatprep.subr.mxu0 0.0
    %4089 = vmatpush1.msra.mxu0 %v178
    %4090 = vmatprep.subr.mxu0 0.0
    %4091 = vmatpush1.msra.mxu0 %v177
    %4092 = vmatprep.subr.mxu0 0.0
    %4093 = vmatpush1.msra.mxu0 %v176
    %4094 = vmatprep.subr.mxu0 0.0
    %4095 = vmatpush1.msra.mxu0 %v175
    %4096 = vmatprep.subr.mxu0 0.0
    %4097 = vmatpush1.msra.mxu0 %v174
    %4098 = vmatprep.subr.mxu0 0.0
    %4099 = vmatpush1.msra.mxu0 %v173
    %4100 = vmatprep.subr.mxu0 0.0
    %4101 = vmatpush1.msra.mxu0 %v172
    %4102 = vmatprep.subr.mxu0 0.0
    %4103 = vmatpush2.msra.mxu0 %v203
    %4104 = vmatprep.subr.mxu0 0.0
    %4105 = vmatpush2.msra.mxu0 %v202
    %4106 = vmatprep.subr.mxu0 0.0
    %4107 = vmatpush2.msra.mxu0 %v201
    %4108 = vmatprep.subr.mxu0 0.0
    %4109 = vmatpush2.msra.mxu0 %v200
    %4110 = vmatprep.subr.mxu0 0.0
    %4111 = vmatpush2.msra.mxu0 %v199
    %4112 = vmatprep.subr.mxu0 0.0
    %4113 = vmatpush2.msra.mxu0 %v198
    %4114 = vmatprep.subr.mxu0 0.0
    %4115 = vmatpush2.msra.mxu0 %v197
    %4116 = vmatprep.subr.mxu0 0.0
    %4117 = vmatpush2.msra.mxu0 %v196
    %4118 = vmatprep.subr.mxu0 0.0
    %4119 = vmatpush2.msra.mxu0 %v195
    %4120 = vmatprep.subr.mxu0 0.0
    %4121 = vmatpush2.msra.mxu0 %v194
    %4122 = vmatprep.subr.mxu0 0.0
    %4123 = vmatpush2.msra.mxu0 %v193
    %4124 = vmatprep.subr.mxu0 0.0
    %4125 = vmatpush2.msra.mxu0 %v192
    %4126 = vmatprep.subr.mxu0 0.0
    %4127 = vmatpush2.msra.mxu0 %v191
    %4128 = vmatprep.subr.mxu0 0.0
    %4129 = vmatpush2.msra.mxu0 %v190
    %4130 = vmatprep.subr.mxu0 0.0
    %4131 = vmatpush2.msra.mxu0 %v189
    %4132 = vmatprep.subr.mxu0 0.0
    %4133 = vmatpush2.msra.mxu0 %v188
    %4134 = vmatprep.mubr.f32.mxu0 %v3168
    %4135 = vmatmul.mubr.f32.gmra.mxu0 %v3104
    %v4136 = vpop.f32.mrf.mxu0
    %v4137 = vadd.f32 %v4068, %v4136
    %v4138 = vpop.f32.mrf.mxu0
    %4139 = vmatprep.mubr.f32.mxu0 %v3169
    %4140 = vmatmul.mubr.f32.gmra.mxu0 %v3105
    %v4141 = vpop.f32.mrf.mxu0
    %v4142 = vadd.f32 %v4068, %v4141
    %v4143 = vpop.f32.mrf.mxu0
    %4144 = vmatprep.mubr.f32.mxu0 %v3170
    %4145 = vmatmul.mubr.f32.gmra.mxu0 %v3106
    %v4146 = vpop.f32.mrf.mxu0
    %v4147 = vadd.f32 %v4068, %v4146
    %v4148 = vpop.f32.mrf.mxu0
    %4149 = vmatprep.mubr.f32.mxu0 %v3171
    %4150 = vmatmul.mubr.f32.gmra.mxu0 %v3107
    %v4151 = vpop.f32.mrf.mxu0
    %v4152 = vadd.f32 %v4068, %v4151
    %v4153 = vpop.f32.mrf.mxu0
    %4154 = vmatprep.mubr.f32.mxu0 %v3172
    %4155 = vmatmul.mubr.f32.gmra.mxu0 %v3108
    %v4156 = vpop.f32.mrf.mxu0
    %v4157 = vadd.f32 %v4068, %v4156
    %v4158 = vpop.f32.mrf.mxu0
    %4159 = vmatprep.mubr.f32.mxu0 %v3173
    %4160 = vmatmul.mubr.f32.gmra.mxu0 %v3109
    %v4161 = vpop.f32.mrf.mxu0
    %v4162 = vadd.f32 %v4068, %v4161
    %v4163 = vpop.f32.mrf.mxu0
    %4164 = vmatprep.mubr.f32.mxu0 %v3174
    %4165 = vmatmul.mubr.f32.gmra.mxu0 %v3110
    %v4166 = vpop.f32.mrf.mxu0
    %v4167 = vadd.f32 %v4068, %v4166
    %v4168 = vpop.f32.mrf.mxu0
    %4169 = vmatprep.mubr.f32.mxu0 %v3175
    %4170 = vmatmul.mubr.f32.gmra.mxu0 %v3111
    %v4171 = vpop.f32.mrf.mxu0
    %v4172 = vadd.f32 %v4068, %v4171
    %v4173 = vpop.f32.mrf.mxu0
    %4174 = vmatprep.mubr.f32.mxu0 %v3176
    %4175 = vmatmul.mubr.f32.gmra.mxu0 %v3112
    %v4176 = vpop.f32.mrf.mxu0
    %v4177 = vadd.f32 %v4068, %v4176
    %v4178 = vpop.f32.mrf.mxu0
    %4179 = vmatprep.mubr.f32.mxu0 %v3177
    %4180 = vmatmul.mubr.f32.gmra.mxu0 %v3113
    %v4181 = vpop.f32.mrf.mxu0
    %v4182 = vadd.f32 %v4068, %v4181
    %v4183 = vpop.f32.mrf.mxu0
    %4184 = vmatprep.mubr.f32.mxu0 %v3178
    %4185 = vmatmul.mubr.f32.gmra.mxu0 %v3114
    %v4186 = vpop.f32.mrf.mxu0
    %v4187 = vadd.f32 %v4068, %v4186
    %v4188 = vpop.f32.mrf.mxu0
    %4189 = vmatprep.mubr.f32.mxu0 %v3179
    %4190 = vmatmul.mubr.f32.gmra.mxu0 %v3115
    %v4191 = vpop.f32.mrf.mxu0
    %v4192 = vadd.f32 %v4068, %v4191
    %v4193 = vpop.f32.mrf.mxu0
    %4194 = vmatprep.mubr.f32.mxu0 %v3180
    %4195 = vmatmul.mubr.f32.gmra.mxu0 %v3116
    %v4196 = vpop.f32.mrf.mxu0
    %v4197 = vadd.f32 %v4068, %v4196
    %v4198 = vpop.f32.mrf.mxu0
    %4199 = vmatprep.mubr.f32.mxu0 %v3181
    %4200 = vmatmul.mubr.f32.gmra.mxu0 %v3117
    %v4201 = vpop.f32.mrf.mxu0
    %v4202 = vadd.f32 %v4068, %v4201
    %v4203 = vpop.f32.mrf.mxu0
    %4204 = vmatprep.mubr.f32.mxu0 %v3182
    %4205 = vmatmul.mubr.f32.gmra.mxu0 %v3118
    %v4206 = vpop.f32.mrf.mxu0
    %v4207 = vadd.f32 %v4068, %v4206
    %v4208 = vpop.f32.mrf.mxu0
    %4209 = vmatprep.mubr.f32.mxu0 %v3183
    %4210 = vmatmul.mubr.f32.gmra.mxu0 %v3119
    %v4211 = vpop.f32.mrf.mxu0
    %v4212 = vadd.f32 %v4068, %v4211
    %v4213 = vpop.f32.mrf.mxu0
    %4214 = vmatprep.mubr.f32.mxu0 %v3184
    %4215 = vmatmul.mubr.f32.gmra.mxu0 %v3120
    %v4216 = vpop.f32.mrf.mxu0
    %v4217 = vadd.f32 %v4068, %v4216
    %v4218 = vpop.f32.mrf.mxu0
    %4219 = vmatprep.mubr.f32.mxu0 %v3185
    %4220 = vmatmul.mubr.f32.gmra.mxu0 %v3121
    %v4221 = vpop.f32.mrf.mxu0
    %v4222 = vadd.f32 %v4068, %v4221
    %v4223 = vpop.f32.mrf.mxu0
    %4224 = vmatprep.mubr.f32.mxu0 %v3186
    %4225 = vmatmul.mubr.f32.gmra.mxu0 %v3122
    %v4226 = vpop.f32.mrf.mxu0
    %v4227 = vadd.f32 %v4068, %v4226
    %v4228 = vpop.f32.mrf.mxu0
    %4229 = vmatprep.mubr.f32.mxu0 %v3187
    %4230 = vmatmul.mubr.f32.gmra.mxu0 %v3123
    %v4231 = vpop.f32.mrf.mxu0
    %v4232 = vadd.f32 %v4068, %v4231
    %v4233 = vpop.f32.mrf.mxu0
    %4234 = vmatprep.mubr.f32.mxu0 %v3188
    %4235 = vmatmul.mubr.f32.gmra.mxu0 %v3124
    %v4236 = vpop.f32.mrf.mxu0
    %v4237 = vadd.f32 %v4068, %v4236
    %v4238 = vpop.f32.mrf.mxu0
    %4239 = vmatprep.mubr.f32.mxu0 %v3189
    %4240 = vmatmul.mubr.f32.gmra.mxu0 %v3125
    %v4241 = vpop.f32.mrf.mxu0
    %v4242 = vadd.f32 %v4068, %v4241
    %v4243 = vpop.f32.mrf.mxu0
    %4244 = vmatprep.mubr.f32.mxu0 %v3190
    %4245 = vmatmul.mubr.f32.gmra.mxu0 %v3126
    %v4246 = vpop.f32.mrf.mxu0
    %v4247 = vadd.f32 %v4068, %v4246
    %v4248 = vpop.f32.mrf.mxu0
    %4249 = vmatprep.mubr.f32.mxu0 %v3191
    %4250 = vmatmul.mubr.f32.gmra.mxu0 %v3127
    %v4251 = vpop.f32.mrf.mxu0
    %v4252 = vadd.f32 %v4068, %v4251
    %v4253 = vpop.f32.mrf.mxu0
    %4254 = vmatprep.mubr.f32.mxu0 %v3192
    %4255 = vmatmul.mubr.f32.gmra.mxu0 %v3128
    %v4256 = vpop.f32.mrf.mxu0
    %v4257 = vadd.f32 %v4068, %v4256
    %v4258 = vpop.f32.mrf.mxu0
    %4259 = vmatprep.mubr.f32.mxu0 %v3193
    %4260 = vmatmul.mubr.f32.gmra.mxu0 %v3129
    %v4261 = vpop.f32.mrf.mxu0
    %v4262 = vadd.f32 %v4068, %v4261
    %v4263 = vpop.f32.mrf.mxu0
    %4264 = vmatprep.mubr.f32.mxu0 %v3194
    %4265 = vmatmul.mubr.f32.gmra.mxu0 %v3130
    %v4266 = vpop.f32.mrf.mxu0
    %v4267 = vadd.f32 %v4068, %v4266
    %v4268 = vpop.f32.mrf.mxu0
    %4269 = vmatprep.mubr.f32.mxu0 %v3195
    %4270 = vmatmul.mubr.f32.gmra.mxu0 %v3131
    %v4271 = vpop.f32.mrf.mxu0
    %v4272 = vadd.f32 %v4068, %v4271
    %v4273 = vpop.f32.mrf.mxu0
    %4274 = vmatprep.mubr.f32.mxu0 %v3196
    %4275 = vmatmul.mubr.f32.gmra.mxu0 %v3132
    %v4276 = vpop.f32.mrf.mxu0
    %v4277 = vadd.f32 %v4068, %v4276
    %v4278 = vpop.f32.mrf.mxu0
    %4279 = vmatprep.mubr.f32.mxu0 %v3197
    %4280 = vmatmul.mubr.f32.gmra.mxu0 %v3133
    %v4281 = vpop.f32.mrf.mxu0
    %v4282 = vadd.f32 %v4068, %v4281
    %v4283 = vpop.f32.mrf.mxu0
    %4284 = vmatprep.mubr.f32.mxu0 %v3198
    %4285 = vmatmul.mubr.f32.gmra.mxu0 %v3134
    %v4286 = vpop.f32.mrf.mxu0
    %v4287 = vadd.f32 %v4068, %v4286
    %v4288 = vpop.f32.mrf.mxu0
    %4289 = vmatprep.mubr.f32.mxu0 %v3199
    %4290 = vmatmul.mubr.f32.gmra.mxu0 %v3135
    %v4291 = vpop.f32.mrf.mxu0
    %v4292 = vadd.f32 %v4068, %v4291
    %v4293 = vpop.f32.mrf.mxu0
    %4294 = vmatprep.mubr.f32.mxu0 %v3200
    %4295 = vmatmul.mubr.f32.gmra.mxu0 %v3136
    %v4296 = vpop.f32.mrf.mxu0
    %v4297 = vadd.f32 %v4068, %v4296
    %v4298 = vpop.f32.mrf.mxu0
    %4299 = vmatprep.mubr.f32.mxu0 %v3201
    %4300 = vmatmul.mubr.f32.gmra.mxu0 %v3137
    %v4301 = vpop.f32.mrf.mxu0
    %v4302 = vadd.f32 %v4068, %v4301
    %v4303 = vpop.f32.mrf.mxu0
    %4304 = vmatprep.mubr.f32.mxu0 %v3202
    %4305 = vmatmul.mubr.f32.gmra.mxu0 %v3138
    %v4306 = vpop.f32.mrf.mxu0
    %v4307 = vadd.f32 %v4068, %v4306
    %v4308 = vpop.f32.mrf.mxu0
    %4309 = vmatprep.mubr.f32.mxu0 %v3203
    %4310 = vmatmul.mubr.f32.gmra.mxu0 %v3139
    %v4311 = vpop.f32.mrf.mxu0
    %v4312 = vadd.f32 %v4068, %v4311
    %v4313 = vpop.f32.mrf.mxu0
    %4314 = vmatprep.mubr.f32.mxu0 %v3204
    %4315 = vmatmul.mubr.f32.gmra.mxu0 %v3140
    %v4316 = vpop.f32.mrf.mxu0
    %v4317 = vadd.f32 %v4068, %v4316
    %v4318 = vpop.f32.mrf.mxu0
    %4319 = vmatprep.mubr.f32.mxu0 %v3205
    %4320 = vmatmul.mubr.f32.gmra.mxu0 %v3141
    %v4321 = vpop.f32.mrf.mxu0
    %v4322 = vadd.f32 %v4068, %v4321
    %v4323 = vpop.f32.mrf.mxu0
    %4324 = vmatprep.mubr.f32.mxu0 %v3206
    %4325 = vmatmul.mubr.f32.gmra.mxu0 %v3142
    %v4326 = vpop.f32.mrf.mxu0
    %v4327 = vadd.f32 %v4068, %v4326
    %v4328 = vpop.f32.mrf.mxu0
    %4329 = vmatprep.mubr.f32.mxu0 %v3207
    %4330 = vmatmul.mubr.f32.gmra.mxu0 %v3143
    %v4331 = vpop.f32.mrf.mxu0
    %v4332 = vadd.f32 %v4068, %v4331
    %v4333 = vpop.f32.mrf.mxu0
    %4334 = vmatprep.mubr.f32.mxu0 %v3208
    %4335 = vmatmul.mubr.f32.gmra.mxu0 %v3144
    %v4336 = vpop.f32.mrf.mxu0
    %v4337 = vadd.f32 %v4068, %v4336
    %v4338 = vpop.f32.mrf.mxu0
    %4339 = vmatprep.mubr.f32.mxu0 %v3209
    %4340 = vmatmul.mubr.f32.gmra.mxu0 %v3145
    %v4341 = vpop.f32.mrf.mxu0
    %v4342 = vadd.f32 %v4068, %v4341
    %v4343 = vpop.f32.mrf.mxu0
    %4344 = vmatprep.mubr.f32.mxu0 %v3210
    %4345 = vmatmul.mubr.f32.gmra.mxu0 %v3146
    %v4346 = vpop.f32.mrf.mxu0
    %v4347 = vadd.f32 %v4068, %v4346
    %v4348 = vpop.f32.mrf.mxu0
    %4349 = vmatprep.mubr.f32.mxu0 %v3211
    %4350 = vmatmul.mubr.f32.gmra.mxu0 %v3147
    %v4351 = vpop.f32.mrf.mxu0
    %v4352 = vadd.f32 %v4068, %v4351
    %v4353 = vpop.f32.mrf.mxu0
    %4354 = vmatprep.mubr.f32.mxu0 %v3212
    %4355 = vmatmul.mubr.f32.gmra.mxu0 %v3148
    %v4356 = vpop.f32.mrf.mxu0
    %v4357 = vadd.f32 %v4068, %v4356
    %v4358 = vpop.f32.mrf.mxu0
    %4359 = vmatprep.mubr.f32.mxu0 %v3213
    %4360 = vmatmul.mubr.f32.gmra.mxu0 %v3149
    %v4361 = vpop.f32.mrf.mxu0
    %v4362 = vadd.f32 %v4068, %v4361
    %v4363 = vpop.f32.mrf.mxu0
    %4364 = vmatprep.mubr.f32.mxu0 %v3214
    %4365 = vmatmul.mubr.f32.gmra.mxu0 %v3150
    %v4366 = vpop.f32.mrf.mxu0
    %v4367 = vadd.f32 %v4068, %v4366
    %v4368 = vpop.f32.mrf.mxu0
    %4369 = vmatprep.mubr.f32.mxu0 %v3215
    %4370 = vmatmul.mubr.f32.gmra.mxu0 %v3151
    %v4371 = vpop.f32.mrf.mxu0
    %v4372 = vadd.f32 %v4068, %v4371
    %v4373 = vpop.f32.mrf.mxu0
    %4374 = vmatprep.mubr.f32.mxu0 %v3216
    %4375 = vmatmul.mubr.f32.gmra.mxu0 %v3152
    %v4376 = vpop.f32.mrf.mxu0
    %v4377 = vadd.f32 %v4068, %v4376
    %v4378 = vpop.f32.mrf.mxu0
    %4379 = vmatprep.mubr.f32.mxu0 %v3217
    %4380 = vmatmul.mubr.f32.gmra.mxu0 %v3153
    %v4381 = vpop.f32.mrf.mxu0
    %v4382 = vadd.f32 %v4068, %v4381
    %v4383 = vpop.f32.mrf.mxu0
    %4384 = vmatprep.mubr.f32.mxu0 %v3218
    %4385 = vmatmul.mubr.f32.gmra.mxu0 %v3154
    %v4386 = vpop.f32.mrf.mxu0
    %v4387 = vadd.f32 %v4068, %v4386
    %v4388 = vpop.f32.mrf.mxu0
    %4389 = vmatprep.mubr.f32.mxu0 %v3219
    %4390 = vmatmul.mubr.f32.gmra.mxu0 %v3155
    %v4391 = vpop.f32.mrf.mxu0
    %v4392 = vadd.f32 %v4068, %v4391
    %v4393 = vpop.f32.mrf.mxu0
    %4394 = vmatprep.mubr.f32.mxu0 %v3220
    %4395 = vmatmul.mubr.f32.gmra.mxu0 %v3156
    %v4396 = vpop.f32.mrf.mxu0
    %v4397 = vadd.f32 %v4068, %v4396
    %v4398 = vpop.f32.mrf.mxu0
    %4399 = vmatprep.mubr.f32.mxu0 %v3221
    %4400 = vmatmul.mubr.f32.gmra.mxu0 %v3157
    %v4401 = vpop.f32.mrf.mxu0
    %v4402 = vadd.f32 %v4068, %v4401
    %v4403 = vpop.f32.mrf.mxu0
    %4404 = vmatprep.mubr.f32.mxu0 %v3222
    %4405 = vmatmul.mubr.f32.gmra.mxu0 %v3158
    %v4406 = vpop.f32.mrf.mxu0
    %v4407 = vadd.f32 %v4068, %v4406
    %v4408 = vpop.f32.mrf.mxu0
    %4409 = vmatprep.mubr.f32.mxu0 %v3223
    %4410 = vmatmul.mubr.f32.gmra.mxu0 %v3159
    %v4411 = vpop.f32.mrf.mxu0
    %v4412 = vadd.f32 %v4068, %v4411
    %v4413 = vpop.f32.mrf.mxu0
    %4414 = vmatprep.mubr.f32.mxu0 %v3224
    %4415 = vmatmul.mubr.f32.gmra.mxu0 %v3160
    %v4416 = vpop.f32.mrf.mxu0
    %v4417 = vadd.f32 %v4068, %v4416
    %v4418 = vpop.f32.mrf.mxu0
    %4419 = vmatprep.mubr.f32.mxu0 %v3225
    %4420 = vmatmul.mubr.f32.gmra.mxu0 %v3161
    %v4421 = vpop.f32.mrf.mxu0
    %v4422 = vadd.f32 %v4068, %v4421
    %v4423 = vpop.f32.mrf.mxu0
    %4424 = vmatprep.mubr.f32.mxu0 %v3226
    %4425 = vmatmul.mubr.f32.gmra.mxu0 %v3162
    %v4426 = vpop.f32.mrf.mxu0
    %v4427 = vadd.f32 %v4068, %v4426
    %v4428 = vpop.f32.mrf.mxu0
    %4429 = vmatprep.mubr.f32.mxu0 %v3227
    %4430 = vmatmul.mubr.f32.gmra.mxu0 %v3163
    %v4431 = vpop.f32.mrf.mxu0
    %v4432 = vadd.f32 %v4068, %v4431
    %v4433 = vpop.f32.mrf.mxu0
    %4434 = vmatprep.mubr.f32.mxu0 %v3228
    %4435 = vmatmul.mubr.f32.gmra.mxu0 %v3164
    %v4436 = vpop.f32.mrf.mxu0
    %v4437 = vadd.f32 %v4068, %v4436
    %v4438 = vpop.f32.mrf.mxu0
    %4439 = vmatprep.mubr.f32.mxu0 %v3229
    %4440 = vmatmul.mubr.f32.gmra.mxu0 %v3165
    %v4441 = vpop.f32.mrf.mxu0
    %v4442 = vadd.f32 %v4068, %v4441
    %v4443 = vpop.f32.mrf.mxu0
    %4444 = vmatprep.mubr.f32.mxu0 %v3230
    %4445 = vmatmul.mubr.f32.gmra.mxu0 %v3166
    %v4446 = vpop.f32.mrf.mxu0
    %v4447 = vadd.f32 %v4068, %v4446
    %v4448 = vpop.f32.mrf.mxu0
    %4449 = vmatprep.mubr.f32.mxu0 %v3231
    %4450 = vmatmul.mubr.f32.gmra.mxu0 %v3167
    %v4451 = vpop.f32.mrf.mxu0
    %v4452 = vadd.f32 %v4068, %v4451
    %v4453 = vpop.f32.mrf.mxu0
    %4454 = vdwg.mxu0
    %4455 = vmatprep.subr.mxu0 0.0
    %4456 = vmatpush1.msra.mxu0 %v219
    %4457 = vmatprep.subr.mxu0 0.0
    %4458 = vmatpush1.msra.mxu0 %v218
    %4459 = vmatprep.subr.mxu0 0.0
    %4460 = vmatpush1.msra.mxu0 %v217
    %4461 = vmatprep.subr.mxu0 0.0
    %4462 = vmatpush1.msra.mxu0 %v216
    %4463 = vmatprep.subr.mxu0 0.0
    %4464 = vmatpush1.msra.mxu0 %v215
    %4465 = vmatprep.subr.mxu0 0.0
    %4466 = vmatpush1.msra.mxu0 %v214
    %4467 = vmatprep.subr.mxu0 0.0
    %4468 = vmatpush1.msra.mxu0 %v213
    %4469 = vmatprep.subr.mxu0 0.0
    %4470 = vmatpush1.msra.mxu0 %v212
    %4471 = vmatprep.subr.mxu0 0.0
    %4472 = vmatpush1.msra.mxu0 %v211
    %4473 = vmatprep.subr.mxu0 0.0
    %4474 = vmatpush1.msra.mxu0 %v210
    %4475 = vmatprep.subr.mxu0 0.0
    %4476 = vmatpush1.msra.mxu0 %v209
    %4477 = vmatprep.subr.mxu0 0.0
    %4478 = vmatpush1.msra.mxu0 %v208
    %4479 = vmatprep.subr.mxu0 0.0
    %4480 = vmatpush1.msra.mxu0 %v207
    %4481 = vmatprep.subr.mxu0 0.0
    %4482 = vmatpush1.msra.mxu0 %v206
    %4483 = vmatprep.subr.mxu0 0.0
    %4484 = vmatpush1.msra.mxu0 %v205
    %4485 = vmatprep.subr.mxu0 0.0
    %4486 = vmatpush1.msra.mxu0 %v204
    %4487 = vmatprep.subr.mxu0 0.0
    %4488 = vmatpush2.msra.mxu0 %v235
    %4489 = vmatprep.subr.mxu0 0.0
    %4490 = vmatpush2.msra.mxu0 %v234
    %4491 = vmatprep.subr.mxu0 0.0
    %4492 = vmatpush2.msra.mxu0 %v233
    %4493 = vmatprep.subr.mxu0 0.0
    %4494 = vmatpush2.msra.mxu0 %v232
    %4495 = vmatprep.subr.mxu0 0.0
    %4496 = vmatpush2.msra.mxu0 %v231
    %4497 = vmatprep.subr.mxu0 0.0
    %4498 = vmatpush2.msra.mxu0 %v230
    %4499 = vmatprep.subr.mxu0 0.0
    %4500 = vmatpush2.msra.mxu0 %v229
    %4501 = vmatprep.subr.mxu0 0.0
    %4502 = vmatpush2.msra.mxu0 %v228
    %4503 = vmatprep.subr.mxu0 0.0
    %4504 = vmatpush2.msra.mxu0 %v227
    %4505 = vmatprep.subr.mxu0 0.0
    %4506 = vmatpush2.msra.mxu0 %v226
    %4507 = vmatprep.subr.mxu0 0.0
    %4508 = vmatpush2.msra.mxu0 %v225
    %4509 = vmatprep.subr.mxu0 0.0
    %4510 = vmatpush2.msra.mxu0 %v224
    %4511 = vmatprep.subr.mxu0 0.0
    %4512 = vmatpush2.msra.mxu0 %v223
    %4513 = vmatprep.subr.mxu0 0.0
    %4514 = vmatpush2.msra.mxu0 %v222
    %4515 = vmatprep.subr.mxu0 0.0
    %4516 = vmatpush2.msra.mxu0 %v221
    %4517 = vmatprep.subr.mxu0 0.0
    %4518 = vmatpush2.msra.mxu0 %v220
    %4519 = vmatprep.mubr.f32.mxu0 %v1630
    %4520 = vmatmul.mubr.f32.gmra.mxu0 %v3232
    %v4521 = vpop.f32.mrf.mxu0
    %v4522 = vadd.f32 %v4137, %v4521
    %v4523 = vpop.f32.mrf.mxu0
    %4524 = vmatprep.mubr.f32.mxu0 %v1631
    %4525 = vmatmul.mubr.f32.gmra.mxu0 %v3233
    %v4526 = vpop.f32.mrf.mxu0
    %v4527 = vadd.f32 %v4142, %v4526
    %v4528 = vpop.f32.mrf.mxu0
    %4529 = vmatprep.mubr.f32.mxu0 %v1632
    %4530 = vmatmul.mubr.f32.gmra.mxu0 %v3234
    %v4531 = vpop.f32.mrf.mxu0
    %v4532 = vadd.f32 %v4147, %v4531
    %v4533 = vpop.f32.mrf.mxu0
    %4534 = vmatprep.mubr.f32.mxu0 %v1633
    %4535 = vmatmul.mubr.f32.gmra.mxu0 %v3235
    %v4536 = vpop.f32.mrf.mxu0
    %v4537 = vadd.f32 %v4152, %v4536
    %v4538 = vpop.f32.mrf.mxu0
    %4539 = vmatprep.mubr.f32.mxu0 %v1634
    %4540 = vmatmul.mubr.f32.gmra.mxu0 %v3236
    %v4541 = vpop.f32.mrf.mxu0
    %v4542 = vadd.f32 %v4157, %v4541
    %v4543 = vpop.f32.mrf.mxu0
    %4544 = vmatprep.mubr.f32.mxu0 %v1635
    %4545 = vmatmul.mubr.f32.gmra.mxu0 %v3237
    %v4546 = vpop.f32.mrf.mxu0
    %v4547 = vadd.f32 %v4162, %v4546
    %v4548 = vpop.f32.mrf.mxu0
    %4549 = vmatprep.mubr.f32.mxu0 %v1636
    %4550 = vmatmul.mubr.f32.gmra.mxu0 %v3238
    %v4551 = vpop.f32.mrf.mxu0
    %v4552 = vadd.f32 %v4167, %v4551
    %v4553 = vpop.f32.mrf.mxu0
    %4554 = vmatprep.mubr.f32.mxu0 %v1637
    %4555 = vmatmul.mubr.f32.gmra.mxu0 %v3239
    %v4556 = vpop.f32.mrf.mxu0
    %v4557 = vadd.f32 %v4172, %v4556
    %v4558 = vpop.f32.mrf.mxu0
    %4559 = vmatprep.mubr.f32.mxu0 %v1638
    %4560 = vmatmul.mubr.f32.gmra.mxu0 %v3240
    %v4561 = vpop.f32.mrf.mxu0
    %v4562 = vadd.f32 %v4177, %v4561
    %v4563 = vpop.f32.mrf.mxu0
    %4564 = vmatprep.mubr.f32.mxu0 %v1639
    %4565 = vmatmul.mubr.f32.gmra.mxu0 %v3241
    %v4566 = vpop.f32.mrf.mxu0
    %v4567 = vadd.f32 %v4182, %v4566
    %v4568 = vpop.f32.mrf.mxu0
    %4569 = vmatprep.mubr.f32.mxu0 %v1640
    %4570 = vmatmul.mubr.f32.gmra.mxu0 %v3242
    %v4571 = vpop.f32.mrf.mxu0
    %v4572 = vadd.f32 %v4187, %v4571
    %v4573 = vpop.f32.mrf.mxu0
    %4574 = vmatprep.mubr.f32.mxu0 %v1641
    %4575 = vmatmul.mubr.f32.gmra.mxu0 %v3243
    %v4576 = vpop.f32.mrf.mxu0
    %v4577 = vadd.f32 %v4192, %v4576
    %v4578 = vpop.f32.mrf.mxu0
    %4579 = vmatprep.mubr.f32.mxu0 %v1642
    %4580 = vmatmul.mubr.f32.gmra.mxu0 %v3244
    %v4581 = vpop.f32.mrf.mxu0
    %v4582 = vadd.f32 %v4197, %v4581
    %v4583 = vpop.f32.mrf.mxu0
    %4584 = vmatprep.mubr.f32.mxu0 %v1643
    %4585 = vmatmul.mubr.f32.gmra.mxu0 %v3245
    %v4586 = vpop.f32.mrf.mxu0
    %v4587 = vadd.f32 %v4202, %v4586
    %v4588 = vpop.f32.mrf.mxu0
    %4589 = vmatprep.mubr.f32.mxu0 %v1644
    %4590 = vmatmul.mubr.f32.gmra.mxu0 %v3246
    %v4591 = vpop.f32.mrf.mxu0
    %v4592 = vadd.f32 %v4207, %v4591
    %v4593 = vpop.f32.mrf.mxu0
    %4594 = vmatprep.mubr.f32.mxu0 %v1645
    %4595 = vmatmul.mubr.f32.gmra.mxu0 %v3247
    %v4596 = vpop.f32.mrf.mxu0
    %v4597 = vadd.f32 %v4212, %v4596
    %v4598 = vpop.f32.mrf.mxu0
    %4599 = vmatprep.mubr.f32.mxu0 %v1646
    %4600 = vmatmul.mubr.f32.gmra.mxu0 %v3248
    %v4601 = vpop.f32.mrf.mxu0
    %v4602 = vadd.f32 %v4217, %v4601
    %v4603 = vpop.f32.mrf.mxu0
    %4604 = vmatprep.mubr.f32.mxu0 %v1647
    %4605 = vmatmul.mubr.f32.gmra.mxu0 %v3249
    %v4606 = vpop.f32.mrf.mxu0
    %v4607 = vadd.f32 %v4222, %v4606
    %v4608 = vpop.f32.mrf.mxu0
    %4609 = vmatprep.mubr.f32.mxu0 %v1648
    %4610 = vmatmul.mubr.f32.gmra.mxu0 %v3250
    %v4611 = vpop.f32.mrf.mxu0
    %v4612 = vadd.f32 %v4227, %v4611
    %v4613 = vpop.f32.mrf.mxu0
    %4614 = vmatprep.mubr.f32.mxu0 %v1649
    %4615 = vmatmul.mubr.f32.gmra.mxu0 %v3251
    %v4616 = vpop.f32.mrf.mxu0
    %v4617 = vadd.f32 %v4232, %v4616
    %v4618 = vpop.f32.mrf.mxu0
    %4619 = vmatprep.mubr.f32.mxu0 %v1650
    %4620 = vmatmul.mubr.f32.gmra.mxu0 %v3252
    %v4621 = vpop.f32.mrf.mxu0
    %v4622 = vadd.f32 %v4237, %v4621
    %v4623 = vpop.f32.mrf.mxu0
    %4624 = vmatprep.mubr.f32.mxu0 %v1651
    %4625 = vmatmul.mubr.f32.gmra.mxu0 %v3253
    %v4626 = vpop.f32.mrf.mxu0
    %v4627 = vadd.f32 %v4242, %v4626
    %v4628 = vpop.f32.mrf.mxu0
    %4629 = vmatprep.mubr.f32.mxu0 %v1652
    %4630 = vmatmul.mubr.f32.gmra.mxu0 %v3254
    %v4631 = vpop.f32.mrf.mxu0
    %v4632 = vadd.f32 %v4247, %v4631
    %v4633 = vpop.f32.mrf.mxu0
    %4634 = vmatprep.mubr.f32.mxu0 %v1653
    %4635 = vmatmul.mubr.f32.gmra.mxu0 %v3255
    %v4636 = vpop.f32.mrf.mxu0
    %v4637 = vadd.f32 %v4252, %v4636
    %v4638 = vpop.f32.mrf.mxu0
    %4639 = vmatprep.mubr.f32.mxu0 %v1654
    %4640 = vmatmul.mubr.f32.gmra.mxu0 %v3256
    %v4641 = vpop.f32.mrf.mxu0
    %v4642 = vadd.f32 %v4257, %v4641
    %v4643 = vpop.f32.mrf.mxu0
    %4644 = vmatprep.mubr.f32.mxu0 %v1655
    %4645 = vmatmul.mubr.f32.gmra.mxu0 %v3257
    %v4646 = vpop.f32.mrf.mxu0
    %v4647 = vadd.f32 %v4262, %v4646
    %v4648 = vpop.f32.mrf.mxu0
    %4649 = vmatprep.mubr.f32.mxu0 %v1656
    %4650 = vmatmul.mubr.f32.gmra.mxu0 %v3258
    %v4651 = vpop.f32.mrf.mxu0
    %v4652 = vadd.f32 %v4267, %v4651
    %v4653 = vpop.f32.mrf.mxu0
    %4654 = vmatprep.mubr.f32.mxu0 %v1657
    %4655 = vmatmul.mubr.f32.gmra.mxu0 %v3259
    %v4656 = vpop.f32.mrf.mxu0
    %v4657 = vadd.f32 %v4272, %v4656
    %v4658 = vpop.f32.mrf.mxu0
    %4659 = vmatprep.mubr.f32.mxu0 %v1658
    %4660 = vmatmul.mubr.f32.gmra.mxu0 %v3260
    %v4661 = vpop.f32.mrf.mxu0
    %v4662 = vadd.f32 %v4277, %v4661
    %v4663 = vpop.f32.mrf.mxu0
    %4664 = vmatprep.mubr.f32.mxu0 %v1659
    %4665 = vmatmul.mubr.f32.gmra.mxu0 %v3261
    %v4666 = vpop.f32.mrf.mxu0
    %v4667 = vadd.f32 %v4282, %v4666
    %v4668 = vpop.f32.mrf.mxu0
    %4669 = vmatprep.mubr.f32.mxu0 %v1660
    %4670 = vmatmul.mubr.f32.gmra.mxu0 %v3262
    %v4671 = vpop.f32.mrf.mxu0
    %v4672 = vadd.f32 %v4287, %v4671
    %v4673 = vpop.f32.mrf.mxu0
    %4674 = vmatprep.mubr.f32.mxu0 %v1661
    %4675 = vmatmul.mubr.f32.gmra.mxu0 %v3263
    %v4676 = vpop.f32.mrf.mxu0
    %v4677 = vadd.f32 %v4292, %v4676
    %v4678 = vpop.f32.mrf.mxu0
    %4679 = vmatprep.mubr.f32.mxu0 %v1662
    %4680 = vmatmul.mubr.f32.gmra.mxu0 %v3264
    %v4681 = vpop.f32.mrf.mxu0
    %v4682 = vadd.f32 %v4297, %v4681
    %v4683 = vpop.f32.mrf.mxu0
    %4684 = vmatprep.mubr.f32.mxu0 %v1663
    %4685 = vmatmul.mubr.f32.gmra.mxu0 %v3265
    %v4686 = vpop.f32.mrf.mxu0
    %v4687 = vadd.f32 %v4302, %v4686
    %v4688 = vpop.f32.mrf.mxu0
    %4689 = vmatprep.mubr.f32.mxu0 %v1664
    %4690 = vmatmul.mubr.f32.gmra.mxu0 %v3266
    %v4691 = vpop.f32.mrf.mxu0
    %v4692 = vadd.f32 %v4307, %v4691
    %v4693 = vpop.f32.mrf.mxu0
    %4694 = vmatprep.mubr.f32.mxu0 %v1665
    %4695 = vmatmul.mubr.f32.gmra.mxu0 %v3267
    %v4696 = vpop.f32.mrf.mxu0
    %v4697 = vadd.f32 %v4312, %v4696
    %v4698 = vpop.f32.mrf.mxu0
    %4699 = vmatprep.mubr.f32.mxu0 %v1666
    %4700 = vmatmul.mubr.f32.gmra.mxu0 %v3268
    %v4701 = vpop.f32.mrf.mxu0
    %v4702 = vadd.f32 %v4317, %v4701
    %v4703 = vpop.f32.mrf.mxu0
    %4704 = vmatprep.mubr.f32.mxu0 %v1667
    %4705 = vmatmul.mubr.f32.gmra.mxu0 %v3269
    %v4706 = vpop.f32.mrf.mxu0
    %v4707 = vadd.f32 %v4322, %v4706
    %v4708 = vpop.f32.mrf.mxu0
    %4709 = vmatprep.mubr.f32.mxu0 %v1668
    %4710 = vmatmul.mubr.f32.gmra.mxu0 %v3270
    %v4711 = vpop.f32.mrf.mxu0
    %v4712 = vadd.f32 %v4327, %v4711
    %v4713 = vpop.f32.mrf.mxu0
    %4714 = vmatprep.mubr.f32.mxu0 %v1669
    %4715 = vmatmul.mubr.f32.gmra.mxu0 %v3271
    %v4716 = vpop.f32.mrf.mxu0
    %v4717 = vadd.f32 %v4332, %v4716
    %v4718 = vpop.f32.mrf.mxu0
    %4719 = vmatprep.mubr.f32.mxu0 %v1670
    %4720 = vmatmul.mubr.f32.gmra.mxu0 %v3272
    %v4721 = vpop.f32.mrf.mxu0
    %v4722 = vadd.f32 %v4337, %v4721
    %v4723 = vpop.f32.mrf.mxu0
    %4724 = vmatprep.mubr.f32.mxu0 %v1671
    %4725 = vmatmul.mubr.f32.gmra.mxu0 %v3273
    %v4726 = vpop.f32.mrf.mxu0
    %v4727 = vadd.f32 %v4342, %v4726
    %v4728 = vpop.f32.mrf.mxu0
    %4729 = vmatprep.mubr.f32.mxu0 %v1672
    %4730 = vmatmul.mubr.f32.gmra.mxu0 %v3274
    %v4731 = vpop.f32.mrf.mxu0
    %v4732 = vadd.f32 %v4347, %v4731
    %v4733 = vpop.f32.mrf.mxu0
    %4734 = vmatprep.mubr.f32.mxu0 %v1673
    %4735 = vmatmul.mubr.f32.gmra.mxu0 %v3275
    %v4736 = vpop.f32.mrf.mxu0
    %v4737 = vadd.f32 %v4352, %v4736
    %v4738 = vpop.f32.mrf.mxu0
    %4739 = vmatprep.mubr.f32.mxu0 %v1674
    %4740 = vmatmul.mubr.f32.gmra.mxu0 %v3276
    %v4741 = vpop.f32.mrf.mxu0
    %v4742 = vadd.f32 %v4357, %v4741
    %v4743 = vpop.f32.mrf.mxu0
    %4744 = vmatprep.mubr.f32.mxu0 %v1675
    %4745 = vmatmul.mubr.f32.gmra.mxu0 %v3277
    %v4746 = vpop.f32.mrf.mxu0
    %v4747 = vadd.f32 %v4362, %v4746
    %v4748 = vpop.f32.mrf.mxu0
    %4749 = vmatprep.mubr.f32.mxu0 %v1676
    %4750 = vmatmul.mubr.f32.gmra.mxu0 %v3278
    %v4751 = vpop.f32.mrf.mxu0
    %v4752 = vadd.f32 %v4367, %v4751
    %v4753 = vpop.f32.mrf.mxu0
    %4754 = vmatprep.mubr.f32.mxu0 %v1677
    %4755 = vmatmul.mubr.f32.gmra.mxu0 %v3279
    %v4756 = vpop.f32.mrf.mxu0
    %v4757 = vadd.f32 %v4372, %v4756
    %v4758 = vpop.f32.mrf.mxu0
    %4759 = vmatprep.mubr.f32.mxu0 %v1678
    %4760 = vmatmul.mubr.f32.gmra.mxu0 %v3280
    %v4761 = vpop.f32.mrf.mxu0
    %v4762 = vadd.f32 %v4377, %v4761
    %v4763 = vpop.f32.mrf.mxu0
    %4764 = vmatprep.mubr.f32.mxu0 %v1679
    %4765 = vmatmul.mubr.f32.gmra.mxu0 %v3281
    %v4766 = vpop.f32.mrf.mxu0
    %v4767 = vadd.f32 %v4382, %v4766
    %v4768 = vpop.f32.mrf.mxu0
    %4769 = vmatprep.mubr.f32.mxu0 %v1680
    %4770 = vmatmul.mubr.f32.gmra.mxu0 %v3282
    %v4771 = vpop.f32.mrf.mxu0
    %v4772 = vadd.f32 %v4387, %v4771
    %v4773 = vpop.f32.mrf.mxu0
    %4774 = vmatprep.mubr.f32.mxu0 %v1681
    %4775 = vmatmul.mubr.f32.gmra.mxu0 %v3283
    %v4776 = vpop.f32.mrf.mxu0
    %v4777 = vadd.f32 %v4392, %v4776
    %v4778 = vpop.f32.mrf.mxu0
    %4779 = vmatprep.mubr.f32.mxu0 %v1682
    %4780 = vmatmul.mubr.f32.gmra.mxu0 %v3284
    %v4781 = vpop.f32.mrf.mxu0
    %v4782 = vadd.f32 %v4397, %v4781
    %v4783 = vpop.f32.mrf.mxu0
    %4784 = vmatprep.mubr.f32.mxu0 %v1683
    %4785 = vmatmul.mubr.f32.gmra.mxu0 %v3285
    %v4786 = vpop.f32.mrf.mxu0
    %v4787 = vadd.f32 %v4402, %v4786
    %v4788 = vpop.f32.mrf.mxu0
    %4789 = vmatprep.mubr.f32.mxu0 %v1684
    %4790 = vmatmul.mubr.f32.gmra.mxu0 %v3286
    %v4791 = vpop.f32.mrf.mxu0
    %v4792 = vadd.f32 %v4407, %v4791
    %v4793 = vpop.f32.mrf.mxu0
    %4794 = vmatprep.mubr.f32.mxu0 %v1685
    %4795 = vmatmul.mubr.f32.gmra.mxu0 %v3287
    %v4796 = vpop.f32.mrf.mxu0
    %v4797 = vadd.f32 %v4412, %v4796
    %v4798 = vpop.f32.mrf.mxu0
    %4799 = vmatprep.mubr.f32.mxu0 %v1686
    %4800 = vmatmul.mubr.f32.gmra.mxu0 %v3288
    %v4801 = vpop.f32.mrf.mxu0
    %v4802 = vadd.f32 %v4417, %v4801
    %v4803 = vpop.f32.mrf.mxu0
    %4804 = vmatprep.mubr.f32.mxu0 %v1687
    %4805 = vmatmul.mubr.f32.gmra.mxu0 %v3289
    %v4806 = vpop.f32.mrf.mxu0
    %v4807 = vadd.f32 %v4422, %v4806
    %v4808 = vpop.f32.mrf.mxu0
    %4809 = vmatprep.mubr.f32.mxu0 %v1688
    %4810 = vmatmul.mubr.f32.gmra.mxu0 %v3290
    %v4811 = vpop.f32.mrf.mxu0
    %v4812 = vadd.f32 %v4427, %v4811
    %v4813 = vpop.f32.mrf.mxu0
    %4814 = vmatprep.mubr.f32.mxu0 %v1689
    %4815 = vmatmul.mubr.f32.gmra.mxu0 %v3291
    %v4816 = vpop.f32.mrf.mxu0
    %v4817 = vadd.f32 %v4432, %v4816
    %v4818 = vpop.f32.mrf.mxu0
    %4819 = vmatprep.mubr.f32.mxu0 %v1690
    %4820 = vmatmul.mubr.f32.gmra.mxu0 %v3292
    %v4821 = vpop.f32.mrf.mxu0
    %v4822 = vadd.f32 %v4437, %v4821
    %v4823 = vpop.f32.mrf.mxu0
    %4824 = vmatprep.mubr.f32.mxu0 %v1691
    %4825 = vmatmul.mubr.f32.gmra.mxu0 %v3293
    %v4826 = vpop.f32.mrf.mxu0
    %v4827 = vadd.f32 %v4442, %v4826
    %v4828 = vpop.f32.mrf.mxu0
    %4829 = vmatprep.mubr.f32.mxu0 %v1692
    %4830 = vmatmul.mubr.f32.gmra.mxu0 %v3294
    %v4831 = vpop.f32.mrf.mxu0
    %v4832 = vadd.f32 %v4447, %v4831
    %v4833 = vpop.f32.mrf.mxu0
    %4834 = vmatprep.mubr.f32.mxu0 %v1693
    %4835 = vmatmul.mubr.f32.gmra.mxu0 %v3295
    %v4836 = vpop.f32.mrf.mxu0
    %v4837 = vadd.f32 %v4452, %v4836
    %v4838 = vpop.f32.mrf.mxu0
    %4839 = vdwg.mxu0
    %4840 = vmatprep.subr.mxu0 0.0
    %4841 = vmatpush1.msra.mxu0 %v251
    %4842 = vmatprep.subr.mxu0 0.0
    %4843 = vmatpush1.msra.mxu0 %v250
    %4844 = vmatprep.subr.mxu0 0.0
    %4845 = vmatpush1.msra.mxu0 %v249
    %4846 = vmatprep.subr.mxu0 0.0
    %4847 = vmatpush1.msra.mxu0 %v248
    %4848 = vmatprep.subr.mxu0 0.0
    %4849 = vmatpush1.msra.mxu0 %v247
    %4850 = vmatprep.subr.mxu0 0.0
    %4851 = vmatpush1.msra.mxu0 %v246
    %4852 = vmatprep.subr.mxu0 0.0
    %4853 = vmatpush1.msra.mxu0 %v245
    %4854 = vmatprep.subr.mxu0 0.0
    %4855 = vmatpush1.msra.mxu0 %v244
    %4856 = vmatprep.subr.mxu0 0.0
    %4857 = vmatpush1.msra.mxu0 %v243
    %4858 = vmatprep.subr.mxu0 0.0
    %4859 = vmatpush1.msra.mxu0 %v242
    %4860 = vmatprep.subr.mxu0 0.0
    %4861 = vmatpush1.msra.mxu0 %v241
    %4862 = vmatprep.subr.mxu0 0.0
    %4863 = vmatpush1.msra.mxu0 %v240
    %4864 = vmatprep.subr.mxu0 0.0
    %4865 = vmatpush1.msra.mxu0 %v239
    %4866 = vmatprep.subr.mxu0 0.0
    %4867 = vmatpush1.msra.mxu0 %v238
    %4868 = vmatprep.subr.mxu0 0.0
    %4869 = vmatpush1.msra.mxu0 %v237
    %4870 = vmatprep.subr.mxu0 0.0
    %4871 = vmatpush1.msra.mxu0 %v236
    %4872 = vmatprep.subr.mxu0 0.0
    %4873 = vmatpush2.msra.mxu0 %v267
    %4874 = vmatprep.subr.mxu0 0.0
    %4875 = vmatpush2.msra.mxu0 %v266
    %4876 = vmatprep.subr.mxu0 0.0
    %4877 = vmatpush2.msra.mxu0 %v265
    %4878 = vmatprep.subr.mxu0 0.0
    %4879 = vmatpush2.msra.mxu0 %v264
    %4880 = vmatprep.subr.mxu0 0.0
    %4881 = vmatpush2.msra.mxu0 %v263
    %4882 = vmatprep.subr.mxu0 0.0
    %4883 = vmatpush2.msra.mxu0 %v262
    %4884 = vmatprep.subr.mxu0 0.0
    %4885 = vmatpush2.msra.mxu0 %v261
    %4886 = vmatprep.subr.mxu0 0.0
    %4887 = vmatpush2.msra.mxu0 %v260
    %4888 = vmatprep.subr.mxu0 0.0
    %4889 = vmatpush2.msra.mxu0 %v259
    %4890 = vmatprep.subr.mxu0 0.0
    %4891 = vmatpush2.msra.mxu0 %v258
    %4892 = vmatprep.subr.mxu0 0.0
    %4893 = vmatpush2.msra.mxu0 %v257
    %4894 = vmatprep.subr.mxu0 0.0
    %4895 = vmatpush2.msra.mxu0 %v256
    %4896 = vmatprep.subr.mxu0 0.0
    %4897 = vmatpush2.msra.mxu0 %v255
    %4898 = vmatprep.subr.mxu0 0.0
    %4899 = vmatpush2.msra.mxu0 %v254
    %4900 = vmatprep.subr.mxu0 0.0
    %4901 = vmatpush2.msra.mxu0 %v253
    %4902 = vmatprep.subr.mxu0 0.0
    %4903 = vmatpush2.msra.mxu0 %v252
    %4904 = vmatprep.mubr.f32.mxu0 %v2464
    %4905 = vmatmul.mubr.f32.gmra.mxu0 %v732
    %v4906 = vpop.f32.mrf.mxu0
    %v4907 = vadd.f32 %v4522, %v4906
    %v4908 = vpop.f32.mrf.mxu0
    %4909 = vmatprep.mubr.f32.mxu0 %v2465
    %4910 = vmatmul.mubr.f32.gmra.mxu0 %v733
    %v4911 = vpop.f32.mrf.mxu0
    %v4912 = vadd.f32 %v4527, %v4911
    %v4913 = vpop.f32.mrf.mxu0
    %4914 = vmatprep.mubr.f32.mxu0 %v2466
    %4915 = vmatmul.mubr.f32.gmra.mxu0 %v734
    %v4916 = vpop.f32.mrf.mxu0
    %v4917 = vadd.f32 %v4532, %v4916
    %v4918 = vpop.f32.mrf.mxu0
    %4919 = vmatprep.mubr.f32.mxu0 %v2467
    %4920 = vmatmul.mubr.f32.gmra.mxu0 %v735
    %v4921 = vpop.f32.mrf.mxu0
    %v4922 = vadd.f32 %v4537, %v4921
    %v4923 = vpop.f32.mrf.mxu0
    %4924 = vmatprep.mubr.f32.mxu0 %v2468
    %4925 = vmatmul.mubr.f32.gmra.mxu0 %v736
    %v4926 = vpop.f32.mrf.mxu0
    %v4927 = vadd.f32 %v4542, %v4926
    %v4928 = vpop.f32.mrf.mxu0
    %4929 = vmatprep.mubr.f32.mxu0 %v2469
    %4930 = vmatmul.mubr.f32.gmra.mxu0 %v737
    %v4931 = vpop.f32.mrf.mxu0
    %v4932 = vadd.f32 %v4547, %v4931
    %v4933 = vpop.f32.mrf.mxu0
    %4934 = vmatprep.mubr.f32.mxu0 %v2470
    %4935 = vmatmul.mubr.f32.gmra.mxu0 %v738
    %v4936 = vpop.f32.mrf.mxu0
    %v4937 = vadd.f32 %v4552, %v4936
    %v4938 = vpop.f32.mrf.mxu0
    %4939 = vmatprep.mubr.f32.mxu0 %v2471
    %4940 = vmatmul.mubr.f32.gmra.mxu0 %v739
    %v4941 = vpop.f32.mrf.mxu0
    %v4942 = vadd.f32 %v4557, %v4941
    %v4943 = vpop.f32.mrf.mxu0
    %4944 = vmatprep.mubr.f32.mxu0 %v2472
    %4945 = vmatmul.mubr.f32.gmra.mxu0 %v740
    %v4946 = vpop.f32.mrf.mxu0
    %v4947 = vadd.f32 %v4562, %v4946
    %v4948 = vpop.f32.mrf.mxu0
    %4949 = vmatprep.mubr.f32.mxu0 %v2473
    %4950 = vmatmul.mubr.f32.gmra.mxu0 %v741
    %v4951 = vpop.f32.mrf.mxu0
    %v4952 = vadd.f32 %v4567, %v4951
    %v4953 = vpop.f32.mrf.mxu0
    %4954 = vmatprep.mubr.f32.mxu0 %v2474
    %4955 = vmatmul.mubr.f32.gmra.mxu0 %v742
    %v4956 = vpop.f32.mrf.mxu0
    %v4957 = vadd.f32 %v4572, %v4956
    %v4958 = vpop.f32.mrf.mxu0
    %4959 = vmatprep.mubr.f32.mxu0 %v2475
    %4960 = vmatmul.mubr.f32.gmra.mxu0 %v743
    %v4961 = vpop.f32.mrf.mxu0
    %v4962 = vadd.f32 %v4577, %v4961
    %v4963 = vpop.f32.mrf.mxu0
    %4964 = vmatprep.mubr.f32.mxu0 %v2476
    %4965 = vmatmul.mubr.f32.gmra.mxu0 %v744
    %v4966 = vpop.f32.mrf.mxu0
    %v4967 = vadd.f32 %v4582, %v4966
    %v4968 = vpop.f32.mrf.mxu0
    %4969 = vmatprep.mubr.f32.mxu0 %v2477
    %4970 = vmatmul.mubr.f32.gmra.mxu0 %v745
    %v4971 = vpop.f32.mrf.mxu0
    %v4972 = vadd.f32 %v4587, %v4971
    %v4973 = vpop.f32.mrf.mxu0
    %4974 = vmatprep.mubr.f32.mxu0 %v2478
    %4975 = vmatmul.mubr.f32.gmra.mxu0 %v746
    %v4976 = vpop.f32.mrf.mxu0
    %v4977 = vadd.f32 %v4592, %v4976
    %v4978 = vpop.f32.mrf.mxu0
    %4979 = vmatprep.mubr.f32.mxu0 %v2479
    %4980 = vmatmul.mubr.f32.gmra.mxu0 %v747
    %v4981 = vpop.f32.mrf.mxu0
    %v4982 = vadd.f32 %v4597, %v4981
    %v4983 = vpop.f32.mrf.mxu0
    %4984 = vmatprep.mubr.f32.mxu0 %v2480
    %4985 = vmatmul.mubr.f32.gmra.mxu0 %v748
    %v4986 = vpop.f32.mrf.mxu0
    %v4987 = vadd.f32 %v4602, %v4986
    %v4988 = vpop.f32.mrf.mxu0
    %4989 = vmatprep.mubr.f32.mxu0 %v2481
    %4990 = vmatmul.mubr.f32.gmra.mxu0 %v749
    %v4991 = vpop.f32.mrf.mxu0
    %v4992 = vadd.f32 %v4607, %v4991
    %v4993 = vpop.f32.mrf.mxu0
    %4994 = vmatprep.mubr.f32.mxu0 %v2482
    %4995 = vmatmul.mubr.f32.gmra.mxu0 %v750
    %v4996 = vpop.f32.mrf.mxu0
    %v4997 = vadd.f32 %v4612, %v4996
    %v4998 = vpop.f32.mrf.mxu0
    %4999 = vmatprep.mubr.f32.mxu0 %v2483
    %5000 = vmatmul.mubr.f32.gmra.mxu0 %v751
    %v5001 = vpop.f32.mrf.mxu0
    %v5002 = vadd.f32 %v4617, %v5001
    %v5003 = vpop.f32.mrf.mxu0
    %5004 = vmatprep.mubr.f32.mxu0 %v2484
    %5005 = vmatmul.mubr.f32.gmra.mxu0 %v752
    %v5006 = vpop.f32.mrf.mxu0
    %v5007 = vadd.f32 %v4622, %v5006
    %v5008 = vpop.f32.mrf.mxu0
    %5009 = vmatprep.mubr.f32.mxu0 %v2485
    %5010 = vmatmul.mubr.f32.gmra.mxu0 %v753
    %v5011 = vpop.f32.mrf.mxu0
    %v5012 = vadd.f32 %v4627, %v5011
    %v5013 = vpop.f32.mrf.mxu0
    %5014 = vmatprep.mubr.f32.mxu0 %v2486
    %5015 = vmatmul.mubr.f32.gmra.mxu0 %v754
    %v5016 = vpop.f32.mrf.mxu0
    %v5017 = vadd.f32 %v4632, %v5016
    %v5018 = vpop.f32.mrf.mxu0
    %5019 = vmatprep.mubr.f32.mxu0 %v2487
    %5020 = vmatmul.mubr.f32.gmra.mxu0 %v755
    %v5021 = vpop.f32.mrf.mxu0
    %v5022 = vadd.f32 %v4637, %v5021
    %v5023 = vpop.f32.mrf.mxu0
    %5024 = vmatprep.mubr.f32.mxu0 %v2488
    %5025 = vmatmul.mubr.f32.gmra.mxu0 %v756
    %v5026 = vpop.f32.mrf.mxu0
    %v5027 = vadd.f32 %v4642, %v5026
    %v5028 = vpop.f32.mrf.mxu0
    %5029 = vmatprep.mubr.f32.mxu0 %v2489
    %5030 = vmatmul.mubr.f32.gmra.mxu0 %v757
    %v5031 = vpop.f32.mrf.mxu0
    %v5032 = vadd.f32 %v4647, %v5031
    %v5033 = vpop.f32.mrf.mxu0
    %5034 = vmatprep.mubr.f32.mxu0 %v2490
    %5035 = vmatmul.mubr.f32.gmra.mxu0 %v758
    %v5036 = vpop.f32.mrf.mxu0
    %v5037 = vadd.f32 %v4652, %v5036
    %v5038 = vpop.f32.mrf.mxu0
    %5039 = vmatprep.mubr.f32.mxu0 %v2491
    %5040 = vmatmul.mubr.f32.gmra.mxu0 %v759
    %v5041 = vpop.f32.mrf.mxu0
    %v5042 = vadd.f32 %v4657, %v5041
    %v5043 = vpop.f32.mrf.mxu0
    %5044 = vmatprep.mubr.f32.mxu0 %v2492
    %5045 = vmatmul.mubr.f32.gmra.mxu0 %v760
    %v5046 = vpop.f32.mrf.mxu0
    %v5047 = vadd.f32 %v4662, %v5046
    %v5048 = vpop.f32.mrf.mxu0
    %5049 = vmatprep.mubr.f32.mxu0 %v2493
    %5050 = vmatmul.mubr.f32.gmra.mxu0 %v761
    %v5051 = vpop.f32.mrf.mxu0
    %v5052 = vadd.f32 %v4667, %v5051
    %v5053 = vpop.f32.mrf.mxu0
    %5054 = vmatprep.mubr.f32.mxu0 %v2494
    %5055 = vmatmul.mubr.f32.gmra.mxu0 %v762
    %v5056 = vpop.f32.mrf.mxu0
    %v5057 = vadd.f32 %v4672, %v5056
    %v5058 = vpop.f32.mrf.mxu0
    %5059 = vmatprep.mubr.f32.mxu0 %v2495
    %5060 = vmatmul.mubr.f32.gmra.mxu0 %v763
    %v5061 = vpop.f32.mrf.mxu0
    %v5062 = vadd.f32 %v4677, %v5061
    %v5063 = vpop.f32.mrf.mxu0
    %5064 = vmatprep.mubr.f32.mxu0 %v2496
    %5065 = vmatmul.mubr.f32.gmra.mxu0 %v764
    %v5066 = vpop.f32.mrf.mxu0
    %v5067 = vadd.f32 %v4682, %v5066
    %v5068 = vpop.f32.mrf.mxu0
    %5069 = vmatprep.mubr.f32.mxu0 %v2497
    %5070 = vmatmul.mubr.f32.gmra.mxu0 %v765
    %v5071 = vpop.f32.mrf.mxu0
    %v5072 = vadd.f32 %v4687, %v5071
    %v5073 = vpop.f32.mrf.mxu0
    %5074 = vmatprep.mubr.f32.mxu0 %v2498
    %5075 = vmatmul.mubr.f32.gmra.mxu0 %v766
    %v5076 = vpop.f32.mrf.mxu0
    %v5077 = vadd.f32 %v4692, %v5076
    %v5078 = vpop.f32.mrf.mxu0
    %5079 = vmatprep.mubr.f32.mxu0 %v2499
    %5080 = vmatmul.mubr.f32.gmra.mxu0 %v767
    %v5081 = vpop.f32.mrf.mxu0
    %v5082 = vadd.f32 %v4697, %v5081
    %v5083 = vpop.f32.mrf.mxu0
    %5084 = vmatprep.mubr.f32.mxu0 %v2500
    %5085 = vmatmul.mubr.f32.gmra.mxu0 %v768
    %v5086 = vpop.f32.mrf.mxu0
    %v5087 = vadd.f32 %v4702, %v5086
    %v5088 = vpop.f32.mrf.mxu0
    %5089 = vmatprep.mubr.f32.mxu0 %v2501
    %5090 = vmatmul.mubr.f32.gmra.mxu0 %v769
    %v5091 = vpop.f32.mrf.mxu0
    %v5092 = vadd.f32 %v4707, %v5091
    %v5093 = vpop.f32.mrf.mxu0
    %5094 = vmatprep.mubr.f32.mxu0 %v2502
    %5095 = vmatmul.mubr.f32.gmra.mxu0 %v770
    %v5096 = vpop.f32.mrf.mxu0
    %v5097 = vadd.f32 %v4712, %v5096
    %v5098 = vpop.f32.mrf.mxu0
    %5099 = vmatprep.mubr.f32.mxu0 %v2503
    %5100 = vmatmul.mubr.f32.gmra.mxu0 %v771
    %v5101 = vpop.f32.mrf.mxu0
    %v5102 = vadd.f32 %v4717, %v5101
    %v5103 = vpop.f32.mrf.mxu0
    %5104 = vmatprep.mubr.f32.mxu0 %v2504
    %5105 = vmatmul.mubr.f32.gmra.mxu0 %v772
    %v5106 = vpop.f32.mrf.mxu0
    %v5107 = vadd.f32 %v4722, %v5106
    %v5108 = vpop.f32.mrf.mxu0
    %5109 = vmatprep.mubr.f32.mxu0 %v2505
    %5110 = vmatmul.mubr.f32.gmra.mxu0 %v773
    %v5111 = vpop.f32.mrf.mxu0
    %v5112 = vadd.f32 %v4727, %v5111
    %v5113 = vpop.f32.mrf.mxu0
    %5114 = vmatprep.mubr.f32.mxu0 %v2506
    %5115 = vmatmul.mubr.f32.gmra.mxu0 %v774
    %v5116 = vpop.f32.mrf.mxu0
    %v5117 = vadd.f32 %v4732, %v5116
    %v5118 = vpop.f32.mrf.mxu0
    %5119 = vmatprep.mubr.f32.mxu0 %v2507
    %5120 = vmatmul.mubr.f32.gmra.mxu0 %v775
    %v5121 = vpop.f32.mrf.mxu0
    %v5122 = vadd.f32 %v4737, %v5121
    %v5123 = vpop.f32.mrf.mxu0
    %5124 = vmatprep.mubr.f32.mxu0 %v2508
    %5125 = vmatmul.mubr.f32.gmra.mxu0 %v776
    %v5126 = vpop.f32.mrf.mxu0
    %v5127 = vadd.f32 %v4742, %v5126
    %v5128 = vpop.f32.mrf.mxu0
    %5129 = vmatprep.mubr.f32.mxu0 %v2509
    %5130 = vmatmul.mubr.f32.gmra.mxu0 %v777
    %v5131 = vpop.f32.mrf.mxu0
    %v5132 = vadd.f32 %v4747, %v5131
    %v5133 = vpop.f32.mrf.mxu0
    %5134 = vmatprep.mubr.f32.mxu0 %v2510
    %5135 = vmatmul.mubr.f32.gmra.mxu0 %v778
    %v5136 = vpop.f32.mrf.mxu0
    %v5137 = vadd.f32 %v4752, %v5136
    %v5138 = vpop.f32.mrf.mxu0
    %5139 = vmatprep.mubr.f32.mxu0 %v2511
    %5140 = vmatmul.mubr.f32.gmra.mxu0 %v779
    %v5141 = vpop.f32.mrf.mxu0
    %v5142 = vadd.f32 %v4757, %v5141
    %v5143 = vpop.f32.mrf.mxu0
    %5144 = vmatprep.mubr.f32.mxu0 %v2512
    %5145 = vmatmul.mubr.f32.gmra.mxu0 %v780
    %v5146 = vpop.f32.mrf.mxu0
    %v5147 = vadd.f32 %v4762, %v5146
    %v5148 = vpop.f32.mrf.mxu0
    %5149 = vmatprep.mubr.f32.mxu0 %v2513
    %5150 = vmatmul.mubr.f32.gmra.mxu0 %v781
    %v5151 = vpop.f32.mrf.mxu0
    %v5152 = vadd.f32 %v4767, %v5151
    %v5153 = vpop.f32.mrf.mxu0
    %5154 = vmatprep.mubr.f32.mxu0 %v2514
    %5155 = vmatmul.mubr.f32.gmra.mxu0 %v782
    %v5156 = vpop.f32.mrf.mxu0
    %v5157 = vadd.f32 %v4772, %v5156
    %v5158 = vpop.f32.mrf.mxu0
    %5159 = vmatprep.mubr.f32.mxu0 %v2515
    %5160 = vmatmul.mubr.f32.gmra.mxu0 %v783
    %v5161 = vpop.f32.mrf.mxu0
    %v5162 = vadd.f32 %v4777, %v5161
    %v5163 = vpop.f32.mrf.mxu0
    %5164 = vmatprep.mubr.f32.mxu0 %v2516
    %5165 = vmatmul.mubr.f32.gmra.mxu0 %v784
    %v5166 = vpop.f32.mrf.mxu0
    %v5167 = vadd.f32 %v4782, %v5166
    %v5168 = vpop.f32.mrf.mxu0
    %5169 = vmatprep.mubr.f32.mxu0 %v2517
    %5170 = vmatmul.mubr.f32.gmra.mxu0 %v785
    %v5171 = vpop.f32.mrf.mxu0
    %v5172 = vadd.f32 %v4787, %v5171
    %v5173 = vpop.f32.mrf.mxu0
    %5174 = vmatprep.mubr.f32.mxu0 %v2518
    %5175 = vmatmul.mubr.f32.gmra.mxu0 %v786
    %v5176 = vpop.f32.mrf.mxu0
    %v5177 = vadd.f32 %v4792, %v5176
    %v5178 = vpop.f32.mrf.mxu0
    %5179 = vmatprep.mubr.f32.mxu0 %v2519
    %5180 = vmatmul.mubr.f32.gmra.mxu0 %v787
    %v5181 = vpop.f32.mrf.mxu0
    %v5182 = vadd.f32 %v4797, %v5181
    %v5183 = vpop.f32.mrf.mxu0
    %5184 = vmatprep.mubr.f32.mxu0 %v2520
    %5185 = vmatmul.mubr.f32.gmra.mxu0 %v788
    %v5186 = vpop.f32.mrf.mxu0
    %v5187 = vadd.f32 %v4802, %v5186
    %v5188 = vpop.f32.mrf.mxu0
    %5189 = vmatprep.mubr.f32.mxu0 %v2521
    %5190 = vmatmul.mubr.f32.gmra.mxu0 %v789
    %v5191 = vpop.f32.mrf.mxu0
    %v5192 = vadd.f32 %v4807, %v5191
    %v5193 = vpop.f32.mrf.mxu0
    %5194 = vmatprep.mubr.f32.mxu0 %v2522
    %5195 = vmatmul.mubr.f32.gmra.mxu0 %v790
    %v5196 = vpop.f32.mrf.mxu0
    %v5197 = vadd.f32 %v4812, %v5196
    %v5198 = vpop.f32.mrf.mxu0
    %5199 = vmatprep.mubr.f32.mxu0 %v2523
    %5200 = vmatmul.mubr.f32.gmra.mxu0 %v791
    %v5201 = vpop.f32.mrf.mxu0
    %v5202 = vadd.f32 %v4817, %v5201
    %v5203 = vpop.f32.mrf.mxu0
    %5204 = vmatprep.mubr.f32.mxu0 %v2524
    %5205 = vmatmul.mubr.f32.gmra.mxu0 %v792
    %v5206 = vpop.f32.mrf.mxu0
    %v5207 = vadd.f32 %v4822, %v5206
    %v5208 = vpop.f32.mrf.mxu0
    %5209 = vmatprep.mubr.f32.mxu0 %v2525
    %5210 = vmatmul.mubr.f32.gmra.mxu0 %v793
    %v5211 = vpop.f32.mrf.mxu0
    %v5212 = vadd.f32 %v4827, %v5211
    %v5213 = vpop.f32.mrf.mxu0
    %5214 = vmatprep.mubr.f32.mxu0 %v2526
    %5215 = vmatmul.mubr.f32.gmra.mxu0 %v794
    %v5216 = vpop.f32.mrf.mxu0
    %v5217 = vadd.f32 %v4832, %v5216
    %v5218 = vpop.f32.mrf.mxu0
    %5219 = vmatprep.mubr.f32.mxu0 %v2527
    %5220 = vmatmul.mubr.f32.gmra.mxu0 %v795
    %v5221 = vpop.f32.mrf.mxu0
    %v5222 = vadd.f32 %v4837, %v5221
    %v5223 = vpop.f32.mrf.mxu0
    %5224 = vdwg.mxu0
    %5225 = vmatprep.subr.mxu0 0.0
    %5226 = vmatpush1.msra.mxu0 %v283
    %5227 = vmatprep.subr.mxu0 0.0
    %5228 = vmatpush1.msra.mxu0 %v282
    %5229 = vmatprep.subr.mxu0 0.0
    %5230 = vmatpush1.msra.mxu0 %v281
    %5231 = vmatprep.subr.mxu0 0.0
    %5232 = vmatpush1.msra.mxu0 %v280
    %5233 = vmatprep.subr.mxu0 0.0
    %5234 = vmatpush1.msra.mxu0 %v279
    %5235 = vmatprep.subr.mxu0 0.0
    %5236 = vmatpush1.msra.mxu0 %v278
    %5237 = vmatprep.subr.mxu0 0.0
    %5238 = vmatpush1.msra.mxu0 %v277
    %5239 = vmatprep.subr.mxu0 0.0
    %5240 = vmatpush1.msra.mxu0 %v276
    %5241 = vmatprep.subr.mxu0 0.0
    %5242 = vmatpush1.msra.mxu0 %v275
    %5243 = vmatprep.subr.mxu0 0.0
    %5244 = vmatpush1.msra.mxu0 %v274
    %5245 = vmatprep.subr.mxu0 0.0
    %5246 = vmatpush1.msra.mxu0 %v273
    %5247 = vmatprep.subr.mxu0 0.0
    %5248 = vmatpush1.msra.mxu0 %v272
    %5249 = vmatprep.subr.mxu0 0.0
    %5250 = vmatpush1.msra.mxu0 %v271
    %5251 = vmatprep.subr.mxu0 0.0
    %5252 = vmatpush1.msra.mxu0 %v270
    %5253 = vmatprep.subr.mxu0 0.0
    %5254 = vmatpush1.msra.mxu0 %v269
    %5255 = vmatprep.subr.mxu0 0.0
    %5256 = vmatpush1.msra.mxu0 %v268
    %5257 = vmatprep.subr.mxu0 0.0
    %5258 = vmatpush2.msra.mxu0 %v299
    %5259 = vmatprep.subr.mxu0 0.0
    %5260 = vmatpush2.msra.mxu0 %v298
    %5261 = vmatprep.subr.mxu0 0.0
    %5262 = vmatpush2.msra.mxu0 %v297
    %5263 = vmatprep.subr.mxu0 0.0
    %5264 = vmatpush2.msra.mxu0 %v296
    %5265 = vmatprep.subr.mxu0 0.0
    %5266 = vmatpush2.msra.mxu0 %v295
    %5267 = vmatprep.subr.mxu0 0.0
    %5268 = vmatpush2.msra.mxu0 %v294
    %5269 = vmatprep.subr.mxu0 0.0
    %5270 = vmatpush2.msra.mxu0 %v293
    %5271 = vmatprep.subr.mxu0 0.0
    %5272 = vmatpush2.msra.mxu0 %v292
    %5273 = vmatprep.subr.mxu0 0.0
    %5274 = vmatpush2.msra.mxu0 %v291
    %5275 = vmatprep.subr.mxu0 0.0
    %5276 = vmatpush2.msra.mxu0 %v290
    %5277 = vmatprep.subr.mxu0 0.0
    %5278 = vmatpush2.msra.mxu0 %v289
    %5279 = vmatprep.subr.mxu0 0.0
    %5280 = vmatpush2.msra.mxu0 %v288
    %5281 = vmatprep.subr.mxu0 0.0
    %5282 = vmatpush2.msra.mxu0 %v287
    %5283 = vmatprep.subr.mxu0 0.0
    %5284 = vmatpush2.msra.mxu0 %v286
    %5285 = vmatprep.subr.mxu0 0.0
    %5286 = vmatpush2.msra.mxu0 %v285
    %5287 = vmatprep.subr.mxu0 0.0
    %5288 = vmatpush2.msra.mxu0 %v284
    %5289 = vmatprep.mubr.f32.mxu0 %v3936
    %5290 = vmatmul.mubr.f32.gmra.mxu0 %v3872
    %v5291 = vpop.f32.mrf.mxu0
    %v5292 = vadd.f32 %v4907, %v5291
    %v5293 = vpop.f32.mrf.mxu0
    %5294 = vmatprep.mubr.f32.mxu0 %v3937
    %5295 = vmatmul.mubr.f32.gmra.mxu0 %v3873
    %v5296 = vpop.f32.mrf.mxu0
    %v5297 = vadd.f32 %v4912, %v5296
    %v5298 = vpop.f32.mrf.mxu0
    %5299 = vmatprep.mubr.f32.mxu0 %v3938
    %5300 = vmatmul.mubr.f32.gmra.mxu0 %v3874
    %v5301 = vpop.f32.mrf.mxu0
    %v5302 = vadd.f32 %v4917, %v5301
    %v5303 = vpop.f32.mrf.mxu0
    %5304 = vmatprep.mubr.f32.mxu0 %v3939
    %5305 = vmatmul.mubr.f32.gmra.mxu0 %v3875
    %v5306 = vpop.f32.mrf.mxu0
    %v5307 = vadd.f32 %v4922, %v5306
    %v5308 = vpop.f32.mrf.mxu0
    %5309 = vmatprep.mubr.f32.mxu0 %v3940
    %5310 = vmatmul.mubr.f32.gmra.mxu0 %v3876
    %v5311 = vpop.f32.mrf.mxu0
    %v5312 = vadd.f32 %v4927, %v5311
    %v5313 = vpop.f32.mrf.mxu0
    %5314 = vmatprep.mubr.f32.mxu0 %v3941
    %5315 = vmatmul.mubr.f32.gmra.mxu0 %v3877
    %v5316 = vpop.f32.mrf.mxu0
    %v5317 = vadd.f32 %v4932, %v5316
    %v5318 = vpop.f32.mrf.mxu0
    %5319 = vmatprep.mubr.f32.mxu0 %v3942
    %5320 = vmatmul.mubr.f32.gmra.mxu0 %v3878
    %v5321 = vpop.f32.mrf.mxu0
    %v5322 = vadd.f32 %v4937, %v5321
    %v5323 = vpop.f32.mrf.mxu0
    %5324 = vmatprep.mubr.f32.mxu0 %v3943
    %5325 = vmatmul.mubr.f32.gmra.mxu0 %v3879
    %v5326 = vpop.f32.mrf.mxu0
    %v5327 = vadd.f32 %v4942, %v5326
    %v5328 = vpop.f32.mrf.mxu0
    %5329 = vmatprep.mubr.f32.mxu0 %v3944
    %5330 = vmatmul.mubr.f32.gmra.mxu0 %v3880
    %v5331 = vpop.f32.mrf.mxu0
    %v5332 = vadd.f32 %v4947, %v5331
    %v5333 = vpop.f32.mrf.mxu0
    %5334 = vmatprep.mubr.f32.mxu0 %v3945
    %5335 = vmatmul.mubr.f32.gmra.mxu0 %v3881
    %v5336 = vpop.f32.mrf.mxu0
    %v5337 = vadd.f32 %v4952, %v5336
    %v5338 = vpop.f32.mrf.mxu0
    %5339 = vmatprep.mubr.f32.mxu0 %v3946
    %5340 = vmatmul.mubr.f32.gmra.mxu0 %v3882
    %v5341 = vpop.f32.mrf.mxu0
    %v5342 = vadd.f32 %v4957, %v5341
    %v5343 = vpop.f32.mrf.mxu0
    %5344 = vmatprep.mubr.f32.mxu0 %v3947
    %5345 = vmatmul.mubr.f32.gmra.mxu0 %v3883
    %v5346 = vpop.f32.mrf.mxu0
    %v5347 = vadd.f32 %v4962, %v5346
    %v5348 = vpop.f32.mrf.mxu0
    %5349 = vmatprep.mubr.f32.mxu0 %v3948
    %5350 = vmatmul.mubr.f32.gmra.mxu0 %v3884
    %v5351 = vpop.f32.mrf.mxu0
    %v5352 = vadd.f32 %v4967, %v5351
    %v5353 = vpop.f32.mrf.mxu0
    %5354 = vmatprep.mubr.f32.mxu0 %v3949
    %5355 = vmatmul.mubr.f32.gmra.mxu0 %v3885
    %v5356 = vpop.f32.mrf.mxu0
    %v5357 = vadd.f32 %v4972, %v5356
    %v5358 = vpop.f32.mrf.mxu0
    %5359 = vmatprep.mubr.f32.mxu0 %v3950
    %5360 = vmatmul.mubr.f32.gmra.mxu0 %v3886
    %v5361 = vpop.f32.mrf.mxu0
    %v5362 = vadd.f32 %v4977, %v5361
    %v5363 = vpop.f32.mrf.mxu0
    %5364 = vmatprep.mubr.f32.mxu0 %v3951
    %5365 = vmatmul.mubr.f32.gmra.mxu0 %v3887
    %v5366 = vpop.f32.mrf.mxu0
    %v5367 = vadd.f32 %v4982, %v5366
    %v5368 = vpop.f32.mrf.mxu0
    %5369 = vmatprep.mubr.f32.mxu0 %v3952
    %5370 = vmatmul.mubr.f32.gmra.mxu0 %v3888
    %v5371 = vpop.f32.mrf.mxu0
    %v5372 = vadd.f32 %v4987, %v5371
    %v5373 = vpop.f32.mrf.mxu0
    %5374 = vmatprep.mubr.f32.mxu0 %v3953
    %5375 = vmatmul.mubr.f32.gmra.mxu0 %v3889
    %v5376 = vpop.f32.mrf.mxu0
    %v5377 = vadd.f32 %v4992, %v5376
    %v5378 = vpop.f32.mrf.mxu0
    %5379 = vmatprep.mubr.f32.mxu0 %v3954
    %5380 = vmatmul.mubr.f32.gmra.mxu0 %v3890
    %v5381 = vpop.f32.mrf.mxu0
    %v5382 = vadd.f32 %v4997, %v5381
    %v5383 = vpop.f32.mrf.mxu0
    %5384 = vmatprep.mubr.f32.mxu0 %v3955
    %5385 = vmatmul.mubr.f32.gmra.mxu0 %v3891
    %v5386 = vpop.f32.mrf.mxu0
    %v5387 = vadd.f32 %v5002, %v5386
    %v5388 = vpop.f32.mrf.mxu0
    %5389 = vmatprep.mubr.f32.mxu0 %v3956
    %5390 = vmatmul.mubr.f32.gmra.mxu0 %v3892
    %v5391 = vpop.f32.mrf.mxu0
    %v5392 = vadd.f32 %v5007, %v5391
    %v5393 = vpop.f32.mrf.mxu0
    %5394 = vmatprep.mubr.f32.mxu0 %v3957
    %5395 = vmatmul.mubr.f32.gmra.mxu0 %v3893
    %v5396 = vpop.f32.mrf.mxu0
    %v5397 = vadd.f32 %v5012, %v5396
    %v5398 = vpop.f32.mrf.mxu0
    %5399 = vmatprep.mubr.f32.mxu0 %v3958
    %5400 = vmatmul.mubr.f32.gmra.mxu0 %v3894
    %v5401 = vpop.f32.mrf.mxu0
    %v5402 = vadd.f32 %v5017, %v5401
    %v5403 = vpop.f32.mrf.mxu0
    %5404 = vmatprep.mubr.f32.mxu0 %v3959
    %5405 = vmatmul.mubr.f32.gmra.mxu0 %v3895
    %v5406 = vpop.f32.mrf.mxu0
    %v5407 = vadd.f32 %v5022, %v5406
    %v5408 = vpop.f32.mrf.mxu0
    %5409 = vmatprep.mubr.f32.mxu0 %v3960
    %5410 = vmatmul.mubr.f32.gmra.mxu0 %v3896
    %v5411 = vpop.f32.mrf.mxu0
    %v5412 = vadd.f32 %v5027, %v5411
    %v5413 = vpop.f32.mrf.mxu0
    %5414 = vmatprep.mubr.f32.mxu0 %v3961
    %5415 = vmatmul.mubr.f32.gmra.mxu0 %v3897
    %v5416 = vpop.f32.mrf.mxu0
    %v5417 = vadd.f32 %v5032, %v5416
    %v5418 = vpop.f32.mrf.mxu0
    %5419 = vmatprep.mubr.f32.mxu0 %v3962
    %5420 = vmatmul.mubr.f32.gmra.mxu0 %v3898
    %v5421 = vpop.f32.mrf.mxu0
    %v5422 = vadd.f32 %v5037, %v5421
    %v5423 = vpop.f32.mrf.mxu0
    %5424 = vmatprep.mubr.f32.mxu0 %v3963
    %5425 = vmatmul.mubr.f32.gmra.mxu0 %v3899
    %v5426 = vpop.f32.mrf.mxu0
    %v5427 = vadd.f32 %v5042, %v5426
    %v5428 = vpop.f32.mrf.mxu0
    %5429 = vmatprep.mubr.f32.mxu0 %v3964
    %5430 = vmatmul.mubr.f32.gmra.mxu0 %v3900
    %v5431 = vpop.f32.mrf.mxu0
    %v5432 = vadd.f32 %v5047, %v5431
    %v5433 = vpop.f32.mrf.mxu0
    %5434 = vmatprep.mubr.f32.mxu0 %v3965
    %5435 = vmatmul.mubr.f32.gmra.mxu0 %v3901
    %v5436 = vpop.f32.mrf.mxu0
    %v5437 = vadd.f32 %v5052, %v5436
    %v5438 = vpop.f32.mrf.mxu0
    %5439 = vmatprep.mubr.f32.mxu0 %v3966
    %5440 = vmatmul.mubr.f32.gmra.mxu0 %v3902
    %v5441 = vpop.f32.mrf.mxu0
    %v5442 = vadd.f32 %v5057, %v5441
    %v5443 = vpop.f32.mrf.mxu0
    %5444 = vmatprep.mubr.f32.mxu0 %v3967
    %5445 = vmatmul.mubr.f32.gmra.mxu0 %v3903
    %v5446 = vpop.f32.mrf.mxu0
    %v5447 = vadd.f32 %v5062, %v5446
    %v5448 = vpop.f32.mrf.mxu0
    %5449 = vmatprep.mubr.f32.mxu0 %v3968
    %5450 = vmatmul.mubr.f32.gmra.mxu0 %v3904
    %v5451 = vpop.f32.mrf.mxu0
    %v5452 = vadd.f32 %v5067, %v5451
    %v5453 = vpop.f32.mrf.mxu0
    %5454 = vmatprep.mubr.f32.mxu0 %v3969
    %5455 = vmatmul.mubr.f32.gmra.mxu0 %v3905
    %v5456 = vpop.f32.mrf.mxu0
    %v5457 = vadd.f32 %v5072, %v5456
    %v5458 = vpop.f32.mrf.mxu0
    %5459 = vmatprep.mubr.f32.mxu0 %v3970
    %5460 = vmatmul.mubr.f32.gmra.mxu0 %v3906
    %v5461 = vpop.f32.mrf.mxu0
    %v5462 = vadd.f32 %v5077, %v5461
    %v5463 = vpop.f32.mrf.mxu0
    %5464 = vmatprep.mubr.f32.mxu0 %v3971
    %5465 = vmatmul.mubr.f32.gmra.mxu0 %v3907
    %v5466 = vpop.f32.mrf.mxu0
    %v5467 = vadd.f32 %v5082, %v5466
    %v5468 = vpop.f32.mrf.mxu0
    %5469 = vmatprep.mubr.f32.mxu0 %v3972
    %5470 = vmatmul.mubr.f32.gmra.mxu0 %v3908
    %v5471 = vpop.f32.mrf.mxu0
    %v5472 = vadd.f32 %v5087, %v5471
    %v5473 = vpop.f32.mrf.mxu0
    %5474 = vmatprep.mubr.f32.mxu0 %v3973
    %5475 = vmatmul.mubr.f32.gmra.mxu0 %v3909
    %v5476 = vpop.f32.mrf.mxu0
    %v5477 = vadd.f32 %v5092, %v5476
    %v5478 = vpop.f32.mrf.mxu0
    %5479 = vmatprep.mubr.f32.mxu0 %v3974
    %5480 = vmatmul.mubr.f32.gmra.mxu0 %v3910
    %v5481 = vpop.f32.mrf.mxu0
    %v5482 = vadd.f32 %v5097, %v5481
    %v5483 = vpop.f32.mrf.mxu0
    %5484 = vmatprep.mubr.f32.mxu0 %v3975
    %5485 = vmatmul.mubr.f32.gmra.mxu0 %v3911
    %v5486 = vpop.f32.mrf.mxu0
    %v5487 = vadd.f32 %v5102, %v5486
    %v5488 = vpop.f32.mrf.mxu0
    %5489 = vmatprep.mubr.f32.mxu0 %v3976
    %5490 = vmatmul.mubr.f32.gmra.mxu0 %v3912
    %v5491 = vpop.f32.mrf.mxu0
    %v5492 = vadd.f32 %v5107, %v5491
    %v5493 = vpop.f32.mrf.mxu0
    %5494 = vmatprep.mubr.f32.mxu0 %v3977
    %5495 = vmatmul.mubr.f32.gmra.mxu0 %v3913
    %v5496 = vpop.f32.mrf.mxu0
    %v5497 = vadd.f32 %v5112, %v5496
    %v5498 = vpop.f32.mrf.mxu0
    %5499 = vmatprep.mubr.f32.mxu0 %v3978
    %5500 = vmatmul.mubr.f32.gmra.mxu0 %v3914
    %v5501 = vpop.f32.mrf.mxu0
    %v5502 = vadd.f32 %v5117, %v5501
    %v5503 = vpop.f32.mrf.mxu0
    %5504 = vmatprep.mubr.f32.mxu0 %v3979
    %5505 = vmatmul.mubr.f32.gmra.mxu0 %v3915
    %v5506 = vpop.f32.mrf.mxu0
    %v5507 = vadd.f32 %v5122, %v5506
    %v5508 = vpop.f32.mrf.mxu0
    %5509 = vmatprep.mubr.f32.mxu0 %v3980
    %5510 = vmatmul.mubr.f32.gmra.mxu0 %v3916
    %v5511 = vpop.f32.mrf.mxu0
    %v5512 = vadd.f32 %v5127, %v5511
    %v5513 = vpop.f32.mrf.mxu0
    %5514 = vmatprep.mubr.f32.mxu0 %v3981
    %5515 = vmatmul.mubr.f32.gmra.mxu0 %v3917
    %v5516 = vpop.f32.mrf.mxu0
    %v5517 = vadd.f32 %v5132, %v5516
    %v5518 = vpop.f32.mrf.mxu0
    %5519 = vmatprep.mubr.f32.mxu0 %v3982
    %5520 = vmatmul.mubr.f32.gmra.mxu0 %v3918
    %v5521 = vpop.f32.mrf.mxu0
    %v5522 = vadd.f32 %v5137, %v5521
    %v5523 = vpop.f32.mrf.mxu0
    %5524 = vmatprep.mubr.f32.mxu0 %v3983
    %5525 = vmatmul.mubr.f32.gmra.mxu0 %v3919
    %v5526 = vpop.f32.mrf.mxu0
    %v5527 = vadd.f32 %v5142, %v5526
    %v5528 = vpop.f32.mrf.mxu0
    %5529 = vmatprep.mubr.f32.mxu0 %v3984
    %5530 = vmatmul.mubr.f32.gmra.mxu0 %v3920
    %v5531 = vpop.f32.mrf.mxu0
    %v5532 = vadd.f32 %v5147, %v5531
    %v5533 = vpop.f32.mrf.mxu0
    %5534 = vmatprep.mubr.f32.mxu0 %v3985
    %5535 = vmatmul.mubr.f32.gmra.mxu0 %v3921
    %v5536 = vpop.f32.mrf.mxu0
    %v5537 = vadd.f32 %v5152, %v5536
    %v5538 = vpop.f32.mrf.mxu0
    %5539 = vmatprep.mubr.f32.mxu0 %v3986
    %5540 = vmatmul.mubr.f32.gmra.mxu0 %v3922
    %v5541 = vpop.f32.mrf.mxu0
    %v5542 = vadd.f32 %v5157, %v5541
    %v5543 = vpop.f32.mrf.mxu0
    %5544 = vmatprep.mubr.f32.mxu0 %v3987
    %5545 = vmatmul.mubr.f32.gmra.mxu0 %v3923
    %v5546 = vpop.f32.mrf.mxu0
    %v5547 = vadd.f32 %v5162, %v5546
    %v5548 = vpop.f32.mrf.mxu0
    %5549 = vmatprep.mubr.f32.mxu0 %v3988
    %5550 = vmatmul.mubr.f32.gmra.mxu0 %v3924
    %v5551 = vpop.f32.mrf.mxu0
    %v5552 = vadd.f32 %v5167, %v5551
    %v5553 = vpop.f32.mrf.mxu0
    %5554 = vmatprep.mubr.f32.mxu0 %v3989
    %5555 = vmatmul.mubr.f32.gmra.mxu0 %v3925
    %v5556 = vpop.f32.mrf.mxu0
    %v5557 = vadd.f32 %v5172, %v5556
    %v5558 = vpop.f32.mrf.mxu0
    %5559 = vmatprep.mubr.f32.mxu0 %v3990
    %5560 = vmatmul.mubr.f32.gmra.mxu0 %v3926
    %v5561 = vpop.f32.mrf.mxu0
    %v5562 = vadd.f32 %v5177, %v5561
    %v5563 = vpop.f32.mrf.mxu0
    %5564 = vmatprep.mubr.f32.mxu0 %v3991
    %5565 = vmatmul.mubr.f32.gmra.mxu0 %v3927
    %v5566 = vpop.f32.mrf.mxu0
    %v5567 = vadd.f32 %v5182, %v5566
    %v5568 = vpop.f32.mrf.mxu0
    %5569 = vmatprep.mubr.f32.mxu0 %v3992
    %5570 = vmatmul.mubr.f32.gmra.mxu0 %v3928
    %v5571 = vpop.f32.mrf.mxu0
    %v5572 = vadd.f32 %v5187, %v5571
    %v5573 = vpop.f32.mrf.mxu0
    %5574 = vmatprep.mubr.f32.mxu0 %v3993
    %5575 = vmatmul.mubr.f32.gmra.mxu0 %v3929
    %v5576 = vpop.f32.mrf.mxu0
    %v5577 = vadd.f32 %v5192, %v5576
    %v5578 = vpop.f32.mrf.mxu0
    %5579 = vmatprep.mubr.f32.mxu0 %v3994
    %5580 = vmatmul.mubr.f32.gmra.mxu0 %v3930
    %v5581 = vpop.f32.mrf.mxu0
    %v5582 = vadd.f32 %v5197, %v5581
    %v5583 = vpop.f32.mrf.mxu0
    %5584 = vmatprep.mubr.f32.mxu0 %v3995
    %5585 = vmatmul.mubr.f32.gmra.mxu0 %v3931
    %v5586 = vpop.f32.mrf.mxu0
    %v5587 = vadd.f32 %v5202, %v5586
    %v5588 = vpop.f32.mrf.mxu0
    %5589 = vmatprep.mubr.f32.mxu0 %v3996
    %5590 = vmatmul.mubr.f32.gmra.mxu0 %v3932
    %v5591 = vpop.f32.mrf.mxu0
    %v5592 = vadd.f32 %v5207, %v5591
    %v5593 = vpop.f32.mrf.mxu0
    %5594 = vmatprep.mubr.f32.mxu0 %v3997
    %5595 = vmatmul.mubr.f32.gmra.mxu0 %v3933
    %v5596 = vpop.f32.mrf.mxu0
    %v5597 = vadd.f32 %v5212, %v5596
    %v5598 = vpop.f32.mrf.mxu0
    %5599 = vmatprep.mubr.f32.mxu0 %v3998
    %5600 = vmatmul.mubr.f32.gmra.mxu0 %v3934
    %v5601 = vpop.f32.mrf.mxu0
    %v5602 = vadd.f32 %v5217, %v5601
    %v5603 = vpop.f32.mrf.mxu0
    %5604 = vmatprep.mubr.f32.mxu0 %v3999
    %5605 = vmatmul.mubr.f32.gmra.mxu0 %v3935
    %v5606 = vpop.f32.mrf.mxu0
    %v5607 = vadd.f32 %v5222, %v5606
    %v5608 = vpop.f32.mrf.mxu0
    %5609 = vdwg.mxu0
    %5610 = vmatprep.subr.mxu0 0.0
    %5611 = vmatpush1.msra.mxu0 %v315
    %5612 = vmatprep.subr.mxu0 0.0
    %5613 = vmatpush1.msra.mxu0 %v314
    %5614 = vmatprep.subr.mxu0 0.0
    %5615 = vmatpush1.msra.mxu0 %v313
    %5616 = vmatprep.subr.mxu0 0.0
    %5617 = vmatpush1.msra.mxu0 %v312
    %5618 = vmatprep.subr.mxu0 0.0
    %5619 = vmatpush1.msra.mxu0 %v311
    %5620 = vmatprep.subr.mxu0 0.0
    %5621 = vmatpush1.msra.mxu0 %v310
    %5622 = vmatprep.subr.mxu0 0.0
    %5623 = vmatpush1.msra.mxu0 %v309
    %5624 = vmatprep.subr.mxu0 0.0
    %5625 = vmatpush1.msra.mxu0 %v308
    %5626 = vmatprep.subr.mxu0 0.0
    %5627 = vmatpush1.msra.mxu0 %v307
    %5628 = vmatprep.subr.mxu0 0.0
    %5629 = vmatpush1.msra.mxu0 %v306
    %5630 = vmatprep.subr.mxu0 0.0
    %5631 = vmatpush1.msra.mxu0 %v305
    %5632 = vmatprep.subr.mxu0 0.0
    %5633 = vmatpush1.msra.mxu0 %v304
    %5634 = vmatprep.subr.mxu0 0.0
    %5635 = vmatpush1.msra.mxu0 %v303
    %5636 = vmatprep.subr.mxu0 0.0
    %5637 = vmatpush1.msra.mxu0 %v302
    %5638 = vmatprep.subr.mxu0 0.0
    %5639 = vmatpush1.msra.mxu0 %v301
    %5640 = vmatprep.subr.mxu0 0.0
    %5641 = vmatpush1.msra.mxu0 %v300
    %5642 = vmatprep.subr.mxu0 0.0
    %5643 = vmatpush2.msra.mxu0 0.0
    %5644 = vmatprep.subr.mxu0 0.0
    %5645 = vmatpush2.msra.mxu0 0.0
    %5646 = vmatprep.subr.mxu0 0.0
    %5647 = vmatpush2.msra.mxu0 0.0
    %5648 = vmatprep.subr.mxu0 0.0
    %5649 = vmatpush2.msra.mxu0 0.0
    %5650 = vmatprep.subr.mxu0 0.0
    %5651 = vmatpush2.msra.mxu0 0.0
    %5652 = vmatprep.subr.mxu0 0.0
    %5653 = vmatpush2.msra.mxu0 0.0
    %5654 = vmatprep.subr.mxu0 0.0
    %5655 = vmatpush2.msra.mxu0 0.0
    %5656 = vmatprep.subr.mxu0 0.0
    %5657 = vmatpush2.msra.mxu0 0.0
    %5658 = vmatprep.subr.mxu0 0.0
    %5659 = vmatpush2.msra.mxu0 0.0
    %5660 = vmatprep.subr.mxu0 0.0
    %5661 = vmatpush2.msra.mxu0 0.0
    %5662 = vmatprep.subr.mxu0 0.0
    %5663 = vmatpush2.msra.mxu0 0.0
    %5664 = vmatprep.subr.mxu0 0.0
    %5665 = vmatpush2.msra.mxu0 0.0
    %5666 = vmatprep.subr.mxu0 0.0
    %5667 = vmatpush2.msra.mxu0 0.0
    %5668 = vmatprep.subr.mxu0 0.0
    %5669 = vmatpush2.msra.mxu0 0.0
    %5670 = vmatprep.subr.mxu0 0.0
    %5671 = vmatpush2.msra.mxu0 0.0
    %5672 = vmatprep.subr.mxu0 0.0
    %5673 = vmatpush2.msra.mxu0 0.0
    %5674 = vmatprep.mubr.f32.mxu0 0.0
    %5675 = vmatmul.mubr.f32.gmra.mxu0 %v4000
    %v5676 = vpop.f32.mrf.mxu0
    %v5677 = vadd.f32 %v5292, %v5676
    %v5678 = vpop.f32.mrf.mxu0
    %5679 = vmatprep.mubr.f32.mxu0 0.0
    %5680 = vmatmul.mubr.f32.gmra.mxu0 %v4001
    %v5681 = vpop.f32.mrf.mxu0
    %v5682 = vadd.f32 %v5297, %v5681
    %v5683 = vpop.f32.mrf.mxu0
    %5684 = vmatprep.mubr.f32.mxu0 0.0
    %5685 = vmatmul.mubr.f32.gmra.mxu0 %v4002
    %v5686 = vpop.f32.mrf.mxu0
    %v5687 = vadd.f32 %v5302, %v5686
    %v5688 = vpop.f32.mrf.mxu0
    %5689 = vmatprep.mubr.f32.mxu0 0.0
    %5690 = vmatmul.mubr.f32.gmra.mxu0 %v4003
    %v5691 = vpop.f32.mrf.mxu0
    %v5692 = vadd.f32 %v5307, %v5691
    %v5693 = vpop.f32.mrf.mxu0
    %5694 = vmatprep.mubr.f32.mxu0 0.0
    %5695 = vmatmul.mubr.f32.gmra.mxu0 %v4004
    %v5696 = vpop.f32.mrf.mxu0
    %v5697 = vadd.f32 %v5312, %v5696
    %v5698 = vpop.f32.mrf.mxu0
    %5699 = vmatprep.mubr.f32.mxu0 0.0
    %5700 = vmatmul.mubr.f32.gmra.mxu0 %v4005
    %v5701 = vpop.f32.mrf.mxu0
    %v5702 = vadd.f32 %v5317, %v5701
    %v5703 = vpop.f32.mrf.mxu0
    %5704 = vmatprep.mubr.f32.mxu0 0.0
    %5705 = vmatmul.mubr.f32.gmra.mxu0 %v4006
    %v5706 = vpop.f32.mrf.mxu0
    %v5707 = vadd.f32 %v5322, %v5706
    %v5708 = vpop.f32.mrf.mxu0
    %5709 = vmatprep.mubr.f32.mxu0 0.0
    %5710 = vmatmul.mubr.f32.gmra.mxu0 %v4007
    %v5711 = vpop.f32.mrf.mxu0
    %v5712 = vadd.f32 %v5327, %v5711
    %v5713 = vpop.f32.mrf.mxu0
    %5714 = vmatprep.mubr.f32.mxu0 0.0
    %5715 = vmatmul.mubr.f32.gmra.mxu0 %v4008
    %v5716 = vpop.f32.mrf.mxu0
    %v5717 = vadd.f32 %v5332, %v5716
    %v5718 = vpop.f32.mrf.mxu0
    %5719 = vmatprep.mubr.f32.mxu0 0.0
    %5720 = vmatmul.mubr.f32.gmra.mxu0 %v4009
    %v5721 = vpop.f32.mrf.mxu0
    %v5722 = vadd.f32 %v5337, %v5721
    %v5723 = vpop.f32.mrf.mxu0
    %5724 = vmatprep.mubr.f32.mxu0 0.0
    %5725 = vmatmul.mubr.f32.gmra.mxu0 %v4010
    %v5726 = vpop.f32.mrf.mxu0
    %v5727 = vadd.f32 %v5342, %v5726
    %v5728 = vpop.f32.mrf.mxu0
    %5729 = vmatprep.mubr.f32.mxu0 0.0
    %5730 = vmatmul.mubr.f32.gmra.mxu0 %v4011
    %v5731 = vpop.f32.mrf.mxu0
    %v5732 = vadd.f32 %v5347, %v5731
    %v5733 = vpop.f32.mrf.mxu0
    %5734 = vmatprep.mubr.f32.mxu0 0.0
    %5735 = vmatmul.mubr.f32.gmra.mxu0 %v4012
    %v5736 = vpop.f32.mrf.mxu0
    %v5737 = vadd.f32 %v5352, %v5736
    %v5738 = vpop.f32.mrf.mxu0
    %5739 = vmatprep.mubr.f32.mxu0 0.0
    %5740 = vmatmul.mubr.f32.gmra.mxu0 %v4013
    %v5741 = vpop.f32.mrf.mxu0
    %v5742 = vadd.f32 %v5357, %v5741
    %v5743 = vpop.f32.mrf.mxu0
    %5744 = vmatprep.mubr.f32.mxu0 0.0
    %5745 = vmatmul.mubr.f32.gmra.mxu0 %v4014
    %v5746 = vpop.f32.mrf.mxu0
    %v5747 = vadd.f32 %v5362, %v5746
    %v5748 = vpop.f32.mrf.mxu0
    %5749 = vmatprep.mubr.f32.mxu0 0.0
    %5750 = vmatmul.mubr.f32.gmra.mxu0 %v4015
    %v5751 = vpop.f32.mrf.mxu0
    %v5752 = vadd.f32 %v5367, %v5751
    %v5753 = vpop.f32.mrf.mxu0
    %5754 = vmatprep.mubr.f32.mxu0 0.0
    %5755 = vmatmul.mubr.f32.gmra.mxu0 %v4016
    %v5756 = vpop.f32.mrf.mxu0
    %v5757 = vadd.f32 %v5372, %v5756
    %v5758 = vpop.f32.mrf.mxu0
    %5759 = vmatprep.mubr.f32.mxu0 0.0
    %5760 = vmatmul.mubr.f32.gmra.mxu0 %v4017
    %v5761 = vpop.f32.mrf.mxu0
    %v5762 = vadd.f32 %v5377, %v5761
    %v5763 = vpop.f32.mrf.mxu0
    %5764 = vmatprep.mubr.f32.mxu0 0.0
    %5765 = vmatmul.mubr.f32.gmra.mxu0 %v4018
    %v5766 = vpop.f32.mrf.mxu0
    %v5767 = vadd.f32 %v5382, %v5766
    %v5768 = vpop.f32.mrf.mxu0
    %5769 = vmatprep.mubr.f32.mxu0 0.0
    %5770 = vmatmul.mubr.f32.gmra.mxu0 %v4019
    %v5771 = vpop.f32.mrf.mxu0
    %v5772 = vadd.f32 %v5387, %v5771
    %v5773 = vpop.f32.mrf.mxu0
    %5774 = vmatprep.mubr.f32.mxu0 0.0
    %5775 = vmatmul.mubr.f32.gmra.mxu0 %v4020
    %v5776 = vpop.f32.mrf.mxu0
    %v5777 = vadd.f32 %v5392, %v5776
    %v5778 = vpop.f32.mrf.mxu0
    %5779 = vmatprep.mubr.f32.mxu0 0.0
    %5780 = vmatmul.mubr.f32.gmra.mxu0 %v4021
    %v5781 = vpop.f32.mrf.mxu0
    %v5782 = vadd.f32 %v5397, %v5781
    %v5783 = vpop.f32.mrf.mxu0
    %5784 = vmatprep.mubr.f32.mxu0 0.0
    %5785 = vmatmul.mubr.f32.gmra.mxu0 %v4022
    %v5786 = vpop.f32.mrf.mxu0
    %v5787 = vadd.f32 %v5402, %v5786
    %v5788 = vpop.f32.mrf.mxu0
    %5789 = vmatprep.mubr.f32.mxu0 0.0
    %5790 = vmatmul.mubr.f32.gmra.mxu0 %v4023
    %v5791 = vpop.f32.mrf.mxu0
    %v5792 = vadd.f32 %v5407, %v5791
    %v5793 = vpop.f32.mrf.mxu0
    %5794 = vmatprep.mubr.f32.mxu0 0.0
    %5795 = vmatmul.mubr.f32.gmra.mxu0 %v4024
    %v5796 = vpop.f32.mrf.mxu0
    %v5797 = vadd.f32 %v5412, %v5796
    %v5798 = vpop.f32.mrf.mxu0
    %5799 = vmatprep.mubr.f32.mxu0 0.0
    %5800 = vmatmul.mubr.f32.gmra.mxu0 %v4025
    %v5801 = vpop.f32.mrf.mxu0
    %v5802 = vadd.f32 %v5417, %v5801
    %v5803 = vpop.f32.mrf.mxu0
    %5804 = vmatprep.mubr.f32.mxu0 0.0
    %5805 = vmatmul.mubr.f32.gmra.mxu0 %v4026
    %v5806 = vpop.f32.mrf.mxu0
    %v5807 = vadd.f32 %v5422, %v5806
    %v5808 = vpop.f32.mrf.mxu0
    %5809 = vmatprep.mubr.f32.mxu0 0.0
    %5810 = vmatmul.mubr.f32.gmra.mxu0 %v4027
    %v5811 = vpop.f32.mrf.mxu0
    %v5812 = vadd.f32 %v5427, %v5811
    %v5813 = vpop.f32.mrf.mxu0
    %5814 = vmatprep.mubr.f32.mxu0 0.0
    %5815 = vmatmul.mubr.f32.gmra.mxu0 %v4028
    %v5816 = vpop.f32.mrf.mxu0
    %v5817 = vadd.f32 %v5432, %v5816
    %v5818 = vpop.f32.mrf.mxu0
    %5819 = vmatprep.mubr.f32.mxu0 0.0
    %5820 = vmatmul.mubr.f32.gmra.mxu0 %v4029
    %v5821 = vpop.f32.mrf.mxu0
    %v5822 = vadd.f32 %v5437, %v5821
    %v5823 = vpop.f32.mrf.mxu0
    %5824 = vmatprep.mubr.f32.mxu0 0.0
    %5825 = vmatmul.mubr.f32.gmra.mxu0 %v4030
    %v5826 = vpop.f32.mrf.mxu0
    %v5827 = vadd.f32 %v5442, %v5826
    %v5828 = vpop.f32.mrf.mxu0
    %5829 = vmatprep.mubr.f32.mxu0 0.0
    %5830 = vmatmul.mubr.f32.gmra.mxu0 %v4031
    %v5831 = vpop.f32.mrf.mxu0
    %v5832 = vadd.f32 %v5447, %v5831
    %v5833 = vpop.f32.mrf.mxu0
    %5834 = vmatprep.mubr.f32.mxu0 0.0
    %5835 = vmatmul.mubr.f32.gmra.mxu0 %v4032
    %v5836 = vpop.f32.mrf.mxu0
    %v5837 = vadd.f32 %v5452, %v5836
    %v5838 = vpop.f32.mrf.mxu0
    %5839 = vmatprep.mubr.f32.mxu0 0.0
    %5840 = vmatmul.mubr.f32.gmra.mxu0 %v4033
    %v5841 = vpop.f32.mrf.mxu0
    %v5842 = vadd.f32 %v5457, %v5841
    %v5843 = vpop.f32.mrf.mxu0
    %5844 = vmatprep.mubr.f32.mxu0 0.0
    %5845 = vmatmul.mubr.f32.gmra.mxu0 %v4034
    %v5846 = vpop.f32.mrf.mxu0
    %v5847 = vadd.f32 %v5462, %v5846
    %v5848 = vpop.f32.mrf.mxu0
    %5849 = vmatprep.mubr.f32.mxu0 0.0
    %5850 = vmatmul.mubr.f32.gmra.mxu0 %v4035
    %v5851 = vpop.f32.mrf.mxu0
    %v5852 = vadd.f32 %v5467, %v5851
    %v5853 = vpop.f32.mrf.mxu0
    %5854 = vmatprep.mubr.f32.mxu0 0.0
    %5855 = vmatmul.mubr.f32.gmra.mxu0 %v4036
    %v5856 = vpop.f32.mrf.mxu0
    %v5857 = vadd.f32 %v5472, %v5856
    %v5858 = vpop.f32.mrf.mxu0
    %5859 = vmatprep.mubr.f32.mxu0 0.0
    %5860 = vmatmul.mubr.f32.gmra.mxu0 %v4037
    %v5861 = vpop.f32.mrf.mxu0
    %v5862 = vadd.f32 %v5477, %v5861
    %v5863 = vpop.f32.mrf.mxu0
    %5864 = vmatprep.mubr.f32.mxu0 0.0
    %5865 = vmatmul.mubr.f32.gmra.mxu0 %v4038
    %v5866 = vpop.f32.mrf.mxu0
    %v5867 = vadd.f32 %v5482, %v5866
    %v5868 = vpop.f32.mrf.mxu0
    %5869 = vmatprep.mubr.f32.mxu0 0.0
    %5870 = vmatmul.mubr.f32.gmra.mxu0 %v4039
    %v5871 = vpop.f32.mrf.mxu0
    %v5872 = vadd.f32 %v5487, %v5871
    %v5873 = vpop.f32.mrf.mxu0
    %5874 = vmatprep.mubr.f32.mxu0 0.0
    %5875 = vmatmul.mubr.f32.gmra.mxu0 %v4040
    %v5876 = vpop.f32.mrf.mxu0
    %v5877 = vadd.f32 %v5492, %v5876
    %v5878 = vpop.f32.mrf.mxu0
    %5879 = vmatprep.mubr.f32.mxu0 0.0
    %5880 = vmatmul.mubr.f32.gmra.mxu0 %v4041
    %v5881 = vpop.f32.mrf.mxu0
    %v5882 = vadd.f32 %v5497, %v5881
    %v5883 = vpop.f32.mrf.mxu0
    %5884 = vmatprep.mubr.f32.mxu0 0.0
    %5885 = vmatmul.mubr.f32.gmra.mxu0 %v4042
    %v5886 = vpop.f32.mrf.mxu0
    %v5887 = vadd.f32 %v5502, %v5886
    %v5888 = vpop.f32.mrf.mxu0
    %5889 = vmatprep.mubr.f32.mxu0 0.0
    %5890 = vmatmul.mubr.f32.gmra.mxu0 %v4043
    %v5891 = vpop.f32.mrf.mxu0
    %v5892 = vadd.f32 %v5507, %v5891
    %v5893 = vpop.f32.mrf.mxu0
    %5894 = vmatprep.mubr.f32.mxu0 0.0
    %5895 = vmatmul.mubr.f32.gmra.mxu0 %v4044
    %v5896 = vpop.f32.mrf.mxu0
    %v5897 = vadd.f32 %v5512, %v5896
    %v5898 = vpop.f32.mrf.mxu0
    %5899 = vmatprep.mubr.f32.mxu0 0.0
    %5900 = vmatmul.mubr.f32.gmra.mxu0 %v4045
    %v5901 = vpop.f32.mrf.mxu0
    %v5902 = vadd.f32 %v5517, %v5901
    %v5903 = vpop.f32.mrf.mxu0
    %5904 = vmatprep.mubr.f32.mxu0 0.0
    %5905 = vmatmul.mubr.f32.gmra.mxu0 %v4046
    %v5906 = vpop.f32.mrf.mxu0
    %v5907 = vadd.f32 %v5522, %v5906
    %v5908 = vpop.f32.mrf.mxu0
    %5909 = vmatprep.mubr.f32.mxu0 0.0
    %5910 = vmatmul.mubr.f32.gmra.mxu0 %v4047
    %v5911 = vpop.f32.mrf.mxu0
    %v5912 = vadd.f32 %v5527, %v5911
    %v5913 = vpop.f32.mrf.mxu0
    %5914 = vmatprep.mubr.f32.mxu0 0.0
    %5915 = vmatmul.mubr.f32.gmra.mxu0 %v4048
    %v5916 = vpop.f32.mrf.mxu0
    %v5917 = vadd.f32 %v5532, %v5916
    %v5918 = vpop.f32.mrf.mxu0
    %5919 = vmatprep.mubr.f32.mxu0 0.0
    %5920 = vmatmul.mubr.f32.gmra.mxu0 %v4049
    %v5921 = vpop.f32.mrf.mxu0
    %v5922 = vadd.f32 %v5537, %v5921
    %v5923 = vpop.f32.mrf.mxu0
    %5924 = vmatprep.mubr.f32.mxu0 0.0
    %5925 = vmatmul.mubr.f32.gmra.mxu0 %v4050
    %v5926 = vpop.f32.mrf.mxu0
    %v5927 = vadd.f32 %v5542, %v5926
    %v5928 = vpop.f32.mrf.mxu0
    %5929 = vmatprep.mubr.f32.mxu0 0.0
    %5930 = vmatmul.mubr.f32.gmra.mxu0 %v4051
    %v5931 = vpop.f32.mrf.mxu0
    %v5932 = vadd.f32 %v5547, %v5931
    %v5933 = vpop.f32.mrf.mxu0
    %5934 = vmatprep.mubr.f32.mxu0 0.0
    %5935 = vmatmul.mubr.f32.gmra.mxu0 %v4052
    %v5936 = vpop.f32.mrf.mxu0
    %v5937 = vadd.f32 %v5552, %v5936
    %v5938 = vpop.f32.mrf.mxu0
    %5939 = vmatprep.mubr.f32.mxu0 0.0
    %5940 = vmatmul.mubr.f32.gmra.mxu0 %v4053
    %v5941 = vpop.f32.mrf.mxu0
    %v5942 = vadd.f32 %v5557, %v5941
    %v5943 = vpop.f32.mrf.mxu0
    %5944 = vmatprep.mubr.f32.mxu0 0.0
    %5945 = vmatmul.mubr.f32.gmra.mxu0 %v4054
    %v5946 = vpop.f32.mrf.mxu0
    %v5947 = vadd.f32 %v5562, %v5946
    %v5948 = vpop.f32.mrf.mxu0
    %5949 = vmatprep.mubr.f32.mxu0 0.0
    %5950 = vmatmul.mubr.f32.gmra.mxu0 %v4055
    %v5951 = vpop.f32.mrf.mxu0
    %v5952 = vadd.f32 %v5567, %v5951
    %v5953 = vpop.f32.mrf.mxu0
    %5954 = vmatprep.mubr.f32.mxu0 0.0
    %5955 = vmatmul.mubr.f32.gmra.mxu0 %v4056
    %v5956 = vpop.f32.mrf.mxu0
    %v5957 = vadd.f32 %v5572, %v5956
    %v5958 = vpop.f32.mrf.mxu0
    %5959 = vmatprep.mubr.f32.mxu0 0.0
    %5960 = vmatmul.mubr.f32.gmra.mxu0 %v4057
    %v5961 = vpop.f32.mrf.mxu0
    %v5962 = vadd.f32 %v5577, %v5961
    %v5963 = vpop.f32.mrf.mxu0
    %5964 = vmatprep.mubr.f32.mxu0 0.0
    %5965 = vmatmul.mubr.f32.gmra.mxu0 %v4058
    %v5966 = vpop.f32.mrf.mxu0
    %v5967 = vadd.f32 %v5582, %v5966
    %v5968 = vpop.f32.mrf.mxu0
    %5969 = vmatprep.mubr.f32.mxu0 0.0
    %5970 = vmatmul.mubr.f32.gmra.mxu0 %v4059
    %v5971 = vpop.f32.mrf.mxu0
    %v5972 = vadd.f32 %v5587, %v5971
    %v5973 = vpop.f32.mrf.mxu0
    %5974 = vmatprep.mubr.f32.mxu0 0.0
    %5975 = vmatmul.mubr.f32.gmra.mxu0 %v4060
    %v5976 = vpop.f32.mrf.mxu0
    %v5977 = vadd.f32 %v5592, %v5976
    %v5978 = vpop.f32.mrf.mxu0
    %5979 = vmatprep.mubr.f32.mxu0 0.0
    %5980 = vmatmul.mubr.f32.gmra.mxu0 %v4061
    %v5981 = vpop.f32.mrf.mxu0
    %v5982 = vadd.f32 %v5597, %v5981
    %v5983 = vpop.f32.mrf.mxu0
    %5984 = vmatprep.mubr.f32.mxu0 0.0
    %5985 = vmatmul.mubr.f32.gmra.mxu0 %v4062
    %v5986 = vpop.f32.mrf.mxu0
    %v5987 = vadd.f32 %v5602, %v5986
    %v5988 = vpop.f32.mrf.mxu0
    %5989 = vmatprep.mubr.f32.mxu0 0.0
    %5990 = vmatmul.mubr.f32.gmra.mxu0 %v4063
    %v5991 = vpop.f32.mrf.mxu0
    %v5992 = vadd.f32 %v5607, %v5991
    %v5993 = vpop.f32.mrf.mxu0
    %5994 = vdwg.mxu0
    %v5995 = vadd.f32 %v5677, %v5682
    %v5996 = vadd.f32 %v5995, %v5687
    %v5997 = vadd.f32 %v5996, %v5692
    %v5998 = vadd.f32 %v5997, %v5697
    %v5999 = vadd.f32 %v5998, %v5702
    %v6000 = vadd.f32 %v5999, %v5707
    %v6001 = vadd.f32 %v6000, %v5712
    %v6002 = vadd.f32 %v6001, %v5717
    %v6003 = vadd.f32 %v6002, %v5722
    %v6004 = vadd.f32 %v6003, %v5727
    %v6005 = vadd.f32 %v6004, %v5732
    %v6006 = vadd.f32 %v6005, %v5737
    %v6007 = vadd.f32 %v6006, %v5742
    %v6008 = vadd.f32 %v6007, %v5747
    %v6009 = vadd.f32 %v6008, %v5752
    %v6010 = vadd.f32 %v6009, %v5757
    %v6011 = vadd.f32 %v6010, %v5762
    %v6012 = vadd.f32 %v6011, %v5767
    %v6013 = vadd.f32 %v6012, %v5772
    %v6014 = vadd.f32 %v6013, %v5777
    %v6015 = vadd.f32 %v6014, %v5782
    %v6016 = vadd.f32 %v6015, %v5787
    %v6017 = vadd.f32 %v6016, %v5792
    %v6018 = vadd.f32 %v6017, %v5797
    %v6019 = vadd.f32 %v6018, %v5802
    %v6020 = vadd.f32 %v6019, %v5807
    %v6021 = vadd.f32 %v6020, %v5812
    %v6022 = vadd.f32 %v6021, %v5817
    %v6023 = vadd.f32 %v6022, %v5822
    %v6024 = vadd.f32 %v6023, %v5827
    %v6025 = vadd.f32 %v6024, %v5832
    %v6026 = vadd.f32 %v6025, %v5837
    %v6027 = vadd.f32 %v6026, %v5842
    %v6028 = vadd.f32 %v6027, %v5847
    %v6029 = vadd.f32 %v6028, %v5852
    %v6030 = vadd.f32 %v6029, %v5857
    %v6031 = vadd.f32 %v6030, %v5862
    %v6032 = vadd.f32 %v6031, %v5867
    %v6033 = vadd.f32 %v6032, %v5872
    %v6034 = vadd.f32 %v6033, %v5877
    %v6035 = vadd.f32 %v6034, %v5882
    %v6036 = vadd.f32 %v6035, %v5887
    %v6037 = vadd.f32 %v6036, %v5892
    %v6038 = vadd.f32 %v6037, %v5897
    %v6039 = vadd.f32 %v6038, %v5902
    %v6040 = vadd.f32 %v6039, %v5907
    %v6041 = vadd.f32 %v6040, %v5912
    %v6042 = vadd.f32 %v6041, %v5917
    %v6043 = vadd.f32 %v6042, %v5922
    %v6044 = vadd.f32 %v6043, %v5927
    %v6045 = vadd.f32 %v6044, %v5932
    %v6046 = vadd.f32 %v6045, %v5937
    %v6047 = vadd.f32 %v6046, %v5942
    %v6048 = vadd.f32 %v6047, %v5947
    %v6049 = vadd.f32 %v6048, %v5952
    %v6050 = vadd.f32 %v6049, %v5957
    %v6051 = vadd.f32 %v6050, %v5962
    %v6052 = vadd.f32 %v6051, %v5967
    %v6053 = vadd.f32 %v6052, %v5972
    %v6054 = vadd.f32 %v6053, %v5977
    %v6055 = vadd.f32 %v6054, %v5982
    %v6056 = vadd.f32 %v6055, %v5987
    %v6057 = vadd.f32 %v6056, %v5992
    %v6058 = vrot.slane %v6057, 4
    %v6059 = vadd.f32 %v6057, %v6058
    %v6060 = vrot.slane %v6059, 2
    %v6061 = vadd.f32 %v6059, %v6060
    %v6062 = vrot.slane %v6061, 1
    %v6063 = vadd.f32 %v6061, %v6062
    %v6064 = vmul.f32 %v6063, 0.001953125
    %v6065 = vmul.f32 %v5677, %v5677
    %v6066 = vmul.f32 %v5682, %v5682
    %v6067 = vmul.f32 %v5687, %v5687
    %v6068 = vmul.f32 %v5692, %v5692
    %v6069 = vmul.f32 %v5697, %v5697
    %v6070 = vmul.f32 %v5702, %v5702
    %v6071 = vmul.f32 %v5707, %v5707
    %v6072 = vmul.f32 %v5712, %v5712
    %v6073 = vmul.f32 %v5717, %v5717
    %v6074 = vmul.f32 %v5722, %v5722
    %v6075 = vmul.f32 %v5727, %v5727
    %v6076 = vmul.f32 %v5732, %v5732
    %v6077 = vmul.f32 %v5737, %v5737
    %v6078 = vmul.f32 %v5742, %v5742
    %v6079 = vmul.f32 %v5747, %v5747
    %v6080 = vmul.f32 %v5752, %v5752
    %v6081 = vmul.f32 %v5757, %v5757
    %v6082 = vmul.f32 %v5762, %v5762
    %v6083 = vmul.f32 %v5767, %v5767
    %v6084 = vmul.f32 %v5772, %v5772
    %v6085 = vmul.f32 %v5777, %v5777
    %v6086 = vmul.f32 %v5782, %v5782
    %v6087 = vmul.f32 %v5787, %v5787
    %v6088 = vmul.f32 %v5792, %v5792
    %v6089 = vmul.f32 %v5797, %v5797
    %v6090 = vmul.f32 %v5802, %v5802
    %v6091 = vmul.f32 %v5807, %v5807
    %v6092 = vmul.f32 %v5812, %v5812
    %v6093 = vmul.f32 %v5817, %v5817
    %v6094 = vmul.f32 %v5822, %v5822
    %v6095 = vmul.f32 %v5827, %v5827
    %v6096 = vmul.f32 %v5832, %v5832
    %v6097 = vmul.f32 %v5837, %v5837
    %v6098 = vmul.f32 %v5842, %v5842
    %v6099 = vmul.f32 %v5847, %v5847
    %v6100 = vmul.f32 %v5852, %v5852
    %v6101 = vmul.f32 %v5857, %v5857
    %v6102 = vmul.f32 %v5862, %v5862
    %v6103 = vmul.f32 %v5867, %v5867
    %v6104 = vmul.f32 %v5872, %v5872
    %v6105 = vmul.f32 %v5877, %v5877
    %v6106 = vmul.f32 %v5882, %v5882
    %v6107 = vmul.f32 %v5887, %v5887
    %v6108 = vmul.f32 %v5892, %v5892
    %v6109 = vmul.f32 %v5897, %v5897
    %v6110 = vmul.f32 %v5902, %v5902
    %v6111 = vmul.f32 %v5907, %v5907
    %v6112 = vmul.f32 %v5912, %v5912
    %v6113 = vmul.f32 %v5917, %v5917
    %v6114 = vmul.f32 %v5922, %v5922
    %v6115 = vmul.f32 %v5927, %v5927
    %v6116 = vmul.f32 %v5932, %v5932
    %v6117 = vmul.f32 %v5937, %v5937
    %v6118 = vmul.f32 %v5942, %v5942
    %v6119 = vmul.f32 %v5947, %v5947
    %v6120 = vmul.f32 %v5952, %v5952
    %v6121 = vmul.f32 %v5957, %v5957
    %v6122 = vmul.f32 %v5962, %v5962
    %v6123 = vmul.f32 %v5967, %v5967
    %v6124 = vmul.f32 %v5972, %v5972
    %v6125 = vmul.f32 %v5977, %v5977
    %v6126 = vmul.f32 %v5982, %v5982
    %v6127 = vmul.f32 %v5987, %v5987
    %v6128 = vmul.f32 %v5992, %v5992
    %v6129 = vadd.f32 %v6065, %v6066
    %v6130 = vadd.f32 %v6129, %v6067
    %v6131 = vadd.f32 %v6130, %v6068
    %v6132 = vadd.f32 %v6131, %v6069
    %v6133 = vadd.f32 %v6132, %v6070
    %v6134 = vadd.f32 %v6133, %v6071
    %v6135 = vadd.f32 %v6134, %v6072
    %v6136 = vadd.f32 %v6135, %v6073
    %v6137 = vadd.f32 %v6136, %v6074
    %v6138 = vadd.f32 %v6137, %v6075
    %v6139 = vadd.f32 %v6138, %v6076
    %v6140 = vadd.f32 %v6139, %v6077
    %v6141 = vadd.f32 %v6140, %v6078
    %v6142 = vadd.f32 %v6141, %v6079
    %v6143 = vadd.f32 %v6142, %v6080
    %v6144 = vadd.f32 %v6143, %v6081
    %v6145 = vadd.f32 %v6144, %v6082
    %v6146 = vadd.f32 %v6145, %v6083
    %v6147 = vadd.f32 %v6146, %v6084
    %v6148 = vadd.f32 %v6147, %v6085
    %v6149 = vadd.f32 %v6148, %v6086
    %v6150 = vadd.f32 %v6149, %v6087
    %v6151 = vadd.f32 %v6150, %v6088
    %v6152 = vadd.f32 %v6151, %v6089
    %v6153 = vadd.f32 %v6152, %v6090
    %v6154 = vadd.f32 %v6153, %v6091
    %v6155 = vadd.f32 %v6154, %v6092
    %v6156 = vadd.f32 %v6155, %v6093
    %v6157 = vadd.f32 %v6156, %v6094
    %v6158 = vadd.f32 %v6157, %v6095
    %v6159 = vadd.f32 %v6158, %v6096
    %v6160 = vadd.f32 %v6159, %v6097
    %v6161 = vadd.f32 %v6160, %v6098
    %v6162 = vadd.f32 %v6161, %v6099
    %v6163 = vadd.f32 %v6162, %v6100
    %v6164 = vadd.f32 %v6163, %v6101
    %v6165 = vadd.f32 %v6164, %v6102
    %v6166 = vadd.f32 %v6165, %v6103
    %v6167 = vadd.f32 %v6166, %v6104
    %v6168 = vadd.f32 %v6167, %v6105
    %v6169 = vadd.f32 %v6168, %v6106
    %v6170 = vadd.f32 %v6169, %v6107
    %v6171 = vadd.f32 %v6170, %v6108
    %v6172 = vadd.f32 %v6171, %v6109
    %v6173 = vadd.f32 %v6172, %v6110
    %v6174 = vadd.f32 %v6173, %v6111
    %v6175 = vadd.f32 %v6174, %v6112
    %v6176 = vadd.f32 %v6175, %v6113
    %v6177 = vadd.f32 %v6176, %v6114
    %v6178 = vadd.f32 %v6177, %v6115
    %v6179 = vadd.f32 %v6178, %v6116
    %v6180 = vadd.f32 %v6179, %v6117
    %v6181 = vadd.f32 %v6180, %v6118
    %v6182 = vadd.f32 %v6181, %v6119
    %v6183 = vadd.f32 %v6182, %v6120
    %v6184 = vadd.f32 %v6183, %v6121
    %v6185 = vadd.f32 %v6184, %v6122
    %v6186 = vadd.f32 %v6185, %v6123
    %v6187 = vadd.f32 %v6186, %v6124
    %v6188 = vadd.f32 %v6187, %v6125
    %v6189 = vadd.f32 %v6188, %v6126
    %v6190 = vadd.f32 %v6189, %v6127
    %v6191 = vadd.f32 %v6190, %v6128
    %v6192 = vrot.slane %v6191, 4
    %v6193 = vadd.f32 %v6191, %v6192
    %v6194 = vrot.slane %v6193, 2
    %v6195 = vadd.f32 %v6193, %v6194
    %v6196 = vrot.slane %v6195, 1
    %v6197 = vadd.f32 %v6195, %v6196
    %v6198 = vmul.f32 %v6197, 0.001953125
    %v6199 = vmul.f32 %v6064, %v6064
    %v6200 = vsub.f32 %v6198, %v6199
    %v6201 = vmax.f32 %v6200, 0.0
    %v6202 = vadd.f32 %v6201, 1e-05
    %v6203 = vrsqrt.pop %v6202
    %v6204 = vmul.f32 %v169, %v6203
    %v6205 = vmul.f32 %v6064, %v6204
    %v6206 = vsub.f32 %v170, %v6205
    %v6208 = vlaneseq
    %v6209 = vshrl.u32 %v6208, 7
    %v6210 = vsub.s32 0, %v6209
    %v6211 = vrot.slane %v6204, %v6210
    %v6213 = vmul.f32 %v5677, %v6211
    %v6214 = vmul.f32 %v5682, %v6211
    %v6215 = vmul.f32 %v5687, %v6211
    %v6216 = vmul.f32 %v5692, %v6211
    %v6217 = vmul.f32 %v5697, %v6211
    %v6218 = vmul.f32 %v5702, %v6211
    %v6219 = vmul.f32 %v5707, %v6211
    %v6220 = vmul.f32 %v5712, %v6211
    %v6221 = vmul.f32 %v5717, %v6211
    %v6222 = vmul.f32 %v5722, %v6211
    %v6223 = vmul.f32 %v5727, %v6211
    %v6224 = vmul.f32 %v5732, %v6211
    %v6225 = vmul.f32 %v5737, %v6211
    %v6226 = vmul.f32 %v5742, %v6211
    %v6227 = vmul.f32 %v5747, %v6211
    %v6228 = vmul.f32 %v5752, %v6211
    %v6229 = vmul.f32 %v5757, %v6211
    %v6230 = vmul.f32 %v5762, %v6211
    %v6231 = vmul.f32 %v5767, %v6211
    %v6232 = vmul.f32 %v5772, %v6211
    %v6233 = vmul.f32 %v5777, %v6211
    %v6234 = vmul.f32 %v5782, %v6211
    %v6235 = vmul.f32 %v5787, %v6211
    %v6236 = vmul.f32 %v5792, %v6211
    %v6237 = vmul.f32 %v5797, %v6211
    %v6238 = vmul.f32 %v5802, %v6211
    %v6239 = vmul.f32 %v5807, %v6211
    %v6240 = vmul.f32 %v5812, %v6211
    %v6241 = vmul.f32 %v5817, %v6211
    %v6242 = vmul.f32 %v5822, %v6211
    %v6243 = vmul.f32 %v5827, %v6211
    %v6244 = vmul.f32 %v5832, %v6211
    %v6245 = vmul.f32 %v5837, %v6211
    %v6246 = vmul.f32 %v5842, %v6211
    %v6247 = vmul.f32 %v5847, %v6211
    %v6248 = vmul.f32 %v5852, %v6211
    %v6249 = vmul.f32 %v5857, %v6211
    %v6250 = vmul.f32 %v5862, %v6211
    %v6251 = vmul.f32 %v5867, %v6211
    %v6252 = vmul.f32 %v5872, %v6211
    %v6253 = vmul.f32 %v5877, %v6211
    %v6254 = vmul.f32 %v5882, %v6211
    %v6255 = vmul.f32 %v5887, %v6211
    %v6256 = vmul.f32 %v5892, %v6211
    %v6257 = vmul.f32 %v5897, %v6211
    %v6258 = vmul.f32 %v5902, %v6211
    %v6259 = vmul.f32 %v5907, %v6211
    %v6260 = vmul.f32 %v5912, %v6211
    %v6261 = vmul.f32 %v5917, %v6211
    %v6262 = vmul.f32 %v5922, %v6211
    %v6263 = vmul.f32 %v5927, %v6211
    %v6264 = vmul.f32 %v5932, %v6211
    %v6265 = vmul.f32 %v5937, %v6211
    %v6266 = vmul.f32 %v5942, %v6211
    %v6267 = vmul.f32 %v5947, %v6211
    %v6268 = vmul.f32 %v5952, %v6211
    %v6269 = vmul.f32 %v5957, %v6211
    %v6270 = vmul.f32 %v5962, %v6211
    %v6271 = vmul.f32 %v5967, %v6211
    %v6272 = vmul.f32 %v5972, %v6211
    %v6273 = vmul.f32 %v5977, %v6211
    %v6274 = vmul.f32 %v5982, %v6211
    %v6275 = vmul.f32 %v5987, %v6211
    %v6276 = vmul.f32 %v5992, %v6211
    %v6278 = vlaneseq
    %v6279 = vshrl.u32 %v6278, 7
    %v6280 = vsub.s32 0, %v6279
    %v6281 = vrot.slane %v6206, %v6280
    %v6283 = vadd.f32 %v6213, %v6281
    %v6284 = vadd.f32 %v6214, %v6281
    %v6285 = vadd.f32 %v6215, %v6281
    %v6286 = vadd.f32 %v6216, %v6281
    %v6287 = vadd.f32 %v6217, %v6281
    %v6288 = vadd.f32 %v6218, %v6281
    %v6289 = vadd.f32 %v6219, %v6281
    %v6290 = vadd.f32 %v6220, %v6281
    %v6291 = vadd.f32 %v6221, %v6281
    %v6292 = vadd.f32 %v6222, %v6281
    %v6293 = vadd.f32 %v6223, %v6281
    %v6294 = vadd.f32 %v6224, %v6281
    %v6295 = vadd.f32 %v6225, %v6281
    %v6296 = vadd.f32 %v6226, %v6281
    %v6297 = vadd.f32 %v6227, %v6281
    %v6298 = vadd.f32 %v6228, %v6281
    %v6299 = vadd.f32 %v6229, %v6281
    %v6300 = vadd.f32 %v6230, %v6281
    %v6301 = vadd.f32 %v6231, %v6281
    %v6302 = vadd.f32 %v6232, %v6281
    %v6303 = vadd.f32 %v6233, %v6281
    %v6304 = vadd.f32 %v6234, %v6281
    %v6305 = vadd.f32 %v6235, %v6281
    %v6306 = vadd.f32 %v6236, %v6281
    %v6307 = vadd.f32 %v6237, %v6281
    %v6308 = vadd.f32 %v6238, %v6281
    %v6309 = vadd.f32 %v6239, %v6281
    %v6310 = vadd.f32 %v6240, %v6281
    %v6311 = vadd.f32 %v6241, %v6281
    %v6312 = vadd.f32 %v6242, %v6281
    %v6313 = vadd.f32 %v6243, %v6281
    %v6314 = vadd.f32 %v6244, %v6281
    %v6315 = vadd.f32 %v6245, %v6281
    %v6316 = vadd.f32 %v6246, %v6281
    %v6317 = vadd.f32 %v6247, %v6281
    %v6318 = vadd.f32 %v6248, %v6281
    %v6319 = vadd.f32 %v6249, %v6281
    %v6320 = vadd.f32 %v6250, %v6281
    %v6321 = vadd.f32 %v6251, %v6281
    %v6322 = vadd.f32 %v6252, %v6281
    %v6323 = vadd.f32 %v6253, %v6281
    %v6324 = vadd.f32 %v6254, %v6281
    %v6325 = vadd.f32 %v6255, %v6281
    %v6326 = vadd.f32 %v6256, %v6281
    %v6327 = vadd.f32 %v6257, %v6281
    %v6328 = vadd.f32 %v6258, %v6281
    %v6329 = vadd.f32 %v6259, %v6281
    %v6330 = vadd.f32 %v6260, %v6281
    %v6331 = vadd.f32 %v6261, %v6281
    %v6332 = vadd.f32 %v6262, %v6281
    %v6333 = vadd.f32 %v6263, %v6281
    %v6334 = vadd.f32 %v6264, %v6281
    %v6335 = vadd.f32 %v6265, %v6281
    %v6336 = vadd.f32 %v6266, %v6281
    %v6337 = vadd.f32 %v6267, %v6281
    %v6338 = vadd.f32 %v6268, %v6281
    %v6339 = vadd.f32 %v6269, %v6281
    %v6340 = vadd.f32 %v6270, %v6281
    %v6341 = vadd.f32 %v6271, %v6281
    %v6342 = vadd.f32 %v6272, %v6281
    %v6343 = vadd.f32 %v6273, %v6281
    %v6344 = vadd.f32 %v6274, %v6281
    %v6345 = vadd.f32 %v6275, %v6281
    %v6346 = vadd.f32 %v6276, %v6281
    %v6347 = vmax.f32 %v6283, 0.0
    %v6348 = vmax.f32 %v6284, 0.0
    %v6349 = vmax.f32 %v6285, 0.0
    %v6350 = vmax.f32 %v6286, 0.0
    %v6351 = vmax.f32 %v6287, 0.0
    %v6352 = vmax.f32 %v6288, 0.0
    %v6353 = vmax.f32 %v6289, 0.0
    %v6354 = vmax.f32 %v6290, 0.0
    %v6355 = vmax.f32 %v6291, 0.0
    %v6356 = vmax.f32 %v6292, 0.0
    %v6357 = vmax.f32 %v6293, 0.0
    %v6358 = vmax.f32 %v6294, 0.0
    %v6359 = vmax.f32 %v6295, 0.0
    %v6360 = vmax.f32 %v6296, 0.0
    %v6361 = vmax.f32 %v6297, 0.0
    %v6362 = vmax.f32 %v6298, 0.0
    %v6363 = vmax.f32 %v6299, 0.0
    %v6364 = vmax.f32 %v6300, 0.0
    %v6365 = vmax.f32 %v6301, 0.0
    %v6366 = vmax.f32 %v6302, 0.0
    %v6367 = vmax.f32 %v6303, 0.0
    %v6368 = vmax.f32 %v6304, 0.0
    %v6369 = vmax.f32 %v6305, 0.0
    %v6370 = vmax.f32 %v6306, 0.0
    %v6371 = vmax.f32 %v6307, 0.0
    %v6372 = vmax.f32 %v6308, 0.0
    %v6373 = vmax.f32 %v6309, 0.0
    %v6374 = vmax.f32 %v6310, 0.0
    %v6375 = vmax.f32 %v6311, 0.0
    %v6376 = vmax.f32 %v6312, 0.0
    %v6377 = vmax.f32 %v6313, 0.0
    %v6378 = vmax.f32 %v6314, 0.0
    %v6379 = vmax.f32 %v6315, 0.0
    %v6380 = vmax.f32 %v6316, 0.0
    %v6381 = vmax.f32 %v6317, 0.0
    %v6382 = vmax.f32 %v6318, 0.0
    %v6383 = vmax.f32 %v6319, 0.0
    %v6384 = vmax.f32 %v6320, 0.0
    %v6385 = vmax.f32 %v6321, 0.0
    %v6386 = vmax.f32 %v6322, 0.0
    %v6387 = vmax.f32 %v6323, 0.0
    %v6388 = vmax.f32 %v6324, 0.0
    %v6389 = vmax.f32 %v6325, 0.0
    %v6390 = vmax.f32 %v6326, 0.0
    %v6391 = vmax.f32 %v6327, 0.0
    %v6392 = vmax.f32 %v6328, 0.0
    %v6393 = vmax.f32 %v6329, 0.0
    %v6394 = vmax.f32 %v6330, 0.0
    %v6395 = vmax.f32 %v6331, 0.0
    %v6396 = vmax.f32 %v6332, 0.0
    %v6397 = vmax.f32 %v6333, 0.0
    %v6398 = vmax.f32 %v6334, 0.0
    %v6399 = vmax.f32 %v6335, 0.0
    %v6400 = vmax.f32 %v6336, 0.0
    %v6401 = vmax.f32 %v6337, 0.0
    %v6402 = vmax.f32 %v6338, 0.0
    %v6403 = vmax.f32 %v6339, 0.0
    %v6404 = vmax.f32 %v6340, 0.0
    %v6405 = vmax.f32 %v6341, 0.0
    %v6406 = vmax.f32 %v6342, 0.0
    %v6407 = vmax.f32 %v6343, 0.0
    %v6408 = vmax.f32 %v6344, 0.0
    %v6409 = vmax.f32 %v6345, 0.0
    %v6410 = vmax.f32 %v6346, 0.0
    %v6412 = vrot.slane %v6410, 7
    %v6477 = vrot.slane %v6347, 7
    %v6478 = vrot.slane %v6348, 7
    %v6479 = vsel %vm862, %v6477, %v6478
    %v6480 = vrot.slane %v6349, 7
    %v6481 = vsel %vm862, %v6478, %v6480
    %v6482 = vrot.slane %v6350, 7
    %v6483 = vsel %vm862, %v6480, %v6482
    %v6484 = vrot.slane %v6351, 7
    %v6485 = vsel %vm862, %v6482, %v6484
    %v6486 = vrot.slane %v6352, 7
    %v6487 = vsel %vm862, %v6484, %v6486
    %v6488 = vrot.slane %v6353, 7
    %v6489 = vsel %vm862, %v6486, %v6488
    %v6490 = vrot.slane %v6354, 7
    %v6491 = vsel %vm862, %v6488, %v6490
    %v6492 = vrot.slane %v6355, 7
    %v6493 = vsel %vm862, %v6490, %v6492
    %v6494 = vrot.slane %v6356, 7
    %v6495 = vsel %vm862, %v6492, %v6494
    %v6496 = vrot.slane %v6357, 7
    %v6497 = vsel %vm862, %v6494, %v6496
    %v6498 = vrot.slane %v6358, 7
    %v6499 = vsel %vm862, %v6496, %v6498
    %v6500 = vrot.slane %v6359, 7
    %v6501 = vsel %vm862, %v6498, %v6500
    %v6502 = vrot.slane %v6360, 7
    %v6503 = vsel %vm862, %v6500, %v6502
    %v6504 = vrot.slane %v6361, 7
    %v6505 = vsel %vm862, %v6502, %v6504
    %v6506 = vrot.slane %v6362, 7
    %v6507 = vsel %vm862, %v6504, %v6506
    %v6508 = vrot.slane %v6363, 7
    %v6509 = vsel %vm862, %v6506, %v6508
    %v6510 = vrot.slane %v6364, 7
    %v6511 = vsel %vm862, %v6508, %v6510
    %v6512 = vrot.slane %v6365, 7
    %v6513 = vsel %vm862, %v6510, %v6512
    %v6514 = vrot.slane %v6366, 7
    %v6515 = vsel %vm862, %v6512, %v6514
    %v6516 = vrot.slane %v6367, 7
    %v6517 = vsel %vm862, %v6514, %v6516
    %v6518 = vrot.slane %v6368, 7
    %v6519 = vsel %vm862, %v6516, %v6518
    %v6520 = vrot.slane %v6369, 7
    %v6521 = vsel %vm862, %v6518, %v6520
    %v6522 = vrot.slane %v6370, 7
    %v6523 = vsel %vm862, %v6520, %v6522
    %v6524 = vrot.slane %v6371, 7
    %v6525 = vsel %vm862, %v6522, %v6524
    %v6526 = vrot.slane %v6372, 7
    %v6527 = vsel %vm862, %v6524, %v6526
    %v6528 = vrot.slane %v6373, 7
    %v6529 = vsel %vm862, %v6526, %v6528
    %v6530 = vrot.slane %v6374, 7
    %v6531 = vsel %vm862, %v6528, %v6530
    %v6532 = vrot.slane %v6375, 7
    %v6533 = vsel %vm862, %v6530, %v6532
    %v6534 = vrot.slane %v6376, 7
    %v6535 = vsel %vm862, %v6532, %v6534
    %v6536 = vrot.slane %v6377, 7
    %v6537 = vsel %vm862, %v6534, %v6536
    %v6538 = vrot.slane %v6378, 7
    %v6539 = vsel %vm862, %v6536, %v6538
    %v6540 = vrot.slane %v6379, 7
    %v6541 = vsel %vm862, %v6538, %v6540
    %v6542 = vrot.slane %v6380, 7
    %v6543 = vsel %vm862, %v6540, %v6542
    %v6544 = vrot.slane %v6381, 7
    %v6545 = vsel %vm862, %v6542, %v6544
    %v6546 = vrot.slane %v6382, 7
    %v6547 = vsel %vm862, %v6544, %v6546
    %v6548 = vrot.slane %v6383, 7
    %v6549 = vsel %vm862, %v6546, %v6548
    %v6550 = vrot.slane %v6384, 7
    %v6551 = vsel %vm862, %v6548, %v6550
    %v6552 = vrot.slane %v6385, 7
    %v6553 = vsel %vm862, %v6550, %v6552
    %v6554 = vrot.slane %v6386, 7
    %v6555 = vsel %vm862, %v6552, %v6554
    %v6556 = vrot.slane %v6387, 7
    %v6557 = vsel %vm862, %v6554, %v6556
    %v6558 = vrot.slane %v6388, 7
    %v6559 = vsel %vm862, %v6556, %v6558
    %v6560 = vrot.slane %v6389, 7
    %v6561 = vsel %vm862, %v6558, %v6560
    %v6562 = vrot.slane %v6390, 7
    %v6563 = vsel %vm862, %v6560, %v6562
    %v6564 = vrot.slane %v6391, 7
    %v6565 = vsel %vm862, %v6562, %v6564
    %v6566 = vrot.slane %v6392, 7
    %v6567 = vsel %vm862, %v6564, %v6566
    %v6568 = vrot.slane %v6393, 7
    %v6569 = vsel %vm862, %v6566, %v6568
    %v6570 = vrot.slane %v6394, 7
    %v6571 = vsel %vm862, %v6568, %v6570
    %v6572 = vrot.slane %v6395, 7
    %v6573 = vsel %vm862, %v6570, %v6572
    %v6574 = vrot.slane %v6396, 7
    %v6575 = vsel %vm862, %v6572, %v6574
    %v6576 = vrot.slane %v6397, 7
    %v6577 = vsel %vm862, %v6574, %v6576
    %v6578 = vrot.slane %v6398, 7
    %v6579 = vsel %vm862, %v6576, %v6578
    %v6580 = vrot.slane %v6399, 7
    %v6581 = vsel %vm862, %v6578, %v6580
    %v6582 = vrot.slane %v6400, 7
    %v6583 = vsel %vm862, %v6580, %v6582
    %v6584 = vrot.slane %v6401, 7
    %v6585 = vsel %vm862, %v6582, %v6584
    %v6586 = vrot.slane %v6402, 7
    %v6587 = vsel %vm862, %v6584, %v6586
    %v6588 = vrot.slane %v6403, 7
    %v6589 = vsel %vm862, %v6586, %v6588
    %v6590 = vrot.slane %v6404, 7
    %v6591 = vsel %vm862, %v6588, %v6590
    %v6592 = vrot.slane %v6405, 7
    %v6593 = vsel %vm862, %v6590, %v6592
    %v6594 = vrot.slane %v6406, 7
    %v6595 = vsel %vm862, %v6592, %v6594
    %v6596 = vrot.slane %v6407, 7
    %v6597 = vsel %vm862, %v6594, %v6596
    %v6598 = vrot.slane %v6408, 7
    %v6599 = vsel %vm862, %v6596, %v6598
    %v6600 = vrot.slane %v6409, 7
    %v6601 = vsel %vm862, %v6598, %v6600
    %v6602 = vsel %vm862, %v6600, %v6412
    %v6667 = vsel %vm862, %v6412, %v6477
    %v6668 = vsel %vm1566, %v6667, 0.0
    %v6669 = vsel %vm1567, %v6479, 0.0
    %v6670 = vsel %vm1568, %v6481, 0.0
    %v6671 = vsel %vm1569, %v6483, 0.0
    %v6672 = vsel %vm1570, %v6485, 0.0
    %v6673 = vsel %vm1571, %v6487, 0.0
    %v6674 = vsel %vm1572, %v6489, 0.0
    %v6675 = vsel %vm1573, %v6491, 0.0
    %v6676 = vsel %vm1574, %v6493, 0.0
    %v6677 = vsel %vm1575, %v6495, 0.0
    %v6678 = vsel %vm1576, %v6497, 0.0
    %v6679 = vsel %vm1577, %v6499, 0.0
    %v6680 = vsel %vm1578, %v6501, 0.0
    %v6681 = vsel %vm1579, %v6503, 0.0
    %v6682 = vsel %vm1580, %v6505, 0.0
    %v6683 = vsel %vm1581, %v6507, 0.0
    %v6684 = vsel %vm1582, %v6509, 0.0
    %v6685 = vsel %vm1583, %v6511, 0.0
    %v6686 = vsel %vm1584, %v6513, 0.0
    %v6687 = vsel %vm1585, %v6515, 0.0
    %v6688 = vsel %vm1586, %v6517, 0.0
    %v6689 = vsel %vm1587, %v6519, 0.0
    %v6690 = vsel %vm1588, %v6521, 0.0
    %v6691 = vsel %vm1589, %v6523, 0.0
    %v6692 = vsel %vm1590, %v6525, 0.0
    %v6693 = vsel %vm1591, %v6527, 0.0
    %v6694 = vsel %vm1592, %v6529, 0.0
    %v6695 = vsel %vm1593, %v6531, 0.0
    %v6696 = vsel %vm1594, %v6533, 0.0
    %v6697 = vsel %vm1595, %v6535, 0.0
    %v6698 = vsel %vm1596, %v6537, 0.0
    %v6699 = vsel %vm1597, %v6539, 0.0
    %v6700 = vsel %vm1598, %v6541, 0.0
    %v6701 = vsel %vm1599, %v6543, 0.0
    %v6702 = vsel %vm1600, %v6545, 0.0
    %v6703 = vsel %vm1601, %v6547, 0.0
    %v6704 = vsel %vm1602, %v6549, 0.0
    %v6705 = vsel %vm1603, %v6551, 0.0
    %v6706 = vsel %vm1604, %v6553, 0.0
    %v6707 = vsel %vm1605, %v6555, 0.0
    %v6708 = vsel %vm1606, %v6557, 0.0
    %v6709 = vsel %vm1607, %v6559, 0.0
    %v6710 = vsel %vm1608, %v6561, 0.0
    %v6711 = vsel %vm1609, %v6563, 0.0
    %v6712 = vsel %vm1610, %v6565, 0.0
    %v6713 = vsel %vm1611, %v6567, 0.0
    %v6714 = vsel %vm1612, %v6569, 0.0
    %v6715 = vsel %vm1613, %v6571, 0.0
    %v6716 = vsel %vm1614, %v6573, 0.0
    %v6717 = vsel %vm1615, %v6575, 0.0
    %v6718 = vsel %vm1616, %v6577, 0.0
    %v6719 = vsel %vm1617, %v6579, 0.0
    %v6720 = vsel %vm1618, %v6581, 0.0
    %v6721 = vsel %vm1619, %v6583, 0.0
    %v6722 = vsel %vm1620, %v6585, 0.0
    %v6723 = vsel %vm1621, %v6587, 0.0
    %v6724 = vsel %vm1622, %v6589, 0.0
    %v6725 = vsel %vm1623, %v6591, 0.0
    %v6726 = vsel %vm1624, %v6593, 0.0
    %v6727 = vsel %vm1625, %v6595, 0.0
    %v6728 = vsel %vm1626, %v6597, 0.0
    %v6729 = vsel %vm1627, %v6599, 0.0
    %v6730 = vsel %vm1628, %v6601, 0.0
    %v6731 = vsel %vm1629, %v6602, 0.0
    %v6732 = vrot.slane %v6347, 1
    %v6733 = vrot.slane %v6348, 1
    %v6734 = vsel %vm1694, %v6732, %v6733
    %v6735 = vrot.slane %v6349, 1
    %v6736 = vsel %vm1694, %v6733, %v6735
    %v6737 = vrot.slane %v6350, 1
    %v6738 = vsel %vm1694, %v6735, %v6737
    %v6739 = vrot.slane %v6351, 1
    %v6740 = vsel %vm1694, %v6737, %v6739
    %v6741 = vrot.slane %v6352, 1
    %v6742 = vsel %vm1694, %v6739, %v6741
    %v6743 = vrot.slane %v6353, 1
    %v6744 = vsel %vm1694, %v6741, %v6743
    %v6745 = vrot.slane %v6354, 1
    %v6746 = vsel %vm1694, %v6743, %v6745
    %v6747 = vrot.slane %v6355, 1
    %v6748 = vsel %vm1694, %v6745, %v6747
    %v6749 = vrot.slane %v6356, 1
    %v6750 = vsel %vm1694, %v6747, %v6749
    %v6751 = vrot.slane %v6357, 1
    %v6752 = vsel %vm1694, %v6749, %v6751
    %v6753 = vrot.slane %v6358, 1
    %v6754 = vsel %vm1694, %v6751, %v6753
    %v6755 = vrot.slane %v6359, 1
    %v6756 = vsel %vm1694, %v6753, %v6755
    %v6757 = vrot.slane %v6360, 1
    %v6758 = vsel %vm1694, %v6755, %v6757
    %v6759 = vrot.slane %v6361, 1
    %v6760 = vsel %vm1694, %v6757, %v6759
    %v6761 = vrot.slane %v6362, 1
    %v6762 = vsel %vm1694, %v6759, %v6761
    %v6763 = vrot.slane %v6363, 1
    %v6764 = vsel %vm1694, %v6761, %v6763
    %v6765 = vrot.slane %v6364, 1
    %v6766 = vsel %vm1694, %v6763, %v6765
    %v6767 = vrot.slane %v6365, 1
    %v6768 = vsel %vm1694, %v6765, %v6767
    %v6769 = vrot.slane %v6366, 1
    %v6770 = vsel %vm1694, %v6767, %v6769
    %v6771 = vrot.slane %v6367, 1
    %v6772 = vsel %vm1694, %v6769, %v6771
    %v6773 = vrot.slane %v6368, 1
    %v6774 = vsel %vm1694, %v6771, %v6773
    %v6775 = vrot.slane %v6369, 1
    %v6776 = vsel %vm1694, %v6773, %v6775
    %v6777 = vrot.slane %v6370, 1
    %v6778 = vsel %vm1694, %v6775, %v6777
    %v6779 = vrot.slane %v6371, 1
    %v6780 = vsel %vm1694, %v6777, %v6779
    %v6781 = vrot.slane %v6372, 1
    %v6782 = vsel %vm1694, %v6779, %v6781
    %v6783 = vrot.slane %v6373, 1
    %v6784 = vsel %vm1694, %v6781, %v6783
    %v6785 = vrot.slane %v6374, 1
    %v6786 = vsel %vm1694, %v6783, %v6785
    %v6787 = vrot.slane %v6375, 1
    %v6788 = vsel %vm1694, %v6785, %v6787
    %v6789 = vrot.slane %v6376, 1
    %v6790 = vsel %vm1694, %v6787, %v6789
    %v6791 = vrot.slane %v6377, 1
    %v6792 = vsel %vm1694, %v6789, %v6791
    %v6793 = vrot.slane %v6378, 1
    %v6794 = vsel %vm1694, %v6791, %v6793
    %v6795 = vrot.slane %v6379, 1
    %v6796 = vsel %vm1694, %v6793, %v6795
    %v6797 = vrot.slane %v6380, 1
    %v6798 = vsel %vm1694, %v6795, %v6797
    %v6799 = vrot.slane %v6381, 1
    %v6800 = vsel %vm1694, %v6797, %v6799
    %v6801 = vrot.slane %v6382, 1
    %v6802 = vsel %vm1694, %v6799, %v6801
    %v6803 = vrot.slane %v6383, 1
    %v6804 = vsel %vm1694, %v6801, %v6803
    %v6805 = vrot.slane %v6384, 1
    %v6806 = vsel %vm1694, %v6803, %v6805
    %v6807 = vrot.slane %v6385, 1
    %v6808 = vsel %vm1694, %v6805, %v6807
    %v6809 = vrot.slane %v6386, 1
    %v6810 = vsel %vm1694, %v6807, %v6809
    %v6811 = vrot.slane %v6387, 1
    %v6812 = vsel %vm1694, %v6809, %v6811
    %v6813 = vrot.slane %v6388, 1
    %v6814 = vsel %vm1694, %v6811, %v6813
    %v6815 = vrot.slane %v6389, 1
    %v6816 = vsel %vm1694, %v6813, %v6815
    %v6817 = vrot.slane %v6390, 1
    %v6818 = vsel %vm1694, %v6815, %v6817
    %v6819 = vrot.slane %v6391, 1
    %v6820 = vsel %vm1694, %v6817, %v6819
    %v6821 = vrot.slane %v6392, 1
    %v6822 = vsel %vm1694, %v6819, %v6821
    %v6823 = vrot.slane %v6393, 1
    %v6824 = vsel %vm1694, %v6821, %v6823
    %v6825 = vrot.slane %v6394, 1
    %v6826 = vsel %vm1694, %v6823, %v6825
    %v6827 = vrot.slane %v6395, 1
    %v6828 = vsel %vm1694, %v6825, %v6827
    %v6829 = vrot.slane %v6396, 1
    %v6830 = vsel %vm1694, %v6827, %v6829
    %v6831 = vrot.slane %v6397, 1
    %v6832 = vsel %vm1694, %v6829, %v6831
    %v6833 = vrot.slane %v6398, 1
    %v6834 = vsel %vm1694, %v6831, %v6833
    %v6835 = vrot.slane %v6399, 1
    %v6836 = vsel %vm1694, %v6833, %v6835
    %v6837 = vrot.slane %v6400, 1
    %v6838 = vsel %vm1694, %v6835, %v6837
    %v6839 = vrot.slane %v6401, 1
    %v6840 = vsel %vm1694, %v6837, %v6839
    %v6841 = vrot.slane %v6402, 1
    %v6842 = vsel %vm1694, %v6839, %v6841
    %v6843 = vrot.slane %v6403, 1
    %v6844 = vsel %vm1694, %v6841, %v6843
    %v6845 = vrot.slane %v6404, 1
    %v6846 = vsel %vm1694, %v6843, %v6845
    %v6847 = vrot.slane %v6405, 1
    %v6848 = vsel %vm1694, %v6845, %v6847
    %v6849 = vrot.slane %v6406, 1
    %v6850 = vsel %vm1694, %v6847, %v6849
    %v6851 = vrot.slane %v6407, 1
    %v6852 = vsel %vm1694, %v6849, %v6851
    %v6853 = vrot.slane %v6408, 1
    %v6854 = vsel %vm1694, %v6851, %v6853
    %v6855 = vrot.slane %v6409, 1
    %v6856 = vsel %vm1694, %v6853, %v6855
    %v6857 = vrot.slane %v6410, 1
    %v6858 = vsel %vm1694, %v6855, %v6857
    %v6924 = vsel %vm1694, %v6857, %v6732
    %v6925 = vsel %vm2400, %v6734, 0.0
    %v6926 = vsel %vm2401, %v6736, 0.0
    %v6927 = vsel %vm2402, %v6738, 0.0
    %v6928 = vsel %vm2403, %v6740, 0.0
    %v6929 = vsel %vm2404, %v6742, 0.0
    %v6930 = vsel %vm2405, %v6744, 0.0
    %v6931 = vsel %vm2406, %v6746, 0.0
    %v6932 = vsel %vm2407, %v6748, 0.0
    %v6933 = vsel %vm2408, %v6750, 0.0
    %v6934 = vsel %vm2409, %v6752, 0.0
    %v6935 = vsel %vm2410, %v6754, 0.0
    %v6936 = vsel %vm2411, %v6756, 0.0
    %v6937 = vsel %vm2412, %v6758, 0.0
    %v6938 = vsel %vm2413, %v6760, 0.0
    %v6939 = vsel %vm2414, %v6762, 0.0
    %v6940 = vsel %vm2415, %v6764, 0.0
    %v6941 = vsel %vm2416, %v6766, 0.0
    %v6942 = vsel %vm2417, %v6768, 0.0
    %v6943 = vsel %vm2418, %v6770, 0.0
    %v6944 = vsel %vm2419, %v6772, 0.0
    %v6945 = vsel %vm2420, %v6774, 0.0
    %v6946 = vsel %vm2421, %v6776, 0.0
    %v6947 = vsel %vm2422, %v6778, 0.0
    %v6948 = vsel %vm2423, %v6780, 0.0
    %v6949 = vsel %vm2424, %v6782, 0.0
    %v6950 = vsel %vm2425, %v6784, 0.0
    %v6951 = vsel %vm2426, %v6786, 0.0
    %v6952 = vsel %vm2427, %v6788, 0.0
    %v6953 = vsel %vm2428, %v6790, 0.0
    %v6954 = vsel %vm2429, %v6792, 0.0
    %v6955 = vsel %vm2430, %v6794, 0.0
    %v6956 = vsel %vm2431, %v6796, 0.0
    %v6957 = vsel %vm2432, %v6798, 0.0
    %v6958 = vsel %vm2433, %v6800, 0.0
    %v6959 = vsel %vm2434, %v6802, 0.0
    %v6960 = vsel %vm2435, %v6804, 0.0
    %v6961 = vsel %vm2436, %v6806, 0.0
    %v6962 = vsel %vm2437, %v6808, 0.0
    %v6963 = vsel %vm2438, %v6810, 0.0
    %v6964 = vsel %vm2439, %v6812, 0.0
    %v6965 = vsel %vm2440, %v6814, 0.0
    %v6966 = vsel %vm2441, %v6816, 0.0
    %v6967 = vsel %vm2442, %v6818, 0.0
    %v6968 = vsel %vm2443, %v6820, 0.0
    %v6969 = vsel %vm2444, %v6822, 0.0
    %v6970 = vsel %vm2445, %v6824, 0.0
    %v6971 = vsel %vm2446, %v6826, 0.0
    %v6972 = vsel %vm2447, %v6828, 0.0
    %v6973 = vsel %vm2448, %v6830, 0.0
    %v6974 = vsel %vm2449, %v6832, 0.0
    %v6975 = vsel %vm2450, %v6834, 0.0
    %v6976 = vsel %vm2451, %v6836, 0.0
    %v6977 = vsel %vm2452, %v6838, 0.0
    %v6978 = vsel %vm2453, %v6840, 0.0
    %v6979 = vsel %vm2454, %v6842, 0.0
    %v6980 = vsel %vm2455, %v6844, 0.0
    %v6981 = vsel %vm2456, %v6846, 0.0
    %v6982 = vsel %vm2457, %v6848, 0.0
    %v6983 = vsel %vm2458, %v6850, 0.0
    %v6984 = vsel %vm2459, %v6852, 0.0
    %v6985 = vsel %vm2460, %v6854, 0.0
    %v6986 = vsel %vm2461, %v6856, 0.0
    %v6987 = vsel %vm2462, %v6858, 0.0
    %v6988 = vsel %vm2463, %v6924, 0.0
    %v6989 = vsel %vm3040, %v6730, 0.0
    %v6990 = vsel %vm3041, %v6731, 0.0
    %v6991 = vsel %vm3042, %v6668, 0.0
    %v6992 = vsel %vm3043, %v6669, 0.0
    %v6993 = vsel %vm3044, %v6670, 0.0
    %v6994 = vsel %vm3045, %v6671, 0.0
    %v6995 = vsel %vm3046, %v6672, 0.0
    %v6996 = vsel %vm3047, %v6673, 0.0
    %v6997 = vsel %vm3048, %v6674, 0.0
    %v6998 = vsel %vm3049, %v6675, 0.0
    %v6999 = vsel %vm3050, %v6676, 0.0
    %v7000 = vsel %vm3051, %v6677, 0.0
    %v7001 = vsel %vm3052, %v6678, 0.0
    %v7002 = vsel %vm3053, %v6679, 0.0
    %v7003 = vsel %vm3054, %v6680, 0.0
    %v7004 = vsel %vm3055, %v6681, 0.0
    %v7005 = vsel %vm3056, %v6682, 0.0
    %v7006 = vsel %vm3057, %v6683, 0.0
    %v7007 = vsel %vm3058, %v6684, 0.0
    %v7008 = vsel %vm3059, %v6685, 0.0
    %v7009 = vsel %vm3060, %v6686, 0.0
    %v7010 = vsel %vm3061, %v6687, 0.0
    %v7011 = vsel %vm3062, %v6688, 0.0
    %v7012 = vsel %vm3063, %v6689, 0.0
    %v7013 = vsel %vm3064, %v6690, 0.0
    %v7014 = vsel %vm3065, %v6691, 0.0
    %v7015 = vsel %vm3066, %v6692, 0.0
    %v7016 = vsel %vm3067, %v6693, 0.0
    %v7017 = vsel %vm3068, %v6694, 0.0
    %v7018 = vsel %vm3069, %v6695, 0.0
    %v7019 = vsel %vm3070, %v6696, 0.0
    %v7020 = vsel %vm3071, %v6697, 0.0
    %v7021 = vsel %vm3072, %v6698, 0.0
    %v7022 = vsel %vm3073, %v6699, 0.0
    %v7023 = vsel %vm3074, %v6700, 0.0
    %v7024 = vsel %vm3075, %v6701, 0.0
    %v7025 = vsel %vm3076, %v6702, 0.0
    %v7026 = vsel %vm3077, %v6703, 0.0
    %v7027 = vsel %vm3078, %v6704, 0.0
    %v7028 = vsel %vm3079, %v6705, 0.0
    %v7029 = vsel %vm3080, %v6706, 0.0
    %v7030 = vsel %vm3081, %v6707, 0.0
    %v7031 = vsel %vm3082, %v6708, 0.0
    %v7032 = vsel %vm3083, %v6709, 0.0
    %v7033 = vsel %vm3084, %v6710, 0.0
    %v7034 = vsel %vm3085, %v6711, 0.0
    %v7035 = vsel %vm3086, %v6712, 0.0
    %v7036 = vsel %vm3087, %v6713, 0.0
    %v7037 = vsel %vm3088, %v6714, 0.0
    %v7038 = vsel %vm3089, %v6715, 0.0
    %v7039 = vsel %vm3090, %v6716, 0.0
    %v7040 = vsel %vm3091, %v6717, 0.0
    %v7041 = vsel %vm3092, %v6718, 0.0
    %v7042 = vsel %vm3093, %v6719, 0.0
    %v7043 = vsel %vm3094, %v6720, 0.0
    %v7044 = vsel %vm3095, %v6721, 0.0
    %v7045 = vsel %vm3096, %v6722, 0.0
    %v7046 = vsel %vm3097, %v6723, 0.0
    %v7047 = vsel %vm3098, %v6724, 0.0
    %v7048 = vsel %vm3099, %v6725, 0.0
    %v7049 = vsel %vm3100, %v6726, 0.0
    %v7050 = vsel %vm3101, %v6727, 0.0
    %v7051 = vsel %vm3102, %v6728, 0.0
    %v7052 = vsel %vm3103, %v6729, 0.0
    %v7053 = vsel %vm3040, %v6409, 0.0
    %v7054 = vsel %vm3041, %v6410, 0.0
    %v7055 = vsel %vm3042, %v6347, 0.0
    %v7056 = vsel %vm3043, %v6348, 0.0
    %v7057 = vsel %vm3044, %v6349, 0.0
    %v7058 = vsel %vm3045, %v6350, 0.0
    %v7059 = vsel %vm3046, %v6351, 0.0
    %v7060 = vsel %vm3047, %v6352, 0.0
    %v7061 = vsel %vm3048, %v6353, 0.0
    %v7062 = vsel %vm3049, %v6354, 0.0
    %v7063 = vsel %vm3050, %v6355, 0.0
    %v7064 = vsel %vm3051, %v6356, 0.0
    %v7065 = vsel %vm3052, %v6357, 0.0
    %v7066 = vsel %vm3053, %v6358, 0.0
    %v7067 = vsel %vm3054, %v6359, 0.0
    %v7068 = vsel %vm3055, %v6360, 0.0
    %v7069 = vsel %vm3056, %v6361, 0.0
    %v7070 = vsel %vm3057, %v6362, 0.0
    %v7071 = vsel %vm3058, %v6363, 0.0
    %v7072 = vsel %vm3059, %v6364, 0.0
    %v7073 = vsel %vm3060, %v6365, 0.0
    %v7074 = vsel %vm3061, %v6366, 0.0
    %v7075 = vsel %vm3062, %v6367, 0.0
    %v7076 = vsel %vm3063, %v6368, 0.0
    %v7077 = vsel %vm3064, %v6369, 0.0
    %v7078 = vsel %vm3065, %v6370, 0.0
    %v7079 = vsel %vm3066, %v6371, 0.0
    %v7080 = vsel %vm3067, %v6372, 0.0
    %v7081 = vsel %vm3068, %v6373, 0.0
    %v7082 = vsel %vm3069, %v6374, 0.0
    %v7083 = vsel %vm3070, %v6375, 0.0
    %v7084 = vsel %vm3071, %v6376, 0.0
    %v7085 = vsel %vm3072, %v6377, 0.0
    %v7086 = vsel %vm3073, %v6378, 0.0
    %v7087 = vsel %vm3074, %v6379, 0.0
    %v7088 = vsel %vm3075, %v6380, 0.0
    %v7089 = vsel %vm3076, %v6381, 0.0
    %v7090 = vsel %vm3077, %v6382, 0.0
    %v7091 = vsel %vm3078, %v6383, 0.0
    %v7092 = vsel %vm3079, %v6384, 0.0
    %v7093 = vsel %vm3080, %v6385, 0.0
    %v7094 = vsel %vm3081, %v6386, 0.0
    %v7095 = vsel %vm3082, %v6387, 0.0
    %v7096 = vsel %vm3083, %v6388, 0.0
    %v7097 = vsel %vm3084, %v6389, 0.0
    %v7098 = vsel %vm3085, %v6390, 0.0
    %v7099 = vsel %vm3086, %v6391, 0.0
    %v7100 = vsel %vm3087, %v6392, 0.0
    %v7101 = vsel %vm3088, %v6393, 0.0
    %v7102 = vsel %vm3089, %v6394, 0.0
    %v7103 = vsel %vm3090, %v6395, 0.0
    %v7104 = vsel %vm3091, %v6396, 0.0
    %v7105 = vsel %vm3092, %v6397, 0.0
    %v7106 = vsel %vm3093, %v6398, 0.0
    %v7107 = vsel %vm3094, %v6399, 0.0
    %v7108 = vsel %vm3095, %v6400, 0.0
    %v7109 = vsel %vm3096, %v6401, 0.0
    %v7110 = vsel %vm3097, %v6402, 0.0
    %v7111 = vsel %vm3098, %v6403, 0.0
    %v7112 = vsel %vm3099, %v6404, 0.0
    %v7113 = vsel %vm3100, %v6405, 0.0
    %v7114 = vsel %vm3101, %v6406, 0.0
    %v7115 = vsel %vm3102, %v6407, 0.0
    %v7116 = vsel %vm3103, %v6408, 0.0
    %v7117 = vsel %vm3040, %v6987, 0.0
    %v7118 = vsel %vm3041, %v6988, 0.0
    %v7119 = vsel %vm3042, %v6925, 0.0
    %v7120 = vsel %vm3043, %v6926, 0.0
    %v7121 = vsel %vm3044, %v6927, 0.0
    %v7122 = vsel %vm3045, %v6928, 0.0
    %v7123 = vsel %vm3046, %v6929, 0.0
    %v7124 = vsel %vm3047, %v6930, 0.0
    %v7125 = vsel %vm3048, %v6931, 0.0
    %v7126 = vsel %vm3049, %v6932, 0.0
    %v7127 = vsel %vm3050, %v6933, 0.0
    %v7128 = vsel %vm3051, %v6934, 0.0
    %v7129 = vsel %vm3052, %v6935, 0.0
    %v7130 = vsel %vm3053, %v6936, 0.0
    %v7131 = vsel %vm3054, %v6937, 0.0
    %v7132 = vsel %vm3055, %v6938, 0.0
    %v7133 = vsel %vm3056, %v6939, 0.0
    %v7134 = vsel %vm3057, %v6940, 0.0
    %v7135 = vsel %vm3058, %v6941, 0.0
    %v7136 = vsel %vm3059, %v6942, 0.0
    %v7137 = vsel %vm3060, %v6943, 0.0
    %v7138 = vsel %vm3061, %v6944, 0.0
    %v7139 = vsel %vm3062, %v6945, 0.0
    %v7140 = vsel %vm3063, %v6946, 0.0
    %v7141 = vsel %vm3064, %v6947, 0.0
    %v7142 = vsel %vm3065, %v6948, 0.0
    %v7143 = vsel %vm3066, %v6949, 0.0
    %v7144 = vsel %vm3067, %v6950, 0.0
    %v7145 = vsel %vm3068, %v6951, 0.0
    %v7146 = vsel %vm3069, %v6952, 0.0
    %v7147 = vsel %vm3070, %v6953, 0.0
    %v7148 = vsel %vm3071, %v6954, 0.0
    %v7149 = vsel %vm3072, %v6955, 0.0
    %v7150 = vsel %vm3073, %v6956, 0.0
    %v7151 = vsel %vm3074, %v6957, 0.0
    %v7152 = vsel %vm3075, %v6958, 0.0
    %v7153 = vsel %vm3076, %v6959, 0.0
    %v7154 = vsel %vm3077, %v6960, 0.0
    %v7155 = vsel %vm3078, %v6961, 0.0
    %v7156 = vsel %vm3079, %v6962, 0.0
    %v7157 = vsel %vm3080, %v6963, 0.0
    %v7158 = vsel %vm3081, %v6964, 0.0
    %v7159 = vsel %vm3082, %v6965, 0.0
    %v7160 = vsel %vm3083, %v6966, 0.0
    %v7161 = vsel %vm3084, %v6967, 0.0
    %v7162 = vsel %vm3085, %v6968, 0.0
    %v7163 = vsel %vm3086, %v6969, 0.0
    %v7164 = vsel %vm3087, %v6970, 0.0
    %v7165 = vsel %vm3088, %v6971, 0.0
    %v7166 = vsel %vm3089, %v6972, 0.0
    %v7167 = vsel %vm3090, %v6973, 0.0
    %v7168 = vsel %vm3091, %v6974, 0.0
    %v7169 = vsel %vm3092, %v6975, 0.0
    %v7170 = vsel %vm3093, %v6976, 0.0
    %v7171 = vsel %vm3094, %v6977, 0.0
    %v7172 = vsel %vm3095, %v6978, 0.0
    %v7173 = vsel %vm3096, %v6979, 0.0
    %v7174 = vsel %vm3097, %v6980, 0.0
    %v7175 = vsel %vm3098, %v6981, 0.0
    %v7176 = vsel %vm3099, %v6982, 0.0
    %v7177 = vsel %vm3100, %v6983, 0.0
    %v7178 = vsel %vm3101, %v6984, 0.0
    %v7179 = vsel %vm3102, %v6985, 0.0
    %v7180 = vsel %vm3103, %v6986, 0.0
    %v7181 = vsel %vm3808, %v6670, 0.0
    %v7182 = vsel %vm3809, %v6671, 0.0
    %v7183 = vsel %vm3810, %v6672, 0.0
    %v7184 = vsel %vm3811, %v6673, 0.0
    %v7185 = vsel %vm3812, %v6674, 0.0
    %v7186 = vsel %vm3813, %v6675, 0.0
    %v7187 = vsel %vm3814, %v6676, 0.0
    %v7188 = vsel %vm3815, %v6677, 0.0
    %v7189 = vsel %vm3816, %v6678, 0.0
    %v7190 = vsel %vm3817, %v6679, 0.0
    %v7191 = vsel %vm3818, %v6680, 0.0
    %v7192 = vsel %vm3819, %v6681, 0.0
    %v7193 = vsel %vm3820, %v6682, 0.0
    %v7194 = vsel %vm3821, %v6683, 0.0
    %v7195 = vsel %vm3822, %v6684, 0.0
    %v7196 = vsel %vm3823, %v6685, 0.0
    %v7197 = vsel %vm3824, %v6686, 0.0
    %v7198 = vsel %vm3825, %v6687, 0.0
    %v7199 = vsel %vm3826, %v6688, 0.0
    %v7200 = vsel %vm3827, %v6689, 0.0
    %v7201 = vsel %vm3828, %v6690, 0.0
    %v7202 = vsel %vm3829, %v6691, 0.0
    %v7203 = vsel %vm3830, %v6692, 0.0
    %v7204 = vsel %vm3831, %v6693, 0.0
    %v7205 = vsel %vm3832, %v6694, 0.0
    %v7206 = vsel %vm3833, %v6695, 0.0
    %v7207 = vsel %vm3834, %v6696, 0.0
    %v7208 = vsel %vm3835, %v6697, 0.0
    %v7209 = vsel %vm3836, %v6698, 0.0
    %v7210 = vsel %vm3837, %v6699, 0.0
    %v7211 = vsel %vm3838, %v6700, 0.0
    %v7212 = vsel %vm3839, %v6701, 0.0
    %v7213 = vsel %vm3840, %v6702, 0.0
    %v7214 = vsel %vm3841, %v6703, 0.0
    %v7215 = vsel %vm3842, %v6704, 0.0
    %v7216 = vsel %vm3843, %v6705, 0.0
    %v7217 = vsel %vm3844, %v6706, 0.0
    %v7218 = vsel %vm3845, %v6707, 0.0
    %v7219 = vsel %vm3846, %v6708, 0.0
    %v7220 = vsel %vm3847, %v6709, 0.0
    %v7221 = vsel %vm3848, %v6710, 0.0
    %v7222 = vsel %vm3849, %v6711, 0.0
    %v7223 = vsel %vm3850, %v6712, 0.0
    %v7224 = vsel %vm3851, %v6713, 0.0
    %v7225 = vsel %vm3852, %v6714, 0.0
    %v7226 = vsel %vm3853, %v6715, 0.0
    %v7227 = vsel %vm3854, %v6716, 0.0
    %v7228 = vsel %vm3855, %v6717, 0.0
    %v7229 = vsel %vm3856, %v6718, 0.0
    %v7230 = vsel %vm3857, %v6719, 0.0
    %v7231 = vsel %vm3858, %v6720, 0.0
    %v7232 = vsel %vm3859, %v6721, 0.0
    %v7233 = vsel %vm3860, %v6722, 0.0
    %v7234 = vsel %vm3861, %v6723, 0.0
    %v7235 = vsel %vm3862, %v6724, 0.0
    %v7236 = vsel %vm3863, %v6725, 0.0
    %v7237 = vsel %vm3864, %v6726, 0.0
    %v7238 = vsel %vm3865, %v6727, 0.0
    %v7239 = vsel %vm3866, %v6728, 0.0
    %v7240 = vsel %vm3867, %v6729, 0.0
    %v7241 = vsel %vm3868, %v6730, 0.0
    %v7242 = vsel %vm3869, %v6731, 0.0
    %v7243 = vsel %vm3870, %v6668, 0.0
    %v7244 = vsel %vm3871, %v6669, 0.0
    %v7245 = vsel %vm3808, %v6349, 0.0
    %v7246 = vsel %vm3809, %v6350, 0.0
    %v7247 = vsel %vm3810, %v6351, 0.0
    %v7248 = vsel %vm3811, %v6352, 0.0
    %v7249 = vsel %vm3812, %v6353, 0.0
    %v7250 = vsel %vm3813, %v6354, 0.0
    %v7251 = vsel %vm3814, %v6355, 0.0
    %v7252 = vsel %vm3815, %v6356, 0.0
    %v7253 = vsel %vm3816, %v6357, 0.0
    %v7254 = vsel %vm3817, %v6358, 0.0
    %v7255 = vsel %vm3818, %v6359, 0.0
    %v7256 = vsel %vm3819, %v6360, 0.0
    %v7257 = vsel %vm3820, %v6361, 0.0
    %v7258 = vsel %vm3821, %v6362, 0.0
    %v7259 = vsel %vm3822, %v6363, 0.0
    %v7260 = vsel %vm3823, %v6364, 0.0
    %v7261 = vsel %vm3824, %v6365, 0.0
    %v7262 = vsel %vm3825, %v6366, 0.0
    %v7263 = vsel %vm3826, %v6367, 0.0
    %v7264 = vsel %vm3827, %v6368, 0.0
    %v7265 = vsel %vm3828, %v6369, 0.0
    %v7266 = vsel %vm3829, %v6370, 0.0
    %v7267 = vsel %vm3830, %v6371, 0.0
    %v7268 = vsel %vm3831, %v6372, 0.0
    %v7269 = vsel %vm3832, %v6373, 0.0
    %v7270 = vsel %vm3833, %v6374, 0.0
    %v7271 = vsel %vm3834, %v6375, 0.0
    %v7272 = vsel %vm3835, %v6376, 0.0
    %v7273 = vsel %vm3836, %v6377, 0.0
    %v7274 = vsel %vm3837, %v6378, 0.0
    %v7275 = vsel %vm3838, %v6379, 0.0
    %v7276 = vsel %vm3839, %v6380, 0.0
    %v7277 = vsel %vm3840, %v6381, 0.0
    %v7278 = vsel %vm3841, %v6382, 0.0
    %v7279 = vsel %vm3842, %v6383, 0.0
    %v7280 = vsel %vm3843, %v6384, 0.0
    %v7281 = vsel %vm3844, %v6385, 0.0
    %v7282 = vsel %vm3845, %v6386, 0.0
    %v7283 = vsel %vm3846, %v6387, 0.0
    %v7284 = vsel %vm3847, %v6388, 0.0
    %v7285 = vsel %vm3848, %v6389, 0.0
    %v7286 = vsel %vm3849, %v6390, 0.0
    %v7287 = vsel %vm3850, %v6391, 0.0
    %v7288 = vsel %vm3851, %v6392, 0.0
    %v7289 = vsel %vm3852, %v6393, 0.0
    %v7290 = vsel %vm3853, %v6394, 0.0
    %v7291 = vsel %vm3854, %v6395, 0.0
    %v7292 = vsel %vm3855, %v6396, 0.0
    %v7293 = vsel %vm3856, %v6397, 0.0
    %v7294 = vsel %vm3857, %v6398, 0.0
    %v7295 = vsel %vm3858, %v6399, 0.0
    %v7296 = vsel %vm3859, %v6400, 0.0
    %v7297 = vsel %vm3860, %v6401, 0.0
    %v7298 = vsel %vm3861, %v6402, 0.0
    %v7299 = vsel %vm3862, %v6403, 0.0
    %v7300 = vsel %vm3863, %v6404, 0.0
    %v7301 = vsel %vm3864, %v6405, 0.0
    %v7302 = vsel %vm3865, %v6406, 0.0
    %v7303 = vsel %vm3866, %v6407, 0.0
    %v7304 = vsel %vm3867, %v6408, 0.0
    %v7305 = vsel %vm3868, %v6409, 0.0
    %v7306 = vsel %vm3869, %v6410, 0.0
    %v7307 = vsel %vm3870, %v6347, 0.0
    %v7308 = vsel %vm3871, %v6348, 0.0
    %v7309 = vsel %vm3808, %v6927, 0.0
    %v7310 = vsel %vm3809, %v6928, 0.0
    %v7311 = vsel %vm3810, %v6929, 0.0
    %v7312 = vsel %vm3811, %v6930, 0.0
    %v7313 = vsel %vm3812, %v6931, 0.0
    %v7314 = vsel %vm3813, %v6932, 0.0
    %v7315 = vsel %vm3814, %v6933, 0.0
    %v7316 = vsel %vm3815, %v6934, 0.0
    %v7317 = vsel %vm3816, %v6935, 0.0
    %v7318 = vsel %vm3817, %v6936, 0.0
    %v7319 = vsel %vm3818, %v6937, 0.0
    %v7320 = vsel %vm3819, %v6938, 0.0
    %v7321 = vsel %vm3820, %v6939, 0.0
    %v7322 = vsel %vm3821, %v6940, 0.0
    %v7323 = vsel %vm3822, %v6941, 0.0
    %v7324 = vsel %vm3823, %v6942, 0.0
    %v7325 = vsel %vm3824, %v6943, 0.0
    %v7326 = vsel %vm3825, %v6944, 0.0
    %v7327 = vsel %vm3826, %v6945, 0.0
    %v7328 = vsel %vm3827, %v6946, 0.0
    %v7329 = vsel %vm3828, %v6947, 0.0
    %v7330 = vsel %vm3829, %v6948, 0.0
    %v7331 = vsel %vm3830, %v6949, 0.0
    %v7332 = vsel %vm3831, %v6950, 0.0
    %v7333 = vsel %vm3832, %v6951, 0.0
    %v7334 = vsel %vm3833, %v6952, 0.0
    %v7335 = vsel %vm3834, %v6953, 0.0
    %v7336 = vsel %vm3835, %v6954, 0.0
    %v7337 = vsel %vm3836, %v6955, 0.0
    %v7338 = vsel %vm3837, %v6956, 0.0
    %v7339 = vsel %vm3838, %v6957, 0.0
    %v7340 = vsel %vm3839, %v6958, 0.0
    %v7341 = vsel %vm3840, %v6959, 0.0
    %v7342 = vsel %vm3841, %v6960, 0.0
    %v7343 = vsel %vm3842, %v6961, 0.0
    %v7344 = vsel %vm3843, %v6962, 0.0
    %v7345 = vsel %vm3844, %v6963, 0.0
    %v7346 = vsel %vm3845, %v6964, 0.0
    %v7347 = vsel %vm3846, %v6965, 0.0
    %v7348 = vsel %vm3847, %v6966, 0.0
    %v7349 = vsel %vm3848, %v6967, 0.0
    %v7350 = vsel %vm3849, %v6968, 0.0
    %v7351 = vsel %vm3850, %v6969, 0.0
    %v7352 = vsel %vm3851, %v6970, 0.0
    %v7353 = vsel %vm3852, %v6971, 0.0
    %v7354 = vsel %vm3853, %v6972, 0.0
    %v7355 = vsel %vm3854, %v6973, 0.0
    %v7356 = vsel %vm3855, %v6974, 0.0
    %v7357 = vsel %vm3856, %v6975, 0.0
    %v7358 = vsel %vm3857, %v6976, 0.0
    %v7359 = vsel %vm3858, %v6977, 0.0
    %v7360 = vsel %vm3859, %v6978, 0.0
    %v7361 = vsel %vm3860, %v6979, 0.0
    %v7362 = vsel %vm3861, %v6980, 0.0
    %v7363 = vsel %vm3862, %v6981, 0.0
    %v7364 = vsel %vm3863, %v6982, 0.0
    %v7365 = vsel %vm3864, %v6983, 0.0
    %v7366 = vsel %vm3865, %v6984, 0.0
    %v7367 = vsel %vm3866, %v6985, 0.0
    %v7368 = vsel %vm3867, %v6986, 0.0
    %v7369 = vsel %vm3868, %v6987, 0.0
    %v7370 = vsel %vm3869, %v6988, 0.0
    %v7371 = vsel %vm3870, %v6925, 0.0
    %v7372 = vsel %vm3871, %v6926, 0.0
    %7373 = vmatprep.subr.mxu0 0.0
    %7374 = vmatpush1.msra.mxu0 %v187
    %7375 = vmatprep.subr.mxu0 0.0
    %7376 = vmatpush1.msra.mxu0 %v186
    %7377 = vmatprep.subr.mxu0 0.0
    %7378 = vmatpush1.msra.mxu0 %v185
    %7379 = vmatprep.subr.mxu0 0.0
    %7380 = vmatpush1.msra.mxu0 %v184
    %7381 = vmatprep.subr.mxu0 0.0
    %7382 = vmatpush1.msra.mxu0 %v183
    %7383 = vmatprep.subr.mxu0 0.0
    %7384 = vmatpush1.msra.mxu0 %v182
    %7385 = vmatprep.subr.mxu0 0.0
    %7386 = vmatpush1.msra.mxu0 %v181
    %7387 = vmatprep.subr.mxu0 0.0
    %7388 = vmatpush1.msra.mxu0 %v180
    %7389 = vmatprep.subr.mxu0 0.0
    %7390 = vmatpush1.msra.mxu0 %v179
    %7391 = vmatprep.subr.mxu0 0.0
    %7392 = vmatpush1.msra.mxu0 %v178
    %7393 = vmatprep.subr.mxu0 0.0
    %7394 = vmatpush1.msra.mxu0 %v177
    %7395 = vmatprep.subr.mxu0 0.0
    %7396 = vmatpush1.msra.mxu0 %v176
    %7397 = vmatprep.subr.mxu0 0.0
    %7398 = vmatpush1.msra.mxu0 %v175
    %7399 = vmatprep.subr.mxu0 0.0
    %7400 = vmatpush1.msra.mxu0 %v174
    %7401 = vmatprep.subr.mxu0 0.0
    %7402 = vmatpush1.msra.mxu0 %v173
    %7403 = vmatprep.subr.mxu0 0.0
    %7404 = vmatpush1.msra.mxu0 %v172
    %7405 = vmatprep.subr.mxu0 0.0
    %7406 = vmatpush2.msra.mxu0 %v203
    %7407 = vmatprep.subr.mxu0 0.0
    %7408 = vmatpush2.msra.mxu0 %v202
    %7409 = vmatprep.subr.mxu0 0.0
    %7410 = vmatpush2.msra.mxu0 %v201
    %7411 = vmatprep.subr.mxu0 0.0
    %7412 = vmatpush2.msra.mxu0 %v200
    %7413 = vmatprep.subr.mxu0 0.0
    %7414 = vmatpush2.msra.mxu0 %v199
    %7415 = vmatprep.subr.mxu0 0.0
    %7416 = vmatpush2.msra.mxu0 %v198
    %7417 = vmatprep.subr.mxu0 0.0
    %7418 = vmatpush2.msra.mxu0 %v197
    %7419 = vmatprep.subr.mxu0 0.0
    %7420 = vmatpush2.msra.mxu0 %v196
    %7421 = vmatprep.subr.mxu0 0.0
    %7422 = vmatpush2.msra.mxu0 %v195
    %7423 = vmatprep.subr.mxu0 0.0
    %7424 = vmatpush2.msra.mxu0 %v194
    %7425 = vmatprep.subr.mxu0 0.0
    %7426 = vmatpush2.msra.mxu0 %v193
    %7427 = vmatprep.subr.mxu0 0.0
    %7428 = vmatpush2.msra.mxu0 %v192
    %7429 = vmatprep.subr.mxu0 0.0
    %7430 = vmatpush2.msra.mxu0 %v191
    %7431 = vmatprep.subr.mxu0 0.0
    %7432 = vmatpush2.msra.mxu0 %v190
    %7433 = vmatprep.subr.mxu0 0.0
    %7434 = vmatpush2.msra.mxu0 %v189
    %7435 = vmatprep.subr.mxu0 0.0
    %7436 = vmatpush2.msra.mxu0 %v188
    %7437 = vmatprep.mubr.f32.mxu0 %v7053
    %7438 = vmatmul.mubr.f32.gmra.mxu0 %v6989
    %v7439 = vpop.f32.mrf.mxu0
    %v7440 = vadd.f32 %v4068, %v7439
    %v7441 = vpop.f32.mrf.mxu0
    %7442 = vmatprep.mubr.f32.mxu0 %v7054
    %7443 = vmatmul.mubr.f32.gmra.mxu0 %v6990
    %v7444 = vpop.f32.mrf.mxu0
    %v7445 = vadd.f32 %v4068, %v7444
    %v7446 = vpop.f32.mrf.mxu0
    %7447 = vmatprep.mubr.f32.mxu0 %v7055
    %7448 = vmatmul.mubr.f32.gmra.mxu0 %v6991
    %v7449 = vpop.f32.mrf.mxu0
    %v7450 = vadd.f32 %v4068, %v7449
    %v7451 = vpop.f32.mrf.mxu0
    %7452 = vmatprep.mubr.f32.mxu0 %v7056
    %7453 = vmatmul.mubr.f32.gmra.mxu0 %v6992
    %v7454 = vpop.f32.mrf.mxu0
    %v7455 = vadd.f32 %v4068, %v7454
    %v7456 = vpop.f32.mrf.mxu0
    %7457 = vmatprep.mubr.f32.mxu0 %v7057
    %7458 = vmatmul.mubr.f32.gmra.mxu0 %v6993
    %v7459 = vpop.f32.mrf.mxu0
    %v7460 = vadd.f32 %v4068, %v7459
    %v7461 = vpop.f32.mrf.mxu0
    %7462 = vmatprep.mubr.f32.mxu0 %v7058
    %7463 = vmatmul.mubr.f32.gmra.mxu0 %v6994
    %v7464 = vpop.f32.mrf.mxu0
    %v7465 = vadd.f32 %v4068, %v7464
    %v7466 = vpop.f32.mrf.mxu0
    %7467 = vmatprep.mubr.f32.mxu0 %v7059
    %7468 = vmatmul.mubr.f32.gmra.mxu0 %v6995
    %v7469 = vpop.f32.mrf.mxu0
    %v7470 = vadd.f32 %v4068, %v7469
    %v7471 = vpop.f32.mrf.mxu0
    %7472 = vmatprep.mubr.f32.mxu0 %v7060
    %7473 = vmatmul.mubr.f32.gmra.mxu0 %v6996
    %v7474 = vpop.f32.mrf.mxu0
    %v7475 = vadd.f32 %v4068, %v7474
    %v7476 = vpop.f32.mrf.mxu0
    %7477 = vmatprep.mubr.f32.mxu0 %v7061
    %7478 = vmatmul.mubr.f32.gmra.mxu0 %v6997
    %v7479 = vpop.f32.mrf.mxu0
    %v7480 = vadd.f32 %v4068, %v7479
    %v7481 = vpop.f32.mrf.mxu0
    %7482 = vmatprep.mubr.f32.mxu0 %v7062
    %7483 = vmatmul.mubr.f32.gmra.mxu0 %v6998
    %v7484 = vpop.f32.mrf.mxu0
    %v7485 = vadd.f32 %v4068, %v7484
    %v7486 = vpop.f32.mrf.mxu0
    %7487 = vmatprep.mubr.f32.mxu0 %v7063
    %7488 = vmatmul.mubr.f32.gmra.mxu0 %v6999
    %v7489 = vpop.f32.mrf.mxu0
    %v7490 = vadd.f32 %v4068, %v7489
    %v7491 = vpop.f32.mrf.mxu0
    %7492 = vmatprep.mubr.f32.mxu0 %v7064
    %7493 = vmatmul.mubr.f32.gmra.mxu0 %v7000
    %v7494 = vpop.f32.mrf.mxu0
    %v7495 = vadd.f32 %v4068, %v7494
    %v7496 = vpop.f32.mrf.mxu0
    %7497 = vmatprep.mubr.f32.mxu0 %v7065
    %7498 = vmatmul.mubr.f32.gmra.mxu0 %v7001
    %v7499 = vpop.f32.mrf.mxu0
    %v7500 = vadd.f32 %v4068, %v7499
    %v7501 = vpop.f32.mrf.mxu0
    %7502 = vmatprep.mubr.f32.mxu0 %v7066
    %7503 = vmatmul.mubr.f32.gmra.mxu0 %v7002
    %v7504 = vpop.f32.mrf.mxu0
    %v7505 = vadd.f32 %v4068, %v7504
    %v7506 = vpop.f32.mrf.mxu0
    %7507 = vmatprep.mubr.f32.mxu0 %v7067
    %7508 = vmatmul.mubr.f32.gmra.mxu0 %v7003
    %v7509 = vpop.f32.mrf.mxu0
    %v7510 = vadd.f32 %v4068, %v7509
    %v7511 = vpop.f32.mrf.mxu0
    %7512 = vmatprep.mubr.f32.mxu0 %v7068
    %7513 = vmatmul.mubr.f32.gmra.mxu0 %v7004
    %v7514 = vpop.f32.mrf.mxu0
    %v7515 = vadd.f32 %v4068, %v7514
    %v7516 = vpop.f32.mrf.mxu0
    %7517 = vmatprep.mubr.f32.mxu0 %v7069
    %7518 = vmatmul.mubr.f32.gmra.mxu0 %v7005
    %v7519 = vpop.f32.mrf.mxu0
    %v7520 = vadd.f32 %v4068, %v7519
    %v7521 = vpop.f32.mrf.mxu0
    %7522 = vmatprep.mubr.f32.mxu0 %v7070
    %7523 = vmatmul.mubr.f32.gmra.mxu0 %v7006
    %v7524 = vpop.f32.mrf.mxu0
    %v7525 = vadd.f32 %v4068, %v7524
    %v7526 = vpop.f32.mrf.mxu0
    %7527 = vmatprep.mubr.f32.mxu0 %v7071
    %7528 = vmatmul.mubr.f32.gmra.mxu0 %v7007
    %v7529 = vpop.f32.mrf.mxu0
    %v7530 = vadd.f32 %v4068, %v7529
    %v7531 = vpop.f32.mrf.mxu0
    %7532 = vmatprep.mubr.f32.mxu0 %v7072
    %7533 = vmatmul.mubr.f32.gmra.mxu0 %v7008
    %v7534 = vpop.f32.mrf.mxu0
    %v7535 = vadd.f32 %v4068, %v7534
    %v7536 = vpop.f32.mrf.mxu0
    %7537 = vmatprep.mubr.f32.mxu0 %v7073
    %7538 = vmatmul.mubr.f32.gmra.mxu0 %v7009
    %v7539 = vpop.f32.mrf.mxu0
    %v7540 = vadd.f32 %v4068, %v7539
    %v7541 = vpop.f32.mrf.mxu0
    %7542 = vmatprep.mubr.f32.mxu0 %v7074
    %7543 = vmatmul.mubr.f32.gmra.mxu0 %v7010
    %v7544 = vpop.f32.mrf.mxu0
    %v7545 = vadd.f32 %v4068, %v7544
    %v7546 = vpop.f32.mrf.mxu0
    %7547 = vmatprep.mubr.f32.mxu0 %v7075
    %7548 = vmatmul.mubr.f32.gmra.mxu0 %v7011
    %v7549 = vpop.f32.mrf.mxu0
    %v7550 = vadd.f32 %v4068, %v7549
    %v7551 = vpop.f32.mrf.mxu0
    %7552 = vmatprep.mubr.f32.mxu0 %v7076
    %7553 = vmatmul.mubr.f32.gmra.mxu0 %v7012
    %v7554 = vpop.f32.mrf.mxu0
    %v7555 = vadd.f32 %v4068, %v7554
    %v7556 = vpop.f32.mrf.mxu0
    %7557 = vmatprep.mubr.f32.mxu0 %v7077
    %7558 = vmatmul.mubr.f32.gmra.mxu0 %v7013
    %v7559 = vpop.f32.mrf.mxu0
    %v7560 = vadd.f32 %v4068, %v7559
    %v7561 = vpop.f32.mrf.mxu0
    %7562 = vmatprep.mubr.f32.mxu0 %v7078
    %7563 = vmatmul.mubr.f32.gmra.mxu0 %v7014
    %v7564 = vpop.f32.mrf.mxu0
    %v7565 = vadd.f32 %v4068, %v7564
    %v7566 = vpop.f32.mrf.mxu0
    %7567 = vmatprep.mubr.f32.mxu0 %v7079
    %7568 = vmatmul.mubr.f32.gmra.mxu0 %v7015
    %v7569 = vpop.f32.mrf.mxu0
    %v7570 = vadd.f32 %v4068, %v7569
    %v7571 = vpop.f32.mrf.mxu0
    %7572 = vmatprep.mubr.f32.mxu0 %v7080
    %7573 = vmatmul.mubr.f32.gmra.mxu0 %v7016
    %v7574 = vpop.f32.mrf.mxu0
    %v7575 = vadd.f32 %v4068, %v7574
    %v7576 = vpop.f32.mrf.mxu0
    %7577 = vmatprep.mubr.f32.mxu0 %v7081
    %7578 = vmatmul.mubr.f32.gmra.mxu0 %v7017
    %v7579 = vpop.f32.mrf.mxu0
    %v7580 = vadd.f32 %v4068, %v7579
    %v7581 = vpop.f32.mrf.mxu0
    %7582 = vmatprep.mubr.f32.mxu0 %v7082
    %7583 = vmatmul.mubr.f32.gmra.mxu0 %v7018
    %v7584 = vpop.f32.mrf.mxu0
    %v7585 = vadd.f32 %v4068, %v7584
    %v7586 = vpop.f32.mrf.mxu0
    %7587 = vmatprep.mubr.f32.mxu0 %v7083
    %7588 = vmatmul.mubr.f32.gmra.mxu0 %v7019
    %v7589 = vpop.f32.mrf.mxu0
    %v7590 = vadd.f32 %v4068, %v7589
    %v7591 = vpop.f32.mrf.mxu0
    %7592 = vmatprep.mubr.f32.mxu0 %v7084
    %7593 = vmatmul.mubr.f32.gmra.mxu0 %v7020
    %v7594 = vpop.f32.mrf.mxu0
    %v7595 = vadd.f32 %v4068, %v7594
    %v7596 = vpop.f32.mrf.mxu0
    %7597 = vmatprep.mubr.f32.mxu0 %v7085
    %7598 = vmatmul.mubr.f32.gmra.mxu0 %v7021
    %v7599 = vpop.f32.mrf.mxu0
    %v7600 = vadd.f32 %v4068, %v7599
    %v7601 = vpop.f32.mrf.mxu0
    %7602 = vmatprep.mubr.f32.mxu0 %v7086
    %7603 = vmatmul.mubr.f32.gmra.mxu0 %v7022
    %v7604 = vpop.f32.mrf.mxu0
    %v7605 = vadd.f32 %v4068, %v7604
    %v7606 = vpop.f32.mrf.mxu0
    %7607 = vmatprep.mubr.f32.mxu0 %v7087
    %7608 = vmatmul.mubr.f32.gmra.mxu0 %v7023
    %v7609 = vpop.f32.mrf.mxu0
    %v7610 = vadd.f32 %v4068, %v7609
    %v7611 = vpop.f32.mrf.mxu0
    %7612 = vmatprep.mubr.f32.mxu0 %v7088
    %7613 = vmatmul.mubr.f32.gmra.mxu0 %v7024
    %v7614 = vpop.f32.mrf.mxu0
    %v7615 = vadd.f32 %v4068, %v7614
    %v7616 = vpop.f32.mrf.mxu0
    %7617 = vmatprep.mubr.f32.mxu0 %v7089
    %7618 = vmatmul.mubr.f32.gmra.mxu0 %v7025
    %v7619 = vpop.f32.mrf.mxu0
    %v7620 = vadd.f32 %v4068, %v7619
    %v7621 = vpop.f32.mrf.mxu0
    %7622 = vmatprep.mubr.f32.mxu0 %v7090
    %7623 = vmatmul.mubr.f32.gmra.mxu0 %v7026
    %v7624 = vpop.f32.mrf.mxu0
    %v7625 = vadd.f32 %v4068, %v7624
    %v7626 = vpop.f32.mrf.mxu0
    %7627 = vmatprep.mubr.f32.mxu0 %v7091
    %7628 = vmatmul.mubr.f32.gmra.mxu0 %v7027
    %v7629 = vpop.f32.mrf.mxu0
    %v7630 = vadd.f32 %v4068, %v7629
    %v7631 = vpop.f32.mrf.mxu0
    %7632 = vmatprep.mubr.f32.mxu0 %v7092
    %7633 = vmatmul.mubr.f32.gmra.mxu0 %v7028
    %v7634 = vpop.f32.mrf.mxu0
    %v7635 = vadd.f32 %v4068, %v7634
    %v7636 = vpop.f32.mrf.mxu0
    %7637 = vmatprep.mubr.f32.mxu0 %v7093
    %7638 = vmatmul.mubr.f32.gmra.mxu0 %v7029
    %v7639 = vpop.f32.mrf.mxu0
    %v7640 = vadd.f32 %v4068, %v7639
    %v7641 = vpop.f32.mrf.mxu0
    %7642 = vmatprep.mubr.f32.mxu0 %v7094
    %7643 = vmatmul.mubr.f32.gmra.mxu0 %v7030
    %v7644 = vpop.f32.mrf.mxu0
    %v7645 = vadd.f32 %v4068, %v7644
    %v7646 = vpop.f32.mrf.mxu0
    %7647 = vmatprep.mubr.f32.mxu0 %v7095
    %7648 = vmatmul.mubr.f32.gmra.mxu0 %v7031
    %v7649 = vpop.f32.mrf.mxu0
    %v7650 = vadd.f32 %v4068, %v7649
    %v7651 = vpop.f32.mrf.mxu0
    %7652 = vmatprep.mubr.f32.mxu0 %v7096
    %7653 = vmatmul.mubr.f32.gmra.mxu0 %v7032
    %v7654 = vpop.f32.mrf.mxu0
    %v7655 = vadd.f32 %v4068, %v7654
    %v7656 = vpop.f32.mrf.mxu0
    %7657 = vmatprep.mubr.f32.mxu0 %v7097
    %7658 = vmatmul.mubr.f32.gmra.mxu0 %v7033
    %v7659 = vpop.f32.mrf.mxu0
    %v7660 = vadd.f32 %v4068, %v7659
    %v7661 = vpop.f32.mrf.mxu0
    %7662 = vmatprep.mubr.f32.mxu0 %v7098
    %7663 = vmatmul.mubr.f32.gmra.mxu0 %v7034
    %v7664 = vpop.f32.mrf.mxu0
    %v7665 = vadd.f32 %v4068, %v7664
    %v7666 = vpop.f32.mrf.mxu0
    %7667 = vmatprep.mubr.f32.mxu0 %v7099
    %7668 = vmatmul.mubr.f32.gmra.mxu0 %v7035
    %v7669 = vpop.f32.mrf.mxu0
    %v7670 = vadd.f32 %v4068, %v7669
    %v7671 = vpop.f32.mrf.mxu0
    %7672 = vmatprep.mubr.f32.mxu0 %v7100
    %7673 = vmatmul.mubr.f32.gmra.mxu0 %v7036
    %v7674 = vpop.f32.mrf.mxu0
    %v7675 = vadd.f32 %v4068, %v7674
    %v7676 = vpop.f32.mrf.mxu0
    %7677 = vmatprep.mubr.f32.mxu0 %v7101
    %7678 = vmatmul.mubr.f32.gmra.mxu0 %v7037
    %v7679 = vpop.f32.mrf.mxu0
    %v7680 = vadd.f32 %v4068, %v7679
    %v7681 = vpop.f32.mrf.mxu0
    %7682 = vmatprep.mubr.f32.mxu0 %v7102
    %7683 = vmatmul.mubr.f32.gmra.mxu0 %v7038
    %v7684 = vpop.f32.mrf.mxu0
    %v7685 = vadd.f32 %v4068, %v7684
    %v7686 = vpop.f32.mrf.mxu0
    %7687 = vmatprep.mubr.f32.mxu0 %v7103
    %7688 = vmatmul.mubr.f32.gmra.mxu0 %v7039
    %v7689 = vpop.f32.mrf.mxu0
    %v7690 = vadd.f32 %v4068, %v7689
    %v7691 = vpop.f32.mrf.mxu0
    %7692 = vmatprep.mubr.f32.mxu0 %v7104
    %7693 = vmatmul.mubr.f32.gmra.mxu0 %v7040
    %v7694 = vpop.f32.mrf.mxu0
    %v7695 = vadd.f32 %v4068, %v7694
    %v7696 = vpop.f32.mrf.mxu0
    %7697 = vmatprep.mubr.f32.mxu0 %v7105
    %7698 = vmatmul.mubr.f32.gmra.mxu0 %v7041
    %v7699 = vpop.f32.mrf.mxu0
    %v7700 = vadd.f32 %v4068, %v7699
    %v7701 = vpop.f32.mrf.mxu0
    %7702 = vmatprep.mubr.f32.mxu0 %v7106
    %7703 = vmatmul.mubr.f32.gmra.mxu0 %v7042
    %v7704 = vpop.f32.mrf.mxu0
    %v7705 = vadd.f32 %v4068, %v7704
    %v7706 = vpop.f32.mrf.mxu0
    %7707 = vmatprep.mubr.f32.mxu0 %v7107
    %7708 = vmatmul.mubr.f32.gmra.mxu0 %v7043
    %v7709 = vpop.f32.mrf.mxu0
    %v7710 = vadd.f32 %v4068, %v7709
    %v7711 = vpop.f32.mrf.mxu0
    %7712 = vmatprep.mubr.f32.mxu0 %v7108
    %7713 = vmatmul.mubr.f32.gmra.mxu0 %v7044
    %v7714 = vpop.f32.mrf.mxu0
    %v7715 = vadd.f32 %v4068, %v7714
    %v7716 = vpop.f32.mrf.mxu0
    %7717 = vmatprep.mubr.f32.mxu0 %v7109
    %7718 = vmatmul.mubr.f32.gmra.mxu0 %v7045
    %v7719 = vpop.f32.mrf.mxu0
    %v7720 = vadd.f32 %v4068, %v7719
    %v7721 = vpop.f32.mrf.mxu0
    %7722 = vmatprep.mubr.f32.mxu0 %v7110
    %7723 = vmatmul.mubr.f32.gmra.mxu0 %v7046
    %v7724 = vpop.f32.mrf.mxu0
    %v7725 = vadd.f32 %v4068, %v7724
    %v7726 = vpop.f32.mrf.mxu0
    %7727 = vmatprep.mubr.f32.mxu0 %v7111
    %7728 = vmatmul.mubr.f32.gmra.mxu0 %v7047
    %v7729 = vpop.f32.mrf.mxu0
    %v7730 = vadd.f32 %v4068, %v7729
    %v7731 = vpop.f32.mrf.mxu0
    %7732 = vmatprep.mubr.f32.mxu0 %v7112
    %7733 = vmatmul.mubr.f32.gmra.mxu0 %v7048
    %v7734 = vpop.f32.mrf.mxu0
    %v7735 = vadd.f32 %v4068, %v7734
    %v7736 = vpop.f32.mrf.mxu0
    %7737 = vmatprep.mubr.f32.mxu0 %v7113
    %7738 = vmatmul.mubr.f32.gmra.mxu0 %v7049
    %v7739 = vpop.f32.mrf.mxu0
    %v7740 = vadd.f32 %v4068, %v7739
    %v7741 = vpop.f32.mrf.mxu0
    %7742 = vmatprep.mubr.f32.mxu0 %v7114
    %7743 = vmatmul.mubr.f32.gmra.mxu0 %v7050
    %v7744 = vpop.f32.mrf.mxu0
    %v7745 = vadd.f32 %v4068, %v7744
    %v7746 = vpop.f32.mrf.mxu0
    %7747 = vmatprep.mubr.f32.mxu0 %v7115
    %7748 = vmatmul.mubr.f32.gmra.mxu0 %v7051
    %v7749 = vpop.f32.mrf.mxu0
    %v7750 = vadd.f32 %v4068, %v7749
    %v7751 = vpop.f32.mrf.mxu0
    %7752 = vmatprep.mubr.f32.mxu0 %v7116
    %7753 = vmatmul.mubr.f32.gmra.mxu0 %v7052
    %v7754 = vpop.f32.mrf.mxu0
    %v7755 = vadd.f32 %v4068, %v7754
    %v7756 = vpop.f32.mrf.mxu0
    %7757 = vdwg.mxu0
    %7758 = vmatprep.subr.mxu0 0.0
    %7759 = vmatpush1.msra.mxu0 %v219
    %7760 = vmatprep.subr.mxu0 0.0
    %7761 = vmatpush1.msra.mxu0 %v218
    %7762 = vmatprep.subr.mxu0 0.0
    %7763 = vmatpush1.msra.mxu0 %v217
    %7764 = vmatprep.subr.mxu0 0.0
    %7765 = vmatpush1.msra.mxu0 %v216
    %7766 = vmatprep.subr.mxu0 0.0
    %7767 = vmatpush1.msra.mxu0 %v215
    %7768 = vmatprep.subr.mxu0 0.0
    %7769 = vmatpush1.msra.mxu0 %v214
    %7770 = vmatprep.subr.mxu0 0.0
    %7771 = vmatpush1.msra.mxu0 %v213
    %7772 = vmatprep.subr.mxu0 0.0
    %7773 = vmatpush1.msra.mxu0 %v212
    %7774 = vmatprep.subr.mxu0 0.0
    %7775 = vmatpush1.msra.mxu0 %v211
    %7776 = vmatprep.subr.mxu0 0.0
    %7777 = vmatpush1.msra.mxu0 %v210
    %7778 = vmatprep.subr.mxu0 0.0
    %7779 = vmatpush1.msra.mxu0 %v209
    %7780 = vmatprep.subr.mxu0 0.0
    %7781 = vmatpush1.msra.mxu0 %v208
    %7782 = vmatprep.subr.mxu0 0.0
    %7783 = vmatpush1.msra.mxu0 %v207
    %7784 = vmatprep.subr.mxu0 0.0
    %7785 = vmatpush1.msra.mxu0 %v206
    %7786 = vmatprep.subr.mxu0 0.0
    %7787 = vmatpush1.msra.mxu0 %v205
    %7788 = vmatprep.subr.mxu0 0.0
    %7789 = vmatpush1.msra.mxu0 %v204
    %7790 = vmatprep.subr.mxu0 0.0
    %7791 = vmatpush2.msra.mxu0 %v235
    %7792 = vmatprep.subr.mxu0 0.0
    %7793 = vmatpush2.msra.mxu0 %v234
    %7794 = vmatprep.subr.mxu0 0.0
    %7795 = vmatpush2.msra.mxu0 %v233
    %7796 = vmatprep.subr.mxu0 0.0
    %7797 = vmatpush2.msra.mxu0 %v232
    %7798 = vmatprep.subr.mxu0 0.0
    %7799 = vmatpush2.msra.mxu0 %v231
    %7800 = vmatprep.subr.mxu0 0.0
    %7801 = vmatpush2.msra.mxu0 %v230
    %7802 = vmatprep.subr.mxu0 0.0
    %7803 = vmatpush2.msra.mxu0 %v229
    %7804 = vmatprep.subr.mxu0 0.0
    %7805 = vmatpush2.msra.mxu0 %v228
    %7806 = vmatprep.subr.mxu0 0.0
    %7807 = vmatpush2.msra.mxu0 %v227
    %7808 = vmatprep.subr.mxu0 0.0
    %7809 = vmatpush2.msra.mxu0 %v226
    %7810 = vmatprep.subr.mxu0 0.0
    %7811 = vmatpush2.msra.mxu0 %v225
    %7812 = vmatprep.subr.mxu0 0.0
    %7813 = vmatpush2.msra.mxu0 %v224
    %7814 = vmatprep.subr.mxu0 0.0
    %7815 = vmatpush2.msra.mxu0 %v223
    %7816 = vmatprep.subr.mxu0 0.0
    %7817 = vmatpush2.msra.mxu0 %v222
    %7818 = vmatprep.subr.mxu0 0.0
    %7819 = vmatpush2.msra.mxu0 %v221
    %7820 = vmatprep.subr.mxu0 0.0
    %7821 = vmatpush2.msra.mxu0 %v220
    %7822 = vmatprep.mubr.f32.mxu0 %v6668
    %7823 = vmatmul.mubr.f32.gmra.mxu0 %v7117
    %v7824 = vpop.f32.mrf.mxu0
    %v7825 = vadd.f32 %v7440, %v7824
    %v7826 = vpop.f32.mrf.mxu0
    %7827 = vmatprep.mubr.f32.mxu0 %v6669
    %7828 = vmatmul.mubr.f32.gmra.mxu0 %v7118
    %v7829 = vpop.f32.mrf.mxu0
    %v7830 = vadd.f32 %v7445, %v7829
    %v7831 = vpop.f32.mrf.mxu0
    %7832 = vmatprep.mubr.f32.mxu0 %v6670
    %7833 = vmatmul.mubr.f32.gmra.mxu0 %v7119
    %v7834 = vpop.f32.mrf.mxu0
    %v7835 = vadd.f32 %v7450, %v7834
    %v7836 = vpop.f32.mrf.mxu0
    %7837 = vmatprep.mubr.f32.mxu0 %v6671
    %7838 = vmatmul.mubr.f32.gmra.mxu0 %v7120
    %v7839 = vpop.f32.mrf.mxu0
    %v7840 = vadd.f32 %v7455, %v7839
    %v7841 = vpop.f32.mrf.mxu0
    %7842 = vmatprep.mubr.f32.mxu0 %v6672
    %7843 = vmatmul.mubr.f32.gmra.mxu0 %v7121
    %v7844 = vpop.f32.mrf.mxu0
    %v7845 = vadd.f32 %v7460, %v7844
    %v7846 = vpop.f32.mrf.mxu0
    %7847 = vmatprep.mubr.f32.mxu0 %v6673
    %7848 = vmatmul.mubr.f32.gmra.mxu0 %v7122
    %v7849 = vpop.f32.mrf.mxu0
    %v7850 = vadd.f32 %v7465, %v7849
    %v7851 = vpop.f32.mrf.mxu0
    %7852 = vmatprep.mubr.f32.mxu0 %v6674
    %7853 = vmatmul.mubr.f32.gmra.mxu0 %v7123
    %v7854 = vpop.f32.mrf.mxu0
    %v7855 = vadd.f32 %v7470, %v7854
    %v7856 = vpop.f32.mrf.mxu0
    %7857 = vmatprep.mubr.f32.mxu0 %v6675
    %7858 = vmatmul.mubr.f32.gmra.mxu0 %v7124
    %v7859 = vpop.f32.mrf.mxu0
    %v7860 = vadd.f32 %v7475, %v7859
    %v7861 = vpop.f32.mrf.mxu0
    %7862 = vmatprep.mubr.f32.mxu0 %v6676
    %7863 = vmatmul.mubr.f32.gmra.mxu0 %v7125
    %v7864 = vpop.f32.mrf.mxu0
    %v7865 = vadd.f32 %v7480, %v7864
    %v7866 = vpop.f32.mrf.mxu0
    %7867 = vmatprep.mubr.f32.mxu0 %v6677
    %7868 = vmatmul.mubr.f32.gmra.mxu0 %v7126
    %v7869 = vpop.f32.mrf.mxu0
    %v7870 = vadd.f32 %v7485, %v7869
    %v7871 = vpop.f32.mrf.mxu0
    %7872 = vmatprep.mubr.f32.mxu0 %v6678
    %7873 = vmatmul.mubr.f32.gmra.mxu0 %v7127
    %v7874 = vpop.f32.mrf.mxu0
    %v7875 = vadd.f32 %v7490, %v7874
    %v7876 = vpop.f32.mrf.mxu0
    %7877 = vmatprep.mubr.f32.mxu0 %v6679
    %7878 = vmatmul.mubr.f32.gmra.mxu0 %v7128
    %v7879 = vpop.f32.mrf.mxu0
    %v7880 = vadd.f32 %v7495, %v7879
    %v7881 = vpop.f32.mrf.mxu0
    %7882 = vmatprep.mubr.f32.mxu0 %v6680
    %7883 = vmatmul.mubr.f32.gmra.mxu0 %v7129
    %v7884 = vpop.f32.mrf.mxu0
    %v7885 = vadd.f32 %v7500, %v7884
    %v7886 = vpop.f32.mrf.mxu0
    %7887 = vmatprep.mubr.f32.mxu0 %v6681
    %7888 = vmatmul.mubr.f32.gmra.mxu0 %v7130
    %v7889 = vpop.f32.mrf.mxu0
    %v7890 = vadd.f32 %v7505, %v7889
    %v7891 = vpop.f32.mrf.mxu0
    %7892 = vmatprep.mubr.f32.mxu0 %v6682
    %7893 = vmatmul.mubr.f32.gmra.mxu0 %v7131
    %v7894 = vpop.f32.mrf.mxu0
    %v7895 = vadd.f32 %v7510, %v7894
    %v7896 = vpop.f32.mrf.mxu0
    %7897 = vmatprep.mubr.f32.mxu0 %v6683
    %7898 = vmatmul.mubr.f32.gmra.mxu0 %v7132
    %v7899 = vpop.f32.mrf.mxu0
    %v7900 = vadd.f32 %v7515, %v7899
    %v7901 = vpop.f32.mrf.mxu0
    %7902 = vmatprep.mubr.f32.mxu0 %v6684
    %7903 = vmatmul.mubr.f32.gmra.mxu0 %v7133
    %v7904 = vpop.f32.mrf.mxu0
    %v7905 = vadd.f32 %v7520, %v7904
    %v7906 = vpop.f32.mrf.mxu0
    %7907 = vmatprep.mubr.f32.mxu0 %v6685
    %7908 = vmatmul.mubr.f32.gmra.mxu0 %v7134
    %v7909 = vpop.f32.mrf.mxu0
    %v7910 = vadd.f32 %v7525, %v7909
    %v7911 = vpop.f32.mrf.mxu0
    %7912 = vmatprep.mubr.f32.mxu0 %v6686
    %7913 = vmatmul.mubr.f32.gmra.mxu0 %v7135
    %v7914 = vpop.f32.mrf.mxu0
    %v7915 = vadd.f32 %v7530, %v7914
    %v7916 = vpop.f32.mrf.mxu0
    %7917 = vmatprep.mubr.f32.mxu0 %v6687
    %7918 = vmatmul.mubr.f32.gmra.mxu0 %v7136
    %v7919 = vpop.f32.mrf.mxu0
    %v7920 = vadd.f32 %v7535, %v7919
    %v7921 = vpop.f32.mrf.mxu0
    %7922 = vmatprep.mubr.f32.mxu0 %v6688
    %7923 = vmatmul.mubr.f32.gmra.mxu0 %v7137
    %v7924 = vpop.f32.mrf.mxu0
    %v7925 = vadd.f32 %v7540, %v7924
    %v7926 = vpop.f32.mrf.mxu0
    %7927 = vmatprep.mubr.f32.mxu0 %v6689
    %7928 = vmatmul.mubr.f32.gmra.mxu0 %v7138
    %v7929 = vpop.f32.mrf.mxu0
    %v7930 = vadd.f32 %v7545, %v7929
    %v7931 = vpop.f32.mrf.mxu0
    %7932 = vmatprep.mubr.f32.mxu0 %v6690
    %7933 = vmatmul.mubr.f32.gmra.mxu0 %v7139
    %v7934 = vpop.f32.mrf.mxu0
    %v7935 = vadd.f32 %v7550, %v7934
    %v7936 = vpop.f32.mrf.mxu0
    %7937 = vmatprep.mubr.f32.mxu0 %v6691
    %7938 = vmatmul.mubr.f32.gmra.mxu0 %v7140
    %v7939 = vpop.f32.mrf.mxu0
    %v7940 = vadd.f32 %v7555, %v7939
    %v7941 = vpop.f32.mrf.mxu0
    %7942 = vmatprep.mubr.f32.mxu0 %v6692
    %7943 = vmatmul.mubr.f32.gmra.mxu0 %v7141
    %v7944 = vpop.f32.mrf.mxu0
    %v7945 = vadd.f32 %v7560, %v7944
    %v7946 = vpop.f32.mrf.mxu0
    %7947 = vmatprep.mubr.f32.mxu0 %v6693
    %7948 = vmatmul.mubr.f32.gmra.mxu0 %v7142
    %v7949 = vpop.f32.mrf.mxu0
    %v7950 = vadd.f32 %v7565, %v7949
    %v7951 = vpop.f32.mrf.mxu0
    %7952 = vmatprep.mubr.f32.mxu0 %v6694
    %7953 = vmatmul.mubr.f32.gmra.mxu0 %v7143
    %v7954 = vpop.f32.mrf.mxu0
    %v7955 = vadd.f32 %v7570, %v7954
    %v7956 = vpop.f32.mrf.mxu0
    %7957 = vmatprep.mubr.f32.mxu0 %v6695
    %7958 = vmatmul.mubr.f32.gmra.mxu0 %v7144
    %v7959 = vpop.f32.mrf.mxu0
    %v7960 = vadd.f32 %v7575, %v7959
    %v7961 = vpop.f32.mrf.mxu0
    %7962 = vmatprep.mubr.f32.mxu0 %v6696
    %7963 = vmatmul.mubr.f32.gmra.mxu0 %v7145
    %v7964 = vpop.f32.mrf.mxu0
    %v7965 = vadd.f32 %v7580, %v7964
    %v7966 = vpop.f32.mrf.mxu0
    %7967 = vmatprep.mubr.f32.mxu0 %v6697
    %7968 = vmatmul.mubr.f32.gmra.mxu0 %v7146
    %v7969 = vpop.f32.mrf.mxu0
    %v7970 = vadd.f32 %v7585, %v7969
    %v7971 = vpop.f32.mrf.mxu0
    %7972 = vmatprep.mubr.f32.mxu0 %v6698
    %7973 = vmatmul.mubr.f32.gmra.mxu0 %v7147
    %v7974 = vpop.f32.mrf.mxu0
    %v7975 = vadd.f32 %v7590, %v7974
    %v7976 = vpop.f32.mrf.mxu0
    %7977 = vmatprep.mubr.f32.mxu0 %v6699
    %7978 = vmatmul.mubr.f32.gmra.mxu0 %v7148
    %v7979 = vpop.f32.mrf.mxu0
    %v7980 = vadd.f32 %v7595, %v7979
    %v7981 = vpop.f32.mrf.mxu0
    %7982 = vmatprep.mubr.f32.mxu0 %v6700
    %7983 = vmatmul.mubr.f32.gmra.mxu0 %v7149
    %v7984 = vpop.f32.mrf.mxu0
    %v7985 = vadd.f32 %v7600, %v7984
    %v7986 = vpop.f32.mrf.mxu0
    %7987 = vmatprep.mubr.f32.mxu0 %v6701
    %7988 = vmatmul.mubr.f32.gmra.mxu0 %v7150
    %v7989 = vpop.f32.mrf.mxu0
    %v7990 = vadd.f32 %v7605, %v7989
    %v7991 = vpop.f32.mrf.mxu0
    %7992 = vmatprep.mubr.f32.mxu0 %v6702
    %7993 = vmatmul.mubr.f32.gmra.mxu0 %v7151
    %v7994 = vpop.f32.mrf.mxu0
    %v7995 = vadd.f32 %v7610, %v7994
    %v7996 = vpop.f32.mrf.mxu0
    %7997 = vmatprep.mubr.f32.mxu0 %v6703
    %7998 = vmatmul.mubr.f32.gmra.mxu0 %v7152
    %v7999 = vpop.f32.mrf.mxu0
    %v8000 = vadd.f32 %v7615, %v7999
    %v8001 = vpop.f32.mrf.mxu0
    %8002 = vmatprep.mubr.f32.mxu0 %v6704
    %8003 = vmatmul.mubr.f32.gmra.mxu0 %v7153
    %v8004 = vpop.f32.mrf.mxu0
    %v8005 = vadd.f32 %v7620, %v8004
    %v8006 = vpop.f32.mrf.mxu0
    %8007 = vmatprep.mubr.f32.mxu0 %v6705
    %8008 = vmatmul.mubr.f32.gmra.mxu0 %v7154
    %v8009 = vpop.f32.mrf.mxu0
    %v8010 = vadd.f32 %v7625, %v8009
    %v8011 = vpop.f32.mrf.mxu0
    %8012 = vmatprep.mubr.f32.mxu0 %v6706
    %8013 = vmatmul.mubr.f32.gmra.mxu0 %v7155
    %v8014 = vpop.f32.mrf.mxu0
    %v8015 = vadd.f32 %v7630, %v8014
    %v8016 = vpop.f32.mrf.mxu0
    %8017 = vmatprep.mubr.f32.mxu0 %v6707
    %8018 = vmatmul.mubr.f32.gmra.mxu0 %v7156
    %v8019 = vpop.f32.mrf.mxu0
    %v8020 = vadd.f32 %v7635, %v8019
    %v8021 = vpop.f32.mrf.mxu0
    %8022 = vmatprep.mubr.f32.mxu0 %v6708
    %8023 = vmatmul.mubr.f32.gmra.mxu0 %v7157
    %v8024 = vpop.f32.mrf.mxu0
    %v8025 = vadd.f32 %v7640, %v8024
    %v8026 = vpop.f32.mrf.mxu0
    %8027 = vmatprep.mubr.f32.mxu0 %v6709
    %8028 = vmatmul.mubr.f32.gmra.mxu0 %v7158
    %v8029 = vpop.f32.mrf.mxu0
    %v8030 = vadd.f32 %v7645, %v8029
    %v8031 = vpop.f32.mrf.mxu0
    %8032 = vmatprep.mubr.f32.mxu0 %v6710
    %8033 = vmatmul.mubr.f32.gmra.mxu0 %v7159
    %v8034 = vpop.f32.mrf.mxu0
    %v8035 = vadd.f32 %v7650, %v8034
    %v8036 = vpop.f32.mrf.mxu0
    %8037 = vmatprep.mubr.f32.mxu0 %v6711
    %8038 = vmatmul.mubr.f32.gmra.mxu0 %v7160
    %v8039 = vpop.f32.mrf.mxu0
    %v8040 = vadd.f32 %v7655, %v8039
    %v8041 = vpop.f32.mrf.mxu0
    %8042 = vmatprep.mubr.f32.mxu0 %v6712
    %8043 = vmatmul.mubr.f32.gmra.mxu0 %v7161
    %v8044 = vpop.f32.mrf.mxu0
    %v8045 = vadd.f32 %v7660, %v8044
    %v8046 = vpop.f32.mrf.mxu0
    %8047 = vmatprep.mubr.f32.mxu0 %v6713
    %8048 = vmatmul.mubr.f32.gmra.mxu0 %v7162
    %v8049 = vpop.f32.mrf.mxu0
    %v8050 = vadd.f32 %v7665, %v8049
    %v8051 = vpop.f32.mrf.mxu0
    %8052 = vmatprep.mubr.f32.mxu0 %v6714
    %8053 = vmatmul.mubr.f32.gmra.mxu0 %v7163
    %v8054 = vpop.f32.mrf.mxu0
    %v8055 = vadd.f32 %v7670, %v8054
    %v8056 = vpop.f32.mrf.mxu0
    %8057 = vmatprep.mubr.f32.mxu0 %v6715
    %8058 = vmatmul.mubr.f32.gmra.mxu0 %v7164
    %v8059 = vpop.f32.mrf.mxu0
    %v8060 = vadd.f32 %v7675, %v8059
    %v8061 = vpop.f32.mrf.mxu0
    %8062 = vmatprep.mubr.f32.mxu0 %v6716
    %8063 = vmatmul.mubr.f32.gmra.mxu0 %v7165
    %v8064 = vpop.f32.mrf.mxu0
    %v8065 = vadd.f32 %v7680, %v8064
    %v8066 = vpop.f32.mrf.mxu0
    %8067 = vmatprep.mubr.f32.mxu0 %v6717
    %8068 = vmatmul.mubr.f32.gmra.mxu0 %v7166
    %v8069 = vpop.f32.mrf.mxu0
    %v8070 = vadd.f32 %v7685, %v8069
    %v8071 = vpop.f32.mrf.mxu0
    %8072 = vmatprep.mubr.f32.mxu0 %v6718
    %8073 = vmatmul.mubr.f32.gmra.mxu0 %v7167
    %v8074 = vpop.f32.mrf.mxu0
    %v8075 = vadd.f32 %v7690, %v8074
    %v8076 = vpop.f32.mrf.mxu0
    %8077 = vmatprep.mubr.f32.mxu0 %v6719
    %8078 = vmatmul.mubr.f32.gmra.mxu0 %v7168
    %v8079 = vpop.f32.mrf.mxu0
    %v8080 = vadd.f32 %v7695, %v8079
    %v8081 = vpop.f32.mrf.mxu0
    %8082 = vmatprep.mubr.f32.mxu0 %v6720
    %8083 = vmatmul.mubr.f32.gmra.mxu0 %v7169
    %v8084 = vpop.f32.mrf.mxu0
    %v8085 = vadd.f32 %v7700, %v8084
    %v8086 = vpop.f32.mrf.mxu0
    %8087 = vmatprep.mubr.f32.mxu0 %v6721
    %8088 = vmatmul.mubr.f32.gmra.mxu0 %v7170
    %v8089 = vpop.f32.mrf.mxu0
    %v8090 = vadd.f32 %v7705, %v8089
    %v8091 = vpop.f32.mrf.mxu0
    %8092 = vmatprep.mubr.f32.mxu0 %v6722
    %8093 = vmatmul.mubr.f32.gmra.mxu0 %v7171
    %v8094 = vpop.f32.mrf.mxu0
    %v8095 = vadd.f32 %v7710, %v8094
    %v8096 = vpop.f32.mrf.mxu0
    %8097 = vmatprep.mubr.f32.mxu0 %v6723
    %8098 = vmatmul.mubr.f32.gmra.mxu0 %v7172
    %v8099 = vpop.f32.mrf.mxu0
    %v8100 = vadd.f32 %v7715, %v8099
    %v8101 = vpop.f32.mrf.mxu0
    %8102 = vmatprep.mubr.f32.mxu0 %v6724
    %8103 = vmatmul.mubr.f32.gmra.mxu0 %v7173
    %v8104 = vpop.f32.mrf.mxu0
    %v8105 = vadd.f32 %v7720, %v8104
    %v8106 = vpop.f32.mrf.mxu0
    %8107 = vmatprep.mubr.f32.mxu0 %v6725
    %8108 = vmatmul.mubr.f32.gmra.mxu0 %v7174
    %v8109 = vpop.f32.mrf.mxu0
    %v8110 = vadd.f32 %v7725, %v8109
    %v8111 = vpop.f32.mrf.mxu0
    %8112 = vmatprep.mubr.f32.mxu0 %v6726
    %8113 = vmatmul.mubr.f32.gmra.mxu0 %v7175
    %v8114 = vpop.f32.mrf.mxu0
    %v8115 = vadd.f32 %v7730, %v8114
    %v8116 = vpop.f32.mrf.mxu0
    %8117 = vmatprep.mubr.f32.mxu0 %v6727
    %8118 = vmatmul.mubr.f32.gmra.mxu0 %v7176
    %v8119 = vpop.f32.mrf.mxu0
    %v8120 = vadd.f32 %v7735, %v8119
    %v8121 = vpop.f32.mrf.mxu0
    %8122 = vmatprep.mubr.f32.mxu0 %v6728
    %8123 = vmatmul.mubr.f32.gmra.mxu0 %v7177
    %v8124 = vpop.f32.mrf.mxu0
    %v8125 = vadd.f32 %v7740, %v8124
    %v8126 = vpop.f32.mrf.mxu0
    %8127 = vmatprep.mubr.f32.mxu0 %v6729
    %8128 = vmatmul.mubr.f32.gmra.mxu0 %v7178
    %v8129 = vpop.f32.mrf.mxu0
    %v8130 = vadd.f32 %v7745, %v8129
    %v8131 = vpop.f32.mrf.mxu0
    %8132 = vmatprep.mubr.f32.mxu0 %v6730
    %8133 = vmatmul.mubr.f32.gmra.mxu0 %v7179
    %v8134 = vpop.f32.mrf.mxu0
    %v8135 = vadd.f32 %v7750, %v8134
    %v8136 = vpop.f32.mrf.mxu0
    %8137 = vmatprep.mubr.f32.mxu0 %v6731
    %8138 = vmatmul.mubr.f32.gmra.mxu0 %v7180
    %v8139 = vpop.f32.mrf.mxu0
    %v8140 = vadd.f32 %v7755, %v8139
    %v8141 = vpop.f32.mrf.mxu0
    %8142 = vdwg.mxu0
    %8143 = vmatprep.subr.mxu0 0.0
    %8144 = vmatpush1.msra.mxu0 %v251
    %8145 = vmatprep.subr.mxu0 0.0
    %8146 = vmatpush1.msra.mxu0 %v250
    %8147 = vmatprep.subr.mxu0 0.0
    %8148 = vmatpush1.msra.mxu0 %v249
    %8149 = vmatprep.subr.mxu0 0.0
    %8150 = vmatpush1.msra.mxu0 %v248
    %8151 = vmatprep.subr.mxu0 0.0
    %8152 = vmatpush1.msra.mxu0 %v247
    %8153 = vmatprep.subr.mxu0 0.0
    %8154 = vmatpush1.msra.mxu0 %v246
    %8155 = vmatprep.subr.mxu0 0.0
    %8156 = vmatpush1.msra.mxu0 %v245
    %8157 = vmatprep.subr.mxu0 0.0
    %8158 = vmatpush1.msra.mxu0 %v244
    %8159 = vmatprep.subr.mxu0 0.0
    %8160 = vmatpush1.msra.mxu0 %v243
    %8161 = vmatprep.subr.mxu0 0.0
    %8162 = vmatpush1.msra.mxu0 %v242
    %8163 = vmatprep.subr.mxu0 0.0
    %8164 = vmatpush1.msra.mxu0 %v241
    %8165 = vmatprep.subr.mxu0 0.0
    %8166 = vmatpush1.msra.mxu0 %v240
    %8167 = vmatprep.subr.mxu0 0.0
    %8168 = vmatpush1.msra.mxu0 %v239
    %8169 = vmatprep.subr.mxu0 0.0
    %8170 = vmatpush1.msra.mxu0 %v238
    %8171 = vmatprep.subr.mxu0 0.0
    %8172 = vmatpush1.msra.mxu0 %v237
    %8173 = vmatprep.subr.mxu0 0.0
    %8174 = vmatpush1.msra.mxu0 %v236
    %8175 = vmatprep.subr.mxu0 0.0
    %8176 = vmatpush2.msra.mxu0 %v267
    %8177 = vmatprep.subr.mxu0 0.0
    %8178 = vmatpush2.msra.mxu0 %v266
    %8179 = vmatprep.subr.mxu0 0.0
    %8180 = vmatpush2.msra.mxu0 %v265
    %8181 = vmatprep.subr.mxu0 0.0
    %8182 = vmatpush2.msra.mxu0 %v264
    %8183 = vmatprep.subr.mxu0 0.0
    %8184 = vmatpush2.msra.mxu0 %v263
    %8185 = vmatprep.subr.mxu0 0.0
    %8186 = vmatpush2.msra.mxu0 %v262
    %8187 = vmatprep.subr.mxu0 0.0
    %8188 = vmatpush2.msra.mxu0 %v261
    %8189 = vmatprep.subr.mxu0 0.0
    %8190 = vmatpush2.msra.mxu0 %v260
    %8191 = vmatprep.subr.mxu0 0.0
    %8192 = vmatpush2.msra.mxu0 %v259
    %8193 = vmatprep.subr.mxu0 0.0
    %8194 = vmatpush2.msra.mxu0 %v258
    %8195 = vmatprep.subr.mxu0 0.0
    %8196 = vmatpush2.msra.mxu0 %v257
    %8197 = vmatprep.subr.mxu0 0.0
    %8198 = vmatpush2.msra.mxu0 %v256
    %8199 = vmatprep.subr.mxu0 0.0
    %8200 = vmatpush2.msra.mxu0 %v255
    %8201 = vmatprep.subr.mxu0 0.0
    %8202 = vmatpush2.msra.mxu0 %v254
    %8203 = vmatprep.subr.mxu0 0.0
    %8204 = vmatpush2.msra.mxu0 %v253
    %8205 = vmatprep.subr.mxu0 0.0
    %8206 = vmatpush2.msra.mxu0 %v252
    %8207 = vmatprep.mubr.f32.mxu0 %v6925
    %8208 = vmatmul.mubr.f32.gmra.mxu0 %v6347
    %v8209 = vpop.f32.mrf.mxu0
    %v8210 = vadd.f32 %v7825, %v8209
    %v8211 = vpop.f32.mrf.mxu0
    %8212 = vmatprep.mubr.f32.mxu0 %v6926
    %8213 = vmatmul.mubr.f32.gmra.mxu0 %v6348
    %v8214 = vpop.f32.mrf.mxu0
    %v8215 = vadd.f32 %v7830, %v8214
    %v8216 = vpop.f32.mrf.mxu0
    %8217 = vmatprep.mubr.f32.mxu0 %v6927
    %8218 = vmatmul.mubr.f32.gmra.mxu0 %v6349
    %v8219 = vpop.f32.mrf.mxu0
    %v8220 = vadd.f32 %v7835, %v8219
    %v8221 = vpop.f32.mrf.mxu0
    %8222 = vmatprep.mubr.f32.mxu0 %v6928
    %8223 = vmatmul.mubr.f32.gmra.mxu0 %v6350
    %v8224 = vpop.f32.mrf.mxu0
    %v8225 = vadd.f32 %v7840, %v8224
    %v8226 = vpop.f32.mrf.mxu0
    %8227 = vmatprep.mubr.f32.mxu0 %v6929
    %8228 = vmatmul.mubr.f32.gmra.mxu0 %v6351
    %v8229 = vpop.f32.mrf.mxu0
    %v8230 = vadd.f32 %v7845, %v8229
    %v8231 = vpop.f32.mrf.mxu0
    %8232 = vmatprep.mubr.f32.mxu0 %v6930
    %8233 = vmatmul.mubr.f32.gmra.mxu0 %v6352
    %v8234 = vpop.f32.mrf.mxu0
    %v8235 = vadd.f32 %v7850, %v8234
    %v8236 = vpop.f32.mrf.mxu0
    %8237 = vmatprep.mubr.f32.mxu0 %v6931
    %8238 = vmatmul.mubr.f32.gmra.mxu0 %v6353
    %v8239 = vpop.f32.mrf.mxu0
    %v8240 = vadd.f32 %v7855, %v8239
    %v8241 = vpop.f32.mrf.mxu0
    %8242 = vmatprep.mubr.f32.mxu0 %v6932
    %8243 = vmatmul.mubr.f32.gmra.mxu0 %v6354
    %v8244 = vpop.f32.mrf.mxu0
    %v8245 = vadd.f32 %v7860, %v8244
    %v8246 = vpop.f32.mrf.mxu0
    %8247 = vmatprep.mubr.f32.mxu0 %v6933
    %8248 = vmatmul.mubr.f32.gmra.mxu0 %v6355
    %v8249 = vpop.f32.mrf.mxu0
    %v8250 = vadd.f32 %v7865, %v8249
    %v8251 = vpop.f32.mrf.mxu0
    %8252 = vmatprep.mubr.f32.mxu0 %v6934
    %8253 = vmatmul.mubr.f32.gmra.mxu0 %v6356
    %v8254 = vpop.f32.mrf.mxu0
    %v8255 = vadd.f32 %v7870, %v8254
    %v8256 = vpop.f32.mrf.mxu0
    %8257 = vmatprep.mubr.f32.mxu0 %v6935
    %8258 = vmatmul.mubr.f32.gmra.mxu0 %v6357
    %v8259 = vpop.f32.mrf.mxu0
    %v8260 = vadd.f32 %v7875, %v8259
    %v8261 = vpop.f32.mrf.mxu0
    %8262 = vmatprep.mubr.f32.mxu0 %v6936
    %8263 = vmatmul.mubr.f32.gmra.mxu0 %v6358
    %v8264 = vpop.f32.mrf.mxu0
    %v8265 = vadd.f32 %v7880, %v8264
    %v8266 = vpop.f32.mrf.mxu0
    %8267 = vmatprep.mubr.f32.mxu0 %v6937
    %8268 = vmatmul.mubr.f32.gmra.mxu0 %v6359
    %v8269 = vpop.f32.mrf.mxu0
    %v8270 = vadd.f32 %v7885, %v8269
    %v8271 = vpop.f32.mrf.mxu0
    %8272 = vmatprep.mubr.f32.mxu0 %v6938
    %8273 = vmatmul.mubr.f32.gmra.mxu0 %v6360
    %v8274 = vpop.f32.mrf.mxu0
    %v8275 = vadd.f32 %v7890, %v8274
    %v8276 = vpop.f32.mrf.mxu0
    %8277 = vmatprep.mubr.f32.mxu0 %v6939
    %8278 = vmatmul.mubr.f32.gmra.mxu0 %v6361
    %v8279 = vpop.f32.mrf.mxu0
    %v8280 = vadd.f32 %v7895, %v8279
    %v8281 = vpop.f32.mrf.mxu0
    %8282 = vmatprep.mubr.f32.mxu0 %v6940
    %8283 = vmatmul.mubr.f32.gmra.mxu0 %v6362
    %v8284 = vpop.f32.mrf.mxu0
    %v8285 = vadd.f32 %v7900, %v8284
    %v8286 = vpop.f32.mrf.mxu0
    %8287 = vmatprep.mubr.f32.mxu0 %v6941
    %8288 = vmatmul.mubr.f32.gmra.mxu0 %v6363
    %v8289 = vpop.f32.mrf.mxu0
    %v8290 = vadd.f32 %v7905, %v8289
    %v8291 = vpop.f32.mrf.mxu0
    %8292 = vmatprep.mubr.f32.mxu0 %v6942
    %8293 = vmatmul.mubr.f32.gmra.mxu0 %v6364
    %v8294 = vpop.f32.mrf.mxu0
    %v8295 = vadd.f32 %v7910, %v8294
    %v8296 = vpop.f32.mrf.mxu0
    %8297 = vmatprep.mubr.f32.mxu0 %v6943
    %8298 = vmatmul.mubr.f32.gmra.mxu0 %v6365
    %v8299 = vpop.f32.mrf.mxu0
    %v8300 = vadd.f32 %v7915, %v8299
    %v8301 = vpop.f32.mrf.mxu0
    %8302 = vmatprep.mubr.f32.mxu0 %v6944
    %8303 = vmatmul.mubr.f32.gmra.mxu0 %v6366
    %v8304 = vpop.f32.mrf.mxu0
    %v8305 = vadd.f32 %v7920, %v8304
    %v8306 = vpop.f32.mrf.mxu0
    %8307 = vmatprep.mubr.f32.mxu0 %v6945
    %8308 = vmatmul.mubr.f32.gmra.mxu0 %v6367
    %v8309 = vpop.f32.mrf.mxu0
    %v8310 = vadd.f32 %v7925, %v8309
    %v8311 = vpop.f32.mrf.mxu0
    %8312 = vmatprep.mubr.f32.mxu0 %v6946
    %8313 = vmatmul.mubr.f32.gmra.mxu0 %v6368
    %v8314 = vpop.f32.mrf.mxu0
    %v8315 = vadd.f32 %v7930, %v8314
    %v8316 = vpop.f32.mrf.mxu0
    %8317 = vmatprep.mubr.f32.mxu0 %v6947
    %8318 = vmatmul.mubr.f32.gmra.mxu0 %v6369
    %v8319 = vpop.f32.mrf.mxu0
    %v8320 = vadd.f32 %v7935, %v8319
    %v8321 = vpop.f32.mrf.mxu0
    %8322 = vmatprep.mubr.f32.mxu0 %v6948
    %8323 = vmatmul.mubr.f32.gmra.mxu0 %v6370
    %v8324 = vpop.f32.mrf.mxu0
    %v8325 = vadd.f32 %v7940, %v8324
    %v8326 = vpop.f32.mrf.mxu0
    %8327 = vmatprep.mubr.f32.mxu0 %v6949
    %8328 = vmatmul.mubr.f32.gmra.mxu0 %v6371
    %v8329 = vpop.f32.mrf.mxu0
    %v8330 = vadd.f32 %v7945, %v8329
    %v8331 = vpop.f32.mrf.mxu0
    %8332 = vmatprep.mubr.f32.mxu0 %v6950
    %8333 = vmatmul.mubr.f32.gmra.mxu0 %v6372
    %v8334 = vpop.f32.mrf.mxu0
    %v8335 = vadd.f32 %v7950, %v8334
    %v8336 = vpop.f32.mrf.mxu0
    %8337 = vmatprep.mubr.f32.mxu0 %v6951
    %8338 = vmatmul.mubr.f32.gmra.mxu0 %v6373
    %v8339 = vpop.f32.mrf.mxu0
    %v8340 = vadd.f32 %v7955, %v8339
    %v8341 = vpop.f32.mrf.mxu0
    %8342 = vmatprep.mubr.f32.mxu0 %v6952
    %8343 = vmatmul.mubr.f32.gmra.mxu0 %v6374
    %v8344 = vpop.f32.mrf.mxu0
    %v8345 = vadd.f32 %v7960, %v8344
    %v8346 = vpop.f32.mrf.mxu0
    %8347 = vmatprep.mubr.f32.mxu0 %v6953
    %8348 = vmatmul.mubr.f32.gmra.mxu0 %v6375
    %v8349 = vpop.f32.mrf.mxu0
    %v8350 = vadd.f32 %v7965, %v8349
    %v8351 = vpop.f32.mrf.mxu0
    %8352 = vmatprep.mubr.f32.mxu0 %v6954
    %8353 = vmatmul.mubr.f32.gmra.mxu0 %v6376
    %v8354 = vpop.f32.mrf.mxu0
    %v8355 = vadd.f32 %v7970, %v8354
    %v8356 = vpop.f32.mrf.mxu0
    %8357 = vmatprep.mubr.f32.mxu0 %v6955
    %8358 = vmatmul.mubr.f32.gmra.mxu0 %v6377
    %v8359 = vpop.f32.mrf.mxu0
    %v8360 = vadd.f32 %v7975, %v8359
    %v8361 = vpop.f32.mrf.mxu0
    %8362 = vmatprep.mubr.f32.mxu0 %v6956
    %8363 = vmatmul.mubr.f32.gmra.mxu0 %v6378
    %v8364 = vpop.f32.mrf.mxu0
    %v8365 = vadd.f32 %v7980, %v8364
    %v8366 = vpop.f32.mrf.mxu0
    %8367 = vmatprep.mubr.f32.mxu0 %v6957
    %8368 = vmatmul.mubr.f32.gmra.mxu0 %v6379
    %v8369 = vpop.f32.mrf.mxu0
    %v8370 = vadd.f32 %v7985, %v8369
    %v8371 = vpop.f32.mrf.mxu0
    %8372 = vmatprep.mubr.f32.mxu0 %v6958
    %8373 = vmatmul.mubr.f32.gmra.mxu0 %v6380
    %v8374 = vpop.f32.mrf.mxu0
    %v8375 = vadd.f32 %v7990, %v8374
    %v8376 = vpop.f32.mrf.mxu0
    %8377 = vmatprep.mubr.f32.mxu0 %v6959
    %8378 = vmatmul.mubr.f32.gmra.mxu0 %v6381
    %v8379 = vpop.f32.mrf.mxu0
    %v8380 = vadd.f32 %v7995, %v8379
    %v8381 = vpop.f32.mrf.mxu0
    %8382 = vmatprep.mubr.f32.mxu0 %v6960
    %8383 = vmatmul.mubr.f32.gmra.mxu0 %v6382
    %v8384 = vpop.f32.mrf.mxu0
    %v8385 = vadd.f32 %v8000, %v8384
    %v8386 = vpop.f32.mrf.mxu0
    %8387 = vmatprep.mubr.f32.mxu0 %v6961
    %8388 = vmatmul.mubr.f32.gmra.mxu0 %v6383
    %v8389 = vpop.f32.mrf.mxu0
    %v8390 = vadd.f32 %v8005, %v8389
    %v8391 = vpop.f32.mrf.mxu0
    %8392 = vmatprep.mubr.f32.mxu0 %v6962
    %8393 = vmatmul.mubr.f32.gmra.mxu0 %v6384
    %v8394 = vpop.f32.mrf.mxu0
    %v8395 = vadd.f32 %v8010, %v8394
    %v8396 = vpop.f32.mrf.mxu0
    %8397 = vmatprep.mubr.f32.mxu0 %v6963
    %8398 = vmatmul.mubr.f32.gmra.mxu0 %v6385
    %v8399 = vpop.f32.mrf.mxu0
    %v8400 = vadd.f32 %v8015, %v8399
    %v8401 = vpop.f32.mrf.mxu0
    %8402 = vmatprep.mubr.f32.mxu0 %v6964
    %8403 = vmatmul.mubr.f32.gmra.mxu0 %v6386
    %v8404 = vpop.f32.mrf.mxu0
    %v8405 = vadd.f32 %v8020, %v8404
    %v8406 = vpop.f32.mrf.mxu0
    %8407 = vmatprep.mubr.f32.mxu0 %v6965
    %8408 = vmatmul.mubr.f32.gmra.mxu0 %v6387
    %v8409 = vpop.f32.mrf.mxu0
    %v8410 = vadd.f32 %v8025, %v8409
    %v8411 = vpop.f32.mrf.mxu0
    %8412 = vmatprep.mubr.f32.mxu0 %v6966
    %8413 = vmatmul.mubr.f32.gmra.mxu0 %v6388
    %v8414 = vpop.f32.mrf.mxu0
    %v8415 = vadd.f32 %v8030, %v8414
    %v8416 = vpop.f32.mrf.mxu0
    %8417 = vmatprep.mubr.f32.mxu0 %v6967
    %8418 = vmatmul.mubr.f32.gmra.mxu0 %v6389
    %v8419 = vpop.f32.mrf.mxu0
    %v8420 = vadd.f32 %v8035, %v8419
    %v8421 = vpop.f32.mrf.mxu0
    %8422 = vmatprep.mubr.f32.mxu0 %v6968
    %8423 = vmatmul.mubr.f32.gmra.mxu0 %v6390
    %v8424 = vpop.f32.mrf.mxu0
    %v8425 = vadd.f32 %v8040, %v8424
    %v8426 = vpop.f32.mrf.mxu0
    %8427 = vmatprep.mubr.f32.mxu0 %v6969
    %8428 = vmatmul.mubr.f32.gmra.mxu0 %v6391
    %v8429 = vpop.f32.mrf.mxu0
    %v8430 = vadd.f32 %v8045, %v8429
    %v8431 = vpop.f32.mrf.mxu0
    %8432 = vmatprep.mubr.f32.mxu0 %v6970
    %8433 = vmatmul.mubr.f32.gmra.mxu0 %v6392
    %v8434 = vpop.f32.mrf.mxu0
    %v8435 = vadd.f32 %v8050, %v8434
    %v8436 = vpop.f32.mrf.mxu0
    %8437 = vmatprep.mubr.f32.mxu0 %v6971
    %8438 = vmatmul.mubr.f32.gmra.mxu0 %v6393
    %v8439 = vpop.f32.mrf.mxu0
    %v8440 = vadd.f32 %v8055, %v8439
    %v8441 = vpop.f32.mrf.mxu0
    %8442 = vmatprep.mubr.f32.mxu0 %v6972
    %8443 = vmatmul.mubr.f32.gmra.mxu0 %v6394
    %v8444 = vpop.f32.mrf.mxu0
    %v8445 = vadd.f32 %v8060, %v8444
    %v8446 = vpop.f32.mrf.mxu0
    %8447 = vmatprep.mubr.f32.mxu0 %v6973
    %8448 = vmatmul.mubr.f32.gmra.mxu0 %v6395
    %v8449 = vpop.f32.mrf.mxu0
    %v8450 = vadd.f32 %v8065, %v8449
    %v8451 = vpop.f32.mrf.mxu0
    %8452 = vmatprep.mubr.f32.mxu0 %v6974
    %8453 = vmatmul.mubr.f32.gmra.mxu0 %v6396
    %v8454 = vpop.f32.mrf.mxu0
    %v8455 = vadd.f32 %v8070, %v8454
    %v8456 = vpop.f32.mrf.mxu0
    %8457 = vmatprep.mubr.f32.mxu0 %v6975
    %8458 = vmatmul.mubr.f32.gmra.mxu0 %v6397
    %v8459 = vpop.f32.mrf.mxu0
    %v8460 = vadd.f32 %v8075, %v8459
    %v8461 = vpop.f32.mrf.mxu0
    %8462 = vmatprep.mubr.f32.mxu0 %v6976
    %8463 = vmatmul.mubr.f32.gmra.mxu0 %v6398
    %v8464 = vpop.f32.mrf.mxu0
    %v8465 = vadd.f32 %v8080, %v8464
    %v8466 = vpop.f32.mrf.mxu0
    %8467 = vmatprep.mubr.f32.mxu0 %v6977
    %8468 = vmatmul.mubr.f32.gmra.mxu0 %v6399
    %v8469 = vpop.f32.mrf.mxu0
    %v8470 = vadd.f32 %v8085, %v8469
    %v8471 = vpop.f32.mrf.mxu0
    %8472 = vmatprep.mubr.f32.mxu0 %v6978
    %8473 = vmatmul.mubr.f32.gmra.mxu0 %v6400
    %v8474 = vpop.f32.mrf.mxu0
    %v8475 = vadd.f32 %v8090, %v8474
    %v8476 = vpop.f32.mrf.mxu0
    %8477 = vmatprep.mubr.f32.mxu0 %v6979
    %8478 = vmatmul.mubr.f32.gmra.mxu0 %v6401
    %v8479 = vpop.f32.mrf.mxu0
    %v8480 = vadd.f32 %v8095, %v8479
    %v8481 = vpop.f32.mrf.mxu0
    %8482 = vmatprep.mubr.f32.mxu0 %v6980
    %8483 = vmatmul.mubr.f32.gmra.mxu0 %v6402
    %v8484 = vpop.f32.mrf.mxu0
    %v8485 = vadd.f32 %v8100, %v8484
    %v8486 = vpop.f32.mrf.mxu0
    %8487 = vmatprep.mubr.f32.mxu0 %v6981
    %8488 = vmatmul.mubr.f32.gmra.mxu0 %v6403
    %v8489 = vpop.f32.mrf.mxu0
    %v8490 = vadd.f32 %v8105, %v8489
    %v8491 = vpop.f32.mrf.mxu0
    %8492 = vmatprep.mubr.f32.mxu0 %v6982
    %8493 = vmatmul.mubr.f32.gmra.mxu0 %v6404
    %v8494 = vpop.f32.mrf.mxu0
    %v8495 = vadd.f32 %v8110, %v8494
    %v8496 = vpop.f32.mrf.mxu0
    %8497 = vmatprep.mubr.f32.mxu0 %v6983
    %8498 = vmatmul.mubr.f32.gmra.mxu0 %v6405
    %v8499 = vpop.f32.mrf.mxu0
    %v8500 = vadd.f32 %v8115, %v8499
    %v8501 = vpop.f32.mrf.mxu0
    %8502 = vmatprep.mubr.f32.mxu0 %v6984
    %8503 = vmatmul.mubr.f32.gmra.mxu0 %v6406
    %v8504 = vpop.f32.mrf.mxu0
    %v8505 = vadd.f32 %v8120, %v8504
    %v8506 = vpop.f32.mrf.mxu0
    %8507 = vmatprep.mubr.f32.mxu0 %v6985
    %8508 = vmatmul.mubr.f32.gmra.mxu0 %v6407
    %v8509 = vpop.f32.mrf.mxu0
    %v8510 = vadd.f32 %v8125, %v8509
    %v8511 = vpop.f32.mrf.mxu0
    %8512 = vmatprep.mubr.f32.mxu0 %v6986
    %8513 = vmatmul.mubr.f32.gmra.mxu0 %v6408
    %v8514 = vpop.f32.mrf.mxu0
    %v8515 = vadd.f32 %v8130, %v8514
    %v8516 = vpop.f32.mrf.mxu0
    %8517 = vmatprep.mubr.f32.mxu0 %v6987
    %8518 = vmatmul.mubr.f32.gmra.mxu0 %v6409
    %v8519 = vpop.f32.mrf.mxu0
    %v8520 = vadd.f32 %v8135, %v8519
    %v8521 = vpop.f32.mrf.mxu0
    %8522 = vmatprep.mubr.f32.mxu0 %v6988
    %8523 = vmatmul.mubr.f32.gmra.mxu0 %v6410
    %v8524 = vpop.f32.mrf.mxu0
    %v8525 = vadd.f32 %v8140, %v8524
    %v8526 = vpop.f32.mrf.mxu0
    %8527 = vdwg.mxu0
    %8528 = vmatprep.subr.mxu0 0.0
    %8529 = vmatpush1.msra.mxu0 %v283
    %8530 = vmatprep.subr.mxu0 0.0
    %8531 = vmatpush1.msra.mxu0 %v282
    %8532 = vmatprep.subr.mxu0 0.0
    %8533 = vmatpush1.msra.mxu0 %v281
    %8534 = vmatprep.subr.mxu0 0.0
    %8535 = vmatpush1.msra.mxu0 %v280
    %8536 = vmatprep.subr.mxu0 0.0
    %8537 = vmatpush1.msra.mxu0 %v279
    %8538 = vmatprep.subr.mxu0 0.0
    %8539 = vmatpush1.msra.mxu0 %v278
    %8540 = vmatprep.subr.mxu0 0.0
    %8541 = vmatpush1.msra.mxu0 %v277
    %8542 = vmatprep.subr.mxu0 0.0
    %8543 = vmatpush1.msra.mxu0 %v276
    %8544 = vmatprep.subr.mxu0 0.0
    %8545 = vmatpush1.msra.mxu0 %v275
    %8546 = vmatprep.subr.mxu0 0.0
    %8547 = vmatpush1.msra.mxu0 %v274
    %8548 = vmatprep.subr.mxu0 0.0
    %8549 = vmatpush1.msra.mxu0 %v273
    %8550 = vmatprep.subr.mxu0 0.0
    %8551 = vmatpush1.msra.mxu0 %v272
    %8552 = vmatprep.subr.mxu0 0.0
    %8553 = vmatpush1.msra.mxu0 %v271
    %8554 = vmatprep.subr.mxu0 0.0
    %8555 = vmatpush1.msra.mxu0 %v270
    %8556 = vmatprep.subr.mxu0 0.0
    %8557 = vmatpush1.msra.mxu0 %v269
    %8558 = vmatprep.subr.mxu0 0.0
    %8559 = vmatpush1.msra.mxu0 %v268
    %8560 = vmatprep.subr.mxu0 0.0
    %8561 = vmatpush2.msra.mxu0 %v299
    %8562 = vmatprep.subr.mxu0 0.0
    %8563 = vmatpush2.msra.mxu0 %v298
    %8564 = vmatprep.subr.mxu0 0.0
    %8565 = vmatpush2.msra.mxu0 %v297
    %8566 = vmatprep.subr.mxu0 0.0
    %8567 = vmatpush2.msra.mxu0 %v296
    %8568 = vmatprep.subr.mxu0 0.0
    %8569 = vmatpush2.msra.mxu0 %v295
    %8570 = vmatprep.subr.mxu0 0.0
    %8571 = vmatpush2.msra.mxu0 %v294
    %8572 = vmatprep.subr.mxu0 0.0
    %8573 = vmatpush2.msra.mxu0 %v293
    %8574 = vmatprep.subr.mxu0 0.0
    %8575 = vmatpush2.msra.mxu0 %v292
    %8576 = vmatprep.subr.mxu0 0.0
    %8577 = vmatpush2.msra.mxu0 %v291
    %8578 = vmatprep.subr.mxu0 0.0
    %8579 = vmatpush2.msra.mxu0 %v290
    %8580 = vmatprep.subr.mxu0 0.0
    %8581 = vmatpush2.msra.mxu0 %v289
    %8582 = vmatprep.subr.mxu0 0.0
    %8583 = vmatpush2.msra.mxu0 %v288
    %8584 = vmatprep.subr.mxu0 0.0
    %8585 = vmatpush2.msra.mxu0 %v287
    %8586 = vmatprep.subr.mxu0 0.0
    %8587 = vmatpush2.msra.mxu0 %v286
    %8588 = vmatprep.subr.mxu0 0.0
    %8589 = vmatpush2.msra.mxu0 %v285
    %8590 = vmatprep.subr.mxu0 0.0
    %8591 = vmatpush2.msra.mxu0 %v284
    %8592 = vmatprep.mubr.f32.mxu0 %v7245
    %8593 = vmatmul.mubr.f32.gmra.mxu0 %v7181
    %v8594 = vpop.f32.mrf.mxu0
    %v8595 = vadd.f32 %v8210, %v8594
    %v8596 = vpop.f32.mrf.mxu0
    %8597 = vmatprep.mubr.f32.mxu0 %v7246
    %8598 = vmatmul.mubr.f32.gmra.mxu0 %v7182
    %v8599 = vpop.f32.mrf.mxu0
    %v8600 = vadd.f32 %v8215, %v8599
    %v8601 = vpop.f32.mrf.mxu0
    %8602 = vmatprep.mubr.f32.mxu0 %v7247
    %8603 = vmatmul.mubr.f32.gmra.mxu0 %v7183
    %v8604 = vpop.f32.mrf.mxu0
    %v8605 = vadd.f32 %v8220, %v8604
    %v8606 = vpop.f32.mrf.mxu0
    %8607 = vmatprep.mubr.f32.mxu0 %v7248
    %8608 = vmatmul.mubr.f32.gmra.mxu0 %v7184
    %v8609 = vpop.f32.mrf.mxu0
    %v8610 = vadd.f32 %v8225, %v8609
    %v8611 = vpop.f32.mrf.mxu0
    %8612 = vmatprep.mubr.f32.mxu0 %v7249
    %8613 = vmatmul.mubr.f32.gmra.mxu0 %v7185
    %v8614 = vpop.f32.mrf.mxu0
    %v8615 = vadd.f32 %v8230, %v8614
    %v8616 = vpop.f32.mrf.mxu0
    %8617 = vmatprep.mubr.f32.mxu0 %v7250
    %8618 = vmatmul.mubr.f32.gmra.mxu0 %v7186
    %v8619 = vpop.f32.mrf.mxu0
    %v8620 = vadd.f32 %v8235, %v8619
    %v8621 = vpop.f32.mrf.mxu0
    %8622 = vmatprep.mubr.f32.mxu0 %v7251
    %8623 = vmatmul.mubr.f32.gmra.mxu0 %v7187
    %v8624 = vpop.f32.mrf.mxu0
    %v8625 = vadd.f32 %v8240, %v8624
    %v8626 = vpop.f32.mrf.mxu0
    %8627 = vmatprep.mubr.f32.mxu0 %v7252
    %8628 = vmatmul.mubr.f32.gmra.mxu0 %v7188
    %v8629 = vpop.f32.mrf.mxu0
    %v8630 = vadd.f32 %v8245, %v8629
    %v8631 = vpop.f32.mrf.mxu0
    %8632 = vmatprep.mubr.f32.mxu0 %v7253
    %8633 = vmatmul.mubr.f32.gmra.mxu0 %v7189
    %v8634 = vpop.f32.mrf.mxu0
    %v8635 = vadd.f32 %v8250, %v8634
    %v8636 = vpop.f32.mrf.mxu0
    %8637 = vmatprep.mubr.f32.mxu0 %v7254
    %8638 = vmatmul.mubr.f32.gmra.mxu0 %v7190
    %v8639 = vpop.f32.mrf.mxu0
    %v8640 = vadd.f32 %v8255, %v8639
    %v8641 = vpop.f32.mrf.mxu0
    %8642 = vmatprep.mubr.f32.mxu0 %v7255
    %8643 = vmatmul.mubr.f32.gmra.mxu0 %v7191
    %v8644 = vpop.f32.mrf.mxu0
    %v8645 = vadd.f32 %v8260, %v8644
    %v8646 = vpop.f32.mrf.mxu0
    %8647 = vmatprep.mubr.f32.mxu0 %v7256
    %8648 = vmatmul.mubr.f32.gmra.mxu0 %v7192
    %v8649 = vpop.f32.mrf.mxu0
    %v8650 = vadd.f32 %v8265, %v8649
    %v8651 = vpop.f32.mrf.mxu0
    %8652 = vmatprep.mubr.f32.mxu0 %v7257
    %8653 = vmatmul.mubr.f32.gmra.mxu0 %v7193
    %v8654 = vpop.f32.mrf.mxu0
    %v8655 = vadd.f32 %v8270, %v8654
    %v8656 = vpop.f32.mrf.mxu0
    %8657 = vmatprep.mubr.f32.mxu0 %v7258
    %8658 = vmatmul.mubr.f32.gmra.mxu0 %v7194
    %v8659 = vpop.f32.mrf.mxu0
    %v8660 = vadd.f32 %v8275, %v8659
    %v8661 = vpop.f32.mrf.mxu0
    %8662 = vmatprep.mubr.f32.mxu0 %v7259
    %8663 = vmatmul.mubr.f32.gmra.mxu0 %v7195
    %v8664 = vpop.f32.mrf.mxu0
    %v8665 = vadd.f32 %v8280, %v8664
    %v8666 = vpop.f32.mrf.mxu0
    %8667 = vmatprep.mubr.f32.mxu0 %v7260
    %8668 = vmatmul.mubr.f32.gmra.mxu0 %v7196
    %v8669 = vpop.f32.mrf.mxu0
    %v8670 = vadd.f32 %v8285, %v8669
    %v8671 = vpop.f32.mrf.mxu0
    %8672 = vmatprep.mubr.f32.mxu0 %v7261
    %8673 = vmatmul.mubr.f32.gmra.mxu0 %v7197
    %v8674 = vpop.f32.mrf.mxu0
    %v8675 = vadd.f32 %v8290, %v8674
    %v8676 = vpop.f32.mrf.mxu0
    %8677 = vmatprep.mubr.f32.mxu0 %v7262
    %8678 = vmatmul.mubr.f32.gmra.mxu0 %v7198
    %v8679 = vpop.f32.mrf.mxu0
    %v8680 = vadd.f32 %v8295, %v8679
    %v8681 = vpop.f32.mrf.mxu0
    %8682 = vmatprep.mubr.f32.mxu0 %v7263
    %8683 = vmatmul.mubr.f32.gmra.mxu0 %v7199
    %v8684 = vpop.f32.mrf.mxu0
    %v8685 = vadd.f32 %v8300, %v8684
    %v8686 = vpop.f32.mrf.mxu0
    %8687 = vmatprep.mubr.f32.mxu0 %v7264
    %8688 = vmatmul.mubr.f32.gmra.mxu0 %v7200
    %v8689 = vpop.f32.mrf.mxu0
    %v8690 = vadd.f32 %v8305, %v8689
    %v8691 = vpop.f32.mrf.mxu0
    %8692 = vmatprep.mubr.f32.mxu0 %v7265
    %8693 = vmatmul.mubr.f32.gmra.mxu0 %v7201
    %v8694 = vpop.f32.mrf.mxu0
    %v8695 = vadd.f32 %v8310, %v8694
    %v8696 = vpop.f32.mrf.mxu0
    %8697 = vmatprep.mubr.f32.mxu0 %v7266
    %8698 = vmatmul.mubr.f32.gmra.mxu0 %v7202
    %v8699 = vpop.f32.mrf.mxu0
    %v8700 = vadd.f32 %v8315, %v8699
    %v8701 = vpop.f32.mrf.mxu0
    %8702 = vmatprep.mubr.f32.mxu0 %v7267
    %8703 = vmatmul.mubr.f32.gmra.mxu0 %v7203
    %v8704 = vpop.f32.mrf.mxu0
    %v8705 = vadd.f32 %v8320, %v8704
    %v8706 = vpop.f32.mrf.mxu0
    %8707 = vmatprep.mubr.f32.mxu0 %v7268
    %8708 = vmatmul.mubr.f32.gmra.mxu0 %v7204
    %v8709 = vpop.f32.mrf.mxu0
    %v8710 = vadd.f32 %v8325, %v8709
    %v8711 = vpop.f32.mrf.mxu0
    %8712 = vmatprep.mubr.f32.mxu0 %v7269
    %8713 = vmatmul.mubr.f32.gmra.mxu0 %v7205
    %v8714 = vpop.f32.mrf.mxu0
    %v8715 = vadd.f32 %v8330, %v8714
    %v8716 = vpop.f32.mrf.mxu0
    %8717 = vmatprep.mubr.f32.mxu0 %v7270
    %8718 = vmatmul.mubr.f32.gmra.mxu0 %v7206
    %v8719 = vpop.f32.mrf.mxu0
    %v8720 = vadd.f32 %v8335, %v8719
    %v8721 = vpop.f32.mrf.mxu0
    %8722 = vmatprep.mubr.f32.mxu0 %v7271
    %8723 = vmatmul.mubr.f32.gmra.mxu0 %v7207
    %v8724 = vpop.f32.mrf.mxu0
    %v8725 = vadd.f32 %v8340, %v8724
    %v8726 = vpop.f32.mrf.mxu0
    %8727 = vmatprep.mubr.f32.mxu0 %v7272
    %8728 = vmatmul.mubr.f32.gmra.mxu0 %v7208
    %v8729 = vpop.f32.mrf.mxu0
    %v8730 = vadd.f32 %v8345, %v8729
    %v8731 = vpop.f32.mrf.mxu0
    %8732 = vmatprep.mubr.f32.mxu0 %v7273
    %8733 = vmatmul.mubr.f32.gmra.mxu0 %v7209
    %v8734 = vpop.f32.mrf.mxu0
    %v8735 = vadd.f32 %v8350, %v8734
    %v8736 = vpop.f32.mrf.mxu0
    %8737 = vmatprep.mubr.f32.mxu0 %v7274
    %8738 = vmatmul.mubr.f32.gmra.mxu0 %v7210
    %v8739 = vpop.f32.mrf.mxu0
    %v8740 = vadd.f32 %v8355, %v8739
    %v8741 = vpop.f32.mrf.mxu0
    %8742 = vmatprep.mubr.f32.mxu0 %v7275
    %8743 = vmatmul.mubr.f32.gmra.mxu0 %v7211
    %v8744 = vpop.f32.mrf.mxu0
    %v8745 = vadd.f32 %v8360, %v8744
    %v8746 = vpop.f32.mrf.mxu0
    %8747 = vmatprep.mubr.f32.mxu0 %v7276
    %8748 = vmatmul.mubr.f32.gmra.mxu0 %v7212
    %v8749 = vpop.f32.mrf.mxu0
    %v8750 = vadd.f32 %v8365, %v8749
    %v8751 = vpop.f32.mrf.mxu0
    %8752 = vmatprep.mubr.f32.mxu0 %v7277
    %8753 = vmatmul.mubr.f32.gmra.mxu0 %v7213
    %v8754 = vpop.f32.mrf.mxu0
    %v8755 = vadd.f32 %v8370, %v8754
    %v8756 = vpop.f32.mrf.mxu0
    %8757 = vmatprep.mubr.f32.mxu0 %v7278
    %8758 = vmatmul.mubr.f32.gmra.mxu0 %v7214
    %v8759 = vpop.f32.mrf.mxu0
    %v8760 = vadd.f32 %v8375, %v8759
    %v8761 = vpop.f32.mrf.mxu0
    %8762 = vmatprep.mubr.f32.mxu0 %v7279
    %8763 = vmatmul.mubr.f32.gmra.mxu0 %v7215
    %v8764 = vpop.f32.mrf.mxu0
    %v8765 = vadd.f32 %v8380, %v8764
    %v8766 = vpop.f32.mrf.mxu0
    %8767 = vmatprep.mubr.f32.mxu0 %v7280
    %8768 = vmatmul.mubr.f32.gmra.mxu0 %v7216
    %v8769 = vpop.f32.mrf.mxu0
    %v8770 = vadd.f32 %v8385, %v8769
    %v8771 = vpop.f32.mrf.mxu0
    %8772 = vmatprep.mubr.f32.mxu0 %v7281
    %8773 = vmatmul.mubr.f32.gmra.mxu0 %v7217
    %v8774 = vpop.f32.mrf.mxu0
    %v8775 = vadd.f32 %v8390, %v8774
    %v8776 = vpop.f32.mrf.mxu0
    %8777 = vmatprep.mubr.f32.mxu0 %v7282
    %8778 = vmatmul.mubr.f32.gmra.mxu0 %v7218
    %v8779 = vpop.f32.mrf.mxu0
    %v8780 = vadd.f32 %v8395, %v8779
    %v8781 = vpop.f32.mrf.mxu0
    %8782 = vmatprep.mubr.f32.mxu0 %v7283
    %8783 = vmatmul.mubr.f32.gmra.mxu0 %v7219
    %v8784 = vpop.f32.mrf.mxu0
    %v8785 = vadd.f32 %v8400, %v8784
    %v8786 = vpop.f32.mrf.mxu0
    %8787 = vmatprep.mubr.f32.mxu0 %v7284
    %8788 = vmatmul.mubr.f32.gmra.mxu0 %v7220
    %v8789 = vpop.f32.mrf.mxu0
    %v8790 = vadd.f32 %v8405, %v8789
    %v8791 = vpop.f32.mrf.mxu0
    %8792 = vmatprep.mubr.f32.mxu0 %v7285
    %8793 = vmatmul.mubr.f32.gmra.mxu0 %v7221
    %v8794 = vpop.f32.mrf.mxu0
    %v8795 = vadd.f32 %v8410, %v8794
    %v8796 = vpop.f32.mrf.mxu0
    %8797 = vmatprep.mubr.f32.mxu0 %v7286
    %8798 = vmatmul.mubr.f32.gmra.mxu0 %v7222
    %v8799 = vpop.f32.mrf.mxu0
    %v8800 = vadd.f32 %v8415, %v8799
    %v8801 = vpop.f32.mrf.mxu0
    %8802 = vmatprep.mubr.f32.mxu0 %v7287
    %8803 = vmatmul.mubr.f32.gmra.mxu0 %v7223
    %v8804 = vpop.f32.mrf.mxu0
    %v8805 = vadd.f32 %v8420, %v8804
    %v8806 = vpop.f32.mrf.mxu0
    %8807 = vmatprep.mubr.f32.mxu0 %v7288
    %8808 = vmatmul.mubr.f32.gmra.mxu0 %v7224
    %v8809 = vpop.f32.mrf.mxu0
    %v8810 = vadd.f32 %v8425, %v8809
    %v8811 = vpop.f32.mrf.mxu0
    %8812 = vmatprep.mubr.f32.mxu0 %v7289
    %8813 = vmatmul.mubr.f32.gmra.mxu0 %v7225
    %v8814 = vpop.f32.mrf.mxu0
    %v8815 = vadd.f32 %v8430, %v8814
    %v8816 = vpop.f32.mrf.mxu0
    %8817 = vmatprep.mubr.f32.mxu0 %v7290
    %8818 = vmatmul.mubr.f32.gmra.mxu0 %v7226
    %v8819 = vpop.f32.mrf.mxu0
    %v8820 = vadd.f32 %v8435, %v8819
    %v8821 = vpop.f32.mrf.mxu0
    %8822 = vmatprep.mubr.f32.mxu0 %v7291
    %8823 = vmatmul.mubr.f32.gmra.mxu0 %v7227
    %v8824 = vpop.f32.mrf.mxu0
    %v8825 = vadd.f32 %v8440, %v8824
    %v8826 = vpop.f32.mrf.mxu0
    %8827 = vmatprep.mubr.f32.mxu0 %v7292
    %8828 = vmatmul.mubr.f32.gmra.mxu0 %v7228
    %v8829 = vpop.f32.mrf.mxu0
    %v8830 = vadd.f32 %v8445, %v8829
    %v8831 = vpop.f32.mrf.mxu0
    %8832 = vmatprep.mubr.f32.mxu0 %v7293
    %8833 = vmatmul.mubr.f32.gmra.mxu0 %v7229
    %v8834 = vpop.f32.mrf.mxu0
    %v8835 = vadd.f32 %v8450, %v8834
    %v8836 = vpop.f32.mrf.mxu0
    %8837 = vmatprep.mubr.f32.mxu0 %v7294
    %8838 = vmatmul.mubr.f32.gmra.mxu0 %v7230
    %v8839 = vpop.f32.mrf.mxu0
    %v8840 = vadd.f32 %v8455, %v8839
    %v8841 = vpop.f32.mrf.mxu0
    %8842 = vmatprep.mubr.f32.mxu0 %v7295
    %8843 = vmatmul.mubr.f32.gmra.mxu0 %v7231
    %v8844 = vpop.f32.mrf.mxu0
    %v8845 = vadd.f32 %v8460, %v8844
    %v8846 = vpop.f32.mrf.mxu0
    %8847 = vmatprep.mubr.f32.mxu0 %v7296
    %8848 = vmatmul.mubr.f32.gmra.mxu0 %v7232
    %v8849 = vpop.f32.mrf.mxu0
    %v8850 = vadd.f32 %v8465, %v8849
    %v8851 = vpop.f32.mrf.mxu0
    %8852 = vmatprep.mubr.f32.mxu0 %v7297
    %8853 = vmatmul.mubr.f32.gmra.mxu0 %v7233
    %v8854 = vpop.f32.mrf.mxu0
    %v8855 = vadd.f32 %v8470, %v8854
    %v8856 = vpop.f32.mrf.mxu0
    %8857 = vmatprep.mubr.f32.mxu0 %v7298
    %8858 = vmatmul.mubr.f32.gmra.mxu0 %v7234
    %v8859 = vpop.f32.mrf.mxu0
    %v8860 = vadd.f32 %v8475, %v8859
    %v8861 = vpop.f32.mrf.mxu0
    %8862 = vmatprep.mubr.f32.mxu0 %v7299
    %8863 = vmatmul.mubr.f32.gmra.mxu0 %v7235
    %v8864 = vpop.f32.mrf.mxu0
    %v8865 = vadd.f32 %v8480, %v8864
    %v8866 = vpop.f32.mrf.mxu0
    %8867 = vmatprep.mubr.f32.mxu0 %v7300
    %8868 = vmatmul.mubr.f32.gmra.mxu0 %v7236
    %v8869 = vpop.f32.mrf.mxu0
    %v8870 = vadd.f32 %v8485, %v8869
    %v8871 = vpop.f32.mrf.mxu0
    %8872 = vmatprep.mubr.f32.mxu0 %v7301
    %8873 = vmatmul.mubr.f32.gmra.mxu0 %v7237
    %v8874 = vpop.f32.mrf.mxu0
    %v8875 = vadd.f32 %v8490, %v8874
    %v8876 = vpop.f32.mrf.mxu0
    %8877 = vmatprep.mubr.f32.mxu0 %v7302
    %8878 = vmatmul.mubr.f32.gmra.mxu0 %v7238
    %v8879 = vpop.f32.mrf.mxu0
    %v8880 = vadd.f32 %v8495, %v8879
    %v8881 = vpop.f32.mrf.mxu0
    %8882 = vmatprep.mubr.f32.mxu0 %v7303
    %8883 = vmatmul.mubr.f32.gmra.mxu0 %v7239
    %v8884 = vpop.f32.mrf.mxu0
    %v8885 = vadd.f32 %v8500, %v8884
    %v8886 = vpop.f32.mrf.mxu0
    %8887 = vmatprep.mubr.f32.mxu0 %v7304
    %8888 = vmatmul.mubr.f32.gmra.mxu0 %v7240
    %v8889 = vpop.f32.mrf.mxu0
    %v8890 = vadd.f32 %v8505, %v8889
    %v8891 = vpop.f32.mrf.mxu0
    %8892 = vmatprep.mubr.f32.mxu0 %v7305
    %8893 = vmatmul.mubr.f32.gmra.mxu0 %v7241
    %v8894 = vpop.f32.mrf.mxu0
    %v8895 = vadd.f32 %v8510, %v8894
    %v8896 = vpop.f32.mrf.mxu0
    %8897 = vmatprep.mubr.f32.mxu0 %v7306
    %8898 = vmatmul.mubr.f32.gmra.mxu0 %v7242
    %v8899 = vpop.f32.mrf.mxu0
    %v8900 = vadd.f32 %v8515, %v8899
    %v8901 = vpop.f32.mrf.mxu0
    %8902 = vmatprep.mubr.f32.mxu0 %v7307
    %8903 = vmatmul.mubr.f32.gmra.mxu0 %v7243
    %v8904 = vpop.f32.mrf.mxu0
    %v8905 = vadd.f32 %v8520, %v8904
    %v8906 = vpop.f32.mrf.mxu0
    %8907 = vmatprep.mubr.f32.mxu0 %v7308
    %8908 = vmatmul.mubr.f32.gmra.mxu0 %v7244
    %v8909 = vpop.f32.mrf.mxu0
    %v8910 = vadd.f32 %v8525, %v8909
    %v8911 = vpop.f32.mrf.mxu0
    %8912 = vdwg.mxu0
    %8913 = vmatprep.subr.mxu0 0.0
    %8914 = vmatpush1.msra.mxu0 %v315
    %8915 = vmatprep.subr.mxu0 0.0
    %8916 = vmatpush1.msra.mxu0 %v314
    %8917 = vmatprep.subr.mxu0 0.0
    %8918 = vmatpush1.msra.mxu0 %v313
    %8919 = vmatprep.subr.mxu0 0.0
    %8920 = vmatpush1.msra.mxu0 %v312
    %8921 = vmatprep.subr.mxu0 0.0
    %8922 = vmatpush1.msra.mxu0 %v311
    %8923 = vmatprep.subr.mxu0 0.0
    %8924 = vmatpush1.msra.mxu0 %v310
    %8925 = vmatprep.subr.mxu0 0.0
    %8926 = vmatpush1.msra.mxu0 %v309
    %8927 = vmatprep.subr.mxu0 0.0
    %8928 = vmatpush1.msra.mxu0 %v308
    %8929 = vmatprep.subr.mxu0 0.0
    %8930 = vmatpush1.msra.mxu0 %v307
    %8931 = vmatprep.subr.mxu0 0.0
    %8932 = vmatpush1.msra.mxu0 %v306
    %8933 = vmatprep.subr.mxu0 0.0
    %8934 = vmatpush1.msra.mxu0 %v305
    %8935 = vmatprep.subr.mxu0 0.0
    %8936 = vmatpush1.msra.mxu0 %v304
    %8937 = vmatprep.subr.mxu0 0.0
    %8938 = vmatpush1.msra.mxu0 %v303
    %8939 = vmatprep.subr.mxu0 0.0
    %8940 = vmatpush1.msra.mxu0 %v302
    %8941 = vmatprep.subr.mxu0 0.0
    %8942 = vmatpush1.msra.mxu0 %v301
    %8943 = vmatprep.subr.mxu0 0.0
    %8944 = vmatpush1.msra.mxu0 %v300
    %8945 = vmatprep.subr.mxu0 0.0
    %8946 = vmatpush2.msra.mxu0 0.0
    %8947 = vmatprep.subr.mxu0 0.0
    %8948 = vmatpush2.msra.mxu0 0.0
    %8949 = vmatprep.subr.mxu0 0.0
    %8950 = vmatpush2.msra.mxu0 0.0
    %8951 = vmatprep.subr.mxu0 0.0
    %8952 = vmatpush2.msra.mxu0 0.0
    %8953 = vmatprep.subr.mxu0 0.0
    %8954 = vmatpush2.msra.mxu0 0.0
    %8955 = vmatprep.subr.mxu0 0.0
    %8956 = vmatpush2.msra.mxu0 0.0
    %8957 = vmatprep.subr.mxu0 0.0
    %8958 = vmatpush2.msra.mxu0 0.0
    %8959 = vmatprep.subr.mxu0 0.0
    %8960 = vmatpush2.msra.mxu0 0.0
    %8961 = vmatprep.subr.mxu0 0.0
    %8962 = vmatpush2.msra.mxu0 0.0
    %8963 = vmatprep.subr.mxu0 0.0
    %8964 = vmatpush2.msra.mxu0 0.0
    %8965 = vmatprep.subr.mxu0 0.0
    %8966 = vmatpush2.msra.mxu0 0.0
    %8967 = vmatprep.subr.mxu0 0.0
    %8968 = vmatpush2.msra.mxu0 0.0
    %8969 = vmatprep.subr.mxu0 0.0
    %8970 = vmatpush2.msra.mxu0 0.0
    %8971 = vmatprep.subr.mxu0 0.0
    %8972 = vmatpush2.msra.mxu0 0.0
    %8973 = vmatprep.subr.mxu0 0.0
    %8974 = vmatpush2.msra.mxu0 0.0
    %8975 = vmatprep.subr.mxu0 0.0
    %8976 = vmatpush2.msra.mxu0 0.0
    %8977 = vmatprep.mubr.f32.mxu0 0.0
    %8978 = vmatmul.mubr.f32.gmra.mxu0 %v7309
    %v8979 = vpop.f32.mrf.mxu0
    %v8980 = vadd.f32 %v8595, %v8979
    %v8981 = vpop.f32.mrf.mxu0
    %8982 = vmatprep.mubr.f32.mxu0 0.0
    %8983 = vmatmul.mubr.f32.gmra.mxu0 %v7310
    %v8984 = vpop.f32.mrf.mxu0
    %v8985 = vadd.f32 %v8600, %v8984
    %v8986 = vpop.f32.mrf.mxu0
    %8987 = vmatprep.mubr.f32.mxu0 0.0
    %8988 = vmatmul.mubr.f32.gmra.mxu0 %v7311
    %v8989 = vpop.f32.mrf.mxu0
    %v8990 = vadd.f32 %v8605, %v8989
    %v8991 = vpop.f32.mrf.mxu0
    %8992 = vmatprep.mubr.f32.mxu0 0.0
    %8993 = vmatmul.mubr.f32.gmra.mxu0 %v7312
    %v8994 = vpop.f32.mrf.mxu0
    %v8995 = vadd.f32 %v8610, %v8994
    %v8996 = vpop.f32.mrf.mxu0
    %8997 = vmatprep.mubr.f32.mxu0 0.0
    %8998 = vmatmul.mubr.f32.gmra.mxu0 %v7313
    %v8999 = vpop.f32.mrf.mxu0
    %v9000 = vadd.f32 %v8615, %v8999
    %v9001 = vpop.f32.mrf.mxu0
    %9002 = vmatprep.mubr.f32.mxu0 0.0
    %9003 = vmatmul.mubr.f32.gmra.mxu0 %v7314
    %v9004 = vpop.f32.mrf.mxu0
    %v9005 = vadd.f32 %v8620, %v9004
    %v9006 = vpop.f32.mrf.mxu0
    %9007 = vmatprep.mubr.f32.mxu0 0.0
    %9008 = vmatmul.mubr.f32.gmra.mxu0 %v7315
    %v9009 = vpop.f32.mrf.mxu0
    %v9010 = vadd.f32 %v8625, %v9009
    %v9011 = vpop.f32.mrf.mxu0
    %9012 = vmatprep.mubr.f32.mxu0 0.0
    %9013 = vmatmul.mubr.f32.gmra.mxu0 %v7316
    %v9014 = vpop.f32.mrf.mxu0
    %v9015 = vadd.f32 %v8630, %v9014
    %v9016 = vpop.f32.mrf.mxu0
    %9017 = vmatprep.mubr.f32.mxu0 0.0
    %9018 = vmatmul.mubr.f32.gmra.mxu0 %v7317
    %v9019 = vpop.f32.mrf.mxu0
    %v9020 = vadd.f32 %v8635, %v9019
    %v9021 = vpop.f32.mrf.mxu0
    %9022 = vmatprep.mubr.f32.mxu0 0.0
    %9023 = vmatmul.mubr.f32.gmra.mxu0 %v7318
    %v9024 = vpop.f32.mrf.mxu0
    %v9025 = vadd.f32 %v8640, %v9024
    %v9026 = vpop.f32.mrf.mxu0
    %9027 = vmatprep.mubr.f32.mxu0 0.0
    %9028 = vmatmul.mubr.f32.gmra.mxu0 %v7319
    %v9029 = vpop.f32.mrf.mxu0
    %v9030 = vadd.f32 %v8645, %v9029
    %v9031 = vpop.f32.mrf.mxu0
    %9032 = vmatprep.mubr.f32.mxu0 0.0
    %9033 = vmatmul.mubr.f32.gmra.mxu0 %v7320
    %v9034 = vpop.f32.mrf.mxu0
    %v9035 = vadd.f32 %v8650, %v9034
    %v9036 = vpop.f32.mrf.mxu0
    %9037 = vmatprep.mubr.f32.mxu0 0.0
    %9038 = vmatmul.mubr.f32.gmra.mxu0 %v7321
    %v9039 = vpop.f32.mrf.mxu0
    %v9040 = vadd.f32 %v8655, %v9039
    %v9041 = vpop.f32.mrf.mxu0
    %9042 = vmatprep.mubr.f32.mxu0 0.0
    %9043 = vmatmul.mubr.f32.gmra.mxu0 %v7322
    %v9044 = vpop.f32.mrf.mxu0
    %v9045 = vadd.f32 %v8660, %v9044
    %v9046 = vpop.f32.mrf.mxu0
    %9047 = vmatprep.mubr.f32.mxu0 0.0
    %9048 = vmatmul.mubr.f32.gmra.mxu0 %v7323
    %v9049 = vpop.f32.mrf.mxu0
    %v9050 = vadd.f32 %v8665, %v9049
    %v9051 = vpop.f32.mrf.mxu0
    %9052 = vmatprep.mubr.f32.mxu0 0.0
    %9053 = vmatmul.mubr.f32.gmra.mxu0 %v7324
    %v9054 = vpop.f32.mrf.mxu0
    %v9055 = vadd.f32 %v8670, %v9054
    %v9056 = vpop.f32.mrf.mxu0
    %9057 = vmatprep.mubr.f32.mxu0 0.0
    %9058 = vmatmul.mubr.f32.gmra.mxu0 %v7325
    %v9059 = vpop.f32.mrf.mxu0
    %v9060 = vadd.f32 %v8675, %v9059
    %v9061 = vpop.f32.mrf.mxu0
    %9062 = vmatprep.mubr.f32.mxu0 0.0
    %9063 = vmatmul.mubr.f32.gmra.mxu0 %v7326
    %v9064 = vpop.f32.mrf.mxu0
    %v9065 = vadd.f32 %v8680, %v9064
    %v9066 = vpop.f32.mrf.mxu0
    %9067 = vmatprep.mubr.f32.mxu0 0.0
    %9068 = vmatmul.mubr.f32.gmra.mxu0 %v7327
    %v9069 = vpop.f32.mrf.mxu0
    %v9070 = vadd.f32 %v8685, %v9069
    %v9071 = vpop.f32.mrf.mxu0
    %9072 = vmatprep.mubr.f32.mxu0 0.0
    %9073 = vmatmul.mubr.f32.gmra.mxu0 %v7328
    %v9074 = vpop.f32.mrf.mxu0
    %v9075 = vadd.f32 %v8690, %v9074
    %v9076 = vpop.f32.mrf.mxu0
    %9077 = vmatprep.mubr.f32.mxu0 0.0
    %9078 = vmatmul.mubr.f32.gmra.mxu0 %v7329
    %v9079 = vpop.f32.mrf.mxu0
    %v9080 = vadd.f32 %v8695, %v9079
    %v9081 = vpop.f32.mrf.mxu0
    %9082 = vmatprep.mubr.f32.mxu0 0.0
    %9083 = vmatmul.mubr.f32.gmra.mxu0 %v7330
    %v9084 = vpop.f32.mrf.mxu0
    %v9085 = vadd.f32 %v8700, %v9084
    %v9086 = vpop.f32.mrf.mxu0
    %9087 = vmatprep.mubr.f32.mxu0 0.0
    %9088 = vmatmul.mubr.f32.gmra.mxu0 %v7331
    %v9089 = vpop.f32.mrf.mxu0
    %v9090 = vadd.f32 %v8705, %v9089
    %v9091 = vpop.f32.mrf.mxu0
    %9092 = vmatprep.mubr.f32.mxu0 0.0
    %9093 = vmatmul.mubr.f32.gmra.mxu0 %v7332
    %v9094 = vpop.f32.mrf.mxu0
    %v9095 = vadd.f32 %v8710, %v9094
    %v9096 = vpop.f32.mrf.mxu0
    %9097 = vmatprep.mubr.f32.mxu0 0.0
    %9098 = vmatmul.mubr.f32.gmra.mxu0 %v7333
    %v9099 = vpop.f32.mrf.mxu0
    %v9100 = vadd.f32 %v8715, %v9099
    %v9101 = vpop.f32.mrf.mxu0
    %9102 = vmatprep.mubr.f32.mxu0 0.0
    %9103 = vmatmul.mubr.f32.gmra.mxu0 %v7334
    %v9104 = vpop.f32.mrf.mxu0
    %v9105 = vadd.f32 %v8720, %v9104
    %v9106 = vpop.f32.mrf.mxu0
    %9107 = vmatprep.mubr.f32.mxu0 0.0
    %9108 = vmatmul.mubr.f32.gmra.mxu0 %v7335
    %v9109 = vpop.f32.mrf.mxu0
    %v9110 = vadd.f32 %v8725, %v9109
    %v9111 = vpop.f32.mrf.mxu0
    %9112 = vmatprep.mubr.f32.mxu0 0.0
    %9113 = vmatmul.mubr.f32.gmra.mxu0 %v7336
    %v9114 = vpop.f32.mrf.mxu0
    %v9115 = vadd.f32 %v8730, %v9114
    %v9116 = vpop.f32.mrf.mxu0
    %9117 = vmatprep.mubr.f32.mxu0 0.0
    %9118 = vmatmul.mubr.f32.gmra.mxu0 %v7337
    %v9119 = vpop.f32.mrf.mxu0
    %v9120 = vadd.f32 %v8735, %v9119
    %v9121 = vpop.f32.mrf.mxu0
    %9122 = vmatprep.mubr.f32.mxu0 0.0
    %9123 = vmatmul.mubr.f32.gmra.mxu0 %v7338
    %v9124 = vpop.f32.mrf.mxu0
    %v9125 = vadd.f32 %v8740, %v9124
    %v9126 = vpop.f32.mrf.mxu0
    %9127 = vmatprep.mubr.f32.mxu0 0.0
    %9128 = vmatmul.mubr.f32.gmra.mxu0 %v7339
    %v9129 = vpop.f32.mrf.mxu0
    %v9130 = vadd.f32 %v8745, %v9129
    %v9131 = vpop.f32.mrf.mxu0
    %9132 = vmatprep.mubr.f32.mxu0 0.0
    %9133 = vmatmul.mubr.f32.gmra.mxu0 %v7340
    %v9134 = vpop.f32.mrf.mxu0
    %v9135 = vadd.f32 %v8750, %v9134
    %v9136 = vpop.f32.mrf.mxu0
    %9137 = vmatprep.mubr.f32.mxu0 0.0
    %9138 = vmatmul.mubr.f32.gmra.mxu0 %v7341
    %v9139 = vpop.f32.mrf.mxu0
    %v9140 = vadd.f32 %v8755, %v9139
    %v9141 = vpop.f32.mrf.mxu0
    %9142 = vmatprep.mubr.f32.mxu0 0.0
    %9143 = vmatmul.mubr.f32.gmra.mxu0 %v7342
    %v9144 = vpop.f32.mrf.mxu0
    %v9145 = vadd.f32 %v8760, %v9144
    %v9146 = vpop.f32.mrf.mxu0
    %9147 = vmatprep.mubr.f32.mxu0 0.0
    %9148 = vmatmul.mubr.f32.gmra.mxu0 %v7343
    %v9149 = vpop.f32.mrf.mxu0
    %v9150 = vadd.f32 %v8765, %v9149
    %v9151 = vpop.f32.mrf.mxu0
    %9152 = vmatprep.mubr.f32.mxu0 0.0
    %9153 = vmatmul.mubr.f32.gmra.mxu0 %v7344
    %v9154 = vpop.f32.mrf.mxu0
    %v9155 = vadd.f32 %v8770, %v9154
    %v9156 = vpop.f32.mrf.mxu0
    %9157 = vmatprep.mubr.f32.mxu0 0.0
    %9158 = vmatmul.mubr.f32.gmra.mxu0 %v7345
    %v9159 = vpop.f32.mrf.mxu0
    %v9160 = vadd.f32 %v8775, %v9159
    %v9161 = vpop.f32.mrf.mxu0
    %9162 = vmatprep.mubr.f32.mxu0 0.0
    %9163 = vmatmul.mubr.f32.gmra.mxu0 %v7346
    %v9164 = vpop.f32.mrf.mxu0
    %v9165 = vadd.f32 %v8780, %v9164
    %v9166 = vpop.f32.mrf.mxu0
    %9167 = vmatprep.mubr.f32.mxu0 0.0
    %9168 = vmatmul.mubr.f32.gmra.mxu0 %v7347
    %v9169 = vpop.f32.mrf.mxu0
    %v9170 = vadd.f32 %v8785, %v9169
    %v9171 = vpop.f32.mrf.mxu0
    %9172 = vmatprep.mubr.f32.mxu0 0.0
    %9173 = vmatmul.mubr.f32.gmra.mxu0 %v7348
    %v9174 = vpop.f32.mrf.mxu0
    %v9175 = vadd.f32 %v8790, %v9174
    %v9176 = vpop.f32.mrf.mxu0
    %9177 = vmatprep.mubr.f32.mxu0 0.0
    %9178 = vmatmul.mubr.f32.gmra.mxu0 %v7349
    %v9179 = vpop.f32.mrf.mxu0
    %v9180 = vadd.f32 %v8795, %v9179
    %v9181 = vpop.f32.mrf.mxu0
    %9182 = vmatprep.mubr.f32.mxu0 0.0
    %9183 = vmatmul.mubr.f32.gmra.mxu0 %v7350
    %v9184 = vpop.f32.mrf.mxu0
    %v9185 = vadd.f32 %v8800, %v9184
    %v9186 = vpop.f32.mrf.mxu0
    %9187 = vmatprep.mubr.f32.mxu0 0.0
    %9188 = vmatmul.mubr.f32.gmra.mxu0 %v7351
    %v9189 = vpop.f32.mrf.mxu0
    %v9190 = vadd.f32 %v8805, %v9189
    %v9191 = vpop.f32.mrf.mxu0
    %9192 = vmatprep.mubr.f32.mxu0 0.0
    %9193 = vmatmul.mubr.f32.gmra.mxu0 %v7352
    %v9194 = vpop.f32.mrf.mxu0
    %v9195 = vadd.f32 %v8810, %v9194
    %v9196 = vpop.f32.mrf.mxu0
    %9197 = vmatprep.mubr.f32.mxu0 0.0
    %9198 = vmatmul.mubr.f32.gmra.mxu0 %v7353
    %v9199 = vpop.f32.mrf.mxu0
    %v9200 = vadd.f32 %v8815, %v9199
    %v9201 = vpop.f32.mrf.mxu0
    %9202 = vmatprep.mubr.f32.mxu0 0.0
    %9203 = vmatmul.mubr.f32.gmra.mxu0 %v7354
    %v9204 = vpop.f32.mrf.mxu0
    %v9205 = vadd.f32 %v8820, %v9204
    %v9206 = vpop.f32.mrf.mxu0
    %9207 = vmatprep.mubr.f32.mxu0 0.0
    %9208 = vmatmul.mubr.f32.gmra.mxu0 %v7355
    %v9209 = vpop.f32.mrf.mxu0
    %v9210 = vadd.f32 %v8825, %v9209
    %v9211 = vpop.f32.mrf.mxu0
    %9212 = vmatprep.mubr.f32.mxu0 0.0
    %9213 = vmatmul.mubr.f32.gmra.mxu0 %v7356
    %v9214 = vpop.f32.mrf.mxu0
    %v9215 = vadd.f32 %v8830, %v9214
    %v9216 = vpop.f32.mrf.mxu0
    %9217 = vmatprep.mubr.f32.mxu0 0.0
    %9218 = vmatmul.mubr.f32.gmra.mxu0 %v7357
    %v9219 = vpop.f32.mrf.mxu0
    %v9220 = vadd.f32 %v8835, %v9219
    %v9221 = vpop.f32.mrf.mxu0
    %9222 = vmatprep.mubr.f32.mxu0 0.0
    %9223 = vmatmul.mubr.f32.gmra.mxu0 %v7358
    %v9224 = vpop.f32.mrf.mxu0
    %v9225 = vadd.f32 %v8840, %v9224
    %v9226 = vpop.f32.mrf.mxu0
    %9227 = vmatprep.mubr.f32.mxu0 0.0
    %9228 = vmatmul.mubr.f32.gmra.mxu0 %v7359
    %v9229 = vpop.f32.mrf.mxu0
    %v9230 = vadd.f32 %v8845, %v9229
    %v9231 = vpop.f32.mrf.mxu0
    %9232 = vmatprep.mubr.f32.mxu0 0.0
    %9233 = vmatmul.mubr.f32.gmra.mxu0 %v7360
    %v9234 = vpop.f32.mrf.mxu0
    %v9235 = vadd.f32 %v8850, %v9234
    %v9236 = vpop.f32.mrf.mxu0
    %9237 = vmatprep.mubr.f32.mxu0 0.0
    %9238 = vmatmul.mubr.f32.gmra.mxu0 %v7361
    %v9239 = vpop.f32.mrf.mxu0
    %v9240 = vadd.f32 %v8855, %v9239
    %v9241 = vpop.f32.mrf.mxu0
    %9242 = vmatprep.mubr.f32.mxu0 0.0
    %9243 = vmatmul.mubr.f32.gmra.mxu0 %v7362
    %v9244 = vpop.f32.mrf.mxu0
    %v9245 = vadd.f32 %v8860, %v9244
    %v9246 = vpop.f32.mrf.mxu0
    %9247 = vmatprep.mubr.f32.mxu0 0.0
    %9248 = vmatmul.mubr.f32.gmra.mxu0 %v7363
    %v9249 = vpop.f32.mrf.mxu0
    %v9250 = vadd.f32 %v8865, %v9249
    %v9251 = vpop.f32.mrf.mxu0
    %9252 = vmatprep.mubr.f32.mxu0 0.0
    %9253 = vmatmul.mubr.f32.gmra.mxu0 %v7364
    %v9254 = vpop.f32.mrf.mxu0
    %v9255 = vadd.f32 %v8870, %v9254
    %v9256 = vpop.f32.mrf.mxu0
    %9257 = vmatprep.mubr.f32.mxu0 0.0
    %9258 = vmatmul.mubr.f32.gmra.mxu0 %v7365
    %v9259 = vpop.f32.mrf.mxu0
    %v9260 = vadd.f32 %v8875, %v9259
    %v9261 = vpop.f32.mrf.mxu0
    %9262 = vmatprep.mubr.f32.mxu0 0.0
    %9263 = vmatmul.mubr.f32.gmra.mxu0 %v7366
    %v9264 = vpop.f32.mrf.mxu0
    %v9265 = vadd.f32 %v8880, %v9264
    %v9266 = vpop.f32.mrf.mxu0
    %9267 = vmatprep.mubr.f32.mxu0 0.0
    %9268 = vmatmul.mubr.f32.gmra.mxu0 %v7367
    %v9269 = vpop.f32.mrf.mxu0
    %v9270 = vadd.f32 %v8885, %v9269
    %v9271 = vpop.f32.mrf.mxu0
    %9272 = vmatprep.mubr.f32.mxu0 0.0
    %9273 = vmatmul.mubr.f32.gmra.mxu0 %v7368
    %v9274 = vpop.f32.mrf.mxu0
    %v9275 = vadd.f32 %v8890, %v9274
    %v9276 = vpop.f32.mrf.mxu0
    %9277 = vmatprep.mubr.f32.mxu0 0.0
    %9278 = vmatmul.mubr.f32.gmra.mxu0 %v7369
    %v9279 = vpop.f32.mrf.mxu0
    %v9280 = vadd.f32 %v8895, %v9279
    %v9281 = vpop.f32.mrf.mxu0
    %9282 = vmatprep.mubr.f32.mxu0 0.0
    %9283 = vmatmul.mubr.f32.gmra.mxu0 %v7370
    %v9284 = vpop.f32.mrf.mxu0
    %v9285 = vadd.f32 %v8900, %v9284
    %v9286 = vpop.f32.mrf.mxu0
    %9287 = vmatprep.mubr.f32.mxu0 0.0
    %9288 = vmatmul.mubr.f32.gmra.mxu0 %v7371
    %v9289 = vpop.f32.mrf.mxu0
    %v9290 = vadd.f32 %v8905, %v9289
    %v9291 = vpop.f32.mrf.mxu0
    %9292 = vmatprep.mubr.f32.mxu0 0.0
    %9293 = vmatmul.mubr.f32.gmra.mxu0 %v7372
    %v9294 = vpop.f32.mrf.mxu0
    %v9295 = vadd.f32 %v8910, %v9294
    %v9296 = vpop.f32.mrf.mxu0
    %9297 = vdwg.mxu0
    %v9298 = vadd.f32 %v8980, %v316
    %v9299 = vadd.f32 %v8985, %v317
    %v9300 = vadd.f32 %v8990, %v318
    %v9301 = vadd.f32 %v8995, %v319
    %v9302 = vadd.f32 %v9000, %v320
    %v9303 = vadd.f32 %v9005, %v321
    %v9304 = vadd.f32 %v9010, %v322
    %v9305 = vadd.f32 %v9015, %v323
    %v9306 = vadd.f32 %v9020, %v324
    %v9307 = vadd.f32 %v9025, %v325
    %v9308 = vadd.f32 %v9030, %v326
    %v9309 = vadd.f32 %v9035, %v327
    %v9310 = vadd.f32 %v9040, %v328
    %v9311 = vadd.f32 %v9045, %v329
    %v9312 = vadd.f32 %v9050, %v330
    %v9313 = vadd.f32 %v9055, %v331
    %v9314 = vadd.f32 %v9060, %v332
    %v9315 = vadd.f32 %v9065, %v333
    %v9316 = vadd.f32 %v9070, %v334
    %v9317 = vadd.f32 %v9075, %v335
    %v9318 = vadd.f32 %v9080, %v336
    %v9319 = vadd.f32 %v9085, %v337
    %v9320 = vadd.f32 %v9090, %v338
    %v9321 = vadd.f32 %v9095, %v339
    %v9322 = vadd.f32 %v9100, %v340
    %v9323 = vadd.f32 %v9105, %v341
    %v9324 = vadd.f32 %v9110, %v342
    %v9325 = vadd.f32 %v9115, %v343
    %v9326 = vadd.f32 %v9120, %v344
    %v9327 = vadd.f32 %v9125, %v345
    %v9328 = vadd.f32 %v9130, %v346
    %v9329 = vadd.f32 %v9135, %v347
    %v9330 = vadd.f32 %v9140, %v348
    %v9331 = vadd.f32 %v9145, %v349
    %v9332 = vadd.f32 %v9150, %v350
    %v9333 = vadd.f32 %v9155, %v351
    %v9334 = vadd.f32 %v9160, %v352
    %v9335 = vadd.f32 %v9165, %v353
    %v9336 = vadd.f32 %v9170, %v354
    %v9337 = vadd.f32 %v9175, %v355
    %v9338 = vadd.f32 %v9180, %v356
    %v9339 = vadd.f32 %v9185, %v357
    %v9340 = vadd.f32 %v9190, %v358
    %v9341 = vadd.f32 %v9195, %v359
    %v9342 = vadd.f32 %v9200, %v360
    %v9343 = vadd.f32 %v9205, %v361
    %v9344 = vadd.f32 %v9210, %v362
    %v9345 = vadd.f32 %v9215, %v363
    %v9346 = vadd.f32 %v9220, %v364
    %v9347 = vadd.f32 %v9225, %v365
    %v9348 = vadd.f32 %v9230, %v366
    %v9349 = vadd.f32 %v9235, %v367
    %v9350 = vadd.f32 %v9240, %v368
    %v9351 = vadd.f32 %v9245, %v369
    %v9352 = vadd.f32 %v9250, %v370
    %v9353 = vadd.f32 %v9255, %v371
    %v9354 = vadd.f32 %v9260, %v372
    %v9355 = vadd.f32 %v9265, %v373
    %v9356 = vadd.f32 %v9270, %v374
    %v9357 = vadd.f32 %v9275, %v375
    %v9358 = vadd.f32 %v9280, %v376
    %v9359 = vadd.f32 %v9285, %v377
    %v9360 = vadd.f32 %v9290, %v378
    %v9361 = vadd.f32 %v9295, %v379
    %9362 = vst [vmem:[#allocation5] sm:$0xff] %v9298
    %9363 = vst [vmem:[#allocation5 + $0x8] sm:$0xff] %v9299
    %9364 = vst [vmem:[#allocation5 + $0x10] sm:$0xff] %v9300
    %9365 = vst [vmem:[#allocation5 + $0x18] sm:$0xff] %v9301
    %9366 = vst [vmem:[#allocation5 + $0x20] sm:$0xff] %v9302
    %9367 = vst [vmem:[#allocation5 + $0x28] sm:$0xff] %v9303
    %9368 = vst [vmem:[#allocation5 + $0x30] sm:$0xff] %v9304
    %9369 = vst [vmem:[#allocation5 + $0x38] sm:$0xff] %v9305
    %9370 = vst [vmem:[#allocation5 + $0x40] sm:$0xff] %v9306
    %9371 = vst [vmem:[#allocation5 + $0x48] sm:$0xff] %v9307
    %9372 = vst [vmem:[#allocation5 + $0x50] sm:$0xff] %v9308
    %9373 = vst [vmem:[#allocation5 + $0x58] sm:$0xff] %v9309
    %9374 = vst [vmem:[#allocation5 + $0x60] sm:$0xff] %v9310
    %9375 = vst [vmem:[#allocation5 + $0x68] sm:$0xff] %v9311
    %9376 = vst [vmem:[#allocation5 + $0x70] sm:$0xff] %v9312
    %9377 = vst [vmem:[#allocation5 + $0x78] sm:$0xff] %v9313
    %9378 = vst [vmem:[#allocation5 + $0x80] sm:$0xff] %v9314
    %9379 = vst [vmem:[#allocation5 + $0x88] sm:$0xff] %v9315
    %9380 = vst [vmem:[#allocation5 + $0x90] sm:$0xff] %v9316
    %9381 = vst [vmem:[#allocation5 + $0x98] sm:$0xff] %v9317
    %9382 = vst [vmem:[#allocation5 + $0xa0] sm:$0xff] %v9318
    %9383 = vst [vmem:[#allocation5 + $0xa8] sm:$0xff] %v9319
    %9384 = vst [vmem:[#allocation5 + $0xb0] sm:$0xff] %v9320
    %9385 = vst [vmem:[#allocation5 + $0xb8] sm:$0xff] %v9321
    %9386 = vst [vmem:[#allocation5 + $0xc0] sm:$0xff] %v9322
    %9387 = vst [vmem:[#allocation5 + $0xc8] sm:$0xff] %v9323
    %9388 = vst [vmem:[#allocation5 + $0xd0] sm:$0xff] %v9324
    %9389 = vst [vmem:[#allocation5 + $0xd8] sm:$0xff] %v9325
    %9390 = vst [vmem:[#allocation5 + $0xe0] sm:$0xff] %v9326
    %9391 = vst [vmem:[#allocation5 + $0xe8] sm:$0xff] %v9327
    %9392 = vst [vmem:[#allocation5 + $0xf0] sm:$0xff] %v9328
    %9393 = vst [vmem:[#allocation5 + $0xf8] sm:$0xff] %v9329
    %9394 = vst [vmem:[#allocation5 + $0x100] sm:$0xff] %v9330
    %9395 = vst [vmem:[#allocation5 + $0x108] sm:$0xff] %v9331
    %9396 = vst [vmem:[#allocation5 + $0x110] sm:$0xff] %v9332
    %9397 = vst [vmem:[#allocation5 + $0x118] sm:$0xff] %v9333
    %9398 = vst [vmem:[#allocation5 + $0x120] sm:$0xff] %v9334
    %9399 = vst [vmem:[#allocation5 + $0x128] sm:$0xff] %v9335
    %9400 = vst [vmem:[#allocation5 + $0x130] sm:$0xff] %v9336
    %9401 = vst [vmem:[#allocation5 + $0x138] sm:$0xff] %v9337
    %9402 = vst [vmem:[#allocation5 + $0x140] sm:$0xff] %v9338
    %9403 = vst [vmem:[#allocation5 + $0x148] sm:$0xff] %v9339
    %9404 = vst [vmem:[#allocation5 + $0x150] sm:$0xff] %v9340
    %9405 = vst [vmem:[#allocation5 + $0x158] sm:$0xff] %v9341
    %9406 = vst [vmem:[#allocation5 + $0x160] sm:$0xff] %v9342
    %9407 = vst [vmem:[#allocation5 + $0x168] sm:$0xff] %v9343
    %9408 = vst [vmem:[#allocation5 + $0x170] sm:$0xff] %v9344
    %9409 = vst [vmem:[#allocation5 + $0x178] sm:$0xff] %v9345
    %9410 = vst [vmem:[#allocation5 + $0x180] sm:$0xff] %v9346
    %9411 = vst [vmem:[#allocation5 + $0x188] sm:$0xff] %v9347
    %9412 = vst [vmem:[#allocation5 + $0x190] sm:$0xff] %v9348
    %9413 = vst [vmem:[#allocation5 + $0x198] sm:$0xff] %v9349
    %9414 = vst [vmem:[#allocation5 + $0x1a0] sm:$0xff] %v9350
    %9415 = vst [vmem:[#allocation5 + $0x1a8] sm:$0xff] %v9351
    %9416 = vst [vmem:[#allocation5 + $0x1b0] sm:$0xff] %v9352
    %9417 = vst [vmem:[#allocation5 + $0x1b8] sm:$0xff] %v9353
    %9418 = vst [vmem:[#allocation5 + $0x1c0] sm:$0xff] %v9354
    %9419 = vst [vmem:[#allocation5 + $0x1c8] sm:$0xff] %v9355
    %9420 = vst [vmem:[#allocation5 + $0x1d0] sm:$0xff] %v9356
    %9421 = vst [vmem:[#allocation5 + $0x1d8] sm:$0xff] %v9357
    %9422 = vst [vmem:[#allocation5 + $0x1e0] sm:$0xff] %v9358
    %9423 = vst [vmem:[#allocation5 + $0x1e8] sm:$0xff] %v9359
    %9424 = vst [vmem:[#allocation5 + $0x1f0] sm:$0xff] %v9360
    %9425 = vst [vmem:[#allocation5 + $0x1f8] sm:$0xff] %v9361
    // Predicated region
    $region34: #{tpu_custom_call.1} parent=1 // pred_check
      _
    $region35: #{tpu_custom_call.1} parent=1 // pred_check_branch
      %9427 = sbr.rel (0) target = $region37
    $region36: #{tpu_custom_call.1} parent=1 // pred_region
      %s9429 = ssub.s32 8192, 8192
      %9430 = vsyncadd [#allocation4], %s9429
      %s9431 = sshll.u32 [#allocation5], 4
      %s9432 = int_to_ptr.vmem [resolvable:$true] %s9431
      %9437 = dma.vmem_to_hbm [thread:$0]  %s9432, 8192, %s7, [#allocation4], 128, 128, 8
    $region37: #{tpu_custom_call.1} parent=1 // pred_fallthru
      _
    // Predicated region
    $region38: #{tpu_custom_call.1} parent=1 // pred_check
      _
    $region39: #{tpu_custom_call.1} parent=1 // pred_check_branch
      %9439 = sbr.rel (0) target = $region41
    $region40: #{tpu_custom_call.1} parent=1 // pred_region
      %9440 = dma.done [#allocation4], 8192
    $region41: #{tpu_custom_call.1} parent=1 // pred_fallthru
      _
    %9441 = vsyncpa [#allocation3], 1
    %9442 = vsyncpa [#allocation4], 1

</llo_original>
